<compile_context>
chip_gen: v5e
topology: v5e:2x2
jax: 0.10.0
libtpu: 0.0.40
codegen_flags: <defaults>
</compile_context>

<pallas_src>
import numpy as np
import jax
import jax.numpy as jnp
from jax import lax
from jax.experimental import pallas as pl
from jax.experimental.pallas import tpu as pltpu

_H = 16
_W = 16
_WP1, _WP2, _WP3, _WP4 = 18, 10, 6, 4                    # padded widths per stage
_P1, _P2, _P3, _P4 = 18 * 18, 10 * 10, 6 * 6, 4 * 4      # padded pixels per image
_G1, _G2, _G3, _G4 = 20, 12, 8, 8                        # guard rows (>= wp+1)


def _fused_kernel(x_ref, w1_ref, w2_ref, w3_ref, w4_ref,
                  wqvk_ref, fc1w_ref, fc2w_ref, vecs_ref,
                  r_ref, rt_ref, selh_ref, negblk_ref, e16_ref, d512_ref,
                  out_ref,
                  xp2, xp3, xp4, y1, y2, y3, y4):
    f32 = jnp.float32
    bt = out_ref.shape[0]

    # Zero the padded/guarded conv-input scratch ONCE: interiors are fully
    # rewritten every step; the 1-pixel borders / guard rows must stay zero.
    # (Scratch persists across grid steps; the grid is sequential.)
    @pl.when(pl.program_id(0) == 0)
    def _init():
        xp2[...] = jnp.zeros_like(xp2)
        xp3[...] = jnp.zeros_like(xp3)
        xp4[...] = jnp.zeros_like(xp4)

    def conv3x3(src_ref, guard, nrows, w_ref, bias, wp):
        # 'same' 3x3 conv on the padded-flat layout: each tap is a plain offset
        # slice of the guarded buffer feeding one (nrows,Cin)x(Cin,Cout) MXU
        # matmul (no window reshapes, no masks).  Rows belonging to per-image
        # padding produce garbage that is simply never read downstream.
        cout = w_ref.shape[2]
        acc = jnp.zeros((nrows, cout), f32)
        for dy in range(3):
            for dx in range(3):
                s = (dy - 1) * wp + (dx - 1)
                xs = src_ref[pl.ds(guard + s, nrows), :]
                acc = acc + jnp.dot(xs, w_ref[dy * 3 + dx],
                                    preferred_element_type=f32)
        return acc + bias

    def pool_into(y_ref, p_src, wp_src, xp_dst, g_dst, p_dst, wp_dst, h2):
        # 2x2 max pool + compaction into the interior of the next padded
        # buffer.  Each (image, output-row) is 4 strided reads + 1 block store;
        # pooled rows are <= 1 vreg each (C <= 64), so bulk roll/max variants
        # would add more vst traffic than they save.
        w2 = wp_dst - 2
        for b in range(bt):
            for r in range(h2):
                s0 = b * p_src + (1 + 2 * r) * wp_src + 1
                s1 = s0 + wp_src
                blk = jnp.maximum(
                    jnp.maximum(y_ref[pl.ds(s0, w2, 2), :],
                                y_ref[pl.ds(s0 + 1, w2, 2), :]),
                    jnp.maximum(y_ref[pl.ds(s1, w2, 2), :],
                                y_ref[pl.ds(s1 + 1, w2, 2), :]))
                dst = g_dst + b * p_dst + (1 + r) * wp_dst + 1
                xp_dst[pl.ds(dst, w2), :] = blk

    # ---- layer 1: conv(3->16) + relu ; pool 2x2 ------------------------------
    # NOTE: `att = self.att1(x)` / `att = self.att2(x)` in the reference are
    # dead code (overwritten before use) and are skipped.
    b1 = vecs_ref[0:1, 0:16]
    y1[...] = jnp.maximum(conv3x3(x_ref, _G1, bt * _P1, w1_ref, b1, _WP1), 0.0)
    pool_into(y1, _P1, _WP1, xp2, _G2, _P2, _WP2, _H // 2)

    # ---- layer 2: conv(16->32) ; x*sigmoid(x) ; BN(eval) ; relu ; pool -------
    b2 = vecs_ref[1:2, 0:32]
    bn1s = vecs_ref[2:3, 0:32]
    bn1t = vecs_ref[3:4, 0:32]
    a2 = conv3x3(xp2, _G2, bt * _P2, w2_ref, b2, _WP2)
    a2 = a2 * jax.nn.sigmoid(a2)
    y2[...] = jnp.maximum(a2 * bn1s + bn1t, 0.0)
    pool_into(y2, _P2, _WP2, xp3, _G3, _P3, _WP3, _H // 4)

    # ---- layer 3: conv(32->64) + relu ; pool ---------------------------------
    b3 = vecs_ref[4:5, 0:64]
    y3[...] = jnp.maximum(conv3x3(xp3, _G3, bt * _P3, w3_ref, b3, _WP3), 0.0)
    pool_into(y3, _P3, _WP3, xp4, _G4, _P4, _WP4, _H // 8)

    # ---- layer 4: conv(64->128) ; silu ; BN ; relu ; pool(->1x1) ; GAP(id) ---
    b4 = vecs_ref[5:6, 0:128]
    bn2s = vecs_ref[6:7, 0:128]
    bn2t = vecs_ref[7:8, 0:128]
    a4 = conv3x3(xp4, _G4, bt * _P4, w4_ref, b4, _WP4)
    a4 = a4 * jax.nn.sigmoid(a4)
    y4[...] = jnp.maximum(a4 * bn2s + bn2t, 0.0)
    # 2x2 map -> 1x1 max pool (rows 5,6,9,10 of each image's 4x4 padded block);
    # AdaptiveAvgPool2d(1) of a 1x1 map is the identity.
    pooled = jnp.maximum(
        jnp.maximum(y4[pl.ds(5, bt, 16), :], y4[pl.ds(6, bt, 16), :]),
        jnp.maximum(y4[pl.ds(9, bt, 16), :], y4[pl.ds(10, bt, 16), :]))  # (Bt,128)

    # ---- attention head over the per-image (32, 4) view ----------------------
    # All selection matrices are precomputed on the host (hoisted constants).
    # rep[b*32+i,:] = pooled[b,:]; selh keeps only channels 4i..4i+3 per row, so
    # m @ tiled-(128,48) weights == reshape(pooled,(32,4)) through the Q/V/K
    # Linear layers without any lane<->sublane reshape.  The column order of
    # wqvk bakes in the reference's k = self.V(x), v = self.K(x) swap.
    rep = jnp.dot(r_ref[...], pooled, preferred_element_type=f32)      # (Bt*32,128)
    m = rep * selh_ref[...]
    qkv = jnp.dot(m, wqvk_ref[...], preferred_element_type=f32) + vecs_ref[8:9, 0:48]
    q = qkv[:, 0:16]
    k = qkv[:, 16:32]
    v = qkv[:, 32:48]
    s = lax.dot_general(q, k, (((1,), (1,)), ((), ())),
                        preferred_element_type=f32) * 0.25             # / sqrt(16)
    s = s + negblk_ref[...]                 # -1e9 outside each image's 32x32 block
    s = s - jnp.max(s, axis=-1, keepdims=True)
    e = jnp.exp(s)
    p_att = e * pl.reciprocal(jnp.sum(e, axis=-1, keepdims=True), approx=True)
    o = jnp.dot(p_att, v, preferred_element_type=f32)                  # (Bt*32,16)

    # ---- flatten to a lane-dense (Bt, 512) slab, then real fc1/fc2 matmuls ---
    o_rep = jnp.dot(o, e16_ref[...], preferred_element_type=f32) * d512_ref[...]
    o_flat = jnp.dot(rt_ref[...], o_rep, preferred_element_type=f32)   # (Bt,512)
    h = jnp.maximum(
        jnp.dot(o_flat, fc1w_ref[...], preferred_element_type=f32)
        + vecs_ref[9:10, 0:32], 0.0)
    # TODO(synk): nn.Dropout(p=0.25) is identity in eval mode; no RNG applied.
    out_ref[...] = (jnp.dot(h, fc2w_ref[...], preferred_element_type=f32)
                    + vecs_ref[10:11, 0:3])


@jax.jit
def forward(params, x_nchw):
    p = params
    B = x_nchw.shape[0]
    assert x_nchw.shape[1:] == (3, _H, _W)
    # Batch tile: even, <= 8 (keeps per-step VMEM well under every generation's
    # scoped limit; raise vmem_limit_bytes before pushing Bt much higher).
    Bt = B + (B % 2) if B <= 8 else 8
    Bp = ((B + Bt - 1) // Bt) * Bt
    n_steps = Bp // Bt

    # NCHW -> NHWC, zero-pad spatially ('same' conv halo) and flatten to the
    # (rows=(b,y,x), lanes=C) layout used inside the kernel, with _G1 guard
    # rows around each batch tile so every tap is a plain offset slice.
    x = jnp.transpose(x_nchw, (0, 2, 3, 1)).astype(jnp.float32)
    x = jnp.pad(x, ((0, Bp - B), (1, 1), (1, 1), (0, 0)))
    x = x.reshape(n_steps, Bt * _P1, 3)
    x = jnp.pad(x, ((0, 0), (_G1, _G1), (0, 0)))
    x_flat = x.reshape(n_steps * (Bt * _P1 + 2 * _G1), 3)

    # Q/V/K Linear(4,16) weights pre-tiled to (128,48): row c maps to W[c % 4].
    wqvk = jnp.tile(jnp.concatenate([p["wq"], p["wv"], p["wk"]], axis=1), (32, 1))

    def row128(v):
        v = jnp.asarray(v, jnp.float32).reshape(1, -1)
        return jnp.pad(v, ((0, 0), (0, 128 - v.shape[1])))

    vecs = jnp.concatenate(
        [row128(p["b1"]), row128(p["b2"]), row128(p["bn1_scale"]),
         row128(p["bn1_shift"]), row128(p["b3"]), row128(p["b4"]),
         row128(p["bn2_scale"]), row128(p["bn2_shift"]),
         row128(jnp.concatenate([p["bq"], p["bv"], p["bk"]])),
         row128(p["fc1_b"]), row128(p["fc2_b"]),
         jnp.zeros((5, 128), jnp.float32)], axis=0)                    # (16,128)

    # Constant selection/mask matrices of the attention + fc head (hoisted out
    # of the kernel body; JAX does not CSE broadcast_in_dim).
    si = np.arange(Bt * 32)
    r_mat = (si[:, None] // 32 == np.arange(Bt)[None, :]).astype(np.float32)
    rt_mat = np.ascontiguousarray(r_mat.T)
    selh = (np.arange(128)[None, :] // 4 == (si % 32)[:, None]).astype(np.float32)
    negblk = np.where(si[:, None] // 32 == si[None, :] // 32,
                      0.0, -1e9).astype(np.float32)
    e16 = (np.arange(512)[None, :] % 16 ==
           np.arange(16)[:, None]).astype(np.float32)
    d512 = (np.arange(512)[None, :] // 16 == (si % 32)[:, None]).astype(np.float32)

    consts = (p["w1"], p["w2"], p["w3"], p["w4"], wqvk, p["fc1_w"], p["fc2_w"],
              vecs, jnp.asarray(r_mat), jnp.asarray(rt_mat), jnp.asarray(selh),
              jnp.asarray(negblk), jnp.asarray(e16), jnp.asarray(d512))

    def rep_spec(a):
        return pl.BlockSpec(a.shape, lambda i, n=a.ndim: (0,) * n)

    out = pl.pallas_call(
        _fused_kernel,
        out_shape=jax.ShapeDtypeStruct((Bp, 3), jnp.float32),
        grid=(n_steps,),
        in_specs=[pl.BlockSpec((Bt * _P1 + 2 * _G1, 3), lambda i: (i, 0))]
                 + [rep_spec(a) for a in consts],
        out_specs=pl.BlockSpec((Bt, 3), lambda i: (i, 0)),
        scratch_shapes=[
            pltpu.VMEM((Bt * _P2 + 2 * _G2, 16), jnp.float32),   # xp2 (padded in)
            pltpu.VMEM((Bt * _P3 + 2 * _G3, 32), jnp.float32),   # xp3
            pltpu.VMEM((Bt * _P4 + 2 * _G4, 64), jnp.float32),   # xp4
            pltpu.VMEM((Bt * _P1, 16), jnp.float32),             # y1 (conv1 out)
            pltpu.VMEM((Bt * _P2, 32), jnp.float32),             # y2
            pltpu.VMEM((Bt * _P3, 64), jnp.float32),             # y3
            pltpu.VMEM((Bt * _P4, 128), jnp.float32),            # y4
        ],
        # Sequential grid so the one-time scratch zeroing at program_id == 0 is
        # valid on multi-TensorCore parts too (grid is 1 step for small batches
        # anyway once Bt images are packed per step).
        compiler_params=pltpu.CompilerParams(
            dimension_semantics=("arbitrary",)),
    )(x_flat, *consts)
    return out[:B]


def init_params(key):
    ks = jax.random.split(key, 18)

    def conv_w(k, cin, cout):
        w = jax.random.normal(k, (3, 3, cin, cout), jnp.float32) / np.sqrt(9 * cin)
        return w.reshape(9, cin, cout)              # tap-major (9, Cin, Cout)

    def vec(k, n):
        return jax.random.normal(k, (n,), jnp.float32) * 0.01

    def lin_w(k, fin, fout):
        return jax.random.normal(k, (fin, fout), jnp.float32) / np.sqrt(fin)

    eps = 1e-5
    return {
        "w1": conv_w(ks[0], 3, 16),    "b1": vec(ks[1], 16),
        "w2": conv_w(ks[2], 16, 32),   "b2": vec(ks[3], 32),
        "w3": conv_w(ks[4], 32, 64),   "b3": vec(ks[5], 64),
        "w4": conv_w(ks[6], 64, 128),  "b4": vec(ks[7], 128),
        # BatchNorm2d eval mode with default running stats (gamma=1, beta=0,
        # mean=0, var=1) pre-folded to an affine scale/shift.
        "bn1_scale": jnp.full((32,), 1.0 / np.sqrt(1.0 + eps), jnp.float32),
        "bn1_shift": jnp.zeros((32,), jnp.float32),
        "bn2_scale": jnp.full((128,), 1.0 / np.sqrt(1.0 + eps), jnp.float32),
        "bn2_shift": jnp.zeros((128,), jnp.float32),
        "wq": lin_w(ks[8], 4, 16),   "bq": vec(ks[9], 16),
        "wk": lin_w(ks[10], 4, 16),  "bk": vec(ks[11], 16),
        "wv": lin_w(ks[12], 4, 16),  "bv": vec(ks[13], 16),
        "fc1_w": lin_w(ks[14], 512, 32), "fc1_b": vec(ks[15], 32),
        "fc2_w": lin_w(ks[16], 32, 3),   "fc2_b": vec(ks[17], 3),
    }


# Pure-JAX reference (no Pallas) for correctness comparison.
def reference_forward(params, x_nchw):
    p = params
    x = jnp.transpose(x_nchw, (0, 2, 3, 1)).astype(jnp.float32)

    def conv(x, w9, b):
        cin, cout = w9.shape[1], w9.shape[2]
        w = w9.reshape(3, 3, cin, cout)
        y = lax.conv_general_dilated(x, w, (1, 1), "SAME",
                                     dimension_numbers=("NHWC", "HWIO", "NHWC"))
        return y + b.reshape(1, 1, 1, cout)

    def pool(x):
        B, H, W, C = x.shape
        return x.reshape(B, H // 2, 2, W // 2, 2, C).max(axis=(2, 4))

    x = pool(jax.nn.relu(conv(x, p["w1"], p["b1"])))
    y = conv(x, p["w2"], p["b2"]); y = y * jax.nn.sigmoid(y)
    x = pool(jax.nn.relu(y * p["bn1_scale"] + p["bn1_shift"]))
    x = pool(jax.nn.relu(conv(x, p["w3"], p["b3"])))
    y = conv(x, p["w4"], p["b4"]); y = y * jax.nn.sigmoid(y)
    x = pool(jax.nn.relu(y * p["bn2_scale"] + p["bn2_shift"]))
    x = x.mean(axis=(1, 2))                               # (B,128); GAP over 1x1

    X = x.reshape(-1, 32, 4)
    q = X @ p["wq"] + p["bq"]
    k = X @ p["wv"] + p["bv"]          # k = self.V(x) in the reference module
    v = X @ p["wk"] + p["bk"]          # v = self.K(x)
    s = jnp.einsum("bik,bjk->bij", q, k) / np.sqrt(16.0)
    s = jax.nn.softmax(s, axis=-1)
    o = jnp.einsum("bij,bjk->bik", s, v)
    flat = o.reshape(-1, 32 * 16)
    h = jax.nn.relu(flat @ p["fc1_w"] + p["fc1_b"])
    return h @ p["fc2_w"] + p["fc2_b"]


if __name__ == "__main__":
    key = jax.random.PRNGKey(0)
    pkey, xkey = jax.random.split(key)
    params = init_params(pkey)
    x = jax.random.normal(xkey, (2, 3, 16, 16), jnp.float32)   # NCHW, like PyTorch

    out = jax.block_until_ready(forward(params, x))
    assert out.shape == (2, 3)

    ref = np.asarray(jax.jit(reference_forward)(params, x))
    diff = float(np.max(np.abs(np.asarray(out) - ref)))
    assert np.allclose(np.asarray(out), ref, atol=2e-2, rtol=2e-2), (
        f"max abs diff {diff}")
    print("KERNEL_OK")
</pallas_src>

<mosaic_0001>
module attributes {stable_mosaic.version = 11 : i64} {
  func.func @_fused_kernel(%arg0: i32, %arg1: memref<688x3xf32, #tpu.memory_space<vmem>>, %arg2: memref<9x3x16xf32, #tpu.memory_space<vmem>>, %arg3: memref<9x16x32xf32, #tpu.memory_space<vmem>>, %arg4: memref<9x32x64xf32, #tpu.memory_space<vmem>>, %arg5: memref<9x64x128xf32, #tpu.memory_space<vmem>>, %arg6: memref<128x48xf32, #tpu.memory_space<vmem>>, %arg7: memref<512x32xf32, #tpu.memory_space<vmem>>, %arg8: memref<32x3xf32, #tpu.memory_space<vmem>>, %arg9: memref<16x128xf32, #tpu.memory_space<vmem>>, %arg10: memref<64x2xf32, #tpu.memory_space<vmem>>, %arg11: memref<2x64xf32, #tpu.memory_space<vmem>>, %arg12: memref<64x128xf32, #tpu.memory_space<vmem>>, %arg13: memref<64x64xf32, #tpu.memory_space<vmem>>, %arg14: memref<16x512xf32, #tpu.memory_space<vmem>>, %arg15: memref<64x512xf32, #tpu.memory_space<vmem>>, %arg16: memref<2x3xf32, #tpu.memory_space<vmem>>, %arg17: memref<224x16xf32, #tpu.memory_space<vmem>>, %arg18: memref<88x32xf32, #tpu.memory_space<vmem>>, %arg19: memref<48x64xf32, #tpu.memory_space<vmem>>, %arg20: memref<648x16xf32, #tpu.memory_space<vmem>>, %arg21: memref<200x32xf32, #tpu.memory_space<vmem>>, %arg22: memref<72x64xf32, #tpu.memory_space<vmem>>, %arg23: memref<32x128xf32, #tpu.memory_space<vmem>>) attributes {dimension_semantics = [#tpu.dimension_semantics<arbitrary>], iteration_bounds = array<i64: 1>, scalar_prefetch = 0 : i64, scratch_operands = 7 : i64, tpu.core_type = #tpu.core_type<tc>, window_params = [{transform_indices = @transform_0, window_bounds = array<i64: 688, 3>}, {pipeline_mode = #tpu.pipeline_mode<synchronous>, transform_indices = @transform_1, window_bounds = array<i64: 9, 3, 16>}, {pipeline_mode = #tpu.pipeline_mode<synchronous>, transform_indices = @transform_2, window_bounds = array<i64: 9, 16, 32>}, {pipeline_mode = #tpu.pipeline_mode<synchronous>, transform_indices = @transform_3, window_bounds = array<i64: 9, 32, 64>}, {pipeline_mode = #tpu.pipeline_mode<synchronous>, transform_indices = @transform_4, window_bounds = array<i64: 9, 64, 128>}, {pipeline_mode = #tpu.pipeline_mode<synchronous>, transform_indices = @transform_5, window_bounds = array<i64: 128, 48>}, {pipeline_mode = #tpu.pipeline_mode<synchronous>, transform_indices = @transform_6, window_bounds = array<i64: 512, 32>}, {pipeline_mode = #tpu.pipeline_mode<synchronous>, transform_indices = @transform_7, window_bounds = array<i64: 32, 3>}, {pipeline_mode = #tpu.pipeline_mode<synchronous>, transform_indices = @transform_8, window_bounds = array<i64: 16, 128>}, {pipeline_mode = #tpu.pipeline_mode<synchronous>, transform_indices = @transform_9, window_bounds = array<i64: 64, 2>}, {pipeline_mode = #tpu.pipeline_mode<synchronous>, transform_indices = @transform_10, window_bounds = array<i64: 2, 64>}, {pipeline_mode = #tpu.pipeline_mode<synchronous>, transform_indices = @transform_11, window_bounds = array<i64: 64, 128>}, {pipeline_mode = #tpu.pipeline_mode<synchronous>, transform_indices = @transform_12, window_bounds = array<i64: 64, 64>}, {pipeline_mode = #tpu.pipeline_mode<synchronous>, transform_indices = @transform_13, window_bounds = array<i64: 16, 512>}, {pipeline_mode = #tpu.pipeline_mode<synchronous>, transform_indices = @transform_14, window_bounds = array<i64: 64, 512>}, {transform_indices = @transform_15, window_bounds = array<i64: 2, 3>}]} {
    %c0_i32 = arith.constant 0 : i32
    %0 = arith.cmpi eq, %arg0, %c0_i32 : i32
    %1 = arith.extui %0 : i1 to i32
    %c0_i32_0 = arith.constant 0 : i32
    %2 = arith.cmpi ne, %1, %c0_i32_0 : i32
    scf.if %2 {
      %cst_443 = arith.constant 0.000000e+00 : f32
      %513 = vector.broadcast %cst_443 : f32 to vector<224x16xf32>
      %c0_444 = arith.constant 0 : index
      %c0_445 = arith.constant 0 : index
      %514 = vector.load %arg17[%c0_444, %c0_445] : memref<224x16xf32, #tpu.memory_space<vmem>>, vector<224x16xf32>
      tpu.vector_store %arg17[%c0_444, %c0_445], %513 {strides = array<i32>} : memref<224x16xf32, #tpu.memory_space<vmem>>, vector<224x16xf32>,
      %cst_446 = arith.constant 0.000000e+00 : f32
      %515 = vector.broadcast %cst_446 : f32 to vector<88x32xf32>
      %c0_447 = arith.constant 0 : index
      %c0_448 = arith.constant 0 : index
      %516 = vector.load %arg18[%c0_447, %c0_448] : memref<88x32xf32, #tpu.memory_space<vmem>>, vector<88x32xf32>
      tpu.vector_store %arg18[%c0_447, %c0_448], %515 {strides = array<i32>} : memref<88x32xf32, #tpu.memory_space<vmem>>, vector<88x32xf32>,
      %cst_449 = arith.constant 0.000000e+00 : f32
      %517 = vector.broadcast %cst_449 : f32 to vector<48x64xf32>
      %c0_450 = arith.constant 0 : index
      %c0_451 = arith.constant 0 : index
      %518 = vector.load %arg19[%c0_450, %c0_451] : memref<48x64xf32, #tpu.memory_space<vmem>>, vector<48x64xf32>
      tpu.vector_store %arg19[%c0_450, %c0_451], %517 {strides = array<i32>} : memref<48x64xf32, #tpu.memory_space<vmem>>, vector<48x64xf32>,
    } else {
    }
    %c0 = arith.constant 0 : index
    %c0_1 = arith.constant 0 : index
    %3 = vector.load %arg9[%c0, %c0_1] : memref<16x128xf32, #tpu.memory_space<vmem>>, vector<1x16xf32>
    %cst = arith.constant 0.000000e+00 : f32
    %4 = vector.broadcast %cst : f32 to vector<648x16xf32>
    %c1 = arith.constant 1 : index
    %c0_2 = arith.constant 0 : index
    %5 = vector.load %arg1[%c1, %c0_2] : memref<688x3xf32, #tpu.memory_space<vmem>>, vector<648x3xf32>
    %c0_3 = arith.constant 0 : index
    %c0_4 = arith.constant 0 : index
    %c0_5 = arith.constant 0 : index
    %6 = vector.load %arg2[%c0_3, %c0_4, %c0_5] : memref<9x3x16xf32, #tpu.memory_space<vmem>>, vector<1x3x16xf32>
    %7 = vector.shape_cast %6 : vector<1x3x16xf32> to vector<3x16xf32>
    %cst_6 = arith.constant dense<0.000000e+00> : vector<648x16xf32>
    %8 = tpu.matmul %5, %7, %cst_6 {dimension_numbers = #tpu.dot_dimension_numbers<[1], [0], [0], [1], [0, 0, 1, 1], [], []>} : vector<648x3xf32>, vector<3x16xf32>, vector<648x16xf32> -> vector<648x16xf32>
    %9 = arith.addf %4, %8 : vector<648x16xf32>
    %c2 = arith.constant 2 : index
    %c0_7 = arith.constant 0 : index
    %10 = vector.load %arg1[%c2, %c0_7] : memref<688x3xf32, #tpu.memory_space<vmem>>, vector<648x3xf32>
    %c1_8 = arith.constant 1 : index
    %c0_9 = arith.constant 0 : index
    %c0_10 = arith.constant 0 : index
    %11 = vector.load %arg2[%c1_8, %c0_9, %c0_10] : memref<9x3x16xf32, #tpu.memory_space<vmem>>, vector<1x3x16xf32>
    %12 = vector.shape_cast %11 : vector<1x3x16xf32> to vector<3x16xf32>
    %cst_11 = arith.constant dense<0.000000e+00> : vector<648x16xf32>
    %13 = tpu.matmul %10, %12, %cst_11 {dimension_numbers = #tpu.dot_dimension_numbers<[1], [0], [0], [1], [0, 0, 1, 1], [], []>} : vector<648x3xf32>, vector<3x16xf32>, vector<648x16xf32> -> vector<648x16xf32>
    %14 = arith.addf %9, %13 : vector<648x16xf32>
    %c3 = arith.constant 3 : index
    %c0_12 = arith.constant 0 : index
    %15 = vector.load %arg1[%c3, %c0_12] : memref<688x3xf32, #tpu.memory_space<vmem>>, vector<648x3xf32>
    %c2_13 = arith.constant 2 : index
    %c0_14 = arith.constant 0 : index
    %c0_15 = arith.constant 0 : index
    %16 = vector.load %arg2[%c2_13, %c0_14, %c0_15] : memref<9x3x16xf32, #tpu.memory_space<vmem>>, vector<1x3x16xf32>
    %17 = vector.shape_cast %16 : vector<1x3x16xf32> to vector<3x16xf32>
    %cst_16 = arith.constant dense<0.000000e+00> : vector<648x16xf32>
    %18 = tpu.matmul %15, %17, %cst_16 {dimension_numbers = #tpu.dot_dimension_numbers<[1], [0], [0], [1], [0, 0, 1, 1], [], []>} : vector<648x3xf32>, vector<3x16xf32>, vector<648x16xf32> -> vector<648x16xf32>
    %19 = arith.addf %14, %18 : vector<648x16xf32>
    %c19 = arith.constant 19 : index
    %c0_17 = arith.constant 0 : index
    %20 = vector.load %arg1[%c19, %c0_17] : memref<688x3xf32, #tpu.memory_space<vmem>>, vector<648x3xf32>
    %c3_18 = arith.constant 3 : index
    %c0_19 = arith.constant 0 : index
    %c0_20 = arith.constant 0 : index
    %21 = vector.load %arg2[%c3_18, %c0_19, %c0_20] : memref<9x3x16xf32, #tpu.memory_space<vmem>>, vector<1x3x16xf32>
    %22 = vector.shape_cast %21 : vector<1x3x16xf32> to vector<3x16xf32>
    %cst_21 = arith.constant dense<0.000000e+00> : vector<648x16xf32>
    %23 = tpu.matmul %20, %22, %cst_21 {dimension_numbers = #tpu.dot_dimension_numbers<[1], [0], [0], [1], [0, 0, 1, 1], [], []>} : vector<648x3xf32>, vector<3x16xf32>, vector<648x16xf32> -> vector<648x16xf32>
    %24 = arith.addf %19, %23 : vector<648x16xf32>
    %c20 = arith.constant 20 : index
    %c0_22 = arith.constant 0 : index
    %25 = vector.load %arg1[%c20, %c0_22] : memref<688x3xf32, #tpu.memory_space<vmem>>, vector<648x3xf32>
    %c4 = arith.constant 4 : index
    %c0_23 = arith.constant 0 : index
    %c0_24 = arith.constant 0 : index
    %26 = vector.load %arg2[%c4, %c0_23, %c0_24] : memref<9x3x16xf32, #tpu.memory_space<vmem>>, vector<1x3x16xf32>
    %27 = vector.shape_cast %26 : vector<1x3x16xf32> to vector<3x16xf32>
    %cst_25 = arith.constant dense<0.000000e+00> : vector<648x16xf32>
    %28 = tpu.matmul %25, %27, %cst_25 {dimension_numbers = #tpu.dot_dimension_numbers<[1], [0], [0], [1], [0, 0, 1, 1], [], []>} : vector<648x3xf32>, vector<3x16xf32>, vector<648x16xf32> -> vector<648x16xf32>
    %29 = arith.addf %24, %28 : vector<648x16xf32>
    %c21 = arith.constant 21 : index
    %c0_26 = arith.constant 0 : index
    %30 = vector.load %arg1[%c21, %c0_26] : memref<688x3xf32, #tpu.memory_space<vmem>>, vector<648x3xf32>
    %c5 = arith.constant 5 : index
    %c0_27 = arith.constant 0 : index
    %c0_28 = arith.constant 0 : index
    %31 = vector.load %arg2[%c5, %c0_27, %c0_28] : memref<9x3x16xf32, #tpu.memory_space<vmem>>, vector<1x3x16xf32>
    %32 = vector.shape_cast %31 : vector<1x3x16xf32> to vector<3x16xf32>
    %cst_29 = arith.constant dense<0.000000e+00> : vector<648x16xf32>
    %33 = tpu.matmul %30, %32, %cst_29 {dimension_numbers = #tpu.dot_dimension_numbers<[1], [0], [0], [1], [0, 0, 1, 1], [], []>} : vector<648x3xf32>, vector<3x16xf32>, vector<648x16xf32> -> vector<648x16xf32>
    %34 = arith.addf %29, %33 : vector<648x16xf32>
    %c37 = arith.constant 37 : index
    %c0_30 = arith.constant 0 : index
    %35 = vector.load %arg1[%c37, %c0_30] : memref<688x3xf32, #tpu.memory_space<vmem>>, vector<648x3xf32>
    %c6 = arith.constant 6 : index
    %c0_31 = arith.constant 0 : index
    %c0_32 = arith.constant 0 : index
    %36 = vector.load %arg2[%c6, %c0_31, %c0_32] : memref<9x3x16xf32, #tpu.memory_space<vmem>>, vector<1x3x16xf32>
    %37 = vector.shape_cast %36 : vector<1x3x16xf32> to vector<3x16xf32>
    %cst_33 = arith.constant dense<0.000000e+00> : vector<648x16xf32>
    %38 = tpu.matmul %35, %37, %cst_33 {dimension_numbers = #tpu.dot_dimension_numbers<[1], [0], [0], [1], [0, 0, 1, 1], [], []>} : vector<648x3xf32>, vector<3x16xf32>, vector<648x16xf32> -> vector<648x16xf32>
    %39 = arith.addf %34, %38 : vector<648x16xf32>
    %c38 = arith.constant 38 : index
    %c0_34 = arith.constant 0 : index
    %40 = vector.load %arg1[%c38, %c0_34] : memref<688x3xf32, #tpu.memory_space<vmem>>, vector<648x3xf32>
    %c7 = arith.constant 7 : index
    %c0_35 = arith.constant 0 : index
    %c0_36 = arith.constant 0 : index
    %41 = vector.load %arg2[%c7, %c0_35, %c0_36] : memref<9x3x16xf32, #tpu.memory_space<vmem>>, vector<1x3x16xf32>
    %42 = vector.shape_cast %41 : vector<1x3x16xf32> to vector<3x16xf32>
    %cst_37 = arith.constant dense<0.000000e+00> : vector<648x16xf32>
    %43 = tpu.matmul %40, %42, %cst_37 {dimension_numbers = #tpu.dot_dimension_numbers<[1], [0], [0], [1], [0, 0, 1, 1], [], []>} : vector<648x3xf32>, vector<3x16xf32>, vector<648x16xf32> -> vector<648x16xf32>
    %44 = arith.addf %39, %43 : vector<648x16xf32>
    %c39 = arith.constant 39 : index
    %c0_38 = arith.constant 0 : index
    %45 = vector.load %arg1[%c39, %c0_38] : memref<688x3xf32, #tpu.memory_space<vmem>>, vector<648x3xf32>
    %c8 = arith.constant 8 : index
    %c0_39 = arith.constant 0 : index
    %c0_40 = arith.constant 0 : index
    %46 = vector.load %arg2[%c8, %c0_39, %c0_40] : memref<9x3x16xf32, #tpu.memory_space<vmem>>, vector<1x3x16xf32>
    %47 = vector.shape_cast %46 : vector<1x3x16xf32> to vector<3x16xf32>
    %cst_41 = arith.constant dense<0.000000e+00> : vector<648x16xf32>
    %48 = tpu.matmul %45, %47, %cst_41 {dimension_numbers = #tpu.dot_dimension_numbers<[1], [0], [0], [1], [0, 0, 1, 1], [], []>} : vector<648x3xf32>, vector<3x16xf32>, vector<648x16xf32> -> vector<648x16xf32>
    %49 = arith.addf %44, %48 : vector<648x16xf32>
    %50 = vector.broadcast %3 : vector<1x16xf32> to vector<648x16xf32>
    %51 = arith.addf %49, %50 : vector<648x16xf32>
    %cst_42 = arith.constant 0.000000e+00 : f32
    %52 = vector.broadcast %cst_42 : f32 to vector<648x16xf32>
    %53 = arith.maximumf %51, %52 : vector<648x16xf32>
    %c0_43 = arith.constant 0 : index
    %c0_44 = arith.constant 0 : index
    %54 = vector.load %arg20[%c0_43, %c0_44] : memref<648x16xf32, #tpu.memory_space<vmem>>, vector<648x16xf32>
    tpu.vector_store %arg20[%c0_43, %c0_44], %53 {strides = array<i32>} : memref<648x16xf32, #tpu.memory_space<vmem>>, vector<648x16xf32>,
    %c19_45 = arith.constant 19 : index
    %c0_46 = arith.constant 0 : index
    %55 = tpu.strided_load %arg20[%c19_45, %c0_46] {strides = array<i32: 2, 1>} : memref<648x16xf32, #tpu.memory_space<vmem>>, vector<8x16xf32>
    %c20_47 = arith.constant 20 : index
    %c0_48 = arith.constant 0 : index
    %56 = tpu.strided_load %arg20[%c20_47, %c0_48] {strides = array<i32: 2, 1>} : memref<648x16xf32, #tpu.memory_space<vmem>>, vector<8x16xf32>
    %57 = arith.maximumf %55, %56 : vector<8x16xf32>
    %c37_49 = arith.constant 37 : index
    %c0_50 = arith.constant 0 : index
    %58 = tpu.strided_load %arg20[%c37_49, %c0_50] {strides = array<i32: 2, 1>} : memref<648x16xf32, #tpu.memory_space<vmem>>, vector<8x16xf32>
    %c38_51 = arith.constant 38 : index
    %c0_52 = arith.constant 0 : index
    %59 = tpu.strided_load %arg20[%c38_51, %c0_52] {strides = array<i32: 2, 1>} : memref<648x16xf32, #tpu.memory_space<vmem>>, vector<8x16xf32>
    %60 = arith.maximumf %58, %59 : vector<8x16xf32>
    %61 = arith.maximumf %57, %60 : vector<8x16xf32>
    %c23 = arith.constant 23 : index
    %c0_53 = arith.constant 0 : index
    %62 = vector.load %arg17[%c23, %c0_53] : memref<224x16xf32, #tpu.memory_space<vmem>>, vector<8x16xf32>
    tpu.vector_store %arg17[%c23, %c0_53], %61 {strides = array<i32>} : memref<224x16xf32, #tpu.memory_space<vmem>>, vector<8x16xf32>,
    %c55 = arith.constant 55 : index
    %c0_54 = arith.constant 0 : index
    %63 = tpu.strided_load %arg20[%c55, %c0_54] {strides = array<i32: 2, 1>} : memref<648x16xf32, #tpu.memory_space<vmem>>, vector<8x16xf32>
    %c56 = arith.constant 56 : index
    %c0_55 = arith.constant 0 : index
    %64 = tpu.strided_load %arg20[%c56, %c0_55] {strides = array<i32: 2, 1>} : memref<648x16xf32, #tpu.memory_space<vmem>>, vector<8x16xf32>
    %65 = arith.maximumf %63, %64 : vector<8x16xf32>
    %c73 = arith.constant 73 : index
    %c0_56 = arith.constant 0 : index
    %66 = tpu.strided_load %arg20[%c73, %c0_56] {strides = array<i32: 2, 1>} : memref<648x16xf32, #tpu.memory_space<vmem>>, vector<8x16xf32>
    %c74 = arith.constant 74 : index
    %c0_57 = arith.constant 0 : index
    %67 = tpu.strided_load %arg20[%c74, %c0_57] {strides = array<i32: 2, 1>} : memref<648x16xf32, #tpu.memory_space<vmem>>, vector<8x16xf32>
    %68 = arith.maximumf %66, %67 : vector<8x16xf32>
    %69 = arith.maximumf %65, %68 : vector<8x16xf32>
    %c33 = arith.constant 33 : index
    %c0_58 = arith.constant 0 : index
    %70 = vector.load %arg17[%c33, %c0_58] : memref<224x16xf32, #tpu.memory_space<vmem>>, vector<8x16xf32>
    tpu.vector_store %arg17[%c33, %c0_58], %69 {strides = array<i32>} : memref<224x16xf32, #tpu.memory_space<vmem>>, vector<8x16xf32>,
    %c91 = arith.constant 91 : index
    %c0_59 = arith.constant 0 : index
    %71 = tpu.strided_load %arg20[%c91, %c0_59] {strides = array<i32: 2, 1>} : memref<648x16xf32, #tpu.memory_space<vmem>>, vector<8x16xf32>
    %c92 = arith.constant 92 : index
    %c0_60 = arith.constant 0 : index
    %72 = tpu.strided_load %arg20[%c92, %c0_60] {strides = array<i32: 2, 1>} : memref<648x16xf32, #tpu.memory_space<vmem>>, vector<8x16xf32>
    %73 = arith.maximumf %71, %72 : vector<8x16xf32>
    %c109 = arith.constant 109 : index
    %c0_61 = arith.constant 0 : index
    %74 = tpu.strided_load %arg20[%c109, %c0_61] {strides = array<i32: 2, 1>} : memref<648x16xf32, #tpu.memory_space<vmem>>, vector<8x16xf32>
    %c110 = arith.constant 110 : index
    %c0_62 = arith.constant 0 : index
    %75 = tpu.strided_load %arg20[%c110, %c0_62] {strides = array<i32: 2, 1>} : memref<648x16xf32, #tpu.memory_space<vmem>>, vector<8x16xf32>
    %76 = arith.maximumf %74, %75 : vector<8x16xf32>
    %77 = arith.maximumf %73, %76 : vector<8x16xf32>
    %c43 = arith.constant 43 : index
    %c0_63 = arith.constant 0 : index
    %78 = vector.load %arg17[%c43, %c0_63] : memref<224x16xf32, #tpu.memory_space<vmem>>, vector<8x16xf32>
    tpu.vector_store %arg17[%c43, %c0_63], %77 {strides = array<i32>} : memref<224x16xf32, #tpu.memory_space<vmem>>, vector<8x16xf32>,
    %c127 = arith.constant 127 : index
    %c0_64 = arith.constant 0 : index
    %79 = tpu.strided_load %arg20[%c127, %c0_64] {strides = array<i32: 2, 1>} : memref<648x16xf32, #tpu.memory_space<vmem>>, vector<8x16xf32>
    %c128 = arith.constant 128 : index
    %c0_65 = arith.constant 0 : index
    %80 = tpu.strided_load %arg20[%c128, %c0_65] {strides = array<i32: 2, 1>} : memref<648x16xf32, #tpu.memory_space<vmem>>, vector<8x16xf32>
    %81 = arith.maximumf %79, %80 : vector<8x16xf32>
    %c145 = arith.constant 145 : index
    %c0_66 = arith.constant 0 : index
    %82 = tpu.strided_load %arg20[%c145, %c0_66] {strides = array<i32: 2, 1>} : memref<648x16xf32, #tpu.memory_space<vmem>>, vector<8x16xf32>
    %c146 = arith.constant 146 : index
    %c0_67 = arith.constant 0 : index
    %83 = tpu.strided_load %arg20[%c146, %c0_67] {strides = array<i32: 2, 1>} : memref<648x16xf32, #tpu.memory_space<vmem>>, vector<8x16xf32>
    %84 = arith.maximumf %82, %83 : vector<8x16xf32>
    %85 = arith.maximumf %81, %84 : vector<8x16xf32>
    %c53 = arith.constant 53 : index
    %c0_68 = arith.constant 0 : index
    %86 = vector.load %arg17[%c53, %c0_68] : memref<224x16xf32, #tpu.memory_space<vmem>>, vector<8x16xf32>
    tpu.vector_store %arg17[%c53, %c0_68], %85 {strides = array<i32>} : memref<224x16xf32, #tpu.memory_space<vmem>>, vector<8x16xf32>,
    %c163 = arith.constant 163 : index
    %c0_69 = arith.constant 0 : index
    %87 = tpu.strided_load %arg20[%c163, %c0_69] {strides = array<i32: 2, 1>} : memref<648x16xf32, #tpu.memory_space<vmem>>, vector<8x16xf32>
    %c164 = arith.constant 164 : index
    %c0_70 = arith.constant 0 : index
    %88 = tpu.strided_load %arg20[%c164, %c0_70] {strides = array<i32: 2, 1>} : memref<648x16xf32, #tpu.memory_space<vmem>>, vector<8x16xf32>
    %89 = arith.maximumf %87, %88 : vector<8x16xf32>
    %c181 = arith.constant 181 : index
    %c0_71 = arith.constant 0 : index
    %90 = tpu.strided_load %arg20[%c181, %c0_71] {strides = array<i32: 2, 1>} : memref<648x16xf32, #tpu.memory_space<vmem>>, vector<8x16xf32>
    %c182 = arith.constant 182 : index
    %c0_72 = arith.constant 0 : index
    %91 = tpu.strided_load %arg20[%c182, %c0_72] {strides = array<i32: 2, 1>} : memref<648x16xf32, #tpu.memory_space<vmem>>, vector<8x16xf32>
    %92 = arith.maximumf %90, %91 : vector<8x16xf32>
    %93 = arith.maximumf %89, %92 : vector<8x16xf32>
    %c63 = arith.constant 63 : index
    %c0_73 = arith.constant 0 : index
    %94 = vector.load %arg17[%c63, %c0_73] : memref<224x16xf32, #tpu.memory_space<vmem>>, vector<8x16xf32>
    tpu.vector_store %arg17[%c63, %c0_73], %93 {strides = array<i32>} : memref<224x16xf32, #tpu.memory_space<vmem>>, vector<8x16xf32>,
    %c199 = arith.constant 199 : index
    %c0_74 = arith.constant 0 : index
    %95 = tpu.strided_load %arg20[%c199, %c0_74] {strides = array<i32: 2, 1>} : memref<648x16xf32, #tpu.memory_space<vmem>>, vector<8x16xf32>
    %c200 = arith.constant 200 : index
    %c0_75 = arith.constant 0 : index
    %96 = tpu.strided_load %arg20[%c200, %c0_75] {strides = array<i32: 2, 1>} : memref<648x16xf32, #tpu.memory_space<vmem>>, vector<8x16xf32>
    %97 = arith.maximumf %95, %96 : vector<8x16xf32>
    %c217 = arith.constant 217 : index
    %c0_76 = arith.constant 0 : index
    %98 = tpu.strided_load %arg20[%c217, %c0_76] {strides = array<i32: 2, 1>} : memref<648x16xf32, #tpu.memory_space<vmem>>, vector<8x16xf32>
    %c218 = arith.constant 218 : index
    %c0_77 = arith.constant 0 : index
    %99 = tpu.strided_load %arg20[%c218, %c0_77] {strides = array<i32: 2, 1>} : memref<648x16xf32, #tpu.memory_space<vmem>>, vector<8x16xf32>
    %100 = arith.maximumf %98, %99 : vector<8x16xf32>
    %101 = arith.maximumf %97, %100 : vector<8x16xf32>
    %c73_78 = arith.constant 73 : index
    %c0_79 = arith.constant 0 : index
    %102 = vector.load %arg17[%c73_78, %c0_79] : memref<224x16xf32, #tpu.memory_space<vmem>>, vector<8x16xf32>
    tpu.vector_store %arg17[%c73_78, %c0_79], %101 {strides = array<i32>} : memref<224x16xf32, #tpu.memory_space<vmem>>, vector<8x16xf32>,
    %c235 = arith.constant 235 : index
    %c0_80 = arith.constant 0 : index
    %103 = tpu.strided_load %arg20[%c235, %c0_80] {strides = array<i32: 2, 1>} : memref<648x16xf32, #tpu.memory_space<vmem>>, vector<8x16xf32>
    %c236 = arith.constant 236 : index
    %c0_81 = arith.constant 0 : index
    %104 = tpu.strided_load %arg20[%c236, %c0_81] {strides = array<i32: 2, 1>} : memref<648x16xf32, #tpu.memory_space<vmem>>, vector<8x16xf32>
    %105 = arith.maximumf %103, %104 : vector<8x16xf32>
    %c253 = arith.constant 253 : index
    %c0_82 = arith.constant 0 : index
    %106 = tpu.strided_load %arg20[%c253, %c0_82] {strides = array<i32: 2, 1>} : memref<648x16xf32, #tpu.memory_space<vmem>>, vector<8x16xf32>
    %c254 = arith.constant 254 : index
    %c0_83 = arith.constant 0 : index
    %107 = tpu.strided_load %arg20[%c254, %c0_83] {strides = array<i32: 2, 1>} : memref<648x16xf32, #tpu.memory_space<vmem>>, vector<8x16xf32>
    %108 = arith.maximumf %106, %107 : vector<8x16xf32>
    %109 = arith.maximumf %105, %108 : vector<8x16xf32>
    %c83 = arith.constant 83 : index
    %c0_84 = arith.constant 0 : index
    %110 = vector.load %arg17[%c83, %c0_84] : memref<224x16xf32, #tpu.memory_space<vmem>>, vector<8x16xf32>
    tpu.vector_store %arg17[%c83, %c0_84], %109 {strides = array<i32>} : memref<224x16xf32, #tpu.memory_space<vmem>>, vector<8x16xf32>,
    %c271 = arith.constant 271 : index
    %c0_85 = arith.constant 0 : index
    %111 = tpu.strided_load %arg20[%c271, %c0_85] {strides = array<i32: 2, 1>} : memref<648x16xf32, #tpu.memory_space<vmem>>, vector<8x16xf32>
    %c272 = arith.constant 272 : index
    %c0_86 = arith.constant 0 : index
    %112 = tpu.strided_load %arg20[%c272, %c0_86] {strides = array<i32: 2, 1>} : memref<648x16xf32, #tpu.memory_space<vmem>>, vector<8x16xf32>
    %113 = arith.maximumf %111, %112 : vector<8x16xf32>
    %c289 = arith.constant 289 : index
    %c0_87 = arith.constant 0 : index
    %114 = tpu.strided_load %arg20[%c289, %c0_87] {strides = array<i32: 2, 1>} : memref<648x16xf32, #tpu.memory_space<vmem>>, vector<8x16xf32>
    %c290 = arith.constant 290 : index
    %c0_88 = arith.constant 0 : index
    %115 = tpu.strided_load %arg20[%c290, %c0_88] {strides = array<i32: 2, 1>} : memref<648x16xf32, #tpu.memory_space<vmem>>, vector<8x16xf32>
    %116 = arith.maximumf %114, %115 : vector<8x16xf32>
    %117 = arith.maximumf %113, %116 : vector<8x16xf32>
    %c93 = arith.constant 93 : index
    %c0_89 = arith.constant 0 : index
    %118 = vector.load %arg17[%c93, %c0_89] : memref<224x16xf32, #tpu.memory_space<vmem>>, vector<8x16xf32>
    tpu.vector_store %arg17[%c93, %c0_89], %117 {strides = array<i32>} : memref<224x16xf32, #tpu.memory_space<vmem>>, vector<8x16xf32>,
    %c343 = arith.constant 343 : index
    %c0_90 = arith.constant 0 : index
    %119 = tpu.strided_load %arg20[%c343, %c0_90] {strides = array<i32: 2, 1>} : memref<648x16xf32, #tpu.memory_space<vmem>>, vector<8x16xf32>
    %c344 = arith.constant 344 : index
    %c0_91 = arith.constant 0 : index
    %120 = tpu.strided_load %arg20[%c344, %c0_91] {strides = array<i32: 2, 1>} : memref<648x16xf32, #tpu.memory_space<vmem>>, vector<8x16xf32>
    %121 = arith.maximumf %119, %120 : vector<8x16xf32>
    %c361 = arith.constant 361 : index
    %c0_92 = arith.constant 0 : index
    %122 = tpu.strided_load %arg20[%c361, %c0_92] {strides = array<i32: 2, 1>} : memref<648x16xf32, #tpu.memory_space<vmem>>, vector<8x16xf32>
    %c362 = arith.constant 362 : index
    %c0_93 = arith.constant 0 : index
    %123 = tpu.strided_load %arg20[%c362, %c0_93] {strides = array<i32: 2, 1>} : memref<648x16xf32, #tpu.memory_space<vmem>>, vector<8x16xf32>
    %124 = arith.maximumf %122, %123 : vector<8x16xf32>
    %125 = arith.maximumf %121, %124 : vector<8x16xf32>
    %c123 = arith.constant 123 : index
    %c0_94 = arith.constant 0 : index
    %126 = vector.load %arg17[%c123, %c0_94] : memref<224x16xf32, #tpu.memory_space<vmem>>, vector<8x16xf32>
    tpu.vector_store %arg17[%c123, %c0_94], %125 {strides = array<i32>} : memref<224x16xf32, #tpu.memory_space<vmem>>, vector<8x16xf32>,
    %c379 = arith.constant 379 : index
    %c0_95 = arith.constant 0 : index
    %127 = tpu.strided_load %arg20[%c379, %c0_95] {strides = array<i32: 2, 1>} : memref<648x16xf32, #tpu.memory_space<vmem>>, vector<8x16xf32>
    %c380 = arith.constant 380 : index
    %c0_96 = arith.constant 0 : index
    %128 = tpu.strided_load %arg20[%c380, %c0_96] {strides = array<i32: 2, 1>} : memref<648x16xf32, #tpu.memory_space<vmem>>, vector<8x16xf32>
    %129 = arith.maximumf %127, %128 : vector<8x16xf32>
    %c397 = arith.constant 397 : index
    %c0_97 = arith.constant 0 : index
    %130 = tpu.strided_load %arg20[%c397, %c0_97] {strides = array<i32: 2, 1>} : memref<648x16xf32, #tpu.memory_space<vmem>>, vector<8x16xf32>
    %c398 = arith.constant 398 : index
    %c0_98 = arith.constant 0 : index
    %131 = tpu.strided_load %arg20[%c398, %c0_98] {strides = array<i32: 2, 1>} : memref<648x16xf32, #tpu.memory_space<vmem>>, vector<8x16xf32>
    %132 = arith.maximumf %130, %131 : vector<8x16xf32>
    %133 = arith.maximumf %129, %132 : vector<8x16xf32>
    %c133 = arith.constant 133 : index
    %c0_99 = arith.constant 0 : index
    %134 = vector.load %arg17[%c133, %c0_99] : memref<224x16xf32, #tpu.memory_space<vmem>>, vector<8x16xf32>
    tpu.vector_store %arg17[%c133, %c0_99], %133 {strides = array<i32>} : memref<224x16xf32, #tpu.memory_space<vmem>>, vector<8x16xf32>,
    %c415 = arith.constant 415 : index
    %c0_100 = arith.constant 0 : index
    %135 = tpu.strided_load %arg20[%c415, %c0_100] {strides = array<i32: 2, 1>} : memref<648x16xf32, #tpu.memory_space<vmem>>, vector<8x16xf32>
    %c416 = arith.constant 416 : index
    %c0_101 = arith.constant 0 : index
    %136 = tpu.strided_load %arg20[%c416, %c0_101] {strides = array<i32: 2, 1>} : memref<648x16xf32, #tpu.memory_space<vmem>>, vector<8x16xf32>
    %137 = arith.maximumf %135, %136 : vector<8x16xf32>
    %c433 = arith.constant 433 : index
    %c0_102 = arith.constant 0 : index
    %138 = tpu.strided_load %arg20[%c433, %c0_102] {strides = array<i32: 2, 1>} : memref<648x16xf32, #tpu.memory_space<vmem>>, vector<8x16xf32>
    %c434 = arith.constant 434 : index
    %c0_103 = arith.constant 0 : index
    %139 = tpu.strided_load %arg20[%c434, %c0_103] {strides = array<i32: 2, 1>} : memref<648x16xf32, #tpu.memory_space<vmem>>, vector<8x16xf32>
    %140 = arith.maximumf %138, %139 : vector<8x16xf32>
    %141 = arith.maximumf %137, %140 : vector<8x16xf32>
    %c143 = arith.constant 143 : index
    %c0_104 = arith.constant 0 : index
    %142 = vector.load %arg17[%c143, %c0_104] : memref<224x16xf32, #tpu.memory_space<vmem>>, vector<8x16xf32>
    tpu.vector_store %arg17[%c143, %c0_104], %141 {strides = array<i32>} : memref<224x16xf32, #tpu.memory_space<vmem>>, vector<8x16xf32>,
    %c451 = arith.constant 451 : index
    %c0_105 = arith.constant 0 : index
    %143 = tpu.strided_load %arg20[%c451, %c0_105] {strides = array<i32: 2, 1>} : memref<648x16xf32, #tpu.memory_space<vmem>>, vector<8x16xf32>
    %c452 = arith.constant 452 : index
    %c0_106 = arith.constant 0 : index
    %144 = tpu.strided_load %arg20[%c452, %c0_106] {strides = array<i32: 2, 1>} : memref<648x16xf32, #tpu.memory_space<vmem>>, vector<8x16xf32>
    %145 = arith.maximumf %143, %144 : vector<8x16xf32>
    %c469 = arith.constant 469 : index
    %c0_107 = arith.constant 0 : index
    %146 = tpu.strided_load %arg20[%c469, %c0_107] {strides = array<i32: 2, 1>} : memref<648x16xf32, #tpu.memory_space<vmem>>, vector<8x16xf32>
    %c470 = arith.constant 470 : index
    %c0_108 = arith.constant 0 : index
    %147 = tpu.strided_load %arg20[%c470, %c0_108] {strides = array<i32: 2, 1>} : memref<648x16xf32, #tpu.memory_space<vmem>>, vector<8x16xf32>
    %148 = arith.maximumf %146, %147 : vector<8x16xf32>
    %149 = arith.maximumf %145, %148 : vector<8x16xf32>
    %c153 = arith.constant 153 : index
    %c0_109 = arith.constant 0 : index
    %150 = vector.load %arg17[%c153, %c0_109] : memref<224x16xf32, #tpu.memory_space<vmem>>, vector<8x16xf32>
    tpu.vector_store %arg17[%c153, %c0_109], %149 {strides = array<i32>} : memref<224x16xf32, #tpu.memory_space<vmem>>, vector<8x16xf32>,
    %c487 = arith.constant 487 : index
    %c0_110 = arith.constant 0 : index
    %151 = tpu.strided_load %arg20[%c487, %c0_110] {strides = array<i32: 2, 1>} : memref<648x16xf32, #tpu.memory_space<vmem>>, vector<8x16xf32>
    %c488 = arith.constant 488 : index
    %c0_111 = arith.constant 0 : index
    %152 = tpu.strided_load %arg20[%c488, %c0_111] {strides = array<i32: 2, 1>} : memref<648x16xf32, #tpu.memory_space<vmem>>, vector<8x16xf32>
    %153 = arith.maximumf %151, %152 : vector<8x16xf32>
    %c505 = arith.constant 505 : index
    %c0_112 = arith.constant 0 : index
    %154 = tpu.strided_load %arg20[%c505, %c0_112] {strides = array<i32: 2, 1>} : memref<648x16xf32, #tpu.memory_space<vmem>>, vector<8x16xf32>
    %c506 = arith.constant 506 : index
    %c0_113 = arith.constant 0 : index
    %155 = tpu.strided_load %arg20[%c506, %c0_113] {strides = array<i32: 2, 1>} : memref<648x16xf32, #tpu.memory_space<vmem>>, vector<8x16xf32>
    %156 = arith.maximumf %154, %155 : vector<8x16xf32>
    %157 = arith.maximumf %153, %156 : vector<8x16xf32>
    %c163_114 = arith.constant 163 : index
    %c0_115 = arith.constant 0 : index
    %158 = vector.load %arg17[%c163_114, %c0_115] : memref<224x16xf32, #tpu.memory_space<vmem>>, vector<8x16xf32>
    tpu.vector_store %arg17[%c163_114, %c0_115], %157 {strides = array<i32>} : memref<224x16xf32, #tpu.memory_space<vmem>>, vector<8x16xf32>,
    %c523 = arith.constant 523 : index
    %c0_116 = arith.constant 0 : index
    %159 = tpu.strided_load %arg20[%c523, %c0_116] {strides = array<i32: 2, 1>} : memref<648x16xf32, #tpu.memory_space<vmem>>, vector<8x16xf32>
    %c524 = arith.constant 524 : index
    %c0_117 = arith.constant 0 : index
    %160 = tpu.strided_load %arg20[%c524, %c0_117] {strides = array<i32: 2, 1>} : memref<648x16xf32, #tpu.memory_space<vmem>>, vector<8x16xf32>
    %161 = arith.maximumf %159, %160 : vector<8x16xf32>
    %c541 = arith.constant 541 : index
    %c0_118 = arith.constant 0 : index
    %162 = tpu.strided_load %arg20[%c541, %c0_118] {strides = array<i32: 2, 1>} : memref<648x16xf32, #tpu.memory_space<vmem>>, vector<8x16xf32>
    %c542 = arith.constant 542 : index
    %c0_119 = arith.constant 0 : index
    %163 = tpu.strided_load %arg20[%c542, %c0_119] {strides = array<i32: 2, 1>} : memref<648x16xf32, #tpu.memory_space<vmem>>, vector<8x16xf32>
    %164 = arith.maximumf %162, %163 : vector<8x16xf32>
    %165 = arith.maximumf %161, %164 : vector<8x16xf32>
    %c173 = arith.constant 173 : index
    %c0_120 = arith.constant 0 : index
    %166 = vector.load %arg17[%c173, %c0_120] : memref<224x16xf32, #tpu.memory_space<vmem>>, vector<8x16xf32>
    tpu.vector_store %arg17[%c173, %c0_120], %165 {strides = array<i32>} : memref<224x16xf32, #tpu.memory_space<vmem>>, vector<8x16xf32>,
    %c559 = arith.constant 559 : index
    %c0_121 = arith.constant 0 : index
    %167 = tpu.strided_load %arg20[%c559, %c0_121] {strides = array<i32: 2, 1>} : memref<648x16xf32, #tpu.memory_space<vmem>>, vector<8x16xf32>
    %c560 = arith.constant 560 : index
    %c0_122 = arith.constant 0 : index
    %168 = tpu.strided_load %arg20[%c560, %c0_122] {strides = array<i32: 2, 1>} : memref<648x16xf32, #tpu.memory_space<vmem>>, vector<8x16xf32>
    %169 = arith.maximumf %167, %168 : vector<8x16xf32>
    %c577 = arith.constant 577 : index
    %c0_123 = arith.constant 0 : index
    %170 = tpu.strided_load %arg20[%c577, %c0_123] {strides = array<i32: 2, 1>} : memref<648x16xf32, #tpu.memory_space<vmem>>, vector<8x16xf32>
    %c578 = arith.constant 578 : index
    %c0_124 = arith.constant 0 : index
    %171 = tpu.strided_load %arg20[%c578, %c0_124] {strides = array<i32: 2, 1>} : memref<648x16xf32, #tpu.memory_space<vmem>>, vector<8x16xf32>
    %172 = arith.maximumf %170, %171 : vector<8x16xf32>
    %173 = arith.maximumf %169, %172 : vector<8x16xf32>
    %c183 = arith.constant 183 : index
    %c0_125 = arith.constant 0 : index
    %174 = vector.load %arg17[%c183, %c0_125] : memref<224x16xf32, #tpu.memory_space<vmem>>, vector<8x16xf32>
    tpu.vector_store %arg17[%c183, %c0_125], %173 {strides = array<i32>} : memref<224x16xf32, #tpu.memory_space<vmem>>, vector<8x16xf32>,
    %c595 = arith.constant 595 : index
    %c0_126 = arith.constant 0 : index
    %175 = tpu.strided_load %arg20[%c595, %c0_126] {strides = array<i32: 2, 1>} : memref<648x16xf32, #tpu.memory_space<vmem>>, vector<8x16xf32>
    %c596 = arith.constant 596 : index
    %c0_127 = arith.constant 0 : index
    %176 = tpu.strided_load %arg20[%c596, %c0_127] {strides = array<i32: 2, 1>} : memref<648x16xf32, #tpu.memory_space<vmem>>, vector<8x16xf32>
    %177 = arith.maximumf %175, %176 : vector<8x16xf32>
    %c613 = arith.constant 613 : index
    %c0_128 = arith.constant 0 : index
    %178 = tpu.strided_load %arg20[%c613, %c0_128] {strides = array<i32: 2, 1>} : memref<648x16xf32, #tpu.memory_space<vmem>>, vector<8x16xf32>
    %c614 = arith.constant 614 : index
    %c0_129 = arith.constant 0 : index
    %179 = tpu.strided_load %arg20[%c614, %c0_129] {strides = array<i32: 2, 1>} : memref<648x16xf32, #tpu.memory_space<vmem>>, vector<8x16xf32>
    %180 = arith.maximumf %178, %179 : vector<8x16xf32>
    %181 = arith.maximumf %177, %180 : vector<8x16xf32>
    %c193 = arith.constant 193 : index
    %c0_130 = arith.constant 0 : index
    %182 = vector.load %arg17[%c193, %c0_130] : memref<224x16xf32, #tpu.memory_space<vmem>>, vector<8x16xf32>
    tpu.vector_store %arg17[%c193, %c0_130], %181 {strides = array<i32>} : memref<224x16xf32, #tpu.memory_space<vmem>>, vector<8x16xf32>,
    %c1_131 = arith.constant 1 : index
    %c0_132 = arith.constant 0 : index
    %183 = vector.load %arg9[%c1_131, %c0_132] : memref<16x128xf32, #tpu.memory_space<vmem>>, vector<1x32xf32>
    %c2_133 = arith.constant 2 : index
    %c0_134 = arith.constant 0 : index
    %184 = vector.load %arg9[%c2_133, %c0_134] : memref<16x128xf32, #tpu.memory_space<vmem>>, vector<1x32xf32>
    %c3_135 = arith.constant 3 : index
    %c0_136 = arith.constant 0 : index
    %185 = vector.load %arg9[%c3_135, %c0_136] : memref<16x128xf32, #tpu.memory_space<vmem>>, vector<1x32xf32>
    %cst_137 = arith.constant 0.000000e+00 : f32
    %186 = vector.broadcast %cst_137 : f32 to vector<200x32xf32>
    %c1_138 = arith.constant 1 : index
    %c0_139 = arith.constant 0 : index
    %187 = vector.load %arg17[%c1_138, %c0_139] : memref<224x16xf32, #tpu.memory_space<vmem>>, vector<200x16xf32>
    %c0_140 = arith.constant 0 : index
    %c0_141 = arith.constant 0 : index
    %c0_142 = arith.constant 0 : index
    %188 = vector.load %arg3[%c0_140, %c0_141, %c0_142] : memref<9x16x32xf32, #tpu.memory_space<vmem>>, vector<1x16x32xf32>
    %189 = vector.shape_cast %188 : vector<1x16x32xf32> to vector<16x32xf32>
    %cst_143 = arith.constant dense<0.000000e+00> : vector<200x32xf32>
    %190 = tpu.matmul %187, %189, %cst_143 {dimension_numbers = #tpu.dot_dimension_numbers<[1], [0], [0], [1], [0, 0, 1, 1], [], []>} : vector<200x16xf32>, vector<16x32xf32>, vector<200x32xf32> -> vector<200x32xf32>
    %191 = arith.addf %186, %190 : vector<200x32xf32>
    %c2_144 = arith.constant 2 : index
    %c0_145 = arith.constant 0 : index
    %192 = vector.load %arg17[%c2_144, %c0_145] : memref<224x16xf32, #tpu.memory_space<vmem>>, vector<200x16xf32>
    %c1_146 = arith.constant 1 : index
    %c0_147 = arith.constant 0 : index
    %c0_148 = arith.constant 0 : index
    %193 = vector.load %arg3[%c1_146, %c0_147, %c0_148] : memref<9x16x32xf32, #tpu.memory_space<vmem>>, vector<1x16x32xf32>
    %194 = vector.shape_cast %193 : vector<1x16x32xf32> to vector<16x32xf32>
    %cst_149 = arith.constant dense<0.000000e+00> : vector<200x32xf32>
    %195 = tpu.matmul %192, %194, %cst_149 {dimension_numbers = #tpu.dot_dimension_numbers<[1], [0], [0], [1], [0, 0, 1, 1], [], []>} : vector<200x16xf32>, vector<16x32xf32>, vector<200x32xf32> -> vector<200x32xf32>
    %196 = arith.addf %191, %195 : vector<200x32xf32>
    %c3_150 = arith.constant 3 : index
    %c0_151 = arith.constant 0 : index
    %197 = vector.load %arg17[%c3_150, %c0_151] : memref<224x16xf32, #tpu.memory_space<vmem>>, vector<200x16xf32>
    %c2_152 = arith.constant 2 : index
    %c0_153 = arith.constant 0 : index
    %c0_154 = arith.constant 0 : index
    %198 = vector.load %arg3[%c2_152, %c0_153, %c0_154] : memref<9x16x32xf32, #tpu.memory_space<vmem>>, vector<1x16x32xf32>
    %199 = vector.shape_cast %198 : vector<1x16x32xf32> to vector<16x32xf32>
    %cst_155 = arith.constant dense<0.000000e+00> : vector<200x32xf32>
    %200 = tpu.matmul %197, %199, %cst_155 {dimension_numbers = #tpu.dot_dimension_numbers<[1], [0], [0], [1], [0, 0, 1, 1], [], []>} : vector<200x16xf32>, vector<16x32xf32>, vector<200x32xf32> -> vector<200x32xf32>
    %201 = arith.addf %196, %200 : vector<200x32xf32>
    %c11 = arith.constant 11 : index
    %c0_156 = arith.constant 0 : index
    %202 = vector.load %arg17[%c11, %c0_156] : memref<224x16xf32, #tpu.memory_space<vmem>>, vector<200x16xf32>
    %c3_157 = arith.constant 3 : index
    %c0_158 = arith.constant 0 : index
    %c0_159 = arith.constant 0 : index
    %203 = vector.load %arg3[%c3_157, %c0_158, %c0_159] : memref<9x16x32xf32, #tpu.memory_space<vmem>>, vector<1x16x32xf32>
    %204 = vector.shape_cast %203 : vector<1x16x32xf32> to vector<16x32xf32>
    %cst_160 = arith.constant dense<0.000000e+00> : vector<200x32xf32>
    %205 = tpu.matmul %202, %204, %cst_160 {dimension_numbers = #tpu.dot_dimension_numbers<[1], [0], [0], [1], [0, 0, 1, 1], [], []>} : vector<200x16xf32>, vector<16x32xf32>, vector<200x32xf32> -> vector<200x32xf32>
    %206 = arith.addf %201, %205 : vector<200x32xf32>
    %c12 = arith.constant 12 : index
    %c0_161 = arith.constant 0 : index
    %207 = vector.load %arg17[%c12, %c0_161] : memref<224x16xf32, #tpu.memory_space<vmem>>, vector<200x16xf32>
    %c4_162 = arith.constant 4 : index
    %c0_163 = arith.constant 0 : index
    %c0_164 = arith.constant 0 : index
    %208 = vector.load %arg3[%c4_162, %c0_163, %c0_164] : memref<9x16x32xf32, #tpu.memory_space<vmem>>, vector<1x16x32xf32>
    %209 = vector.shape_cast %208 : vector<1x16x32xf32> to vector<16x32xf32>
    %cst_165 = arith.constant dense<0.000000e+00> : vector<200x32xf32>
    %210 = tpu.matmul %207, %209, %cst_165 {dimension_numbers = #tpu.dot_dimension_numbers<[1], [0], [0], [1], [0, 0, 1, 1], [], []>} : vector<200x16xf32>, vector<16x32xf32>, vector<200x32xf32> -> vector<200x32xf32>
    %211 = arith.addf %206, %210 : vector<200x32xf32>
    %c13 = arith.constant 13 : index
    %c0_166 = arith.constant 0 : index
    %212 = vector.load %arg17[%c13, %c0_166] : memref<224x16xf32, #tpu.memory_space<vmem>>, vector<200x16xf32>
    %c5_167 = arith.constant 5 : index
    %c0_168 = arith.constant 0 : index
    %c0_169 = arith.constant 0 : index
    %213 = vector.load %arg3[%c5_167, %c0_168, %c0_169] : memref<9x16x32xf32, #tpu.memory_space<vmem>>, vector<1x16x32xf32>
    %214 = vector.shape_cast %213 : vector<1x16x32xf32> to vector<16x32xf32>
    %cst_170 = arith.constant dense<0.000000e+00> : vector<200x32xf32>
    %215 = tpu.matmul %212, %214, %cst_170 {dimension_numbers = #tpu.dot_dimension_numbers<[1], [0], [0], [1], [0, 0, 1, 1], [], []>} : vector<200x16xf32>, vector<16x32xf32>, vector<200x32xf32> -> vector<200x32xf32>
    %216 = arith.addf %211, %215 : vector<200x32xf32>
    %c21_171 = arith.constant 21 : index
    %c0_172 = arith.constant 0 : index
    %217 = vector.load %arg17[%c21_171, %c0_172] : memref<224x16xf32, #tpu.memory_space<vmem>>, vector<200x16xf32>
    %c6_173 = arith.constant 6 : index
    %c0_174 = arith.constant 0 : index
    %c0_175 = arith.constant 0 : index
    %218 = vector.load %arg3[%c6_173, %c0_174, %c0_175] : memref<9x16x32xf32, #tpu.memory_space<vmem>>, vector<1x16x32xf32>
    %219 = vector.shape_cast %218 : vector<1x16x32xf32> to vector<16x32xf32>
    %cst_176 = arith.constant dense<0.000000e+00> : vector<200x32xf32>
    %220 = tpu.matmul %217, %219, %cst_176 {dimension_numbers = #tpu.dot_dimension_numbers<[1], [0], [0], [1], [0, 0, 1, 1], [], []>} : vector<200x16xf32>, vector<16x32xf32>, vector<200x32xf32> -> vector<200x32xf32>
    %221 = arith.addf %216, %220 : vector<200x32xf32>
    %c22 = arith.constant 22 : index
    %c0_177 = arith.constant 0 : index
    %222 = vector.load %arg17[%c22, %c0_177] : memref<224x16xf32, #tpu.memory_space<vmem>>, vector<200x16xf32>
    %c7_178 = arith.constant 7 : index
    %c0_179 = arith.constant 0 : index
    %c0_180 = arith.constant 0 : index
    %223 = vector.load %arg3[%c7_178, %c0_179, %c0_180] : memref<9x16x32xf32, #tpu.memory_space<vmem>>, vector<1x16x32xf32>
    %224 = vector.shape_cast %223 : vector<1x16x32xf32> to vector<16x32xf32>
    %cst_181 = arith.constant dense<0.000000e+00> : vector<200x32xf32>
    %225 = tpu.matmul %222, %224, %cst_181 {dimension_numbers = #tpu.dot_dimension_numbers<[1], [0], [0], [1], [0, 0, 1, 1], [], []>} : vector<200x16xf32>, vector<16x32xf32>, vector<200x32xf32> -> vector<200x32xf32>
    %226 = arith.addf %221, %225 : vector<200x32xf32>
    %c23_182 = arith.constant 23 : index
    %c0_183 = arith.constant 0 : index
    %227 = vector.load %arg17[%c23_182, %c0_183] : memref<224x16xf32, #tpu.memory_space<vmem>>, vector<200x16xf32>
    %c8_184 = arith.constant 8 : index
    %c0_185 = arith.constant 0 : index
    %c0_186 = arith.constant 0 : index
    %228 = vector.load %arg3[%c8_184, %c0_185, %c0_186] : memref<9x16x32xf32, #tpu.memory_space<vmem>>, vector<1x16x32xf32>
    %229 = vector.shape_cast %228 : vector<1x16x32xf32> to vector<16x32xf32>
    %cst_187 = arith.constant dense<0.000000e+00> : vector<200x32xf32>
    %230 = tpu.matmul %227, %229, %cst_187 {dimension_numbers = #tpu.dot_dimension_numbers<[1], [0], [0], [1], [0, 0, 1, 1], [], []>} : vector<200x16xf32>, vector<16x32xf32>, vector<200x32xf32> -> vector<200x32xf32>
    %231 = arith.addf %226, %230 : vector<200x32xf32>
    %232 = vector.broadcast %183 : vector<1x32xf32> to vector<200x32xf32>
    %233 = arith.addf %231, %232 : vector<200x32xf32>
    %234 = arith.negf %233 : vector<200x32xf32>
    %235 = math.exp %234 : vector<200x32xf32>
    %cst_188 = arith.constant 1.000000e+00 : f32
    %236 = vector.broadcast %cst_188 : f32 to vector<200x32xf32>
    %237 = arith.addf %236, %235 : vector<200x32xf32>
    %238 = arith.divf %236, %237 : vector<200x32xf32>
    %239 = arith.mulf %233, %238 : vector<200x32xf32>
    %240 = vector.broadcast %184 : vector<1x32xf32> to vector<200x32xf32>
    %241 = arith.mulf %239, %240 : vector<200x32xf32>
    %242 = vector.broadcast %185 : vector<1x32xf32> to vector<200x32xf32>
    %243 = arith.addf %241, %242 : vector<200x32xf32>
    %cst_189 = arith.constant 0.000000e+00 : f32
    %244 = vector.broadcast %cst_189 : f32 to vector<200x32xf32>
    %245 = arith.maximumf %243, %244 : vector<200x32xf32>
    %c0_190 = arith.constant 0 : index
    %c0_191 = arith.constant 0 : index
    %246 = vector.load %arg21[%c0_190, %c0_191] : memref<200x32xf32, #tpu.memory_space<vmem>>, vector<200x32xf32>
    tpu.vector_store %arg21[%c0_190, %c0_191], %245 {strides = array<i32>} : memref<200x32xf32, #tpu.memory_space<vmem>>, vector<200x32xf32>,
    %c11_192 = arith.constant 11 : index
    %c0_193 = arith.constant 0 : index
    %247 = tpu.strided_load %arg21[%c11_192, %c0_193] {strides = array<i32: 2, 1>} : memref<200x32xf32, #tpu.memory_space<vmem>>, vector<4x32xf32>
    %c12_194 = arith.constant 12 : index
    %c0_195 = arith.constant 0 : index
    %248 = tpu.strided_load %arg21[%c12_194, %c0_195] {strides = array<i32: 2, 1>} : memref<200x32xf32, #tpu.memory_space<vmem>>, vector<4x32xf32>
    %249 = arith.maximumf %247, %248 : vector<4x32xf32>
    %c21_196 = arith.constant 21 : index
    %c0_197 = arith.constant 0 : index
    %250 = tpu.strided_load %arg21[%c21_196, %c0_197] {strides = array<i32: 2, 1>} : memref<200x32xf32, #tpu.memory_space<vmem>>, vector<4x32xf32>
    %c22_198 = arith.constant 22 : index
    %c0_199 = arith.constant 0 : index
    %251 = tpu.strided_load %arg21[%c22_198, %c0_199] {strides = array<i32: 2, 1>} : memref<200x32xf32, #tpu.memory_space<vmem>>, vector<4x32xf32>
    %252 = arith.maximumf %250, %251 : vector<4x32xf32>
    %253 = arith.maximumf %249, %252 : vector<4x32xf32>
    %c15 = arith.constant 15 : index
    %c0_200 = arith.constant 0 : index
    %254 = vector.load %arg18[%c15, %c0_200] : memref<88x32xf32, #tpu.memory_space<vmem>>, vector<4x32xf32>
    tpu.vector_store %arg18[%c15, %c0_200], %253 {strides = array<i32>} : memref<88x32xf32, #tpu.memory_space<vmem>>, vector<4x32xf32>,
    %c31 = arith.constant 31 : index
    %c0_201 = arith.constant 0 : index
    %255 = tpu.strided_load %arg21[%c31, %c0_201] {strides = array<i32: 2, 1>} : memref<200x32xf32, #tpu.memory_space<vmem>>, vector<4x32xf32>
    %c32 = arith.constant 32 : index
    %c0_202 = arith.constant 0 : index
    %256 = tpu.strided_load %arg21[%c32, %c0_202] {strides = array<i32: 2, 1>} : memref<200x32xf32, #tpu.memory_space<vmem>>, vector<4x32xf32>
    %257 = arith.maximumf %255, %256 : vector<4x32xf32>
    %c41 = arith.constant 41 : index
    %c0_203 = arith.constant 0 : index
    %258 = tpu.strided_load %arg21[%c41, %c0_203] {strides = array<i32: 2, 1>} : memref<200x32xf32, #tpu.memory_space<vmem>>, vector<4x32xf32>
    %c42 = arith.constant 42 : index
    %c0_204 = arith.constant 0 : index
    %259 = tpu.strided_load %arg21[%c42, %c0_204] {strides = array<i32: 2, 1>} : memref<200x32xf32, #tpu.memory_space<vmem>>, vector<4x32xf32>
    %260 = arith.maximumf %258, %259 : vector<4x32xf32>
    %261 = arith.maximumf %257, %260 : vector<4x32xf32>
    %c21_205 = arith.constant 21 : index
    %c0_206 = arith.constant 0 : index
    %262 = vector.load %arg18[%c21_205, %c0_206] : memref<88x32xf32, #tpu.memory_space<vmem>>, vector<4x32xf32>
    tpu.vector_store %arg18[%c21_205, %c0_206], %261 {strides = array<i32>} : memref<88x32xf32, #tpu.memory_space<vmem>>, vector<4x32xf32>,
    %c51 = arith.constant 51 : index
    %c0_207 = arith.constant 0 : index
    %263 = tpu.strided_load %arg21[%c51, %c0_207] {strides = array<i32: 2, 1>} : memref<200x32xf32, #tpu.memory_space<vmem>>, vector<4x32xf32>
    %c52 = arith.constant 52 : index
    %c0_208 = arith.constant 0 : index
    %264 = tpu.strided_load %arg21[%c52, %c0_208] {strides = array<i32: 2, 1>} : memref<200x32xf32, #tpu.memory_space<vmem>>, vector<4x32xf32>
    %265 = arith.maximumf %263, %264 : vector<4x32xf32>
    %c61 = arith.constant 61 : index
    %c0_209 = arith.constant 0 : index
    %266 = tpu.strided_load %arg21[%c61, %c0_209] {strides = array<i32: 2, 1>} : memref<200x32xf32, #tpu.memory_space<vmem>>, vector<4x32xf32>
    %c62 = arith.constant 62 : index
    %c0_210 = arith.constant 0 : index
    %267 = tpu.strided_load %arg21[%c62, %c0_210] {strides = array<i32: 2, 1>} : memref<200x32xf32, #tpu.memory_space<vmem>>, vector<4x32xf32>
    %268 = arith.maximumf %266, %267 : vector<4x32xf32>
    %269 = arith.maximumf %265, %268 : vector<4x32xf32>
    %c27 = arith.constant 27 : index
    %c0_211 = arith.constant 0 : index
    %270 = vector.load %arg18[%c27, %c0_211] : memref<88x32xf32, #tpu.memory_space<vmem>>, vector<4x32xf32>
    tpu.vector_store %arg18[%c27, %c0_211], %269 {strides = array<i32>} : memref<88x32xf32, #tpu.memory_space<vmem>>, vector<4x32xf32>,
    %c71 = arith.constant 71 : index
    %c0_212 = arith.constant 0 : index
    %271 = tpu.strided_load %arg21[%c71, %c0_212] {strides = array<i32: 2, 1>} : memref<200x32xf32, #tpu.memory_space<vmem>>, vector<4x32xf32>
    %c72 = arith.constant 72 : index
    %c0_213 = arith.constant 0 : index
    %272 = tpu.strided_load %arg21[%c72, %c0_213] {strides = array<i32: 2, 1>} : memref<200x32xf32, #tpu.memory_space<vmem>>, vector<4x32xf32>
    %273 = arith.maximumf %271, %272 : vector<4x32xf32>
    %c81 = arith.constant 81 : index
    %c0_214 = arith.constant 0 : index
    %274 = tpu.strided_load %arg21[%c81, %c0_214] {strides = array<i32: 2, 1>} : memref<200x32xf32, #tpu.memory_space<vmem>>, vector<4x32xf32>
    %c82 = arith.constant 82 : index
    %c0_215 = arith.constant 0 : index
    %275 = tpu.strided_load %arg21[%c82, %c0_215] {strides = array<i32: 2, 1>} : memref<200x32xf32, #tpu.memory_space<vmem>>, vector<4x32xf32>
    %276 = arith.maximumf %274, %275 : vector<4x32xf32>
    %277 = arith.maximumf %273, %276 : vector<4x32xf32>
    %c33_216 = arith.constant 33 : index
    %c0_217 = arith.constant 0 : index
    %278 = vector.load %arg18[%c33_216, %c0_217] : memref<88x32xf32, #tpu.memory_space<vmem>>, vector<4x32xf32>
    tpu.vector_store %arg18[%c33_216, %c0_217], %277 {strides = array<i32>} : memref<88x32xf32, #tpu.memory_space<vmem>>, vector<4x32xf32>,
    %c111 = arith.constant 111 : index
    %c0_218 = arith.constant 0 : index
    %279 = tpu.strided_load %arg21[%c111, %c0_218] {strides = array<i32: 2, 1>} : memref<200x32xf32, #tpu.memory_space<vmem>>, vector<4x32xf32>
    %c112 = arith.constant 112 : index
    %c0_219 = arith.constant 0 : index
    %280 = tpu.strided_load %arg21[%c112, %c0_219] {strides = array<i32: 2, 1>} : memref<200x32xf32, #tpu.memory_space<vmem>>, vector<4x32xf32>
    %281 = arith.maximumf %279, %280 : vector<4x32xf32>
    %c121 = arith.constant 121 : index
    %c0_220 = arith.constant 0 : index
    %282 = tpu.strided_load %arg21[%c121, %c0_220] {strides = array<i32: 2, 1>} : memref<200x32xf32, #tpu.memory_space<vmem>>, vector<4x32xf32>
    %c122 = arith.constant 122 : index
    %c0_221 = arith.constant 0 : index
    %283 = tpu.strided_load %arg21[%c122, %c0_221] {strides = array<i32: 2, 1>} : memref<200x32xf32, #tpu.memory_space<vmem>>, vector<4x32xf32>
    %284 = arith.maximumf %282, %283 : vector<4x32xf32>
    %285 = arith.maximumf %281, %284 : vector<4x32xf32>
    %c51_222 = arith.constant 51 : index
    %c0_223 = arith.constant 0 : index
    %286 = vector.load %arg18[%c51_222, %c0_223] : memref<88x32xf32, #tpu.memory_space<vmem>>, vector<4x32xf32>
    tpu.vector_store %arg18[%c51_222, %c0_223], %285 {strides = array<i32>} : memref<88x32xf32, #tpu.memory_space<vmem>>, vector<4x32xf32>,
    %c131 = arith.constant 131 : index
    %c0_224 = arith.constant 0 : index
    %287 = tpu.strided_load %arg21[%c131, %c0_224] {strides = array<i32: 2, 1>} : memref<200x32xf32, #tpu.memory_space<vmem>>, vector<4x32xf32>
    %c132 = arith.constant 132 : index
    %c0_225 = arith.constant 0 : index
    %288 = tpu.strided_load %arg21[%c132, %c0_225] {strides = array<i32: 2, 1>} : memref<200x32xf32, #tpu.memory_space<vmem>>, vector<4x32xf32>
    %289 = arith.maximumf %287, %288 : vector<4x32xf32>
    %c141 = arith.constant 141 : index
    %c0_226 = arith.constant 0 : index
    %290 = tpu.strided_load %arg21[%c141, %c0_226] {strides = array<i32: 2, 1>} : memref<200x32xf32, #tpu.memory_space<vmem>>, vector<4x32xf32>
    %c142 = arith.constant 142 : index
    %c0_227 = arith.constant 0 : index
    %291 = tpu.strided_load %arg21[%c142, %c0_227] {strides = array<i32: 2, 1>} : memref<200x32xf32, #tpu.memory_space<vmem>>, vector<4x32xf32>
    %292 = arith.maximumf %290, %291 : vector<4x32xf32>
    %293 = arith.maximumf %289, %292 : vector<4x32xf32>
    %c57 = arith.constant 57 : index
    %c0_228 = arith.constant 0 : index
    %294 = vector.load %arg18[%c57, %c0_228] : memref<88x32xf32, #tpu.memory_space<vmem>>, vector<4x32xf32>
    tpu.vector_store %arg18[%c57, %c0_228], %293 {strides = array<i32>} : memref<88x32xf32, #tpu.memory_space<vmem>>, vector<4x32xf32>,
    %c151 = arith.constant 151 : index
    %c0_229 = arith.constant 0 : index
    %295 = tpu.strided_load %arg21[%c151, %c0_229] {strides = array<i32: 2, 1>} : memref<200x32xf32, #tpu.memory_space<vmem>>, vector<4x32xf32>
    %c152 = arith.constant 152 : index
    %c0_230 = arith.constant 0 : index
    %296 = tpu.strided_load %arg21[%c152, %c0_230] {strides = array<i32: 2, 1>} : memref<200x32xf32, #tpu.memory_space<vmem>>, vector<4x32xf32>
    %297 = arith.maximumf %295, %296 : vector<4x32xf32>
    %c161 = arith.constant 161 : index
    %c0_231 = arith.constant 0 : index
    %298 = tpu.strided_load %arg21[%c161, %c0_231] {strides = array<i32: 2, 1>} : memref<200x32xf32, #tpu.memory_space<vmem>>, vector<4x32xf32>
    %c162 = arith.constant 162 : index
    %c0_232 = arith.constant 0 : index
    %299 = tpu.strided_load %arg21[%c162, %c0_232] {strides = array<i32: 2, 1>} : memref<200x32xf32, #tpu.memory_space<vmem>>, vector<4x32xf32>
    %300 = arith.maximumf %298, %299 : vector<4x32xf32>
    %301 = arith.maximumf %297, %300 : vector<4x32xf32>
    %c63_233 = arith.constant 63 : index
    %c0_234 = arith.constant 0 : index
    %302 = vector.load %arg18[%c63_233, %c0_234] : memref<88x32xf32, #tpu.memory_space<vmem>>, vector<4x32xf32>
    tpu.vector_store %arg18[%c63_233, %c0_234], %301 {strides = array<i32>} : memref<88x32xf32, #tpu.memory_space<vmem>>, vector<4x32xf32>,
    %c171 = arith.constant 171 : index
    %c0_235 = arith.constant 0 : index
    %303 = tpu.strided_load %arg21[%c171, %c0_235] {strides = array<i32: 2, 1>} : memref<200x32xf32, #tpu.memory_space<vmem>>, vector<4x32xf32>
    %c172 = arith.constant 172 : index
    %c0_236 = arith.constant 0 : index
    %304 = tpu.strided_load %arg21[%c172, %c0_236] {strides = array<i32: 2, 1>} : memref<200x32xf32, #tpu.memory_space<vmem>>, vector<4x32xf32>
    %305 = arith.maximumf %303, %304 : vector<4x32xf32>
    %c181_237 = arith.constant 181 : index
    %c0_238 = arith.constant 0 : index
    %306 = tpu.strided_load %arg21[%c181_237, %c0_238] {strides = array<i32: 2, 1>} : memref<200x32xf32, #tpu.memory_space<vmem>>, vector<4x32xf32>
    %c182_239 = arith.constant 182 : index
    %c0_240 = arith.constant 0 : index
    %307 = tpu.strided_load %arg21[%c182_239, %c0_240] {strides = array<i32: 2, 1>} : memref<200x32xf32, #tpu.memory_space<vmem>>, vector<4x32xf32>
    %308 = arith.maximumf %306, %307 : vector<4x32xf32>
    %309 = arith.maximumf %305, %308 : vector<4x32xf32>
    %c69 = arith.constant 69 : index
    %c0_241 = arith.constant 0 : index
    %310 = vector.load %arg18[%c69, %c0_241] : memref<88x32xf32, #tpu.memory_space<vmem>>, vector<4x32xf32>
    tpu.vector_store %arg18[%c69, %c0_241], %309 {strides = array<i32>} : memref<88x32xf32, #tpu.memory_space<vmem>>, vector<4x32xf32>,
    %c4_242 = arith.constant 4 : index
    %c0_243 = arith.constant 0 : index
    %311 = vector.load %arg9[%c4_242, %c0_243] : memref<16x128xf32, #tpu.memory_space<vmem>>, vector<1x64xf32>
    %cst_244 = arith.constant 0.000000e+00 : f32
    %312 = vector.broadcast %cst_244 : f32 to vector<72x64xf32>
    %c1_245 = arith.constant 1 : index
    %c0_246 = arith.constant 0 : index
    %313 = vector.load %arg18[%c1_245, %c0_246] : memref<88x32xf32, #tpu.memory_space<vmem>>, vector<72x32xf32>
    %c0_247 = arith.constant 0 : index
    %c0_248 = arith.constant 0 : index
    %c0_249 = arith.constant 0 : index
    %314 = vector.load %arg4[%c0_247, %c0_248, %c0_249] : memref<9x32x64xf32, #tpu.memory_space<vmem>>, vector<1x32x64xf32>
    %315 = vector.shape_cast %314 : vector<1x32x64xf32> to vector<32x64xf32>
    %cst_250 = arith.constant dense<0.000000e+00> : vector<72x64xf32>
    %316 = tpu.matmul %313, %315, %cst_250 {dimension_numbers = #tpu.dot_dimension_numbers<[1], [0], [0], [1], [0, 0, 1, 1], [], []>} : vector<72x32xf32>, vector<32x64xf32>, vector<72x64xf32> -> vector<72x64xf32>
    %317 = arith.addf %312, %316 : vector<72x64xf32>
    %c2_251 = arith.constant 2 : index
    %c0_252 = arith.constant 0 : index
    %318 = vector.load %arg18[%c2_251, %c0_252] : memref<88x32xf32, #tpu.memory_space<vmem>>, vector<72x32xf32>
    %c1_253 = arith.constant 1 : index
    %c0_254 = arith.constant 0 : index
    %c0_255 = arith.constant 0 : index
    %319 = vector.load %arg4[%c1_253, %c0_254, %c0_255] : memref<9x32x64xf32, #tpu.memory_space<vmem>>, vector<1x32x64xf32>
    %320 = vector.shape_cast %319 : vector<1x32x64xf32> to vector<32x64xf32>
    %cst_256 = arith.constant dense<0.000000e+00> : vector<72x64xf32>
    %321 = tpu.matmul %318, %320, %cst_256 {dimension_numbers = #tpu.dot_dimension_numbers<[1], [0], [0], [1], [0, 0, 1, 1], [], []>} : vector<72x32xf32>, vector<32x64xf32>, vector<72x64xf32> -> vector<72x64xf32>
    %322 = arith.addf %317, %321 : vector<72x64xf32>
    %c3_257 = arith.constant 3 : index
    %c0_258 = arith.constant 0 : index
    %323 = vector.load %arg18[%c3_257, %c0_258] : memref<88x32xf32, #tpu.memory_space<vmem>>, vector<72x32xf32>
    %c2_259 = arith.constant 2 : index
    %c0_260 = arith.constant 0 : index
    %c0_261 = arith.constant 0 : index
    %324 = vector.load %arg4[%c2_259, %c0_260, %c0_261] : memref<9x32x64xf32, #tpu.memory_space<vmem>>, vector<1x32x64xf32>
    %325 = vector.shape_cast %324 : vector<1x32x64xf32> to vector<32x64xf32>
    %cst_262 = arith.constant dense<0.000000e+00> : vector<72x64xf32>
    %326 = tpu.matmul %323, %325, %cst_262 {dimension_numbers = #tpu.dot_dimension_numbers<[1], [0], [0], [1], [0, 0, 1, 1], [], []>} : vector<72x32xf32>, vector<32x64xf32>, vector<72x64xf32> -> vector<72x64xf32>
    %327 = arith.addf %322, %326 : vector<72x64xf32>
    %c7_263 = arith.constant 7 : index
    %c0_264 = arith.constant 0 : index
    %328 = vector.load %arg18[%c7_263, %c0_264] : memref<88x32xf32, #tpu.memory_space<vmem>>, vector<72x32xf32>
    %c3_265 = arith.constant 3 : index
    %c0_266 = arith.constant 0 : index
    %c0_267 = arith.constant 0 : index
    %329 = vector.load %arg4[%c3_265, %c0_266, %c0_267] : memref<9x32x64xf32, #tpu.memory_space<vmem>>, vector<1x32x64xf32>
    %330 = vector.shape_cast %329 : vector<1x32x64xf32> to vector<32x64xf32>
    %cst_268 = arith.constant dense<0.000000e+00> : vector<72x64xf32>
    %331 = tpu.matmul %328, %330, %cst_268 {dimension_numbers = #tpu.dot_dimension_numbers<[1], [0], [0], [1], [0, 0, 1, 1], [], []>} : vector<72x32xf32>, vector<32x64xf32>, vector<72x64xf32> -> vector<72x64xf32>
    %332 = arith.addf %327, %331 : vector<72x64xf32>
    %c8_269 = arith.constant 8 : index
    %c0_270 = arith.constant 0 : index
    %333 = vector.load %arg18[%c8_269, %c0_270] : memref<88x32xf32, #tpu.memory_space<vmem>>, vector<72x32xf32>
    %c4_271 = arith.constant 4 : index
    %c0_272 = arith.constant 0 : index
    %c0_273 = arith.constant 0 : index
    %334 = vector.load %arg4[%c4_271, %c0_272, %c0_273] : memref<9x32x64xf32, #tpu.memory_space<vmem>>, vector<1x32x64xf32>
    %335 = vector.shape_cast %334 : vector<1x32x64xf32> to vector<32x64xf32>
    %cst_274 = arith.constant dense<0.000000e+00> : vector<72x64xf32>
    %336 = tpu.matmul %333, %335, %cst_274 {dimension_numbers = #tpu.dot_dimension_numbers<[1], [0], [0], [1], [0, 0, 1, 1], [], []>} : vector<72x32xf32>, vector<32x64xf32>, vector<72x64xf32> -> vector<72x64xf32>
    %337 = arith.addf %332, %336 : vector<72x64xf32>
    %c9 = arith.constant 9 : index
    %c0_275 = arith.constant 0 : index
    %338 = vector.load %arg18[%c9, %c0_275] : memref<88x32xf32, #tpu.memory_space<vmem>>, vector<72x32xf32>
    %c5_276 = arith.constant 5 : index
    %c0_277 = arith.constant 0 : index
    %c0_278 = arith.constant 0 : index
    %339 = vector.load %arg4[%c5_276, %c0_277, %c0_278] : memref<9x32x64xf32, #tpu.memory_space<vmem>>, vector<1x32x64xf32>
    %340 = vector.shape_cast %339 : vector<1x32x64xf32> to vector<32x64xf32>
    %cst_279 = arith.constant dense<0.000000e+00> : vector<72x64xf32>
    %341 = tpu.matmul %338, %340, %cst_279 {dimension_numbers = #tpu.dot_dimension_numbers<[1], [0], [0], [1], [0, 0, 1, 1], [], []>} : vector<72x32xf32>, vector<32x64xf32>, vector<72x64xf32> -> vector<72x64xf32>
    %342 = arith.addf %337, %341 : vector<72x64xf32>
    %c13_280 = arith.constant 13 : index
    %c0_281 = arith.constant 0 : index
    %343 = vector.load %arg18[%c13_280, %c0_281] : memref<88x32xf32, #tpu.memory_space<vmem>>, vector<72x32xf32>
    %c6_282 = arith.constant 6 : index
    %c0_283 = arith.constant 0 : index
    %c0_284 = arith.constant 0 : index
    %344 = vector.load %arg4[%c6_282, %c0_283, %c0_284] : memref<9x32x64xf32, #tpu.memory_space<vmem>>, vector<1x32x64xf32>
    %345 = vector.shape_cast %344 : vector<1x32x64xf32> to vector<32x64xf32>
    %cst_285 = arith.constant dense<0.000000e+00> : vector<72x64xf32>
    %346 = tpu.matmul %343, %345, %cst_285 {dimension_numbers = #tpu.dot_dimension_numbers<[1], [0], [0], [1], [0, 0, 1, 1], [], []>} : vector<72x32xf32>, vector<32x64xf32>, vector<72x64xf32> -> vector<72x64xf32>
    %347 = arith.addf %342, %346 : vector<72x64xf32>
    %c14 = arith.constant 14 : index
    %c0_286 = arith.constant 0 : index
    %348 = vector.load %arg18[%c14, %c0_286] : memref<88x32xf32, #tpu.memory_space<vmem>>, vector<72x32xf32>
    %c7_287 = arith.constant 7 : index
    %c0_288 = arith.constant 0 : index
    %c0_289 = arith.constant 0 : index
    %349 = vector.load %arg4[%c7_287, %c0_288, %c0_289] : memref<9x32x64xf32, #tpu.memory_space<vmem>>, vector<1x32x64xf32>
    %350 = vector.shape_cast %349 : vector<1x32x64xf32> to vector<32x64xf32>
    %cst_290 = arith.constant dense<0.000000e+00> : vector<72x64xf32>
    %351 = tpu.matmul %348, %350, %cst_290 {dimension_numbers = #tpu.dot_dimension_numbers<[1], [0], [0], [1], [0, 0, 1, 1], [], []>} : vector<72x32xf32>, vector<32x64xf32>, vector<72x64xf32> -> vector<72x64xf32>
    %352 = arith.addf %347, %351 : vector<72x64xf32>
    %c15_291 = arith.constant 15 : index
    %c0_292 = arith.constant 0 : index
    %353 = vector.load %arg18[%c15_291, %c0_292] : memref<88x32xf32, #tpu.memory_space<vmem>>, vector<72x32xf32>
    %c8_293 = arith.constant 8 : index
    %c0_294 = arith.constant 0 : index
    %c0_295 = arith.constant 0 : index
    %354 = vector.load %arg4[%c8_293, %c0_294, %c0_295] : memref<9x32x64xf32, #tpu.memory_space<vmem>>, vector<1x32x64xf32>
    %355 = vector.shape_cast %354 : vector<1x32x64xf32> to vector<32x64xf32>
    %cst_296 = arith.constant dense<0.000000e+00> : vector<72x64xf32>
    %356 = tpu.matmul %353, %355, %cst_296 {dimension_numbers = #tpu.dot_dimension_numbers<[1], [0], [0], [1], [0, 0, 1, 1], [], []>} : vector<72x32xf32>, vector<32x64xf32>, vector<72x64xf32> -> vector<72x64xf32>
    %357 = arith.addf %352, %356 : vector<72x64xf32>
    %358 = vector.broadcast %311 : vector<1x64xf32> to vector<72x64xf32>
    %359 = arith.addf %357, %358 : vector<72x64xf32>
    %cst_297 = arith.constant 0.000000e+00 : f32
    %360 = vector.broadcast %cst_297 : f32 to vector<72x64xf32>
    %361 = arith.maximumf %359, %360 : vector<72x64xf32>
    %c0_298 = arith.constant 0 : index
    %c0_299 = arith.constant 0 : index
    %362 = vector.load %arg22[%c0_298, %c0_299] : memref<72x64xf32, #tpu.memory_space<vmem>>, vector<72x64xf32>
    tpu.vector_store %arg22[%c0_298, %c0_299], %361 {strides = array<i32>} : memref<72x64xf32, #tpu.memory_space<vmem>>, vector<72x64xf32>,
    %c7_300 = arith.constant 7 : index
    %c0_301 = arith.constant 0 : index
    %363 = tpu.strided_load %arg22[%c7_300, %c0_301] {strides = array<i32: 2, 1>} : memref<72x64xf32, #tpu.memory_space<vmem>>, vector<2x64xf32>
    %c8_302 = arith.constant 8 : index
    %c0_303 = arith.constant 0 : index
    %364 = tpu.strided_load %arg22[%c8_302, %c0_303] {strides = array<i32: 2, 1>} : memref<72x64xf32, #tpu.memory_space<vmem>>, vector<2x64xf32>
    %365 = arith.maximumf %363, %364 : vector<2x64xf32>
    %c13_304 = arith.constant 13 : index
    %c0_305 = arith.constant 0 : index
    %366 = tpu.strided_load %arg22[%c13_304, %c0_305] {strides = array<i32: 2, 1>} : memref<72x64xf32, #tpu.memory_space<vmem>>, vector<2x64xf32>
    %c14_306 = arith.constant 14 : index
    %c0_307 = arith.constant 0 : index
    %367 = tpu.strided_load %arg22[%c14_306, %c0_307] {strides = array<i32: 2, 1>} : memref<72x64xf32, #tpu.memory_space<vmem>>, vector<2x64xf32>
    %368 = arith.maximumf %366, %367 : vector<2x64xf32>
    %369 = arith.maximumf %365, %368 : vector<2x64xf32>
    %c13_308 = arith.constant 13 : index
    %c0_309 = arith.constant 0 : index
    %370 = vector.load %arg19[%c13_308, %c0_309] : memref<48x64xf32, #tpu.memory_space<vmem>>, vector<2x64xf32>
    tpu.vector_store %arg19[%c13_308, %c0_309], %369 {strides = array<i32>} : memref<48x64xf32, #tpu.memory_space<vmem>>, vector<2x64xf32>,
    %c19_310 = arith.constant 19 : index
    %c0_311 = arith.constant 0 : index
    %371 = tpu.strided_load %arg22[%c19_310, %c0_311] {strides = array<i32: 2, 1>} : memref<72x64xf32, #tpu.memory_space<vmem>>, vector<2x64xf32>
    %c20_312 = arith.constant 20 : index
    %c0_313 = arith.constant 0 : index
    %372 = tpu.strided_load %arg22[%c20_312, %c0_313] {strides = array<i32: 2, 1>} : memref<72x64xf32, #tpu.memory_space<vmem>>, vector<2x64xf32>
    %373 = arith.maximumf %371, %372 : vector<2x64xf32>
    %c25 = arith.constant 25 : index
    %c0_314 = arith.constant 0 : index
    %374 = tpu.strided_load %arg22[%c25, %c0_314] {strides = array<i32: 2, 1>} : memref<72x64xf32, #tpu.memory_space<vmem>>, vector<2x64xf32>
    %c26 = arith.constant 26 : index
    %c0_315 = arith.constant 0 : index
    %375 = tpu.strided_load %arg22[%c26, %c0_315] {strides = array<i32: 2, 1>} : memref<72x64xf32, #tpu.memory_space<vmem>>, vector<2x64xf32>
    %376 = arith.maximumf %374, %375 : vector<2x64xf32>
    %377 = arith.maximumf %373, %376 : vector<2x64xf32>
    %c17 = arith.constant 17 : index
    %c0_316 = arith.constant 0 : index
    %378 = vector.load %arg19[%c17, %c0_316] : memref<48x64xf32, #tpu.memory_space<vmem>>, vector<2x64xf32>
    tpu.vector_store %arg19[%c17, %c0_316], %377 {strides = array<i32>} : memref<48x64xf32, #tpu.memory_space<vmem>>, vector<2x64xf32>,
    %c43_317 = arith.constant 43 : index
    %c0_318 = arith.constant 0 : index
    %379 = tpu.strided_load %arg22[%c43_317, %c0_318] {strides = array<i32: 2, 1>} : memref<72x64xf32, #tpu.memory_space<vmem>>, vector<2x64xf32>
    %c44 = arith.constant 44 : index
    %c0_319 = arith.constant 0 : index
    %380 = tpu.strided_load %arg22[%c44, %c0_319] {strides = array<i32: 2, 1>} : memref<72x64xf32, #tpu.memory_space<vmem>>, vector<2x64xf32>
    %381 = arith.maximumf %379, %380 : vector<2x64xf32>
    %c49 = arith.constant 49 : index
    %c0_320 = arith.constant 0 : index
    %382 = tpu.strided_load %arg22[%c49, %c0_320] {strides = array<i32: 2, 1>} : memref<72x64xf32, #tpu.memory_space<vmem>>, vector<2x64xf32>
    %c50 = arith.constant 50 : index
    %c0_321 = arith.constant 0 : index
    %383 = tpu.strided_load %arg22[%c50, %c0_321] {strides = array<i32: 2, 1>} : memref<72x64xf32, #tpu.memory_space<vmem>>, vector<2x64xf32>
    %384 = arith.maximumf %382, %383 : vector<2x64xf32>
    %385 = arith.maximumf %381, %384 : vector<2x64xf32>
    %c29 = arith.constant 29 : index
    %c0_322 = arith.constant 0 : index
    %386 = vector.load %arg19[%c29, %c0_322] : memref<48x64xf32, #tpu.memory_space<vmem>>, vector<2x64xf32>
    tpu.vector_store %arg19[%c29, %c0_322], %385 {strides = array<i32>} : memref<48x64xf32, #tpu.memory_space<vmem>>, vector<2x64xf32>,
    %c55_323 = arith.constant 55 : index
    %c0_324 = arith.constant 0 : index
    %387 = tpu.strided_load %arg22[%c55_323, %c0_324] {strides = array<i32: 2, 1>} : memref<72x64xf32, #tpu.memory_space<vmem>>, vector<2x64xf32>
    %c56_325 = arith.constant 56 : index
    %c0_326 = arith.constant 0 : index
    %388 = tpu.strided_load %arg22[%c56_325, %c0_326] {strides = array<i32: 2, 1>} : memref<72x64xf32, #tpu.memory_space<vmem>>, vector<2x64xf32>
    %389 = arith.maximumf %387, %388 : vector<2x64xf32>
    %c61_327 = arith.constant 61 : index
    %c0_328 = arith.constant 0 : index
    %390 = tpu.strided_load %arg22[%c61_327, %c0_328] {strides = array<i32: 2, 1>} : memref<72x64xf32, #tpu.memory_space<vmem>>, vector<2x64xf32>
    %c62_329 = arith.constant 62 : index
    %c0_330 = arith.constant 0 : index
    %391 = tpu.strided_load %arg22[%c62_329, %c0_330] {strides = array<i32: 2, 1>} : memref<72x64xf32, #tpu.memory_space<vmem>>, vector<2x64xf32>
    %392 = arith.maximumf %390, %391 : vector<2x64xf32>
    %393 = arith.maximumf %389, %392 : vector<2x64xf32>
    %c33_331 = arith.constant 33 : index
    %c0_332 = arith.constant 0 : index
    %394 = vector.load %arg19[%c33_331, %c0_332] : memref<48x64xf32, #tpu.memory_space<vmem>>, vector<2x64xf32>
    tpu.vector_store %arg19[%c33_331, %c0_332], %393 {strides = array<i32>} : memref<48x64xf32, #tpu.memory_space<vmem>>, vector<2x64xf32>,
    %c5_333 = arith.constant 5 : index
    %c0_334 = arith.constant 0 : index
    %395 = vector.load %arg9[%c5_333, %c0_334] : memref<16x128xf32, #tpu.memory_space<vmem>>, vector<1x128xf32>
    %c6_335 = arith.constant 6 : index
    %c0_336 = arith.constant 0 : index
    %396 = vector.load %arg9[%c6_335, %c0_336] : memref<16x128xf32, #tpu.memory_space<vmem>>, vector<1x128xf32>
    %c7_337 = arith.constant 7 : index
    %c0_338 = arith.constant 0 : index
    %397 = vector.load %arg9[%c7_337, %c0_338] : memref<16x128xf32, #tpu.memory_space<vmem>>, vector<1x128xf32>
    %cst_339 = arith.constant 0.000000e+00 : f32
    %398 = vector.broadcast %cst_339 : f32 to vector<32x128xf32>
    %c3_340 = arith.constant 3 : index
    %c0_341 = arith.constant 0 : index
    %399 = vector.load %arg19[%c3_340, %c0_341] : memref<48x64xf32, #tpu.memory_space<vmem>>, vector<32x64xf32>
    %c0_342 = arith.constant 0 : index
    %c0_343 = arith.constant 0 : index
    %c0_344 = arith.constant 0 : index
    %400 = vector.load %arg5[%c0_342, %c0_343, %c0_344] : memref<9x64x128xf32, #tpu.memory_space<vmem>>, vector<1x64x128xf32>
    %401 = vector.shape_cast %400 : vector<1x64x128xf32> to vector<64x128xf32>
    %cst_345 = arith.constant dense<0.000000e+00> : vector<32x128xf32>
    %402 = tpu.matmul %399, %401, %cst_345 {dimension_numbers = #tpu.dot_dimension_numbers<[1], [0], [0], [1], [0, 0, 1, 1], [], []>} : vector<32x64xf32>, vector<64x128xf32>, vector<32x128xf32> -> vector<32x128xf32>
    %403 = arith.addf %398, %402 : vector<32x128xf32>
    %c4_346 = arith.constant 4 : index
    %c0_347 = arith.constant 0 : index
    %404 = vector.load %arg19[%c4_346, %c0_347] : memref<48x64xf32, #tpu.memory_space<vmem>>, vector<32x64xf32>
    %c1_348 = arith.constant 1 : index
    %c0_349 = arith.constant 0 : index
    %c0_350 = arith.constant 0 : index
    %405 = vector.load %arg5[%c1_348, %c0_349, %c0_350] : memref<9x64x128xf32, #tpu.memory_space<vmem>>, vector<1x64x128xf32>
    %406 = vector.shape_cast %405 : vector<1x64x128xf32> to vector<64x128xf32>
    %cst_351 = arith.constant dense<0.000000e+00> : vector<32x128xf32>
    %407 = tpu.matmul %404, %406, %cst_351 {dimension_numbers = #tpu.dot_dimension_numbers<[1], [0], [0], [1], [0, 0, 1, 1], [], []>} : vector<32x64xf32>, vector<64x128xf32>, vector<32x128xf32> -> vector<32x128xf32>
    %408 = arith.addf %403, %407 : vector<32x128xf32>
    %c5_352 = arith.constant 5 : index
    %c0_353 = arith.constant 0 : index
    %409 = vector.load %arg19[%c5_352, %c0_353] : memref<48x64xf32, #tpu.memory_space<vmem>>, vector<32x64xf32>
    %c2_354 = arith.constant 2 : index
    %c0_355 = arith.constant 0 : index
    %c0_356 = arith.constant 0 : index
    %410 = vector.load %arg5[%c2_354, %c0_355, %c0_356] : memref<9x64x128xf32, #tpu.memory_space<vmem>>, vector<1x64x128xf32>
    %411 = vector.shape_cast %410 : vector<1x64x128xf32> to vector<64x128xf32>
    %cst_357 = arith.constant dense<0.000000e+00> : vector<32x128xf32>
    %412 = tpu.matmul %409, %411, %cst_357 {dimension_numbers = #tpu.dot_dimension_numbers<[1], [0], [0], [1], [0, 0, 1, 1], [], []>} : vector<32x64xf32>, vector<64x128xf32>, vector<32x128xf32> -> vector<32x128xf32>
    %413 = arith.addf %408, %412 : vector<32x128xf32>
    %c7_358 = arith.constant 7 : index
    %c0_359 = arith.constant 0 : index
    %414 = vector.load %arg19[%c7_358, %c0_359] : memref<48x64xf32, #tpu.memory_space<vmem>>, vector<32x64xf32>
    %c3_360 = arith.constant 3 : index
    %c0_361 = arith.constant 0 : index
    %c0_362 = arith.constant 0 : index
    %415 = vector.load %arg5[%c3_360, %c0_361, %c0_362] : memref<9x64x128xf32, #tpu.memory_space<vmem>>, vector<1x64x128xf32>
    %416 = vector.shape_cast %415 : vector<1x64x128xf32> to vector<64x128xf32>
    %cst_363 = arith.constant dense<0.000000e+00> : vector<32x128xf32>
    %417 = tpu.matmul %414, %416, %cst_363 {dimension_numbers = #tpu.dot_dimension_numbers<[1], [0], [0], [1], [0, 0, 1, 1], [], []>} : vector<32x64xf32>, vector<64x128xf32>, vector<32x128xf32> -> vector<32x128xf32>
    %418 = arith.addf %413, %417 : vector<32x128xf32>
    %c8_364 = arith.constant 8 : index
    %c0_365 = arith.constant 0 : index
    %419 = vector.load %arg19[%c8_364, %c0_365] : memref<48x64xf32, #tpu.memory_space<vmem>>, vector<32x64xf32>
    %c4_366 = arith.constant 4 : index
    %c0_367 = arith.constant 0 : index
    %c0_368 = arith.constant 0 : index
    %420 = vector.load %arg5[%c4_366, %c0_367, %c0_368] : memref<9x64x128xf32, #tpu.memory_space<vmem>>, vector<1x64x128xf32>
    %421 = vector.shape_cast %420 : vector<1x64x128xf32> to vector<64x128xf32>
    %cst_369 = arith.constant dense<0.000000e+00> : vector<32x128xf32>
    %422 = tpu.matmul %419, %421, %cst_369 {dimension_numbers = #tpu.dot_dimension_numbers<[1], [0], [0], [1], [0, 0, 1, 1], [], []>} : vector<32x64xf32>, vector<64x128xf32>, vector<32x128xf32> -> vector<32x128xf32>
    %423 = arith.addf %418, %422 : vector<32x128xf32>
    %c9_370 = arith.constant 9 : index
    %c0_371 = arith.constant 0 : index
    %424 = vector.load %arg19[%c9_370, %c0_371] : memref<48x64xf32, #tpu.memory_space<vmem>>, vector<32x64xf32>
    %c5_372 = arith.constant 5 : index
    %c0_373 = arith.constant 0 : index
    %c0_374 = arith.constant 0 : index
    %425 = vector.load %arg5[%c5_372, %c0_373, %c0_374] : memref<9x64x128xf32, #tpu.memory_space<vmem>>, vector<1x64x128xf32>
    %426 = vector.shape_cast %425 : vector<1x64x128xf32> to vector<64x128xf32>
    %cst_375 = arith.constant dense<0.000000e+00> : vector<32x128xf32>
    %427 = tpu.matmul %424, %426, %cst_375 {dimension_numbers = #tpu.dot_dimension_numbers<[1], [0], [0], [1], [0, 0, 1, 1], [], []>} : vector<32x64xf32>, vector<64x128xf32>, vector<32x128xf32> -> vector<32x128xf32>
    %428 = arith.addf %423, %427 : vector<32x128xf32>
    %c11_376 = arith.constant 11 : index
    %c0_377 = arith.constant 0 : index
    %429 = vector.load %arg19[%c11_376, %c0_377] : memref<48x64xf32, #tpu.memory_space<vmem>>, vector<32x64xf32>
    %c6_378 = arith.constant 6 : index
    %c0_379 = arith.constant 0 : index
    %c0_380 = arith.constant 0 : index
    %430 = vector.load %arg5[%c6_378, %c0_379, %c0_380] : memref<9x64x128xf32, #tpu.memory_space<vmem>>, vector<1x64x128xf32>
    %431 = vector.shape_cast %430 : vector<1x64x128xf32> to vector<64x128xf32>
    %cst_381 = arith.constant dense<0.000000e+00> : vector<32x128xf32>
    %432 = tpu.matmul %429, %431, %cst_381 {dimension_numbers = #tpu.dot_dimension_numbers<[1], [0], [0], [1], [0, 0, 1, 1], [], []>} : vector<32x64xf32>, vector<64x128xf32>, vector<32x128xf32> -> vector<32x128xf32>
    %433 = arith.addf %428, %432 : vector<32x128xf32>
    %c12_382 = arith.constant 12 : index
    %c0_383 = arith.constant 0 : index
    %434 = vector.load %arg19[%c12_382, %c0_383] : memref<48x64xf32, #tpu.memory_space<vmem>>, vector<32x64xf32>
    %c7_384 = arith.constant 7 : index
    %c0_385 = arith.constant 0 : index
    %c0_386 = arith.constant 0 : index
    %435 = vector.load %arg5[%c7_384, %c0_385, %c0_386] : memref<9x64x128xf32, #tpu.memory_space<vmem>>, vector<1x64x128xf32>
    %436 = vector.shape_cast %435 : vector<1x64x128xf32> to vector<64x128xf32>
    %cst_387 = arith.constant dense<0.000000e+00> : vector<32x128xf32>
    %437 = tpu.matmul %434, %436, %cst_387 {dimension_numbers = #tpu.dot_dimension_numbers<[1], [0], [0], [1], [0, 0, 1, 1], [], []>} : vector<32x64xf32>, vector<64x128xf32>, vector<32x128xf32> -> vector<32x128xf32>
    %438 = arith.addf %433, %437 : vector<32x128xf32>
    %c13_388 = arith.constant 13 : index
    %c0_389 = arith.constant 0 : index
    %439 = vector.load %arg19[%c13_388, %c0_389] : memref<48x64xf32, #tpu.memory_space<vmem>>, vector<32x64xf32>
    %c8_390 = arith.constant 8 : index
    %c0_391 = arith.constant 0 : index
    %c0_392 = arith.constant 0 : index
    %440 = vector.load %arg5[%c8_390, %c0_391, %c0_392] : memref<9x64x128xf32, #tpu.memory_space<vmem>>, vector<1x64x128xf32>
    %441 = vector.shape_cast %440 : vector<1x64x128xf32> to vector<64x128xf32>
    %cst_393 = arith.constant dense<0.000000e+00> : vector<32x128xf32>
    %442 = tpu.matmul %439, %441, %cst_393 {dimension_numbers = #tpu.dot_dimension_numbers<[1], [0], [0], [1], [0, 0, 1, 1], [], []>} : vector<32x64xf32>, vector<64x128xf32>, vector<32x128xf32> -> vector<32x128xf32>
    %443 = arith.addf %438, %442 : vector<32x128xf32>
    %444 = vector.broadcast %395 : vector<1x128xf32> to vector<32x128xf32>
    %445 = arith.addf %443, %444 : vector<32x128xf32>
    %446 = arith.negf %445 : vector<32x128xf32>
    %447 = math.exp %446 : vector<32x128xf32>
    %cst_394 = arith.constant 1.000000e+00 : f32
    %448 = vector.broadcast %cst_394 : f32 to vector<32x128xf32>
    %449 = arith.addf %448, %447 : vector<32x128xf32>
    %450 = arith.divf %448, %449 : vector<32x128xf32>
    %451 = arith.mulf %445, %450 : vector<32x128xf32>
    %452 = vector.broadcast %396 : vector<1x128xf32> to vector<32x128xf32>
    %453 = arith.mulf %451, %452 : vector<32x128xf32>
    %454 = vector.broadcast %397 : vector<1x128xf32> to vector<32x128xf32>
    %455 = arith.addf %453, %454 : vector<32x128xf32>
    %cst_395 = arith.constant 0.000000e+00 : f32
    %456 = vector.broadcast %cst_395 : f32 to vector<32x128xf32>
    %457 = arith.maximumf %455, %456 : vector<32x128xf32>
    %c0_396 = arith.constant 0 : index
    %c0_397 = arith.constant 0 : index
    %458 = vector.load %arg23[%c0_396, %c0_397] : memref<32x128xf32, #tpu.memory_space<vmem>>, vector<32x128xf32>
    tpu.vector_store %arg23[%c0_396, %c0_397], %457 {strides = array<i32>} : memref<32x128xf32, #tpu.memory_space<vmem>>, vector<32x128xf32>,
    %c5_398 = arith.constant 5 : index
    %c0_399 = arith.constant 0 : index
    %459 = tpu.strided_load %arg23[%c5_398, %c0_399] {strides = array<i32: 16, 1>} : memref<32x128xf32, #tpu.memory_space<vmem>>, vector<2x128xf32>
    %c6_400 = arith.constant 6 : index
    %c0_401 = arith.constant 0 : index
    %460 = tpu.strided_load %arg23[%c6_400, %c0_401] {strides = array<i32: 16, 1>} : memref<32x128xf32, #tpu.memory_space<vmem>>, vector<2x128xf32>
    %461 = arith.maximumf %459, %460 : vector<2x128xf32>
    %c9_402 = arith.constant 9 : index
    %c0_403 = arith.constant 0 : index
    %462 = tpu.strided_load %arg23[%c9_402, %c0_403] {strides = array<i32: 16, 1>} : memref<32x128xf32, #tpu.memory_space<vmem>>, vector<2x128xf32>
    %c10 = arith.constant 10 : index
    %c0_404 = arith.constant 0 : index
    %463 = tpu.strided_load %arg23[%c10, %c0_404] {strides = array<i32: 16, 1>} : memref<32x128xf32, #tpu.memory_space<vmem>>, vector<2x128xf32>
    %464 = arith.maximumf %462, %463 : vector<2x128xf32>
    %465 = arith.maximumf %461, %464 : vector<2x128xf32>
    %c0_405 = arith.constant 0 : index
    %c0_406 = arith.constant 0 : index
    %466 = vector.load %arg10[%c0_405, %c0_406] : memref<64x2xf32, #tpu.memory_space<vmem>>, vector<64x2xf32>
    %cst_407 = arith.constant dense<0.000000e+00> : vector<64x128xf32>
    %467 = tpu.matmul %466, %465, %cst_407 {dimension_numbers = #tpu.dot_dimension_numbers<[1], [0], [0], [1], [0, 0, 1, 1], [], []>} : vector<64x2xf32>, vector<2x128xf32>, vector<64x128xf32> -> vector<64x128xf32>
    %c0_408 = arith.constant 0 : index
    %c0_409 = arith.constant 0 : index
    %468 = vector.load %arg12[%c0_408, %c0_409] : memref<64x128xf32, #tpu.memory_space<vmem>>, vector<64x128xf32>
    %469 = arith.mulf %467, %468 : vector<64x128xf32>
    %c0_410 = arith.constant 0 : index
    %c0_411 = arith.constant 0 : index
    %470 = vector.load %arg6[%c0_410, %c0_411] : memref<128x48xf32, #tpu.memory_space<vmem>>, vector<128x48xf32>
    %cst_412 = arith.constant dense<0.000000e+00> : vector<64x48xf32>
    %471 = tpu.matmul %469, %470, %cst_412 {dimension_numbers = #tpu.dot_dimension_numbers<[1], [0], [0], [1], [0, 0, 1, 1], [], []>} : vector<64x128xf32>, vector<128x48xf32>, vector<64x48xf32> -> vector<64x48xf32>
    %c8_413 = arith.constant 8 : index
    %c0_414 = arith.constant 0 : index
    %472 = vector.load %arg9[%c8_413, %c0_414] : memref<16x128xf32, #tpu.memory_space<vmem>>, vector<1x48xf32>
    %473 = vector.broadcast %472 : vector<1x48xf32> to vector<64x48xf32>
    %474 = arith.addf %471, %473 : vector<64x48xf32>
    %475 = vector.extract_strided_slice %474 {offsets = [0, 0], sizes = [64, 16], strides = [1, 1]} : vector<64x48xf32> to vector<64x16xf32>
    %476 = vector.extract_strided_slice %474 {offsets = [0, 16], sizes = [64, 16], strides = [1, 1]} : vector<64x48xf32> to vector<64x16xf32>
    %477 = vector.extract_strided_slice %474 {offsets = [0, 32], sizes = [64, 16], strides = [1, 1]} : vector<64x48xf32> to vector<64x16xf32>
    %cst_415 = arith.constant dense<0.000000e+00> : vector<64x64xf32>
    %478 = tpu.matmul %475, %476, %cst_415 {dimension_numbers = #tpu.dot_dimension_numbers<[1], [1], [0], [0], [0, 0, 1, 0], [], []>} : vector<64x16xf32>, vector<64x16xf32>, vector<64x64xf32> -> vector<64x64xf32>
    %cst_416 = arith.constant 2.500000e-01 : f32
    %479 = vector.broadcast %cst_416 : f32 to vector<64x64xf32>
    %480 = arith.mulf %478, %479 : vector<64x64xf32>
    %c0_417 = arith.constant 0 : index
    %c0_418 = arith.constant 0 : index
    %481 = vector.load %arg13[%c0_417, %c0_418] : memref<64x64xf32, #tpu.memory_space<vmem>>, vector<64x64xf32>
    %482 = arith.addf %480, %481 : vector<64x64xf32>
    %cst_419 = arith.constant dense<0xFF800000> : vector<64xf32>
    %483 = vector.multi_reduction <maximumf>, %482, %cst_419 [1] : vector<64x64xf32> to vector<64xf32>
    %484 = vector.shape_cast %483 : vector<64xf32> to vector<64x1xf32>
    %485 = vector.broadcast %484 : vector<64x1xf32> to vector<64x64xf32>
    %486 = arith.subf %482, %485 : vector<64x64xf32>
    %487 = math.exp %486 : vector<64x64xf32>
    %cst_420 = arith.constant dense<0.000000e+00> : vector<64xf32>
    %488 = vector.multi_reduction <add>, %487, %cst_420 [1] : vector<64x64xf32> to vector<64xf32>
    %489 = vector.shape_cast %488 : vector<64xf32> to vector<64x1xf32>
    %490 = tpu.reciprocal %489 {approx = true} : vector<64x1xf32> -> vector<64x1xf32>
    %491 = vector.broadcast %490 : vector<64x1xf32> to vector<64x64xf32>
    %492 = arith.mulf %487, %491 : vector<64x64xf32>
    %cst_421 = arith.constant dense<0.000000e+00> : vector<64x16xf32>
    %493 = tpu.matmul %492, %477, %cst_421 {dimension_numbers = #tpu.dot_dimension_numbers<[1], [0], [0], [1], [0, 0, 1, 1], [], []>} : vector<64x64xf32>, vector<64x16xf32>, vector<64x16xf32> -> vector<64x16xf32>
    %c0_422 = arith.constant 0 : index
    %c0_423 = arith.constant 0 : index
    %494 = vector.load %arg14[%c0_422, %c0_423] : memref<16x512xf32, #tpu.memory_space<vmem>>, vector<16x512xf32>
    %cst_424 = arith.constant dense<0.000000e+00> : vector<64x512xf32>
    %495 = tpu.matmul %493, %494, %cst_424 {dimension_numbers = #tpu.dot_dimension_numbers<[1], [0], [0], [1], [0, 0, 1, 1], [], []>} : vector<64x16xf32>, vector<16x512xf32>, vector<64x512xf32> -> vector<64x512xf32>
    %c0_425 = arith.constant 0 : index
    %c0_426 = arith.constant 0 : index
    %496 = vector.load %arg15[%c0_425, %c0_426] : memref<64x512xf32, #tpu.memory_space<vmem>>, vector<64x512xf32>
    %497 = arith.mulf %495, %496 : vector<64x512xf32>
    %c0_427 = arith.constant 0 : index
    %c0_428 = arith.constant 0 : index
    %498 = vector.load %arg11[%c0_427, %c0_428] : memref<2x64xf32, #tpu.memory_space<vmem>>, vector<2x64xf32>
    %cst_429 = arith.constant dense<0.000000e+00> : vector<2x512xf32>
    %499 = tpu.matmul %498, %497, %cst_429 {dimension_numbers = #tpu.dot_dimension_numbers<[1], [0], [0], [1], [0, 0, 1, 1], [], []>} : vector<2x64xf32>, vector<64x512xf32>, vector<2x512xf32> -> vector<2x512xf32>
    %c0_430 = arith.constant 0 : index
    %c0_431 = arith.constant 0 : index
    %500 = vector.load %arg7[%c0_430, %c0_431] : memref<512x32xf32, #tpu.memory_space<vmem>>, vector<512x32xf32>
    %cst_432 = arith.constant dense<0.000000e+00> : vector<2x32xf32>
    %501 = tpu.matmul %499, %500, %cst_432 {dimension_numbers = #tpu.dot_dimension_numbers<[1], [0], [0], [1], [0, 0, 1, 1], [], []>} : vector<2x512xf32>, vector<512x32xf32>, vector<2x32xf32> -> vector<2x32xf32>
    %c9_433 = arith.constant 9 : index
    %c0_434 = arith.constant 0 : index
    %502 = vector.load %arg9[%c9_433, %c0_434] : memref<16x128xf32, #tpu.memory_space<vmem>>, vector<1x32xf32>
    %503 = vector.broadcast %502 : vector<1x32xf32> to vector<2x32xf32>
    %504 = arith.addf %501, %503 : vector<2x32xf32>
    %cst_435 = arith.constant 0.000000e+00 : f32
    %505 = vector.broadcast %cst_435 : f32 to vector<2x32xf32>
    %506 = arith.maximumf %504, %505 : vector<2x32xf32>
    %c0_436 = arith.constant 0 : index
    %c0_437 = arith.constant 0 : index
    %507 = vector.load %arg8[%c0_436, %c0_437] : memref<32x3xf32, #tpu.memory_space<vmem>>, vector<32x3xf32>
    %cst_438 = arith.constant dense<0.000000e+00> : vector<2x3xf32>
    %508 = tpu.matmul %506, %507, %cst_438 {dimension_numbers = #tpu.dot_dimension_numbers<[1], [0], [0], [1], [0, 0, 1, 1], [], []>} : vector<2x32xf32>, vector<32x3xf32>, vector<2x3xf32> -> vector<2x3xf32>
    %c10_439 = arith.constant 10 : index
    %c0_440 = arith.constant 0 : index
    %509 = vector.load %arg9[%c10_439, %c0_440] : memref<16x128xf32, #tpu.memory_space<vmem>>, vector<1x3xf32>
    %510 = vector.broadcast %509 : vector<1x3xf32> to vector<2x3xf32>
    %511 = arith.addf %508, %510 : vector<2x3xf32>
    %c0_441 = arith.constant 0 : index
    %c0_442 = arith.constant 0 : index
    %512 = vector.load %arg16[%c0_441, %c0_442] : memref<2x3xf32, #tpu.memory_space<vmem>>, vector<2x3xf32>
    tpu.vector_store %arg16[%c0_441, %c0_442], %511 {strides = array<i32>} : memref<2x3xf32, #tpu.memory_space<vmem>>, vector<2x3xf32>,
    return
  }
  func.func @transform_0(%arg0: i32) -> (i32, i32) {
    %c0_i32 = arith.constant 0 : i32
    %c0_i32_0 = arith.constant 0 : i32
    return %arg0, %c0_i32 : i32, i32
  }
  func.func @transform_1(%arg0: i32) -> (i32, i32, i32) {
    %c0_i32 = arith.constant 0 : i32
    %c0_i32_0 = arith.constant 0 : i32
    %c0_i32_1 = arith.constant 0 : i32
    %c0_i32_2 = arith.constant 0 : i32
    return %c0_i32, %c0_i32_0, %c0_i32_1 : i32, i32, i32
  }
  func.func @transform_2(%arg0: i32) -> (i32, i32, i32) {
    %c0_i32 = arith.constant 0 : i32
    %c0_i32_0 = arith.constant 0 : i32
    %c0_i32_1 = arith.constant 0 : i32
    %c0_i32_2 = arith.constant 0 : i32
    return %c0_i32, %c0_i32_0, %c0_i32_1 : i32, i32, i32
  }
  func.func @transform_3(%arg0: i32) -> (i32, i32, i32) {
    %c0_i32 = arith.constant 0 : i32
    %c0_i32_0 = arith.constant 0 : i32
    %c0_i32_1 = arith.constant 0 : i32
    %c0_i32_2 = arith.constant 0 : i32
    return %c0_i32, %c0_i32_0, %c0_i32_1 : i32, i32, i32
  }
  func.func @transform_4(%arg0: i32) -> (i32, i32, i32) {
    %c0_i32 = arith.constant 0 : i32
    %c0_i32_0 = arith.constant 0 : i32
    %c0_i32_1 = arith.constant 0 : i32
    %c0_i32_2 = arith.constant 0 : i32
    return %c0_i32, %c0_i32_0, %c0_i32_1 : i32, i32, i32
  }
  func.func @transform_5(%arg0: i32) -> (i32, i32) {
    %c0_i32 = arith.constant 0 : i32
    %c0_i32_0 = arith.constant 0 : i32
    %c0_i32_1 = arith.constant 0 : i32
    return %c0_i32, %c0_i32_0 : i32, i32
  }
  func.func @transform_6(%arg0: i32) -> (i32, i32) {
    %c0_i32 = arith.constant 0 : i32
    %c0_i32_0 = arith.constant 0 : i32
    %c0_i32_1 = arith.constant 0 : i32
    return %c0_i32, %c0_i32_0 : i32, i32
  }
  func.func @transform_7(%arg0: i32) -> (i32, i32) {
    %c0_i32 = arith.constant 0 : i32
    %c0_i32_0 = arith.constant 0 : i32
    %c0_i32_1 = arith.constant 0 : i32
    return %c0_i32, %c0_i32_0 : i32, i32
  }
  func.func @transform_8(%arg0: i32) -> (i32, i32) {
    %c0_i32 = arith.constant 0 : i32
    %c0_i32_0 = arith.constant 0 : i32
    %c0_i32_1 = arith.constant 0 : i32
    return %c0_i32, %c0_i32_0 : i32, i32
  }
  func.func @transform_9(%arg0: i32) -> (i32, i32) {
    %c0_i32 = arith.constant 0 : i32
    %c0_i32_0 = arith.constant 0 : i32
    %c0_i32_1 = arith.constant 0 : i32
    return %c0_i32, %c0_i32_0 : i32, i32
  }
  func.func @transform_10(%arg0: i32) -> (i32, i32) {
    %c0_i32 = arith.constant 0 : i32
    %c0_i32_0 = arith.constant 0 : i32
    %c0_i32_1 = arith.constant 0 : i32
    return %c0_i32, %c0_i32_0 : i32, i32
  }
  func.func @transform_11(%arg0: i32) -> (i32, i32) {
    %c0_i32 = arith.constant 0 : i32
    %c0_i32_0 = arith.constant 0 : i32
    %c0_i32_1 = arith.constant 0 : i32
    return %c0_i32, %c0_i32_0 : i32, i32
  }
  func.func @transform_12(%arg0: i32) -> (i32, i32) {
    %c0_i32 = arith.constant 0 : i32
    %c0_i32_0 = arith.constant 0 : i32
    %c0_i32_1 = arith.constant 0 : i32
    return %c0_i32, %c0_i32_0 : i32, i32
  }
  func.func @transform_13(%arg0: i32) -> (i32, i32) {
    %c0_i32 = arith.constant 0 : i32
    %c0_i32_0 = arith.constant 0 : i32
    %c0_i32_1 = arith.constant 0 : i32
    return %c0_i32, %c0_i32_0 : i32, i32
  }
  func.func @transform_14(%arg0: i32) -> (i32, i32) {
    %c0_i32 = arith.constant 0 : i32
    %c0_i32_0 = arith.constant 0 : i32
    %c0_i32_1 = arith.constant 0 : i32
    return %c0_i32, %c0_i32_0 : i32, i32
  }
  func.func @transform_15(%arg0: i32) -> (i32, i32) {
    %c0_i32 = arith.constant 0 : i32
    %c0_i32_0 = arith.constant 0 : i32
    return %arg0, %c0_i32 : i32, i32
  }
}

</mosaic_0001>

<llo_original>
// kernel: forward.1
$region0: #{forward.1}
  #allocation0 [shape = 'u32[]', space=smem, size = 0x4, offset = 0x4, fixed_abs, tag = 'smem constant byte address 0x4 - core index']
  #allocation1 [shape = 'u32[72,128]{1,0:T(1,128)}', space=vmem, size = 0x9000, scoped, tag = 'internal scratch']
  #allocation2 [shape = 'f32[224,16]{1,0:T(8,128)}', space=vmem, size = 0x1c000, scoped, tag = 'scratch operand']
  #allocation3 [shape = 'f32[88,32]{1,0:T(8,128)}', space=vmem, size = 0xb000, scoped, tag = 'scratch operand']
  #allocation4 [shape = 'f32[48,64]{1,0:T(8,128)}', space=vmem, size = 0x6000, scoped, tag = 'scratch operand']
  #allocation5 [shape = 'f32[648,16]{1,0:T(8,128)}', space=vmem, size = 0x51000, scoped, tag = 'scratch operand']
  #allocation6 [shape = 'f32[200,32]{1,0:T(8,128)}', space=vmem, size = 0x19000, scoped, tag = 'scratch operand']
  #allocation7 [shape = 'f32[72,64]{1,0:T(8,128)}', space=vmem, size = 0x9000, scoped, tag = 'scratch operand']
  #allocation8 [shape = 'f32[32,128]{1,0:T(8,128)}', space=vmem, size = 0x4000, scoped, tag = 'scratch operand']
  %s0 = inlined_call_operand.vmem [shape: f32[688,3], index: 0, kind: input, shape index: {}]
  %s1 = inlined_call_operand.vmem [shape: f32[9,3,16], index: 1, kind: input, shape index: {}]
  %s2 = inlined_call_operand.vmem [shape: f32[9,16,32], index: 2, kind: input, shape index: {}]
  %s3 = inlined_call_operand.vmem [shape: f32[9,32,64], index: 3, kind: input, shape index: {}]
  %s4 = inlined_call_operand.vmem [shape: f32[9,64,128], index: 4, kind: input, shape index: {}]
  %s5 = inlined_call_operand.vmem [shape: f32[128,48], index: 5, kind: input, shape index: {}]
  %s6 = inlined_call_operand.vmem [shape: f32[512,32], index: 6, kind: input, shape index: {}]
  %s7 = inlined_call_operand.vmem [shape: f32[32,3], index: 7, kind: input, shape index: {}]
  %s8 = inlined_call_operand.vmem [shape: f32[16,128], index: 8, kind: input, shape index: {}]
  %s9 = inlined_call_operand.vmem [shape: f32[64,2], index: 9, kind: input, shape index: {}]
  %s10 = inlined_call_operand.vmem [shape: f32[2,64], index: 10, kind: input, shape index: {}]
  %s11 = inlined_call_operand.vmem [shape: f32[64,128], index: 11, kind: input, shape index: {}]
  %s12 = inlined_call_operand.vmem [shape: f32[64,64], index: 12, kind: input, shape index: {}]
  %s13 = inlined_call_operand.vmem [shape: f32[16,512], index: 13, kind: input, shape index: {}]
  %s14 = inlined_call_operand.vmem [shape: f32[64,512], index: 14, kind: input, shape index: {}]
  %s15 = inlined_call_operand.hbm [shape: f32[2,3], index: 15, kind: output, shape index: {}]
  %s16 = sld [smem:[#allocation0]]
  $region74: #{forward.1} parent=0
    _
  %s18 = ssub.s32 1, %s16
  %s19 = scalar_select 0, %s18, %s16
  $region1: #{forward.1} parent=0
    #allocation9 [shape = 'u8[1024]{0}', space=vmem, size = 0x400, scoped, tag = 'output window, operand 0, single buffered']
    #allocation10 [shape = 's32[1]{0}', space=sflag, size = 0x4, scoped, tag = 'scoped memory for forward.1']
    %20 = vsyncpa [#allocation10], 0
    // Predicated region
    $region2: #{forward.1} parent=1 // pred_check
      _
    $region3: #{forward.1} parent=1 // pred_check_branch
      %22 = sbr.rel (0) target = $region5
    $region4: #{forward.1} parent=1 // pred_region
      _
    $region5: #{forward.1} parent=1 // pred_fallthru
      _
    // Predicated region
    $region6: #{forward.1} parent=1 // pred_check
      _
    $region7: #{forward.1} parent=1 // pred_check_branch
      %24 = sbr.rel (0) target = $region9
    $region8: #{forward.1} parent=1 // pred_region
      _
    $region9: #{forward.1} parent=1 // pred_fallthru
      _
    // Predicated region
    $region10: #{forward.1} parent=1 // pred_check
      _
    $region11: #{forward.1} parent=1 // pred_check_branch
      %26 = sbr.rel (0) target = $region13
    $region12: #{forward.1} parent=1 // pred_region
      _
    $region13: #{forward.1} parent=1 // pred_fallthru
      _
    // Predicated region
    $region14: #{forward.1} parent=1 // pred_check
      _
    $region15: #{forward.1} parent=1 // pred_check_branch
      %28 = sbr.rel (0) target = $region17
    $region16: #{forward.1} parent=1 // pred_region
      _
    $region17: #{forward.1} parent=1 // pred_fallthru
      _
    // Predicated region
    $region18: #{forward.1} parent=1 // pred_check
      _
    $region19: #{forward.1} parent=1 // pred_check_branch
      %30 = sbr.rel (0) target = $region21
    $region20: #{forward.1} parent=1 // pred_region
      _
    $region21: #{forward.1} parent=1 // pred_fallthru
      _
    // Predicated region
    $region22: #{forward.1} parent=1 // pred_check
      _
    $region23: #{forward.1} parent=1 // pred_check_branch
      %32 = sbr.rel (0) target = $region25
    $region24: #{forward.1} parent=1 // pred_region
      _
    $region25: #{forward.1} parent=1 // pred_fallthru
      _
    // Predicated region
    $region26: #{forward.1} parent=1 // pred_check
      _
    $region27: #{forward.1} parent=1 // pred_check_branch
      %34 = sbr.rel (0) target = $region29
    $region28: #{forward.1} parent=1 // pred_region
      _
    $region29: #{forward.1} parent=1 // pred_fallthru
      _
    // Predicated region
    $region30: #{forward.1} parent=1 // pred_check
      _
    $region31: #{forward.1} parent=1 // pred_check_branch
      %36 = sbr.rel (0) target = $region33
    $region32: #{forward.1} parent=1 // pred_region
      _
    $region33: #{forward.1} parent=1 // pred_fallthru
      _
    // Predicated region
    $region34: #{forward.1} parent=1 // pred_check
      _
    $region35: #{forward.1} parent=1 // pred_check_branch
      %38 = sbr.rel (0) target = $region37
    $region36: #{forward.1} parent=1 // pred_region
      _
    $region37: #{forward.1} parent=1 // pred_fallthru
      _
    // Predicated region
    $region38: #{forward.1} parent=1 // pred_check
      _
    $region39: #{forward.1} parent=1 // pred_check_branch
      %40 = sbr.rel (0) target = $region41
    $region40: #{forward.1} parent=1 // pred_region
      _
    $region41: #{forward.1} parent=1 // pred_fallthru
      _
    // Predicated region
    $region42: #{forward.1} parent=1 // pred_check
      _
    $region43: #{forward.1} parent=1 // pred_check_branch
      %42 = sbr.rel (0) target = $region45
    $region44: #{forward.1} parent=1 // pred_region
      _
    $region45: #{forward.1} parent=1 // pred_fallthru
      _
    // Predicated region
    $region46: #{forward.1} parent=1 // pred_check
      _
    $region47: #{forward.1} parent=1 // pred_check_branch
      %44 = sbr.rel (0) target = $region49
    $region48: #{forward.1} parent=1 // pred_region
      _
    $region49: #{forward.1} parent=1 // pred_fallthru
      _
    // Predicated region
    $region50: #{forward.1} parent=1 // pred_check
      _
    $region51: #{forward.1} parent=1 // pred_check_branch
      %46 = sbr.rel (0) target = $region53
    $region52: #{forward.1} parent=1 // pred_region
      _
    $region53: #{forward.1} parent=1 // pred_fallthru
      _
    // Predicated region
    $region54: #{forward.1} parent=1 // pred_check
      _
    $region55: #{forward.1} parent=1 // pred_check_branch
      %48 = sbr.rel (0) target = $region57
    $region56: #{forward.1} parent=1 // pred_region
      _
    $region57: #{forward.1} parent=1 // pred_fallthru
      _
    // Predicated region
    $region58: #{forward.1} parent=1 // pred_check
      _
    $region59: #{forward.1} parent=1 // pred_check_branch
      %50 = sbr.rel (0) target = $region61
    $region60: #{forward.1} parent=1 // pred_region
      _
    $region61: #{forward.1} parent=1 // pred_fallthru
      _
    %p51 = scmp.eq.s32.totalorder 0, 0
    // Predicated region
    $region62: #{forward.1} parent=1 // pred_check
      %p52 = pneg %p51
    $region63: #{forward.1} parent=1 // pred_check_branch
      %54 = sbr.rel (%p52) target = $region65
    $region64: #{forward.1} parent=1 // pred_region
      %vm55 = vcmask 130048
      %56 = vst.msk [vmem:[#allocation2] sm:$0xff] %vm55, 0.0
      %57 = vst.msk [vmem:[#allocation2 + $0x8] sm:$0xff] %vm55, 0.0
      %58 = vst.msk [vmem:[#allocation2 + $0x10] sm:$0xff] %vm55, 0.0
      %59 = vst.msk [vmem:[#allocation2 + $0x18] sm:$0xff] %vm55, 0.0
      %60 = vst.msk [vmem:[#allocation2 + $0x20] sm:$0xff] %vm55, 0.0
      %61 = vst.msk [vmem:[#allocation2 + $0x28] sm:$0xff] %vm55, 0.0
      %62 = vst.msk [vmem:[#allocation2 + $0x30] sm:$0xff] %vm55, 0.0
      %63 = vst.msk [vmem:[#allocation2 + $0x38] sm:$0xff] %vm55, 0.0
      %64 = vst.msk [vmem:[#allocation2 + $0x40] sm:$0xff] %vm55, 0.0
      %65 = vst.msk [vmem:[#allocation2 + $0x48] sm:$0xff] %vm55, 0.0
      %66 = vst.msk [vmem:[#allocation2 + $0x50] sm:$0xff] %vm55, 0.0
      %67 = vst.msk [vmem:[#allocation2 + $0x58] sm:$0xff] %vm55, 0.0
      %68 = vst.msk [vmem:[#allocation2 + $0x60] sm:$0xff] %vm55, 0.0
      %69 = vst.msk [vmem:[#allocation2 + $0x68] sm:$0xff] %vm55, 0.0
      %70 = vst.msk [vmem:[#allocation2 + $0x70] sm:$0xff] %vm55, 0.0
      %71 = vst.msk [vmem:[#allocation2 + $0x78] sm:$0xff] %vm55, 0.0
      %72 = vst.msk [vmem:[#allocation2 + $0x80] sm:$0xff] %vm55, 0.0
      %73 = vst.msk [vmem:[#allocation2 + $0x88] sm:$0xff] %vm55, 0.0
      %74 = vst.msk [vmem:[#allocation2 + $0x90] sm:$0xff] %vm55, 0.0
      %75 = vst.msk [vmem:[#allocation2 + $0x98] sm:$0xff] %vm55, 0.0
      %76 = vst.msk [vmem:[#allocation2 + $0xa0] sm:$0xff] %vm55, 0.0
      %77 = vst.msk [vmem:[#allocation2 + $0xa8] sm:$0xff] %vm55, 0.0
      %78 = vst.msk [vmem:[#allocation2 + $0xb0] sm:$0xff] %vm55, 0.0
      %79 = vst.msk [vmem:[#allocation2 + $0xb8] sm:$0xff] %vm55, 0.0
      %80 = vst.msk [vmem:[#allocation2 + $0xc0] sm:$0xff] %vm55, 0.0
      %81 = vst.msk [vmem:[#allocation2 + $0xc8] sm:$0xff] %vm55, 0.0
      %82 = vst.msk [vmem:[#allocation2 + $0xd0] sm:$0xff] %vm55, 0.0
      %83 = vst.msk [vmem:[#allocation2 + $0xd8] sm:$0xff] %vm55, 0.0
      %vm84 = vcmask 261120
      %85 = vst.msk [vmem:[#allocation3] sm:$0xff] %vm84, 0.0
      %86 = vst.msk [vmem:[#allocation3 + $0x8] sm:$0xff] %vm84, 0.0
      %87 = vst.msk [vmem:[#allocation3 + $0x10] sm:$0xff] %vm84, 0.0
      %88 = vst.msk [vmem:[#allocation3 + $0x18] sm:$0xff] %vm84, 0.0
      %89 = vst.msk [vmem:[#allocation3 + $0x20] sm:$0xff] %vm84, 0.0
      %90 = vst.msk [vmem:[#allocation3 + $0x28] sm:$0xff] %vm84, 0.0
      %91 = vst.msk [vmem:[#allocation3 + $0x30] sm:$0xff] %vm84, 0.0
      %92 = vst.msk [vmem:[#allocation3 + $0x38] sm:$0xff] %vm84, 0.0
      %93 = vst.msk [vmem:[#allocation3 + $0x40] sm:$0xff] %vm84, 0.0
      %94 = vst.msk [vmem:[#allocation3 + $0x48] sm:$0xff] %vm84, 0.0
      %95 = vst.msk [vmem:[#allocation3 + $0x50] sm:$0xff] %vm84, 0.0
      %vm96 = vcmask 523264
      %97 = vst.msk [vmem:[#allocation4] sm:$0xff] %vm96, 0.0
      %98 = vst.msk [vmem:[#allocation4 + $0x8] sm:$0xff] %vm96, 0.0
      %99 = vst.msk [vmem:[#allocation4 + $0x10] sm:$0xff] %vm96, 0.0
      %100 = vst.msk [vmem:[#allocation4 + $0x18] sm:$0xff] %vm96, 0.0
      %101 = vst.msk [vmem:[#allocation4 + $0x20] sm:$0xff] %vm96, 0.0
      %102 = vst.msk [vmem:[#allocation4 + $0x28] sm:$0xff] %vm96, 0.0
    $region65: #{forward.1} parent=1 // pred_fallthru
      _
    %v103 = vld [vmem:[%s8] sm:$0x1]
    %v104 = vld [vmem:[%s0 + $0x1] sm:$0xff]
    %v105 = vld [vmem:[%s0 + $0x9] sm:$0xff]
    %v106 = vld [vmem:[%s0 + $0x11] sm:$0xff]
    %v107 = vld [vmem:[%s0 + $0x19] sm:$0xff]
    %v108 = vld [vmem:[%s0 + $0x21] sm:$0xff]
    %v109 = vld [vmem:[%s0 + $0x29] sm:$0xff]
    %v110 = vld [vmem:[%s0 + $0x31] sm:$0xff]
    %v111 = vld [vmem:[%s0 + $0x39] sm:$0xff]
    %v112 = vld [vmem:[%s0 + $0x41] sm:$0xff]
    %v113 = vld [vmem:[%s0 + $0x49] sm:$0xff]
    %v114 = vld [vmem:[%s0 + $0x51] sm:$0xff]
    %v115 = vld [vmem:[%s0 + $0x59] sm:$0xff]
    %v116 = vld [vmem:[%s0 + $0x61] sm:$0xff]
    %v117 = vld [vmem:[%s0 + $0x69] sm:$0xff]
    %v118 = vld [vmem:[%s0 + $0x71] sm:$0xff]
    %v119 = vld [vmem:[%s0 + $0x79] sm:$0xff]
    %v120 = vld [vmem:[%s0 + $0x81] sm:$0xff]
    %v121 = vld [vmem:[%s0 + $0x89] sm:$0xff]
    %v122 = vld [vmem:[%s0 + $0x91] sm:$0xff]
    %v123 = vld [vmem:[%s0 + $0x99] sm:$0xff]
    %v124 = vld [vmem:[%s0 + $0xa1] sm:$0xff]
    %v125 = vld [vmem:[%s0 + $0xa9] sm:$0xff]
    %v126 = vld [vmem:[%s0 + $0xb1] sm:$0xff]
    %v127 = vld [vmem:[%s0 + $0xb9] sm:$0xff]
    %v128 = vld [vmem:[%s0 + $0xc1] sm:$0xff]
    %v129 = vld [vmem:[%s0 + $0xc9] sm:$0xff]
    %v130 = vld [vmem:[%s0 + $0xd1] sm:$0xff]
    %v131 = vld [vmem:[%s0 + $0xd9] sm:$0xff]
    %v132 = vld [vmem:[%s0 + $0xe1] sm:$0xff]
    %v133 = vld [vmem:[%s0 + $0xe9] sm:$0xff]
    %v134 = vld [vmem:[%s0 + $0xf1] sm:$0xff]
    %v135 = vld [vmem:[%s0 + $0xf9] sm:$0xff]
    %v136 = vld [vmem:[%s0 + $0x101] sm:$0xff]
    %v137 = vld [vmem:[%s0 + $0x109] sm:$0xff]
    %v138 = vld [vmem:[%s0 + $0x111] sm:$0xff]
    %v139 = vld [vmem:[%s0 + $0x119] sm:$0xff]
    %v140 = vld [vmem:[%s0 + $0x121] sm:$0xff]
    %v141 = vld [vmem:[%s0 + $0x129] sm:$0xff]
    %v142 = vld [vmem:[%s0 + $0x131] sm:$0xff]
    %v143 = vld [vmem:[%s0 + $0x139] sm:$0xff]
    %v144 = vld [vmem:[%s0 + $0x141] sm:$0xff]
    %v145 = vld [vmem:[%s0 + $0x149] sm:$0xff]
    %v146 = vld [vmem:[%s0 + $0x151] sm:$0xff]
    %v147 = vld [vmem:[%s0 + $0x159] sm:$0xff]
    %v148 = vld [vmem:[%s0 + $0x161] sm:$0xff]
    %v149 = vld [vmem:[%s0 + $0x169] sm:$0xff]
    %v150 = vld [vmem:[%s0 + $0x171] sm:$0xff]
    %v151 = vld [vmem:[%s0 + $0x179] sm:$0xff]
    %v152 = vld [vmem:[%s0 + $0x181] sm:$0xff]
    %v153 = vld [vmem:[%s0 + $0x189] sm:$0xff]
    %v154 = vld [vmem:[%s0 + $0x191] sm:$0xff]
    %v155 = vld [vmem:[%s0 + $0x199] sm:$0xff]
    %v156 = vld [vmem:[%s0 + $0x1a1] sm:$0xff]
    %v157 = vld [vmem:[%s0 + $0x1a9] sm:$0xff]
    %v158 = vld [vmem:[%s0 + $0x1b1] sm:$0xff]
    %v159 = vld [vmem:[%s0 + $0x1b9] sm:$0xff]
    %v160 = vld [vmem:[%s0 + $0x1c1] sm:$0xff]
    %v161 = vld [vmem:[%s0 + $0x1c9] sm:$0xff]
    %v162 = vld [vmem:[%s0 + $0x1d1] sm:$0xff]
    %v163 = vld [vmem:[%s0 + $0x1d9] sm:$0xff]
    %v164 = vld [vmem:[%s0 + $0x1e1] sm:$0xff]
    %v165 = vld [vmem:[%s0 + $0x1e9] sm:$0xff]
    %v166 = vld [vmem:[%s0 + $0x1f1] sm:$0xff]
    %v167 = vld [vmem:[%s0 + $0x1f9] sm:$0xff]
    %v168 = vld [vmem:[%s0 + $0x201] sm:$0xff]
    %v169 = vld [vmem:[%s0 + $0x209] sm:$0xff]
    %v170 = vld [vmem:[%s0 + $0x211] sm:$0xff]
    %v171 = vld [vmem:[%s0 + $0x219] sm:$0xff]
    %v172 = vld [vmem:[%s0 + $0x221] sm:$0xff]
    %v173 = vld [vmem:[%s0 + $0x229] sm:$0xff]
    %v174 = vld [vmem:[%s0 + $0x231] sm:$0xff]
    %v175 = vld [vmem:[%s0 + $0x239] sm:$0xff]
    %v176 = vld [vmem:[%s0 + $0x241] sm:$0xff]
    %v177 = vld [vmem:[%s0 + $0x249] sm:$0xff]
    %v178 = vld [vmem:[%s0 + $0x251] sm:$0xff]
    %v179 = vld [vmem:[%s0 + $0x259] sm:$0xff]
    %v180 = vld [vmem:[%s0 + $0x261] sm:$0xff]
    %v181 = vld [vmem:[%s0 + $0x269] sm:$0xff]
    %v182 = vld [vmem:[%s0 + $0x271] sm:$0xff]
    %v183 = vld [vmem:[%s0 + $0x279] sm:$0xff]
    %v184 = vld [vmem:[%s0 + $0x281] sm:$0xff]
    %v185 = vld [vmem:[%s1] sm:$0x7]
    %v186 = vld [vmem:[%s0 + $0x2] sm:$0xff]
    %v187 = vld [vmem:[%s0 + $0xa] sm:$0xff]
    %v188 = vld [vmem:[%s0 + $0x12] sm:$0xff]
    %v189 = vld [vmem:[%s0 + $0x1a] sm:$0xff]
    %v190 = vld [vmem:[%s0 + $0x22] sm:$0xff]
    %v191 = vld [vmem:[%s0 + $0x2a] sm:$0xff]
    %v192 = vld [vmem:[%s0 + $0x32] sm:$0xff]
    %v193 = vld [vmem:[%s0 + $0x3a] sm:$0xff]
    %v194 = vld [vmem:[%s0 + $0x42] sm:$0xff]
    %v195 = vld [vmem:[%s0 + $0x4a] sm:$0xff]
    %v196 = vld [vmem:[%s0 + $0x52] sm:$0xff]
    %v197 = vld [vmem:[%s0 + $0x5a] sm:$0xff]
    %v198 = vld [vmem:[%s0 + $0x62] sm:$0xff]
    %v199 = vld [vmem:[%s0 + $0x6a] sm:$0xff]
    %v200 = vld [vmem:[%s0 + $0x72] sm:$0xff]
    %v201 = vld [vmem:[%s0 + $0x7a] sm:$0xff]
    %v202 = vld [vmem:[%s0 + $0x82] sm:$0xff]
    %v203 = vld [vmem:[%s0 + $0x8a] sm:$0xff]
    %v204 = vld [vmem:[%s0 + $0x92] sm:$0xff]
    %v205 = vld [vmem:[%s0 + $0x9a] sm:$0xff]
    %v206 = vld [vmem:[%s0 + $0xa2] sm:$0xff]
    %v207 = vld [vmem:[%s0 + $0xaa] sm:$0xff]
    %v208 = vld [vmem:[%s0 + $0xb2] sm:$0xff]
    %v209 = vld [vmem:[%s0 + $0xba] sm:$0xff]
    %v210 = vld [vmem:[%s0 + $0xc2] sm:$0xff]
    %v211 = vld [vmem:[%s0 + $0xca] sm:$0xff]
    %v212 = vld [vmem:[%s0 + $0xd2] sm:$0xff]
    %v213 = vld [vmem:[%s0 + $0xda] sm:$0xff]
    %v214 = vld [vmem:[%s0 + $0xe2] sm:$0xff]
    %v215 = vld [vmem:[%s0 + $0xea] sm:$0xff]
    %v216 = vld [vmem:[%s0 + $0xf2] sm:$0xff]
    %v217 = vld [vmem:[%s0 + $0xfa] sm:$0xff]
    %v218 = vld [vmem:[%s0 + $0x102] sm:$0xff]
    %v219 = vld [vmem:[%s0 + $0x10a] sm:$0xff]
    %v220 = vld [vmem:[%s0 + $0x112] sm:$0xff]
    %v221 = vld [vmem:[%s0 + $0x11a] sm:$0xff]
    %v222 = vld [vmem:[%s0 + $0x122] sm:$0xff]
    %v223 = vld [vmem:[%s0 + $0x12a] sm:$0xff]
    %v224 = vld [vmem:[%s0 + $0x132] sm:$0xff]
    %v225 = vld [vmem:[%s0 + $0x13a] sm:$0xff]
    %v226 = vld [vmem:[%s0 + $0x142] sm:$0xff]
    %v227 = vld [vmem:[%s0 + $0x14a] sm:$0xff]
    %v228 = vld [vmem:[%s0 + $0x152] sm:$0xff]
    %v229 = vld [vmem:[%s0 + $0x15a] sm:$0xff]
    %v230 = vld [vmem:[%s0 + $0x162] sm:$0xff]
    %v231 = vld [vmem:[%s0 + $0x16a] sm:$0xff]
    %v232 = vld [vmem:[%s0 + $0x172] sm:$0xff]
    %v233 = vld [vmem:[%s0 + $0x17a] sm:$0xff]
    %v234 = vld [vmem:[%s0 + $0x182] sm:$0xff]
    %v235 = vld [vmem:[%s0 + $0x18a] sm:$0xff]
    %v236 = vld [vmem:[%s0 + $0x192] sm:$0xff]
    %v237 = vld [vmem:[%s0 + $0x19a] sm:$0xff]
    %v238 = vld [vmem:[%s0 + $0x1a2] sm:$0xff]
    %v239 = vld [vmem:[%s0 + $0x1aa] sm:$0xff]
    %v240 = vld [vmem:[%s0 + $0x1b2] sm:$0xff]
    %v241 = vld [vmem:[%s0 + $0x1ba] sm:$0xff]
    %v242 = vld [vmem:[%s0 + $0x1c2] sm:$0xff]
    %v243 = vld [vmem:[%s0 + $0x1ca] sm:$0xff]
    %v244 = vld [vmem:[%s0 + $0x1d2] sm:$0xff]
    %v245 = vld [vmem:[%s0 + $0x1da] sm:$0xff]
    %v246 = vld [vmem:[%s0 + $0x1e2] sm:$0xff]
    %v247 = vld [vmem:[%s0 + $0x1ea] sm:$0xff]
    %v248 = vld [vmem:[%s0 + $0x1f2] sm:$0xff]
    %v249 = vld [vmem:[%s0 + $0x1fa] sm:$0xff]
    %v250 = vld [vmem:[%s0 + $0x202] sm:$0xff]
    %v251 = vld [vmem:[%s0 + $0x20a] sm:$0xff]
    %v252 = vld [vmem:[%s0 + $0x212] sm:$0xff]
    %v253 = vld [vmem:[%s0 + $0x21a] sm:$0xff]
    %v254 = vld [vmem:[%s0 + $0x222] sm:$0xff]
    %v255 = vld [vmem:[%s0 + $0x22a] sm:$0xff]
    %v256 = vld [vmem:[%s0 + $0x232] sm:$0xff]
    %v257 = vld [vmem:[%s0 + $0x23a] sm:$0xff]
    %v258 = vld [vmem:[%s0 + $0x242] sm:$0xff]
    %v259 = vld [vmem:[%s0 + $0x24a] sm:$0xff]
    %v260 = vld [vmem:[%s0 + $0x252] sm:$0xff]
    %v261 = vld [vmem:[%s0 + $0x25a] sm:$0xff]
    %v262 = vld [vmem:[%s0 + $0x262] sm:$0xff]
    %v263 = vld [vmem:[%s0 + $0x26a] sm:$0xff]
    %v264 = vld [vmem:[%s0 + $0x272] sm:$0xff]
    %v265 = vld [vmem:[%s0 + $0x27a] sm:$0xff]
    %v266 = vld [vmem:[%s0 + $0x282] sm:$0xff]
    %s267 = scalar_lea.vmem %s1, 4
    %v268 = vld [vmem:[%s267] sm:$0x7]
    %vm269 = vcmask 23552
    %v271 = vsel %vm269, %v186, 0
    %v274 = vsel %vm269, %v187, 0
    %v277 = vsel %vm269, %v188, 0
    %v280 = vsel %vm269, %v189, 0
    %v283 = vsel %vm269, %v190, 0
    %v286 = vsel %vm269, %v191, 0
    %v289 = vsel %vm269, %v192, 0
    %v292 = vsel %vm269, %v193, 0
    %v295 = vsel %vm269, %v194, 0
    %v298 = vsel %vm269, %v195, 0
    %v301 = vsel %vm269, %v196, 0
    %v304 = vsel %vm269, %v197, 0
    %v307 = vsel %vm269, %v198, 0
    %v310 = vsel %vm269, %v199, 0
    %v313 = vsel %vm269, %v200, 0
    %v316 = vsel %vm269, %v201, 0
    %v319 = vsel %vm269, %v202, 0
    %v322 = vsel %vm269, %v203, 0
    %v325 = vsel %vm269, %v204, 0
    %v328 = vsel %vm269, %v205, 0
    %v331 = vsel %vm269, %v206, 0
    %v334 = vsel %vm269, %v207, 0
    %v337 = vsel %vm269, %v208, 0
    %v340 = vsel %vm269, %v209, 0
    %v343 = vsel %vm269, %v210, 0
    %v346 = vsel %vm269, %v211, 0
    %v349 = vsel %vm269, %v212, 0
    %v352 = vsel %vm269, %v213, 0
    %v355 = vsel %vm269, %v214, 0
    %v358 = vsel %vm269, %v215, 0
    %v361 = vsel %vm269, %v216, 0
    %v364 = vsel %vm269, %v217, 0
    %v367 = vsel %vm269, %v218, 0
    %v370 = vsel %vm269, %v219, 0
    %v373 = vsel %vm269, %v220, 0
    %v376 = vsel %vm269, %v221, 0
    %v379 = vsel %vm269, %v222, 0
    %v382 = vsel %vm269, %v223, 0
    %v385 = vsel %vm269, %v224, 0
    %v388 = vsel %vm269, %v225, 0
    %v391 = vsel %vm269, %v226, 0
    %v394 = vsel %vm269, %v227, 0
    %v397 = vsel %vm269, %v228, 0
    %v400 = vsel %vm269, %v229, 0
    %v403 = vsel %vm269, %v230, 0
    %v406 = vsel %vm269, %v231, 0
    %v409 = vsel %vm269, %v232, 0
    %v412 = vsel %vm269, %v233, 0
    %v415 = vsel %vm269, %v234, 0
    %v418 = vsel %vm269, %v235, 0
    %v421 = vsel %vm269, %v236, 0
    %v424 = vsel %vm269, %v237, 0
    %v427 = vsel %vm269, %v238, 0
    %v430 = vsel %vm269, %v239, 0
    %v433 = vsel %vm269, %v240, 0
    %v436 = vsel %vm269, %v241, 0
    %v439 = vsel %vm269, %v242, 0
    %v442 = vsel %vm269, %v243, 0
    %v445 = vsel %vm269, %v244, 0
    %v448 = vsel %vm269, %v245, 0
    %v451 = vsel %vm269, %v246, 0
    %v454 = vsel %vm269, %v247, 0
    %v457 = vsel %vm269, %v248, 0
    %v460 = vsel %vm269, %v249, 0
    %v463 = vsel %vm269, %v250, 0
    %v466 = vsel %vm269, %v251, 0
    %v469 = vsel %vm269, %v252, 0
    %v472 = vsel %vm269, %v253, 0
    %v475 = vsel %vm269, %v254, 0
    %v478 = vsel %vm269, %v255, 0
    %v481 = vsel %vm269, %v256, 0
    %v484 = vsel %vm269, %v257, 0
    %v487 = vsel %vm269, %v258, 0
    %v490 = vsel %vm269, %v259, 0
    %v493 = vsel %vm269, %v260, 0
    %v496 = vsel %vm269, %v261, 0
    %v499 = vsel %vm269, %v262, 0
    %v502 = vsel %vm269, %v263, 0
    %v505 = vsel %vm269, %v264, 0
    %v508 = vsel %vm269, %v265, 0
    %v511 = vsel %vm269, %v266, 0
    %vm513 = vcmask 1042432
    %v515 = vsel %vm513, %v268, 0
    %517 = vmatpush.msra.mxu0 0.0
    %518 = vmatpush.msra.mxu0 0.0
    %519 = vmatpush.msra.mxu0 0.0
    %520 = vmatpush.msra.mxu0 0.0
    %521 = vmatpush.msra.mxu0 0.0
    %522 = vmatpush.msra.mxu0 0.0
    %523 = vmatpush.msra.mxu0 0.0
    %524 = vmatpush.msra.mxu0 0.0
    %525 = vmatpush.msra.mxu0 0.0
    %526 = vmatpush.msra.mxu0 0.0
    %527 = vmatpush.msra.mxu0 0.0
    %528 = vmatpush.msra.mxu0 0.0
    %529 = vmatpush.msra.mxu0 0.0
    %530 = vmatpush.msra.mxu0 0.0
    %531 = vmatpush.msra.mxu0 0.0
    %532 = vmatpush.msra.mxu0 %v515
    %533 = vmatmul.f32.gmra.mxu0 %v271
    %v534 = vpop.f32.mrf.mxu0
    %v535 = vadd.f32 0.0, %v534
    %536 = vmatmul.f32.gmra.mxu0 %v274
    %v537 = vpop.f32.mrf.mxu0
    %v538 = vadd.f32 0.0, %v537
    %539 = vmatmul.f32.gmra.mxu0 %v277
    %v540 = vpop.f32.mrf.mxu0
    %v541 = vadd.f32 0.0, %v540
    %542 = vmatmul.f32.gmra.mxu0 %v280
    %v543 = vpop.f32.mrf.mxu0
    %v544 = vadd.f32 0.0, %v543
    %545 = vmatmul.f32.gmra.mxu0 %v283
    %v546 = vpop.f32.mrf.mxu0
    %v547 = vadd.f32 0.0, %v546
    %548 = vmatmul.f32.gmra.mxu0 %v286
    %v549 = vpop.f32.mrf.mxu0
    %v550 = vadd.f32 0.0, %v549
    %551 = vmatmul.f32.gmra.mxu0 %v289
    %v552 = vpop.f32.mrf.mxu0
    %v553 = vadd.f32 0.0, %v552
    %554 = vmatmul.f32.gmra.mxu0 %v292
    %v555 = vpop.f32.mrf.mxu0
    %v556 = vadd.f32 0.0, %v555
    %557 = vmatmul.f32.gmra.mxu0 %v295
    %v558 = vpop.f32.mrf.mxu0
    %v559 = vadd.f32 0.0, %v558
    %560 = vmatmul.f32.gmra.mxu0 %v298
    %v561 = vpop.f32.mrf.mxu0
    %v562 = vadd.f32 0.0, %v561
    %563 = vmatmul.f32.gmra.mxu0 %v301
    %v564 = vpop.f32.mrf.mxu0
    %v565 = vadd.f32 0.0, %v564
    %566 = vmatmul.f32.gmra.mxu0 %v304
    %v567 = vpop.f32.mrf.mxu0
    %v568 = vadd.f32 0.0, %v567
    %569 = vmatmul.f32.gmra.mxu0 %v307
    %v570 = vpop.f32.mrf.mxu0
    %v571 = vadd.f32 0.0, %v570
    %572 = vmatmul.f32.gmra.mxu0 %v310
    %v573 = vpop.f32.mrf.mxu0
    %v574 = vadd.f32 0.0, %v573
    %575 = vmatmul.f32.gmra.mxu0 %v313
    %v576 = vpop.f32.mrf.mxu0
    %v577 = vadd.f32 0.0, %v576
    %578 = vmatmul.f32.gmra.mxu0 %v316
    %v579 = vpop.f32.mrf.mxu0
    %v580 = vadd.f32 0.0, %v579
    %581 = vmatmul.f32.gmra.mxu0 %v319
    %v582 = vpop.f32.mrf.mxu0
    %v583 = vadd.f32 0.0, %v582
    %584 = vmatmul.f32.gmra.mxu0 %v322
    %v585 = vpop.f32.mrf.mxu0
    %v586 = vadd.f32 0.0, %v585
    %587 = vmatmul.f32.gmra.mxu0 %v325
    %v588 = vpop.f32.mrf.mxu0
    %v589 = vadd.f32 0.0, %v588
    %590 = vmatmul.f32.gmra.mxu0 %v328
    %v591 = vpop.f32.mrf.mxu0
    %v592 = vadd.f32 0.0, %v591
    %593 = vmatmul.f32.gmra.mxu0 %v331
    %v594 = vpop.f32.mrf.mxu0
    %v595 = vadd.f32 0.0, %v594
    %596 = vmatmul.f32.gmra.mxu0 %v334
    %v597 = vpop.f32.mrf.mxu0
    %v598 = vadd.f32 0.0, %v597
    %599 = vmatmul.f32.gmra.mxu0 %v337
    %v600 = vpop.f32.mrf.mxu0
    %v601 = vadd.f32 0.0, %v600
    %602 = vmatmul.f32.gmra.mxu0 %v340
    %v603 = vpop.f32.mrf.mxu0
    %v604 = vadd.f32 0.0, %v603
    %605 = vmatmul.f32.gmra.mxu0 %v343
    %v606 = vpop.f32.mrf.mxu0
    %v607 = vadd.f32 0.0, %v606
    %608 = vmatmul.f32.gmra.mxu0 %v346
    %v609 = vpop.f32.mrf.mxu0
    %v610 = vadd.f32 0.0, %v609
    %611 = vmatmul.f32.gmra.mxu0 %v349
    %v612 = vpop.f32.mrf.mxu0
    %v613 = vadd.f32 0.0, %v612
    %614 = vmatmul.f32.gmra.mxu0 %v352
    %v615 = vpop.f32.mrf.mxu0
    %v616 = vadd.f32 0.0, %v615
    %617 = vmatmul.f32.gmra.mxu0 %v355
    %v618 = vpop.f32.mrf.mxu0
    %v619 = vadd.f32 0.0, %v618
    %620 = vmatmul.f32.gmra.mxu0 %v358
    %v621 = vpop.f32.mrf.mxu0
    %v622 = vadd.f32 0.0, %v621
    %623 = vmatmul.f32.gmra.mxu0 %v361
    %v624 = vpop.f32.mrf.mxu0
    %v625 = vadd.f32 0.0, %v624
    %626 = vmatmul.f32.gmra.mxu0 %v364
    %v627 = vpop.f32.mrf.mxu0
    %v628 = vadd.f32 0.0, %v627
    %629 = vmatmul.f32.gmra.mxu0 %v367
    %v630 = vpop.f32.mrf.mxu0
    %v631 = vadd.f32 0.0, %v630
    %632 = vmatmul.f32.gmra.mxu0 %v370
    %v633 = vpop.f32.mrf.mxu0
    %v634 = vadd.f32 0.0, %v633
    %635 = vmatmul.f32.gmra.mxu0 %v373
    %v636 = vpop.f32.mrf.mxu0
    %v637 = vadd.f32 0.0, %v636
    %638 = vmatmul.f32.gmra.mxu0 %v376
    %v639 = vpop.f32.mrf.mxu0
    %v640 = vadd.f32 0.0, %v639
    %641 = vmatmul.f32.gmra.mxu0 %v379
    %v642 = vpop.f32.mrf.mxu0
    %v643 = vadd.f32 0.0, %v642
    %644 = vmatmul.f32.gmra.mxu0 %v382
    %v645 = vpop.f32.mrf.mxu0
    %v646 = vadd.f32 0.0, %v645
    %647 = vmatmul.f32.gmra.mxu0 %v385
    %v648 = vpop.f32.mrf.mxu0
    %v649 = vadd.f32 0.0, %v648
    %650 = vmatmul.f32.gmra.mxu0 %v388
    %v651 = vpop.f32.mrf.mxu0
    %v652 = vadd.f32 0.0, %v651
    %653 = vmatmul.f32.gmra.mxu0 %v391
    %v654 = vpop.f32.mrf.mxu0
    %v655 = vadd.f32 0.0, %v654
    %656 = vmatmul.f32.gmra.mxu0 %v394
    %v657 = vpop.f32.mrf.mxu0
    %v658 = vadd.f32 0.0, %v657
    %659 = vmatmul.f32.gmra.mxu0 %v397
    %v660 = vpop.f32.mrf.mxu0
    %v661 = vadd.f32 0.0, %v660
    %662 = vmatmul.f32.gmra.mxu0 %v400
    %v663 = vpop.f32.mrf.mxu0
    %v664 = vadd.f32 0.0, %v663
    %665 = vmatmul.f32.gmra.mxu0 %v403
    %v666 = vpop.f32.mrf.mxu0
    %v667 = vadd.f32 0.0, %v666
    %668 = vmatmul.f32.gmra.mxu0 %v406
    %v669 = vpop.f32.mrf.mxu0
    %v670 = vadd.f32 0.0, %v669
    %671 = vmatmul.f32.gmra.mxu0 %v409
    %v672 = vpop.f32.mrf.mxu0
    %v673 = vadd.f32 0.0, %v672
    %674 = vmatmul.f32.gmra.mxu0 %v412
    %v675 = vpop.f32.mrf.mxu0
    %v676 = vadd.f32 0.0, %v675
    %677 = vmatmul.f32.gmra.mxu0 %v415
    %v678 = vpop.f32.mrf.mxu0
    %v679 = vadd.f32 0.0, %v678
    %680 = vmatmul.f32.gmra.mxu0 %v418
    %v681 = vpop.f32.mrf.mxu0
    %v682 = vadd.f32 0.0, %v681
    %683 = vmatmul.f32.gmra.mxu0 %v421
    %v684 = vpop.f32.mrf.mxu0
    %v685 = vadd.f32 0.0, %v684
    %686 = vmatmul.f32.gmra.mxu0 %v424
    %v687 = vpop.f32.mrf.mxu0
    %v688 = vadd.f32 0.0, %v687
    %689 = vmatmul.f32.gmra.mxu0 %v427
    %v690 = vpop.f32.mrf.mxu0
    %v691 = vadd.f32 0.0, %v690
    %692 = vmatmul.f32.gmra.mxu0 %v430
    %v693 = vpop.f32.mrf.mxu0
    %v694 = vadd.f32 0.0, %v693
    %695 = vmatmul.f32.gmra.mxu0 %v433
    %v696 = vpop.f32.mrf.mxu0
    %v697 = vadd.f32 0.0, %v696
    %698 = vmatmul.f32.gmra.mxu0 %v436
    %v699 = vpop.f32.mrf.mxu0
    %v700 = vadd.f32 0.0, %v699
    %701 = vmatmul.f32.gmra.mxu0 %v439
    %v702 = vpop.f32.mrf.mxu0
    %v703 = vadd.f32 0.0, %v702
    %704 = vmatmul.f32.gmra.mxu0 %v442
    %v705 = vpop.f32.mrf.mxu0
    %v706 = vadd.f32 0.0, %v705
    %707 = vmatmul.f32.gmra.mxu0 %v445
    %v708 = vpop.f32.mrf.mxu0
    %v709 = vadd.f32 0.0, %v708
    %710 = vmatmul.f32.gmra.mxu0 %v448
    %v711 = vpop.f32.mrf.mxu0
    %v712 = vadd.f32 0.0, %v711
    %713 = vmatmul.f32.gmra.mxu0 %v451
    %v714 = vpop.f32.mrf.mxu0
    %v715 = vadd.f32 0.0, %v714
    %716 = vmatmul.f32.gmra.mxu0 %v454
    %v717 = vpop.f32.mrf.mxu0
    %v718 = vadd.f32 0.0, %v717
    %719 = vmatmul.f32.gmra.mxu0 %v457
    %v720 = vpop.f32.mrf.mxu0
    %v721 = vadd.f32 0.0, %v720
    %722 = vmatmul.f32.gmra.mxu0 %v460
    %v723 = vpop.f32.mrf.mxu0
    %v724 = vadd.f32 0.0, %v723
    %725 = vmatmul.f32.gmra.mxu0 %v463
    %v726 = vpop.f32.mrf.mxu0
    %v727 = vadd.f32 0.0, %v726
    %728 = vmatmul.f32.gmra.mxu0 %v466
    %v729 = vpop.f32.mrf.mxu0
    %v730 = vadd.f32 0.0, %v729
    %731 = vmatmul.f32.gmra.mxu0 %v469
    %v732 = vpop.f32.mrf.mxu0
    %v733 = vadd.f32 0.0, %v732
    %734 = vmatmul.f32.gmra.mxu0 %v472
    %v735 = vpop.f32.mrf.mxu0
    %v736 = vadd.f32 0.0, %v735
    %737 = vmatmul.f32.gmra.mxu0 %v475
    %v738 = vpop.f32.mrf.mxu0
    %v739 = vadd.f32 0.0, %v738
    %740 = vmatmul.f32.gmra.mxu0 %v478
    %v741 = vpop.f32.mrf.mxu0
    %v742 = vadd.f32 0.0, %v741
    %743 = vmatmul.f32.gmra.mxu0 %v481
    %v744 = vpop.f32.mrf.mxu0
    %v745 = vadd.f32 0.0, %v744
    %746 = vmatmul.f32.gmra.mxu0 %v484
    %v747 = vpop.f32.mrf.mxu0
    %v748 = vadd.f32 0.0, %v747
    %749 = vmatmul.f32.gmra.mxu0 %v487
    %v750 = vpop.f32.mrf.mxu0
    %v751 = vadd.f32 0.0, %v750
    %752 = vmatmul.f32.gmra.mxu0 %v490
    %v753 = vpop.f32.mrf.mxu0
    %v754 = vadd.f32 0.0, %v753
    %755 = vmatmul.f32.gmra.mxu0 %v493
    %v756 = vpop.f32.mrf.mxu0
    %v757 = vadd.f32 0.0, %v756
    %758 = vmatmul.f32.gmra.mxu0 %v496
    %v759 = vpop.f32.mrf.mxu0
    %v760 = vadd.f32 0.0, %v759
    %761 = vmatmul.f32.gmra.mxu0 %v499
    %v762 = vpop.f32.mrf.mxu0
    %v763 = vadd.f32 0.0, %v762
    %764 = vmatmul.f32.gmra.mxu0 %v502
    %v765 = vpop.f32.mrf.mxu0
    %v766 = vadd.f32 0.0, %v765
    %767 = vmatmul.f32.gmra.mxu0 %v505
    %v768 = vpop.f32.mrf.mxu0
    %v769 = vadd.f32 0.0, %v768
    %770 = vmatmul.f32.gmra.mxu0 %v508
    %v771 = vpop.f32.mrf.mxu0
    %v772 = vadd.f32 0.0, %v771
    %773 = vmatmul.f32.gmra.mxu0 %v511
    %v774 = vpop.f32.mrf.mxu0
    %v775 = vadd.f32 0.0, %v774
    %776 = vdwg.mxu0
    %v778 = vsel %vm269, %v104, 0
    %v781 = vsel %vm269, %v105, 0
    %v784 = vsel %vm269, %v106, 0
    %v787 = vsel %vm269, %v107, 0
    %v790 = vsel %vm269, %v108, 0
    %v793 = vsel %vm269, %v109, 0
    %v796 = vsel %vm269, %v110, 0
    %v799 = vsel %vm269, %v111, 0
    %v802 = vsel %vm269, %v112, 0
    %v805 = vsel %vm269, %v113, 0
    %v808 = vsel %vm269, %v114, 0
    %v811 = vsel %vm269, %v115, 0
    %v814 = vsel %vm269, %v116, 0
    %v817 = vsel %vm269, %v117, 0
    %v820 = vsel %vm269, %v118, 0
    %v823 = vsel %vm269, %v119, 0
    %v826 = vsel %vm269, %v120, 0
    %v829 = vsel %vm269, %v121, 0
    %v832 = vsel %vm269, %v122, 0
    %v835 = vsel %vm269, %v123, 0
    %v838 = vsel %vm269, %v124, 0
    %v841 = vsel %vm269, %v125, 0
    %v844 = vsel %vm269, %v126, 0
    %v847 = vsel %vm269, %v127, 0
    %v850 = vsel %vm269, %v128, 0
    %v853 = vsel %vm269, %v129, 0
    %v856 = vsel %vm269, %v130, 0
    %v859 = vsel %vm269, %v131, 0
    %v862 = vsel %vm269, %v132, 0
    %v865 = vsel %vm269, %v133, 0
    %v868 = vsel %vm269, %v134, 0
    %v871 = vsel %vm269, %v135, 0
    %v874 = vsel %vm269, %v136, 0
    %v877 = vsel %vm269, %v137, 0
    %v880 = vsel %vm269, %v138, 0
    %v883 = vsel %vm269, %v139, 0
    %v886 = vsel %vm269, %v140, 0
    %v889 = vsel %vm269, %v141, 0
    %v892 = vsel %vm269, %v142, 0
    %v895 = vsel %vm269, %v143, 0
    %v898 = vsel %vm269, %v144, 0
    %v901 = vsel %vm269, %v145, 0
    %v904 = vsel %vm269, %v146, 0
    %v907 = vsel %vm269, %v147, 0
    %v910 = vsel %vm269, %v148, 0
    %v913 = vsel %vm269, %v149, 0
    %v916 = vsel %vm269, %v150, 0
    %v919 = vsel %vm269, %v151, 0
    %v922 = vsel %vm269, %v152, 0
    %v925 = vsel %vm269, %v153, 0
    %v928 = vsel %vm269, %v154, 0
    %v931 = vsel %vm269, %v155, 0
    %v934 = vsel %vm269, %v156, 0
    %v937 = vsel %vm269, %v157, 0
    %v940 = vsel %vm269, %v158, 0
    %v943 = vsel %vm269, %v159, 0
    %v946 = vsel %vm269, %v160, 0
    %v949 = vsel %vm269, %v161, 0
    %v952 = vsel %vm269, %v162, 0
    %v955 = vsel %vm269, %v163, 0
    %v958 = vsel %vm269, %v164, 0
    %v961 = vsel %vm269, %v165, 0
    %v964 = vsel %vm269, %v166, 0
    %v967 = vsel %vm269, %v167, 0
    %v970 = vsel %vm269, %v168, 0
    %v973 = vsel %vm269, %v169, 0
    %v976 = vsel %vm269, %v170, 0
    %v979 = vsel %vm269, %v171, 0
    %v982 = vsel %vm269, %v172, 0
    %v985 = vsel %vm269, %v173, 0
    %v988 = vsel %vm269, %v174, 0
    %v991 = vsel %vm269, %v175, 0
    %v994 = vsel %vm269, %v176, 0
    %v997 = vsel %vm269, %v177, 0
    %v1000 = vsel %vm269, %v178, 0
    %v1003 = vsel %vm269, %v179, 0
    %v1006 = vsel %vm269, %v180, 0
    %v1009 = vsel %vm269, %v181, 0
    %v1012 = vsel %vm269, %v182, 0
    %v1015 = vsel %vm269, %v183, 0
    %v1018 = vsel %vm269, %v184, 0
    %v1021 = vsel %vm513, %v185, 0
    %1023 = vmatpush.msra.mxu0 0.0
    %1024 = vmatpush.msra.mxu0 0.0
    %1025 = vmatpush.msra.mxu0 0.0
    %1026 = vmatpush.msra.mxu0 0.0
    %1027 = vmatpush.msra.mxu0 0.0
    %1028 = vmatpush.msra.mxu0 0.0
    %1029 = vmatpush.msra.mxu0 0.0
    %1030 = vmatpush.msra.mxu0 0.0
    %1031 = vmatpush.msra.mxu0 0.0
    %1032 = vmatpush.msra.mxu0 0.0
    %1033 = vmatpush.msra.mxu0 0.0
    %1034 = vmatpush.msra.mxu0 0.0
    %1035 = vmatpush.msra.mxu0 0.0
    %1036 = vmatpush.msra.mxu0 0.0
    %1037 = vmatpush.msra.mxu0 0.0
    %1038 = vmatpush.msra.mxu0 %v1021
    %1039 = vmatmul.f32.gmra.mxu0 %v778
    %v1040 = vpop.f32.mrf.mxu0
    %v1041 = vadd.f32 %v535, %v1040
    %1042 = vmatmul.f32.gmra.mxu0 %v781
    %v1043 = vpop.f32.mrf.mxu0
    %v1044 = vadd.f32 %v538, %v1043
    %1045 = vmatmul.f32.gmra.mxu0 %v784
    %v1046 = vpop.f32.mrf.mxu0
    %v1047 = vadd.f32 %v541, %v1046
    %1048 = vmatmul.f32.gmra.mxu0 %v787
    %v1049 = vpop.f32.mrf.mxu0
    %v1050 = vadd.f32 %v544, %v1049
    %1051 = vmatmul.f32.gmra.mxu0 %v790
    %v1052 = vpop.f32.mrf.mxu0
    %v1053 = vadd.f32 %v547, %v1052
    %1054 = vmatmul.f32.gmra.mxu0 %v793
    %v1055 = vpop.f32.mrf.mxu0
    %v1056 = vadd.f32 %v550, %v1055
    %1057 = vmatmul.f32.gmra.mxu0 %v796
    %v1058 = vpop.f32.mrf.mxu0
    %v1059 = vadd.f32 %v553, %v1058
    %1060 = vmatmul.f32.gmra.mxu0 %v799
    %v1061 = vpop.f32.mrf.mxu0
    %v1062 = vadd.f32 %v556, %v1061
    %1063 = vmatmul.f32.gmra.mxu0 %v802
    %v1064 = vpop.f32.mrf.mxu0
    %v1065 = vadd.f32 %v559, %v1064
    %1066 = vmatmul.f32.gmra.mxu0 %v805
    %v1067 = vpop.f32.mrf.mxu0
    %v1068 = vadd.f32 %v562, %v1067
    %1069 = vmatmul.f32.gmra.mxu0 %v808
    %v1070 = vpop.f32.mrf.mxu0
    %v1071 = vadd.f32 %v565, %v1070
    %1072 = vmatmul.f32.gmra.mxu0 %v811
    %v1073 = vpop.f32.mrf.mxu0
    %v1074 = vadd.f32 %v568, %v1073
    %1075 = vmatmul.f32.gmra.mxu0 %v814
    %v1076 = vpop.f32.mrf.mxu0
    %v1077 = vadd.f32 %v571, %v1076
    %1078 = vmatmul.f32.gmra.mxu0 %v817
    %v1079 = vpop.f32.mrf.mxu0
    %v1080 = vadd.f32 %v574, %v1079
    %1081 = vmatmul.f32.gmra.mxu0 %v820
    %v1082 = vpop.f32.mrf.mxu0
    %v1083 = vadd.f32 %v577, %v1082
    %1084 = vmatmul.f32.gmra.mxu0 %v823
    %v1085 = vpop.f32.mrf.mxu0
    %v1086 = vadd.f32 %v580, %v1085
    %1087 = vmatmul.f32.gmra.mxu0 %v826
    %v1088 = vpop.f32.mrf.mxu0
    %v1089 = vadd.f32 %v583, %v1088
    %1090 = vmatmul.f32.gmra.mxu0 %v829
    %v1091 = vpop.f32.mrf.mxu0
    %v1092 = vadd.f32 %v586, %v1091
    %1093 = vmatmul.f32.gmra.mxu0 %v832
    %v1094 = vpop.f32.mrf.mxu0
    %v1095 = vadd.f32 %v589, %v1094
    %1096 = vmatmul.f32.gmra.mxu0 %v835
    %v1097 = vpop.f32.mrf.mxu0
    %v1098 = vadd.f32 %v592, %v1097
    %1099 = vmatmul.f32.gmra.mxu0 %v838
    %v1100 = vpop.f32.mrf.mxu0
    %v1101 = vadd.f32 %v595, %v1100
    %1102 = vmatmul.f32.gmra.mxu0 %v841
    %v1103 = vpop.f32.mrf.mxu0
    %v1104 = vadd.f32 %v598, %v1103
    %1105 = vmatmul.f32.gmra.mxu0 %v844
    %v1106 = vpop.f32.mrf.mxu0
    %v1107 = vadd.f32 %v601, %v1106
    %1108 = vmatmul.f32.gmra.mxu0 %v847
    %v1109 = vpop.f32.mrf.mxu0
    %v1110 = vadd.f32 %v604, %v1109
    %1111 = vmatmul.f32.gmra.mxu0 %v850
    %v1112 = vpop.f32.mrf.mxu0
    %v1113 = vadd.f32 %v607, %v1112
    %1114 = vmatmul.f32.gmra.mxu0 %v853
    %v1115 = vpop.f32.mrf.mxu0
    %v1116 = vadd.f32 %v610, %v1115
    %1117 = vmatmul.f32.gmra.mxu0 %v856
    %v1118 = vpop.f32.mrf.mxu0
    %v1119 = vadd.f32 %v613, %v1118
    %1120 = vmatmul.f32.gmra.mxu0 %v859
    %v1121 = vpop.f32.mrf.mxu0
    %v1122 = vadd.f32 %v616, %v1121
    %1123 = vmatmul.f32.gmra.mxu0 %v862
    %v1124 = vpop.f32.mrf.mxu0
    %v1125 = vadd.f32 %v619, %v1124
    %1126 = vmatmul.f32.gmra.mxu0 %v865
    %v1127 = vpop.f32.mrf.mxu0
    %v1128 = vadd.f32 %v622, %v1127
    %1129 = vmatmul.f32.gmra.mxu0 %v868
    %v1130 = vpop.f32.mrf.mxu0
    %v1131 = vadd.f32 %v625, %v1130
    %1132 = vmatmul.f32.gmra.mxu0 %v871
    %v1133 = vpop.f32.mrf.mxu0
    %v1134 = vadd.f32 %v628, %v1133
    %1135 = vmatmul.f32.gmra.mxu0 %v874
    %v1136 = vpop.f32.mrf.mxu0
    %v1137 = vadd.f32 %v631, %v1136
    %1138 = vmatmul.f32.gmra.mxu0 %v877
    %v1139 = vpop.f32.mrf.mxu0
    %v1140 = vadd.f32 %v634, %v1139
    %1141 = vmatmul.f32.gmra.mxu0 %v880
    %v1142 = vpop.f32.mrf.mxu0
    %v1143 = vadd.f32 %v637, %v1142
    %1144 = vmatmul.f32.gmra.mxu0 %v883
    %v1145 = vpop.f32.mrf.mxu0
    %v1146 = vadd.f32 %v640, %v1145
    %1147 = vmatmul.f32.gmra.mxu0 %v886
    %v1148 = vpop.f32.mrf.mxu0
    %v1149 = vadd.f32 %v643, %v1148
    %1150 = vmatmul.f32.gmra.mxu0 %v889
    %v1151 = vpop.f32.mrf.mxu0
    %v1152 = vadd.f32 %v646, %v1151
    %1153 = vmatmul.f32.gmra.mxu0 %v892
    %v1154 = vpop.f32.mrf.mxu0
    %v1155 = vadd.f32 %v649, %v1154
    %1156 = vmatmul.f32.gmra.mxu0 %v895
    %v1157 = vpop.f32.mrf.mxu0
    %v1158 = vadd.f32 %v652, %v1157
    %1159 = vmatmul.f32.gmra.mxu0 %v898
    %v1160 = vpop.f32.mrf.mxu0
    %v1161 = vadd.f32 %v655, %v1160
    %1162 = vmatmul.f32.gmra.mxu0 %v901
    %v1163 = vpop.f32.mrf.mxu0
    %v1164 = vadd.f32 %v658, %v1163
    %1165 = vmatmul.f32.gmra.mxu0 %v904
    %v1166 = vpop.f32.mrf.mxu0
    %v1167 = vadd.f32 %v661, %v1166
    %1168 = vmatmul.f32.gmra.mxu0 %v907
    %v1169 = vpop.f32.mrf.mxu0
    %v1170 = vadd.f32 %v664, %v1169
    %1171 = vmatmul.f32.gmra.mxu0 %v910
    %v1172 = vpop.f32.mrf.mxu0
    %v1173 = vadd.f32 %v667, %v1172
    %1174 = vmatmul.f32.gmra.mxu0 %v913
    %v1175 = vpop.f32.mrf.mxu0
    %v1176 = vadd.f32 %v670, %v1175
    %1177 = vmatmul.f32.gmra.mxu0 %v916
    %v1178 = vpop.f32.mrf.mxu0
    %v1179 = vadd.f32 %v673, %v1178
    %1180 = vmatmul.f32.gmra.mxu0 %v919
    %v1181 = vpop.f32.mrf.mxu0
    %v1182 = vadd.f32 %v676, %v1181
    %1183 = vmatmul.f32.gmra.mxu0 %v922
    %v1184 = vpop.f32.mrf.mxu0
    %v1185 = vadd.f32 %v679, %v1184
    %1186 = vmatmul.f32.gmra.mxu0 %v925
    %v1187 = vpop.f32.mrf.mxu0
    %v1188 = vadd.f32 %v682, %v1187
    %1189 = vmatmul.f32.gmra.mxu0 %v928
    %v1190 = vpop.f32.mrf.mxu0
    %v1191 = vadd.f32 %v685, %v1190
    %1192 = vmatmul.f32.gmra.mxu0 %v931
    %v1193 = vpop.f32.mrf.mxu0
    %v1194 = vadd.f32 %v688, %v1193
    %1195 = vmatmul.f32.gmra.mxu0 %v934
    %v1196 = vpop.f32.mrf.mxu0
    %v1197 = vadd.f32 %v691, %v1196
    %1198 = vmatmul.f32.gmra.mxu0 %v937
    %v1199 = vpop.f32.mrf.mxu0
    %v1200 = vadd.f32 %v694, %v1199
    %1201 = vmatmul.f32.gmra.mxu0 %v940
    %v1202 = vpop.f32.mrf.mxu0
    %v1203 = vadd.f32 %v697, %v1202
    %1204 = vmatmul.f32.gmra.mxu0 %v943
    %v1205 = vpop.f32.mrf.mxu0
    %v1206 = vadd.f32 %v700, %v1205
    %1207 = vmatmul.f32.gmra.mxu0 %v946
    %v1208 = vpop.f32.mrf.mxu0
    %v1209 = vadd.f32 %v703, %v1208
    %1210 = vmatmul.f32.gmra.mxu0 %v949
    %v1211 = vpop.f32.mrf.mxu0
    %v1212 = vadd.f32 %v706, %v1211
    %1213 = vmatmul.f32.gmra.mxu0 %v952
    %v1214 = vpop.f32.mrf.mxu0
    %v1215 = vadd.f32 %v709, %v1214
    %1216 = vmatmul.f32.gmra.mxu0 %v955
    %v1217 = vpop.f32.mrf.mxu0
    %v1218 = vadd.f32 %v712, %v1217
    %1219 = vmatmul.f32.gmra.mxu0 %v958
    %v1220 = vpop.f32.mrf.mxu0
    %v1221 = vadd.f32 %v715, %v1220
    %1222 = vmatmul.f32.gmra.mxu0 %v961
    %v1223 = vpop.f32.mrf.mxu0
    %v1224 = vadd.f32 %v718, %v1223
    %1225 = vmatmul.f32.gmra.mxu0 %v964
    %v1226 = vpop.f32.mrf.mxu0
    %v1227 = vadd.f32 %v721, %v1226
    %1228 = vmatmul.f32.gmra.mxu0 %v967
    %v1229 = vpop.f32.mrf.mxu0
    %v1230 = vadd.f32 %v724, %v1229
    %1231 = vmatmul.f32.gmra.mxu0 %v970
    %v1232 = vpop.f32.mrf.mxu0
    %v1233 = vadd.f32 %v727, %v1232
    %1234 = vmatmul.f32.gmra.mxu0 %v973
    %v1235 = vpop.f32.mrf.mxu0
    %v1236 = vadd.f32 %v730, %v1235
    %1237 = vmatmul.f32.gmra.mxu0 %v976
    %v1238 = vpop.f32.mrf.mxu0
    %v1239 = vadd.f32 %v733, %v1238
    %1240 = vmatmul.f32.gmra.mxu0 %v979
    %v1241 = vpop.f32.mrf.mxu0
    %v1242 = vadd.f32 %v736, %v1241
    %1243 = vmatmul.f32.gmra.mxu0 %v982
    %v1244 = vpop.f32.mrf.mxu0
    %v1245 = vadd.f32 %v739, %v1244
    %1246 = vmatmul.f32.gmra.mxu0 %v985
    %v1247 = vpop.f32.mrf.mxu0
    %v1248 = vadd.f32 %v742, %v1247
    %1249 = vmatmul.f32.gmra.mxu0 %v988
    %v1250 = vpop.f32.mrf.mxu0
    %v1251 = vadd.f32 %v745, %v1250
    %1252 = vmatmul.f32.gmra.mxu0 %v991
    %v1253 = vpop.f32.mrf.mxu0
    %v1254 = vadd.f32 %v748, %v1253
    %1255 = vmatmul.f32.gmra.mxu0 %v994
    %v1256 = vpop.f32.mrf.mxu0
    %v1257 = vadd.f32 %v751, %v1256
    %1258 = vmatmul.f32.gmra.mxu0 %v997
    %v1259 = vpop.f32.mrf.mxu0
    %v1260 = vadd.f32 %v754, %v1259
    %1261 = vmatmul.f32.gmra.mxu0 %v1000
    %v1262 = vpop.f32.mrf.mxu0
    %v1263 = vadd.f32 %v757, %v1262
    %1264 = vmatmul.f32.gmra.mxu0 %v1003
    %v1265 = vpop.f32.mrf.mxu0
    %v1266 = vadd.f32 %v760, %v1265
    %1267 = vmatmul.f32.gmra.mxu0 %v1006
    %v1268 = vpop.f32.mrf.mxu0
    %v1269 = vadd.f32 %v763, %v1268
    %1270 = vmatmul.f32.gmra.mxu0 %v1009
    %v1271 = vpop.f32.mrf.mxu0
    %v1272 = vadd.f32 %v766, %v1271
    %1273 = vmatmul.f32.gmra.mxu0 %v1012
    %v1274 = vpop.f32.mrf.mxu0
    %v1275 = vadd.f32 %v769, %v1274
    %1276 = vmatmul.f32.gmra.mxu0 %v1015
    %v1277 = vpop.f32.mrf.mxu0
    %v1278 = vadd.f32 %v772, %v1277
    %1279 = vmatmul.f32.gmra.mxu0 %v1018
    %v1280 = vpop.f32.mrf.mxu0
    %v1281 = vadd.f32 %v775, %v1280
    %1282 = vdwg.mxu0
    %v1283 = vld [vmem:[%s0 + $0x3] sm:$0xff]
    %v1284 = vld [vmem:[%s0 + $0xb] sm:$0xff]
    %v1285 = vld [vmem:[%s0 + $0x13] sm:$0xff]
    %v1286 = vld [vmem:[%s0 + $0x1b] sm:$0xff]
    %v1287 = vld [vmem:[%s0 + $0x23] sm:$0xff]
    %v1288 = vld [vmem:[%s0 + $0x2b] sm:$0xff]
    %v1289 = vld [vmem:[%s0 + $0x33] sm:$0xff]
    %v1290 = vld [vmem:[%s0 + $0x3b] sm:$0xff]
    %v1291 = vld [vmem:[%s0 + $0x43] sm:$0xff]
    %v1292 = vld [vmem:[%s0 + $0x4b] sm:$0xff]
    %v1293 = vld [vmem:[%s0 + $0x53] sm:$0xff]
    %v1294 = vld [vmem:[%s0 + $0x5b] sm:$0xff]
    %v1295 = vld [vmem:[%s0 + $0x63] sm:$0xff]
    %v1296 = vld [vmem:[%s0 + $0x6b] sm:$0xff]
    %v1297 = vld [vmem:[%s0 + $0x73] sm:$0xff]
    %v1298 = vld [vmem:[%s0 + $0x7b] sm:$0xff]
    %v1299 = vld [vmem:[%s0 + $0x83] sm:$0xff]
    %v1300 = vld [vmem:[%s0 + $0x8b] sm:$0xff]
    %v1301 = vld [vmem:[%s0 + $0x93] sm:$0xff]
    %v1302 = vld [vmem:[%s0 + $0x9b] sm:$0xff]
    %v1303 = vld [vmem:[%s0 + $0xa3] sm:$0xff]
    %v1304 = vld [vmem:[%s0 + $0xab] sm:$0xff]
    %v1305 = vld [vmem:[%s0 + $0xb3] sm:$0xff]
    %v1306 = vld [vmem:[%s0 + $0xbb] sm:$0xff]
    %v1307 = vld [vmem:[%s0 + $0xc3] sm:$0xff]
    %v1308 = vld [vmem:[%s0 + $0xcb] sm:$0xff]
    %v1309 = vld [vmem:[%s0 + $0xd3] sm:$0xff]
    %v1310 = vld [vmem:[%s0 + $0xdb] sm:$0xff]
    %v1311 = vld [vmem:[%s0 + $0xe3] sm:$0xff]
    %v1312 = vld [vmem:[%s0 + $0xeb] sm:$0xff]
    %v1313 = vld [vmem:[%s0 + $0xf3] sm:$0xff]
    %v1314 = vld [vmem:[%s0 + $0xfb] sm:$0xff]
    %v1315 = vld [vmem:[%s0 + $0x103] sm:$0xff]
    %v1316 = vld [vmem:[%s0 + $0x10b] sm:$0xff]
    %v1317 = vld [vmem:[%s0 + $0x113] sm:$0xff]
    %v1318 = vld [vmem:[%s0 + $0x11b] sm:$0xff]
    %v1319 = vld [vmem:[%s0 + $0x123] sm:$0xff]
    %v1320 = vld [vmem:[%s0 + $0x12b] sm:$0xff]
    %v1321 = vld [vmem:[%s0 + $0x133] sm:$0xff]
    %v1322 = vld [vmem:[%s0 + $0x13b] sm:$0xff]
    %v1323 = vld [vmem:[%s0 + $0x143] sm:$0xff]
    %v1324 = vld [vmem:[%s0 + $0x14b] sm:$0xff]
    %v1325 = vld [vmem:[%s0 + $0x153] sm:$0xff]
    %v1326 = vld [vmem:[%s0 + $0x15b] sm:$0xff]
    %v1327 = vld [vmem:[%s0 + $0x163] sm:$0xff]
    %v1328 = vld [vmem:[%s0 + $0x16b] sm:$0xff]
    %v1329 = vld [vmem:[%s0 + $0x173] sm:$0xff]
    %v1330 = vld [vmem:[%s0 + $0x17b] sm:$0xff]
    %v1331 = vld [vmem:[%s0 + $0x183] sm:$0xff]
    %v1332 = vld [vmem:[%s0 + $0x18b] sm:$0xff]
    %v1333 = vld [vmem:[%s0 + $0x193] sm:$0xff]
    %v1334 = vld [vmem:[%s0 + $0x19b] sm:$0xff]
    %v1335 = vld [vmem:[%s0 + $0x1a3] sm:$0xff]
    %v1336 = vld [vmem:[%s0 + $0x1ab] sm:$0xff]
    %v1337 = vld [vmem:[%s0 + $0x1b3] sm:$0xff]
    %v1338 = vld [vmem:[%s0 + $0x1bb] sm:$0xff]
    %v1339 = vld [vmem:[%s0 + $0x1c3] sm:$0xff]
    %v1340 = vld [vmem:[%s0 + $0x1cb] sm:$0xff]
    %v1341 = vld [vmem:[%s0 + $0x1d3] sm:$0xff]
    %v1342 = vld [vmem:[%s0 + $0x1db] sm:$0xff]
    %v1343 = vld [vmem:[%s0 + $0x1e3] sm:$0xff]
    %v1344 = vld [vmem:[%s0 + $0x1eb] sm:$0xff]
    %v1345 = vld [vmem:[%s0 + $0x1f3] sm:$0xff]
    %v1346 = vld [vmem:[%s0 + $0x1fb] sm:$0xff]
    %v1347 = vld [vmem:[%s0 + $0x203] sm:$0xff]
    %v1348 = vld [vmem:[%s0 + $0x20b] sm:$0xff]
    %v1349 = vld [vmem:[%s0 + $0x213] sm:$0xff]
    %v1350 = vld [vmem:[%s0 + $0x21b] sm:$0xff]
    %v1351 = vld [vmem:[%s0 + $0x223] sm:$0xff]
    %v1352 = vld [vmem:[%s0 + $0x22b] sm:$0xff]
    %v1353 = vld [vmem:[%s0 + $0x233] sm:$0xff]
    %v1354 = vld [vmem:[%s0 + $0x23b] sm:$0xff]
    %v1355 = vld [vmem:[%s0 + $0x243] sm:$0xff]
    %v1356 = vld [vmem:[%s0 + $0x24b] sm:$0xff]
    %v1357 = vld [vmem:[%s0 + $0x253] sm:$0xff]
    %v1358 = vld [vmem:[%s0 + $0x25b] sm:$0xff]
    %v1359 = vld [vmem:[%s0 + $0x263] sm:$0xff]
    %v1360 = vld [vmem:[%s0 + $0x26b] sm:$0xff]
    %v1361 = vld [vmem:[%s0 + $0x273] sm:$0xff]
    %v1362 = vld [vmem:[%s0 + $0x27b] sm:$0xff]
    %v1363 = vld [vmem:[%s0 + $0x283] sm:$0xff]
    %s1364 = scalar_lea.vmem %s1, 8
    %v1365 = vld [vmem:[%s1364] sm:$0x7]
    %v1367 = vsel %vm269, %v1283, 0
    %v1370 = vsel %vm269, %v1284, 0
    %v1373 = vsel %vm269, %v1285, 0
    %v1376 = vsel %vm269, %v1286, 0
    %v1379 = vsel %vm269, %v1287, 0
    %v1382 = vsel %vm269, %v1288, 0
    %v1385 = vsel %vm269, %v1289, 0
    %v1388 = vsel %vm269, %v1290, 0
    %v1391 = vsel %vm269, %v1291, 0
    %v1394 = vsel %vm269, %v1292, 0
    %v1397 = vsel %vm269, %v1293, 0
    %v1400 = vsel %vm269, %v1294, 0
    %v1403 = vsel %vm269, %v1295, 0
    %v1406 = vsel %vm269, %v1296, 0
    %v1409 = vsel %vm269, %v1297, 0
    %v1412 = vsel %vm269, %v1298, 0
    %v1415 = vsel %vm269, %v1299, 0
    %v1418 = vsel %vm269, %v1300, 0
    %v1421 = vsel %vm269, %v1301, 0
    %v1424 = vsel %vm269, %v1302, 0
    %v1427 = vsel %vm269, %v1303, 0
    %v1430 = vsel %vm269, %v1304, 0
    %v1433 = vsel %vm269, %v1305, 0
    %v1436 = vsel %vm269, %v1306, 0
    %v1439 = vsel %vm269, %v1307, 0
    %v1442 = vsel %vm269, %v1308, 0
    %v1445 = vsel %vm269, %v1309, 0
    %v1448 = vsel %vm269, %v1310, 0
    %v1451 = vsel %vm269, %v1311, 0
    %v1454 = vsel %vm269, %v1312, 0
    %v1457 = vsel %vm269, %v1313, 0
    %v1460 = vsel %vm269, %v1314, 0
    %v1463 = vsel %vm269, %v1315, 0
    %v1466 = vsel %vm269, %v1316, 0
    %v1469 = vsel %vm269, %v1317, 0
    %v1472 = vsel %vm269, %v1318, 0
    %v1475 = vsel %vm269, %v1319, 0
    %v1478 = vsel %vm269, %v1320, 0
    %v1481 = vsel %vm269, %v1321, 0
    %v1484 = vsel %vm269, %v1322, 0
    %v1487 = vsel %vm269, %v1323, 0
    %v1490 = vsel %vm269, %v1324, 0
    %v1493 = vsel %vm269, %v1325, 0
    %v1496 = vsel %vm269, %v1326, 0
    %v1499 = vsel %vm269, %v1327, 0
    %v1502 = vsel %vm269, %v1328, 0
    %v1505 = vsel %vm269, %v1329, 0
    %v1508 = vsel %vm269, %v1330, 0
    %v1511 = vsel %vm269, %v1331, 0
    %v1514 = vsel %vm269, %v1332, 0
    %v1517 = vsel %vm269, %v1333, 0
    %v1520 = vsel %vm269, %v1334, 0
    %v1523 = vsel %vm269, %v1335, 0
    %v1526 = vsel %vm269, %v1336, 0
    %v1529 = vsel %vm269, %v1337, 0
    %v1532 = vsel %vm269, %v1338, 0
    %v1535 = vsel %vm269, %v1339, 0
    %v1538 = vsel %vm269, %v1340, 0
    %v1541 = vsel %vm269, %v1341, 0
    %v1544 = vsel %vm269, %v1342, 0
    %v1547 = vsel %vm269, %v1343, 0
    %v1550 = vsel %vm269, %v1344, 0
    %v1553 = vsel %vm269, %v1345, 0
    %v1556 = vsel %vm269, %v1346, 0
    %v1559 = vsel %vm269, %v1347, 0
    %v1562 = vsel %vm269, %v1348, 0
    %v1565 = vsel %vm269, %v1349, 0
    %v1568 = vsel %vm269, %v1350, 0
    %v1571 = vsel %vm269, %v1351, 0
    %v1574 = vsel %vm269, %v1352, 0
    %v1577 = vsel %vm269, %v1353, 0
    %v1580 = vsel %vm269, %v1354, 0
    %v1583 = vsel %vm269, %v1355, 0
    %v1586 = vsel %vm269, %v1356, 0
    %v1589 = vsel %vm269, %v1357, 0
    %v1592 = vsel %vm269, %v1358, 0
    %v1595 = vsel %vm269, %v1359, 0
    %v1598 = vsel %vm269, %v1360, 0
    %v1601 = vsel %vm269, %v1361, 0
    %v1604 = vsel %vm269, %v1362, 0
    %v1607 = vsel %vm269, %v1363, 0
    %v1610 = vsel %vm513, %v1365, 0
    %1612 = vmatpush.msra.mxu0 0.0
    %1613 = vmatpush.msra.mxu0 0.0
    %1614 = vmatpush.msra.mxu0 0.0
    %1615 = vmatpush.msra.mxu0 0.0
    %1616 = vmatpush.msra.mxu0 0.0
    %1617 = vmatpush.msra.mxu0 0.0
    %1618 = vmatpush.msra.mxu0 0.0
    %1619 = vmatpush.msra.mxu0 0.0
    %1620 = vmatpush.msra.mxu0 0.0
    %1621 = vmatpush.msra.mxu0 0.0
    %1622 = vmatpush.msra.mxu0 0.0
    %1623 = vmatpush.msra.mxu0 0.0
    %1624 = vmatpush.msra.mxu0 0.0
    %1625 = vmatpush.msra.mxu0 0.0
    %1626 = vmatpush.msra.mxu0 0.0
    %1627 = vmatpush.msra.mxu0 %v1610
    %1628 = vmatmul.f32.gmra.mxu0 %v1367
    %v1629 = vpop.f32.mrf.mxu0
    %v1630 = vadd.f32 0.0, %v1629
    %1631 = vmatmul.f32.gmra.mxu0 %v1370
    %v1632 = vpop.f32.mrf.mxu0
    %v1633 = vadd.f32 0.0, %v1632
    %1634 = vmatmul.f32.gmra.mxu0 %v1373
    %v1635 = vpop.f32.mrf.mxu0
    %v1636 = vadd.f32 0.0, %v1635
    %1637 = vmatmul.f32.gmra.mxu0 %v1376
    %v1638 = vpop.f32.mrf.mxu0
    %v1639 = vadd.f32 0.0, %v1638
    %1640 = vmatmul.f32.gmra.mxu0 %v1379
    %v1641 = vpop.f32.mrf.mxu0
    %v1642 = vadd.f32 0.0, %v1641
    %1643 = vmatmul.f32.gmra.mxu0 %v1382
    %v1644 = vpop.f32.mrf.mxu0
    %v1645 = vadd.f32 0.0, %v1644
    %1646 = vmatmul.f32.gmra.mxu0 %v1385
    %v1647 = vpop.f32.mrf.mxu0
    %v1648 = vadd.f32 0.0, %v1647
    %1649 = vmatmul.f32.gmra.mxu0 %v1388
    %v1650 = vpop.f32.mrf.mxu0
    %v1651 = vadd.f32 0.0, %v1650
    %1652 = vmatmul.f32.gmra.mxu0 %v1391
    %v1653 = vpop.f32.mrf.mxu0
    %v1654 = vadd.f32 0.0, %v1653
    %1655 = vmatmul.f32.gmra.mxu0 %v1394
    %v1656 = vpop.f32.mrf.mxu0
    %v1657 = vadd.f32 0.0, %v1656
    %1658 = vmatmul.f32.gmra.mxu0 %v1397
    %v1659 = vpop.f32.mrf.mxu0
    %v1660 = vadd.f32 0.0, %v1659
    %1661 = vmatmul.f32.gmra.mxu0 %v1400
    %v1662 = vpop.f32.mrf.mxu0
    %v1663 = vadd.f32 0.0, %v1662
    %1664 = vmatmul.f32.gmra.mxu0 %v1403
    %v1665 = vpop.f32.mrf.mxu0
    %v1666 = vadd.f32 0.0, %v1665
    %1667 = vmatmul.f32.gmra.mxu0 %v1406
    %v1668 = vpop.f32.mrf.mxu0
    %v1669 = vadd.f32 0.0, %v1668
    %1670 = vmatmul.f32.gmra.mxu0 %v1409
    %v1671 = vpop.f32.mrf.mxu0
    %v1672 = vadd.f32 0.0, %v1671
    %1673 = vmatmul.f32.gmra.mxu0 %v1412
    %v1674 = vpop.f32.mrf.mxu0
    %v1675 = vadd.f32 0.0, %v1674
    %1676 = vmatmul.f32.gmra.mxu0 %v1415
    %v1677 = vpop.f32.mrf.mxu0
    %v1678 = vadd.f32 0.0, %v1677
    %1679 = vmatmul.f32.gmra.mxu0 %v1418
    %v1680 = vpop.f32.mrf.mxu0
    %v1681 = vadd.f32 0.0, %v1680
    %1682 = vmatmul.f32.gmra.mxu0 %v1421
    %v1683 = vpop.f32.mrf.mxu0
    %v1684 = vadd.f32 0.0, %v1683
    %1685 = vmatmul.f32.gmra.mxu0 %v1424
    %v1686 = vpop.f32.mrf.mxu0
    %v1687 = vadd.f32 0.0, %v1686
    %1688 = vmatmul.f32.gmra.mxu0 %v1427
    %v1689 = vpop.f32.mrf.mxu0
    %v1690 = vadd.f32 0.0, %v1689
    %1691 = vmatmul.f32.gmra.mxu0 %v1430
    %v1692 = vpop.f32.mrf.mxu0
    %v1693 = vadd.f32 0.0, %v1692
    %1694 = vmatmul.f32.gmra.mxu0 %v1433
    %v1695 = vpop.f32.mrf.mxu0
    %v1696 = vadd.f32 0.0, %v1695
    %1697 = vmatmul.f32.gmra.mxu0 %v1436
    %v1698 = vpop.f32.mrf.mxu0
    %v1699 = vadd.f32 0.0, %v1698
    %1700 = vmatmul.f32.gmra.mxu0 %v1439
    %v1701 = vpop.f32.mrf.mxu0
    %v1702 = vadd.f32 0.0, %v1701
    %1703 = vmatmul.f32.gmra.mxu0 %v1442
    %v1704 = vpop.f32.mrf.mxu0
    %v1705 = vadd.f32 0.0, %v1704
    %1706 = vmatmul.f32.gmra.mxu0 %v1445
    %v1707 = vpop.f32.mrf.mxu0
    %v1708 = vadd.f32 0.0, %v1707
    %1709 = vmatmul.f32.gmra.mxu0 %v1448
    %v1710 = vpop.f32.mrf.mxu0
    %v1711 = vadd.f32 0.0, %v1710
    %1712 = vmatmul.f32.gmra.mxu0 %v1451
    %v1713 = vpop.f32.mrf.mxu0
    %v1714 = vadd.f32 0.0, %v1713
    %1715 = vmatmul.f32.gmra.mxu0 %v1454
    %v1716 = vpop.f32.mrf.mxu0
    %v1717 = vadd.f32 0.0, %v1716
    %1718 = vmatmul.f32.gmra.mxu0 %v1457
    %v1719 = vpop.f32.mrf.mxu0
    %v1720 = vadd.f32 0.0, %v1719
    %1721 = vmatmul.f32.gmra.mxu0 %v1460
    %v1722 = vpop.f32.mrf.mxu0
    %v1723 = vadd.f32 0.0, %v1722
    %1724 = vmatmul.f32.gmra.mxu0 %v1463
    %v1725 = vpop.f32.mrf.mxu0
    %v1726 = vadd.f32 0.0, %v1725
    %1727 = vmatmul.f32.gmra.mxu0 %v1466
    %v1728 = vpop.f32.mrf.mxu0
    %v1729 = vadd.f32 0.0, %v1728
    %1730 = vmatmul.f32.gmra.mxu0 %v1469
    %v1731 = vpop.f32.mrf.mxu0
    %v1732 = vadd.f32 0.0, %v1731
    %1733 = vmatmul.f32.gmra.mxu0 %v1472
    %v1734 = vpop.f32.mrf.mxu0
    %v1735 = vadd.f32 0.0, %v1734
    %1736 = vmatmul.f32.gmra.mxu0 %v1475
    %v1737 = vpop.f32.mrf.mxu0
    %v1738 = vadd.f32 0.0, %v1737
    %1739 = vmatmul.f32.gmra.mxu0 %v1478
    %v1740 = vpop.f32.mrf.mxu0
    %v1741 = vadd.f32 0.0, %v1740
    %1742 = vmatmul.f32.gmra.mxu0 %v1481
    %v1743 = vpop.f32.mrf.mxu0
    %v1744 = vadd.f32 0.0, %v1743
    %1745 = vmatmul.f32.gmra.mxu0 %v1484
    %v1746 = vpop.f32.mrf.mxu0
    %v1747 = vadd.f32 0.0, %v1746
    %1748 = vmatmul.f32.gmra.mxu0 %v1487
    %v1749 = vpop.f32.mrf.mxu0
    %v1750 = vadd.f32 0.0, %v1749
    %1751 = vmatmul.f32.gmra.mxu0 %v1490
    %v1752 = vpop.f32.mrf.mxu0
    %v1753 = vadd.f32 0.0, %v1752
    %1754 = vmatmul.f32.gmra.mxu0 %v1493
    %v1755 = vpop.f32.mrf.mxu0
    %v1756 = vadd.f32 0.0, %v1755
    %1757 = vmatmul.f32.gmra.mxu0 %v1496
    %v1758 = vpop.f32.mrf.mxu0
    %v1759 = vadd.f32 0.0, %v1758
    %1760 = vmatmul.f32.gmra.mxu0 %v1499
    %v1761 = vpop.f32.mrf.mxu0
    %v1762 = vadd.f32 0.0, %v1761
    %1763 = vmatmul.f32.gmra.mxu0 %v1502
    %v1764 = vpop.f32.mrf.mxu0
    %v1765 = vadd.f32 0.0, %v1764
    %1766 = vmatmul.f32.gmra.mxu0 %v1505
    %v1767 = vpop.f32.mrf.mxu0
    %v1768 = vadd.f32 0.0, %v1767
    %1769 = vmatmul.f32.gmra.mxu0 %v1508
    %v1770 = vpop.f32.mrf.mxu0
    %v1771 = vadd.f32 0.0, %v1770
    %1772 = vmatmul.f32.gmra.mxu0 %v1511
    %v1773 = vpop.f32.mrf.mxu0
    %v1774 = vadd.f32 0.0, %v1773
    %1775 = vmatmul.f32.gmra.mxu0 %v1514
    %v1776 = vpop.f32.mrf.mxu0
    %v1777 = vadd.f32 0.0, %v1776
    %1778 = vmatmul.f32.gmra.mxu0 %v1517
    %v1779 = vpop.f32.mrf.mxu0
    %v1780 = vadd.f32 0.0, %v1779
    %1781 = vmatmul.f32.gmra.mxu0 %v1520
    %v1782 = vpop.f32.mrf.mxu0
    %v1783 = vadd.f32 0.0, %v1782
    %1784 = vmatmul.f32.gmra.mxu0 %v1523
    %v1785 = vpop.f32.mrf.mxu0
    %v1786 = vadd.f32 0.0, %v1785
    %1787 = vmatmul.f32.gmra.mxu0 %v1526
    %v1788 = vpop.f32.mrf.mxu0
    %v1789 = vadd.f32 0.0, %v1788
    %1790 = vmatmul.f32.gmra.mxu0 %v1529
    %v1791 = vpop.f32.mrf.mxu0
    %v1792 = vadd.f32 0.0, %v1791
    %1793 = vmatmul.f32.gmra.mxu0 %v1532
    %v1794 = vpop.f32.mrf.mxu0
    %v1795 = vadd.f32 0.0, %v1794
    %1796 = vmatmul.f32.gmra.mxu0 %v1535
    %v1797 = vpop.f32.mrf.mxu0
    %v1798 = vadd.f32 0.0, %v1797
    %1799 = vmatmul.f32.gmra.mxu0 %v1538
    %v1800 = vpop.f32.mrf.mxu0
    %v1801 = vadd.f32 0.0, %v1800
    %1802 = vmatmul.f32.gmra.mxu0 %v1541
    %v1803 = vpop.f32.mrf.mxu0
    %v1804 = vadd.f32 0.0, %v1803
    %1805 = vmatmul.f32.gmra.mxu0 %v1544
    %v1806 = vpop.f32.mrf.mxu0
    %v1807 = vadd.f32 0.0, %v1806
    %1808 = vmatmul.f32.gmra.mxu0 %v1547
    %v1809 = vpop.f32.mrf.mxu0
    %v1810 = vadd.f32 0.0, %v1809
    %1811 = vmatmul.f32.gmra.mxu0 %v1550
    %v1812 = vpop.f32.mrf.mxu0
    %v1813 = vadd.f32 0.0, %v1812
    %1814 = vmatmul.f32.gmra.mxu0 %v1553
    %v1815 = vpop.f32.mrf.mxu0
    %v1816 = vadd.f32 0.0, %v1815
    %1817 = vmatmul.f32.gmra.mxu0 %v1556
    %v1818 = vpop.f32.mrf.mxu0
    %v1819 = vadd.f32 0.0, %v1818
    %1820 = vmatmul.f32.gmra.mxu0 %v1559
    %v1821 = vpop.f32.mrf.mxu0
    %v1822 = vadd.f32 0.0, %v1821
    %1823 = vmatmul.f32.gmra.mxu0 %v1562
    %v1824 = vpop.f32.mrf.mxu0
    %v1825 = vadd.f32 0.0, %v1824
    %1826 = vmatmul.f32.gmra.mxu0 %v1565
    %v1827 = vpop.f32.mrf.mxu0
    %v1828 = vadd.f32 0.0, %v1827
    %1829 = vmatmul.f32.gmra.mxu0 %v1568
    %v1830 = vpop.f32.mrf.mxu0
    %v1831 = vadd.f32 0.0, %v1830
    %1832 = vmatmul.f32.gmra.mxu0 %v1571
    %v1833 = vpop.f32.mrf.mxu0
    %v1834 = vadd.f32 0.0, %v1833
    %1835 = vmatmul.f32.gmra.mxu0 %v1574
    %v1836 = vpop.f32.mrf.mxu0
    %v1837 = vadd.f32 0.0, %v1836
    %1838 = vmatmul.f32.gmra.mxu0 %v1577
    %v1839 = vpop.f32.mrf.mxu0
    %v1840 = vadd.f32 0.0, %v1839
    %1841 = vmatmul.f32.gmra.mxu0 %v1580
    %v1842 = vpop.f32.mrf.mxu0
    %v1843 = vadd.f32 0.0, %v1842
    %1844 = vmatmul.f32.gmra.mxu0 %v1583
    %v1845 = vpop.f32.mrf.mxu0
    %v1846 = vadd.f32 0.0, %v1845
    %1847 = vmatmul.f32.gmra.mxu0 %v1586
    %v1848 = vpop.f32.mrf.mxu0
    %v1849 = vadd.f32 0.0, %v1848
    %1850 = vmatmul.f32.gmra.mxu0 %v1589
    %v1851 = vpop.f32.mrf.mxu0
    %v1852 = vadd.f32 0.0, %v1851
    %1853 = vmatmul.f32.gmra.mxu0 %v1592
    %v1854 = vpop.f32.mrf.mxu0
    %v1855 = vadd.f32 0.0, %v1854
    %1856 = vmatmul.f32.gmra.mxu0 %v1595
    %v1857 = vpop.f32.mrf.mxu0
    %v1858 = vadd.f32 0.0, %v1857
    %1859 = vmatmul.f32.gmra.mxu0 %v1598
    %v1860 = vpop.f32.mrf.mxu0
    %v1861 = vadd.f32 0.0, %v1860
    %1862 = vmatmul.f32.gmra.mxu0 %v1601
    %v1863 = vpop.f32.mrf.mxu0
    %v1864 = vadd.f32 0.0, %v1863
    %1865 = vmatmul.f32.gmra.mxu0 %v1604
    %v1866 = vpop.f32.mrf.mxu0
    %v1867 = vadd.f32 0.0, %v1866
    %1868 = vmatmul.f32.gmra.mxu0 %v1607
    %v1869 = vpop.f32.mrf.mxu0
    %v1870 = vadd.f32 0.0, %v1869
    %1871 = vdwg.mxu0
    %v1872 = vadd.f32 %v1041, %v1630
    %v1873 = vadd.f32 %v1044, %v1633
    %v1874 = vadd.f32 %v1047, %v1636
    %v1875 = vadd.f32 %v1050, %v1639
    %v1876 = vadd.f32 %v1053, %v1642
    %v1877 = vadd.f32 %v1056, %v1645
    %v1878 = vadd.f32 %v1059, %v1648
    %v1879 = vadd.f32 %v1062, %v1651
    %v1880 = vadd.f32 %v1065, %v1654
    %v1881 = vadd.f32 %v1068, %v1657
    %v1882 = vadd.f32 %v1071, %v1660
    %v1883 = vadd.f32 %v1074, %v1663
    %v1884 = vadd.f32 %v1077, %v1666
    %v1885 = vadd.f32 %v1080, %v1669
    %v1886 = vadd.f32 %v1083, %v1672
    %v1887 = vadd.f32 %v1086, %v1675
    %v1888 = vadd.f32 %v1089, %v1678
    %v1889 = vadd.f32 %v1092, %v1681
    %v1890 = vadd.f32 %v1095, %v1684
    %v1891 = vadd.f32 %v1098, %v1687
    %v1892 = vadd.f32 %v1101, %v1690
    %v1893 = vadd.f32 %v1104, %v1693
    %v1894 = vadd.f32 %v1107, %v1696
    %v1895 = vadd.f32 %v1110, %v1699
    %v1896 = vadd.f32 %v1113, %v1702
    %v1897 = vadd.f32 %v1116, %v1705
    %v1898 = vadd.f32 %v1119, %v1708
    %v1899 = vadd.f32 %v1122, %v1711
    %v1900 = vadd.f32 %v1125, %v1714
    %v1901 = vadd.f32 %v1128, %v1717
    %v1902 = vadd.f32 %v1131, %v1720
    %v1903 = vadd.f32 %v1134, %v1723
    %v1904 = vadd.f32 %v1137, %v1726
    %v1905 = vadd.f32 %v1140, %v1729
    %v1906 = vadd.f32 %v1143, %v1732
    %v1907 = vadd.f32 %v1146, %v1735
    %v1908 = vadd.f32 %v1149, %v1738
    %v1909 = vadd.f32 %v1152, %v1741
    %v1910 = vadd.f32 %v1155, %v1744
    %v1911 = vadd.f32 %v1158, %v1747
    %v1912 = vadd.f32 %v1161, %v1750
    %v1913 = vadd.f32 %v1164, %v1753
    %v1914 = vadd.f32 %v1167, %v1756
    %v1915 = vadd.f32 %v1170, %v1759
    %v1916 = vadd.f32 %v1173, %v1762
    %v1917 = vadd.f32 %v1176, %v1765
    %v1918 = vadd.f32 %v1179, %v1768
    %v1919 = vadd.f32 %v1182, %v1771
    %v1920 = vadd.f32 %v1185, %v1774
    %v1921 = vadd.f32 %v1188, %v1777
    %v1922 = vadd.f32 %v1191, %v1780
    %v1923 = vadd.f32 %v1194, %v1783
    %v1924 = vadd.f32 %v1197, %v1786
    %v1925 = vadd.f32 %v1200, %v1789
    %v1926 = vadd.f32 %v1203, %v1792
    %v1927 = vadd.f32 %v1206, %v1795
    %v1928 = vadd.f32 %v1209, %v1798
    %v1929 = vadd.f32 %v1212, %v1801
    %v1930 = vadd.f32 %v1215, %v1804
    %v1931 = vadd.f32 %v1218, %v1807
    %v1932 = vadd.f32 %v1221, %v1810
    %v1933 = vadd.f32 %v1224, %v1813
    %v1934 = vadd.f32 %v1227, %v1816
    %v1935 = vadd.f32 %v1230, %v1819
    %v1936 = vadd.f32 %v1233, %v1822
    %v1937 = vadd.f32 %v1236, %v1825
    %v1938 = vadd.f32 %v1239, %v1828
    %v1939 = vadd.f32 %v1242, %v1831
    %v1940 = vadd.f32 %v1245, %v1834
    %v1941 = vadd.f32 %v1248, %v1837
    %v1942 = vadd.f32 %v1251, %v1840
    %v1943 = vadd.f32 %v1254, %v1843
    %v1944 = vadd.f32 %v1257, %v1846
    %v1945 = vadd.f32 %v1260, %v1849
    %v1946 = vadd.f32 %v1263, %v1852
    %v1947 = vadd.f32 %v1266, %v1855
    %v1948 = vadd.f32 %v1269, %v1858
    %v1949 = vadd.f32 %v1272, %v1861
    %v1950 = vadd.f32 %v1275, %v1864
    %v1951 = vadd.f32 %v1278, %v1867
    %v1952 = vadd.f32 %v1281, %v1870
    %v1953 = vld [vmem:[%s0 + $0x13] sm:$0xff]
    %v1954 = vld [vmem:[%s0 + $0x1b] sm:$0xff]
    %v1955 = vld [vmem:[%s0 + $0x23] sm:$0xff]
    %v1956 = vld [vmem:[%s0 + $0x2b] sm:$0xff]
    %v1957 = vld [vmem:[%s0 + $0x33] sm:$0xff]
    %v1958 = vld [vmem:[%s0 + $0x3b] sm:$0xff]
    %v1959 = vld [vmem:[%s0 + $0x43] sm:$0xff]
    %v1960 = vld [vmem:[%s0 + $0x4b] sm:$0xff]
    %v1961 = vld [vmem:[%s0 + $0x53] sm:$0xff]
    %v1962 = vld [vmem:[%s0 + $0x5b] sm:$0xff]
    %v1963 = vld [vmem:[%s0 + $0x63] sm:$0xff]
    %v1964 = vld [vmem:[%s0 + $0x6b] sm:$0xff]
    %v1965 = vld [vmem:[%s0 + $0x73] sm:$0xff]
    %v1966 = vld [vmem:[%s0 + $0x7b] sm:$0xff]
    %v1967 = vld [vmem:[%s0 + $0x83] sm:$0xff]
    %v1968 = vld [vmem:[%s0 + $0x8b] sm:$0xff]
    %v1969 = vld [vmem:[%s0 + $0x93] sm:$0xff]
    %v1970 = vld [vmem:[%s0 + $0x9b] sm:$0xff]
    %v1971 = vld [vmem:[%s0 + $0xa3] sm:$0xff]
    %v1972 = vld [vmem:[%s0 + $0xab] sm:$0xff]
    %v1973 = vld [vmem:[%s0 + $0xb3] sm:$0xff]
    %v1974 = vld [vmem:[%s0 + $0xbb] sm:$0xff]
    %v1975 = vld [vmem:[%s0 + $0xc3] sm:$0xff]
    %v1976 = vld [vmem:[%s0 + $0xcb] sm:$0xff]
    %v1977 = vld [vmem:[%s0 + $0xd3] sm:$0xff]
    %v1978 = vld [vmem:[%s0 + $0xdb] sm:$0xff]
    %v1979 = vld [vmem:[%s0 + $0xe3] sm:$0xff]
    %v1980 = vld [vmem:[%s0 + $0xeb] sm:$0xff]
    %v1981 = vld [vmem:[%s0 + $0xf3] sm:$0xff]
    %v1982 = vld [vmem:[%s0 + $0xfb] sm:$0xff]
    %v1983 = vld [vmem:[%s0 + $0x103] sm:$0xff]
    %v1984 = vld [vmem:[%s0 + $0x10b] sm:$0xff]
    %v1985 = vld [vmem:[%s0 + $0x113] sm:$0xff]
    %v1986 = vld [vmem:[%s0 + $0x11b] sm:$0xff]
    %v1987 = vld [vmem:[%s0 + $0x123] sm:$0xff]
    %v1988 = vld [vmem:[%s0 + $0x12b] sm:$0xff]
    %v1989 = vld [vmem:[%s0 + $0x133] sm:$0xff]
    %v1990 = vld [vmem:[%s0 + $0x13b] sm:$0xff]
    %v1991 = vld [vmem:[%s0 + $0x143] sm:$0xff]
    %v1992 = vld [vmem:[%s0 + $0x14b] sm:$0xff]
    %v1993 = vld [vmem:[%s0 + $0x153] sm:$0xff]
    %v1994 = vld [vmem:[%s0 + $0x15b] sm:$0xff]
    %v1995 = vld [vmem:[%s0 + $0x163] sm:$0xff]
    %v1996 = vld [vmem:[%s0 + $0x16b] sm:$0xff]
    %v1997 = vld [vmem:[%s0 + $0x173] sm:$0xff]
    %v1998 = vld [vmem:[%s0 + $0x17b] sm:$0xff]
    %v1999 = vld [vmem:[%s0 + $0x183] sm:$0xff]
    %v2000 = vld [vmem:[%s0 + $0x18b] sm:$0xff]
    %v2001 = vld [vmem:[%s0 + $0x193] sm:$0xff]
    %v2002 = vld [vmem:[%s0 + $0x19b] sm:$0xff]
    %v2003 = vld [vmem:[%s0 + $0x1a3] sm:$0xff]
    %v2004 = vld [vmem:[%s0 + $0x1ab] sm:$0xff]
    %v2005 = vld [vmem:[%s0 + $0x1b3] sm:$0xff]
    %v2006 = vld [vmem:[%s0 + $0x1bb] sm:$0xff]
    %v2007 = vld [vmem:[%s0 + $0x1c3] sm:$0xff]
    %v2008 = vld [vmem:[%s0 + $0x1cb] sm:$0xff]
    %v2009 = vld [vmem:[%s0 + $0x1d3] sm:$0xff]
    %v2010 = vld [vmem:[%s0 + $0x1db] sm:$0xff]
    %v2011 = vld [vmem:[%s0 + $0x1e3] sm:$0xff]
    %v2012 = vld [vmem:[%s0 + $0x1eb] sm:$0xff]
    %v2013 = vld [vmem:[%s0 + $0x1f3] sm:$0xff]
    %v2014 = vld [vmem:[%s0 + $0x1fb] sm:$0xff]
    %v2015 = vld [vmem:[%s0 + $0x203] sm:$0xff]
    %v2016 = vld [vmem:[%s0 + $0x20b] sm:$0xff]
    %v2017 = vld [vmem:[%s0 + $0x213] sm:$0xff]
    %v2018 = vld [vmem:[%s0 + $0x21b] sm:$0xff]
    %v2019 = vld [vmem:[%s0 + $0x223] sm:$0xff]
    %v2020 = vld [vmem:[%s0 + $0x22b] sm:$0xff]
    %v2021 = vld [vmem:[%s0 + $0x233] sm:$0xff]
    %v2022 = vld [vmem:[%s0 + $0x23b] sm:$0xff]
    %v2023 = vld [vmem:[%s0 + $0x243] sm:$0xff]
    %v2024 = vld [vmem:[%s0 + $0x24b] sm:$0xff]
    %v2025 = vld [vmem:[%s0 + $0x253] sm:$0xff]
    %v2026 = vld [vmem:[%s0 + $0x25b] sm:$0xff]
    %v2027 = vld [vmem:[%s0 + $0x263] sm:$0xff]
    %v2028 = vld [vmem:[%s0 + $0x26b] sm:$0xff]
    %v2029 = vld [vmem:[%s0 + $0x273] sm:$0xff]
    %v2030 = vld [vmem:[%s0 + $0x27b] sm:$0xff]
    %v2031 = vld [vmem:[%s0 + $0x283] sm:$0xff]
    %v2032 = vld [vmem:[%s0 + $0x28b] sm:$0xff]
    %v2033 = vld [vmem:[%s0 + $0x293] sm:$0xff]
    %s2034 = scalar_lea.vmem %s1, 12
    %v2035 = vld [vmem:[%s2034] sm:$0x7]
    %v2037 = vsel %vm269, %v1953, 0
    %v2040 = vsel %vm269, %v1954, 0
    %v2043 = vsel %vm269, %v1955, 0
    %v2046 = vsel %vm269, %v1956, 0
    %v2049 = vsel %vm269, %v1957, 0
    %v2052 = vsel %vm269, %v1958, 0
    %v2055 = vsel %vm269, %v1959, 0
    %v2058 = vsel %vm269, %v1960, 0
    %v2061 = vsel %vm269, %v1961, 0
    %v2064 = vsel %vm269, %v1962, 0
    %v2067 = vsel %vm269, %v1963, 0
    %v2070 = vsel %vm269, %v1964, 0
    %v2073 = vsel %vm269, %v1965, 0
    %v2076 = vsel %vm269, %v1966, 0
    %v2079 = vsel %vm269, %v1967, 0
    %v2082 = vsel %vm269, %v1968, 0
    %v2085 = vsel %vm269, %v1969, 0
    %v2088 = vsel %vm269, %v1970, 0
    %v2091 = vsel %vm269, %v1971, 0
    %v2094 = vsel %vm269, %v1972, 0
    %v2097 = vsel %vm269, %v1973, 0
    %v2100 = vsel %vm269, %v1974, 0
    %v2103 = vsel %vm269, %v1975, 0
    %v2106 = vsel %vm269, %v1976, 0
    %v2109 = vsel %vm269, %v1977, 0
    %v2112 = vsel %vm269, %v1978, 0
    %v2115 = vsel %vm269, %v1979, 0
    %v2118 = vsel %vm269, %v1980, 0
    %v2121 = vsel %vm269, %v1981, 0
    %v2124 = vsel %vm269, %v1982, 0
    %v2127 = vsel %vm269, %v1983, 0
    %v2130 = vsel %vm269, %v1984, 0
    %v2133 = vsel %vm269, %v1985, 0
    %v2136 = vsel %vm269, %v1986, 0
    %v2139 = vsel %vm269, %v1987, 0
    %v2142 = vsel %vm269, %v1988, 0
    %v2145 = vsel %vm269, %v1989, 0
    %v2148 = vsel %vm269, %v1990, 0
    %v2151 = vsel %vm269, %v1991, 0
    %v2154 = vsel %vm269, %v1992, 0
    %v2157 = vsel %vm269, %v1993, 0
    %v2160 = vsel %vm269, %v1994, 0
    %v2163 = vsel %vm269, %v1995, 0
    %v2166 = vsel %vm269, %v1996, 0
    %v2169 = vsel %vm269, %v1997, 0
    %v2172 = vsel %vm269, %v1998, 0
    %v2175 = vsel %vm269, %v1999, 0
    %v2178 = vsel %vm269, %v2000, 0
    %v2181 = vsel %vm269, %v2001, 0
    %v2184 = vsel %vm269, %v2002, 0
    %v2187 = vsel %vm269, %v2003, 0
    %v2190 = vsel %vm269, %v2004, 0
    %v2193 = vsel %vm269, %v2005, 0
    %v2196 = vsel %vm269, %v2006, 0
    %v2199 = vsel %vm269, %v2007, 0
    %v2202 = vsel %vm269, %v2008, 0
    %v2205 = vsel %vm269, %v2009, 0
    %v2208 = vsel %vm269, %v2010, 0
    %v2211 = vsel %vm269, %v2011, 0
    %v2214 = vsel %vm269, %v2012, 0
    %v2217 = vsel %vm269, %v2013, 0
    %v2220 = vsel %vm269, %v2014, 0
    %v2223 = vsel %vm269, %v2015, 0
    %v2226 = vsel %vm269, %v2016, 0
    %v2229 = vsel %vm269, %v2017, 0
    %v2232 = vsel %vm269, %v2018, 0
    %v2235 = vsel %vm269, %v2019, 0
    %v2238 = vsel %vm269, %v2020, 0
    %v2241 = vsel %vm269, %v2021, 0
    %v2244 = vsel %vm269, %v2022, 0
    %v2247 = vsel %vm269, %v2023, 0
    %v2250 = vsel %vm269, %v2024, 0
    %v2253 = vsel %vm269, %v2025, 0
    %v2256 = vsel %vm269, %v2026, 0
    %v2259 = vsel %vm269, %v2027, 0
    %v2262 = vsel %vm269, %v2028, 0
    %v2265 = vsel %vm269, %v2029, 0
    %v2268 = vsel %vm269, %v2030, 0
    %v2271 = vsel %vm269, %v2031, 0
    %v2274 = vsel %vm269, %v2032, 0
    %v2277 = vsel %vm269, %v2033, 0
    %v2280 = vsel %vm513, %v2035, 0
    %2282 = vmatpush.msra.mxu0 0.0
    %2283 = vmatpush.msra.mxu0 0.0
    %2284 = vmatpush.msra.mxu0 0.0
    %2285 = vmatpush.msra.mxu0 0.0
    %2286 = vmatpush.msra.mxu0 0.0
    %2287 = vmatpush.msra.mxu0 0.0
    %2288 = vmatpush.msra.mxu0 0.0
    %2289 = vmatpush.msra.mxu0 0.0
    %2290 = vmatpush.msra.mxu0 0.0
    %2291 = vmatpush.msra.mxu0 0.0
    %2292 = vmatpush.msra.mxu0 0.0
    %2293 = vmatpush.msra.mxu0 0.0
    %2294 = vmatpush.msra.mxu0 0.0
    %2295 = vmatpush.msra.mxu0 0.0
    %2296 = vmatpush.msra.mxu0 0.0
    %2297 = vmatpush.msra.mxu0 %v2280
    %2298 = vmatmul.f32.gmra.mxu0 %v2037
    %v2299 = vpop.f32.mrf.mxu0
    %v2300 = vadd.f32 0.0, %v2299
    %2301 = vmatmul.f32.gmra.mxu0 %v2040
    %v2302 = vpop.f32.mrf.mxu0
    %v2303 = vadd.f32 0.0, %v2302
    %2304 = vmatmul.f32.gmra.mxu0 %v2043
    %v2305 = vpop.f32.mrf.mxu0
    %v2306 = vadd.f32 0.0, %v2305
    %2307 = vmatmul.f32.gmra.mxu0 %v2046
    %v2308 = vpop.f32.mrf.mxu0
    %v2309 = vadd.f32 0.0, %v2308
    %2310 = vmatmul.f32.gmra.mxu0 %v2049
    %v2311 = vpop.f32.mrf.mxu0
    %v2312 = vadd.f32 0.0, %v2311
    %2313 = vmatmul.f32.gmra.mxu0 %v2052
    %v2314 = vpop.f32.mrf.mxu0
    %v2315 = vadd.f32 0.0, %v2314
    %2316 = vmatmul.f32.gmra.mxu0 %v2055
    %v2317 = vpop.f32.mrf.mxu0
    %v2318 = vadd.f32 0.0, %v2317
    %2319 = vmatmul.f32.gmra.mxu0 %v2058
    %v2320 = vpop.f32.mrf.mxu0
    %v2321 = vadd.f32 0.0, %v2320
    %2322 = vmatmul.f32.gmra.mxu0 %v2061
    %v2323 = vpop.f32.mrf.mxu0
    %v2324 = vadd.f32 0.0, %v2323
    %2325 = vmatmul.f32.gmra.mxu0 %v2064
    %v2326 = vpop.f32.mrf.mxu0
    %v2327 = vadd.f32 0.0, %v2326
    %2328 = vmatmul.f32.gmra.mxu0 %v2067
    %v2329 = vpop.f32.mrf.mxu0
    %v2330 = vadd.f32 0.0, %v2329
    %2331 = vmatmul.f32.gmra.mxu0 %v2070
    %v2332 = vpop.f32.mrf.mxu0
    %v2333 = vadd.f32 0.0, %v2332
    %2334 = vmatmul.f32.gmra.mxu0 %v2073
    %v2335 = vpop.f32.mrf.mxu0
    %v2336 = vadd.f32 0.0, %v2335
    %2337 = vmatmul.f32.gmra.mxu0 %v2076
    %v2338 = vpop.f32.mrf.mxu0
    %v2339 = vadd.f32 0.0, %v2338
    %2340 = vmatmul.f32.gmra.mxu0 %v2079
    %v2341 = vpop.f32.mrf.mxu0
    %v2342 = vadd.f32 0.0, %v2341
    %2343 = vmatmul.f32.gmra.mxu0 %v2082
    %v2344 = vpop.f32.mrf.mxu0
    %v2345 = vadd.f32 0.0, %v2344
    %2346 = vmatmul.f32.gmra.mxu0 %v2085
    %v2347 = vpop.f32.mrf.mxu0
    %v2348 = vadd.f32 0.0, %v2347
    %2349 = vmatmul.f32.gmra.mxu0 %v2088
    %v2350 = vpop.f32.mrf.mxu0
    %v2351 = vadd.f32 0.0, %v2350
    %2352 = vmatmul.f32.gmra.mxu0 %v2091
    %v2353 = vpop.f32.mrf.mxu0
    %v2354 = vadd.f32 0.0, %v2353
    %2355 = vmatmul.f32.gmra.mxu0 %v2094
    %v2356 = vpop.f32.mrf.mxu0
    %v2357 = vadd.f32 0.0, %v2356
    %2358 = vmatmul.f32.gmra.mxu0 %v2097
    %v2359 = vpop.f32.mrf.mxu0
    %v2360 = vadd.f32 0.0, %v2359
    %2361 = vmatmul.f32.gmra.mxu0 %v2100
    %v2362 = vpop.f32.mrf.mxu0
    %v2363 = vadd.f32 0.0, %v2362
    %2364 = vmatmul.f32.gmra.mxu0 %v2103
    %v2365 = vpop.f32.mrf.mxu0
    %v2366 = vadd.f32 0.0, %v2365
    %2367 = vmatmul.f32.gmra.mxu0 %v2106
    %v2368 = vpop.f32.mrf.mxu0
    %v2369 = vadd.f32 0.0, %v2368
    %2370 = vmatmul.f32.gmra.mxu0 %v2109
    %v2371 = vpop.f32.mrf.mxu0
    %v2372 = vadd.f32 0.0, %v2371
    %2373 = vmatmul.f32.gmra.mxu0 %v2112
    %v2374 = vpop.f32.mrf.mxu0
    %v2375 = vadd.f32 0.0, %v2374
    %2376 = vmatmul.f32.gmra.mxu0 %v2115
    %v2377 = vpop.f32.mrf.mxu0
    %v2378 = vadd.f32 0.0, %v2377
    %2379 = vmatmul.f32.gmra.mxu0 %v2118
    %v2380 = vpop.f32.mrf.mxu0
    %v2381 = vadd.f32 0.0, %v2380
    %2382 = vmatmul.f32.gmra.mxu0 %v2121
    %v2383 = vpop.f32.mrf.mxu0
    %v2384 = vadd.f32 0.0, %v2383
    %2385 = vmatmul.f32.gmra.mxu0 %v2124
    %v2386 = vpop.f32.mrf.mxu0
    %v2387 = vadd.f32 0.0, %v2386
    %2388 = vmatmul.f32.gmra.mxu0 %v2127
    %v2389 = vpop.f32.mrf.mxu0
    %v2390 = vadd.f32 0.0, %v2389
    %2391 = vmatmul.f32.gmra.mxu0 %v2130
    %v2392 = vpop.f32.mrf.mxu0
    %v2393 = vadd.f32 0.0, %v2392
    %2394 = vmatmul.f32.gmra.mxu0 %v2133
    %v2395 = vpop.f32.mrf.mxu0
    %v2396 = vadd.f32 0.0, %v2395
    %2397 = vmatmul.f32.gmra.mxu0 %v2136
    %v2398 = vpop.f32.mrf.mxu0
    %v2399 = vadd.f32 0.0, %v2398
    %2400 = vmatmul.f32.gmra.mxu0 %v2139
    %v2401 = vpop.f32.mrf.mxu0
    %v2402 = vadd.f32 0.0, %v2401
    %2403 = vmatmul.f32.gmra.mxu0 %v2142
    %v2404 = vpop.f32.mrf.mxu0
    %v2405 = vadd.f32 0.0, %v2404
    %2406 = vmatmul.f32.gmra.mxu0 %v2145
    %v2407 = vpop.f32.mrf.mxu0
    %v2408 = vadd.f32 0.0, %v2407
    %2409 = vmatmul.f32.gmra.mxu0 %v2148
    %v2410 = vpop.f32.mrf.mxu0
    %v2411 = vadd.f32 0.0, %v2410
    %2412 = vmatmul.f32.gmra.mxu0 %v2151
    %v2413 = vpop.f32.mrf.mxu0
    %v2414 = vadd.f32 0.0, %v2413
    %2415 = vmatmul.f32.gmra.mxu0 %v2154
    %v2416 = vpop.f32.mrf.mxu0
    %v2417 = vadd.f32 0.0, %v2416
    %2418 = vmatmul.f32.gmra.mxu0 %v2157
    %v2419 = vpop.f32.mrf.mxu0
    %v2420 = vadd.f32 0.0, %v2419
    %2421 = vmatmul.f32.gmra.mxu0 %v2160
    %v2422 = vpop.f32.mrf.mxu0
    %v2423 = vadd.f32 0.0, %v2422
    %2424 = vmatmul.f32.gmra.mxu0 %v2163
    %v2425 = vpop.f32.mrf.mxu0
    %v2426 = vadd.f32 0.0, %v2425
    %2427 = vmatmul.f32.gmra.mxu0 %v2166
    %v2428 = vpop.f32.mrf.mxu0
    %v2429 = vadd.f32 0.0, %v2428
    %2430 = vmatmul.f32.gmra.mxu0 %v2169
    %v2431 = vpop.f32.mrf.mxu0
    %v2432 = vadd.f32 0.0, %v2431
    %2433 = vmatmul.f32.gmra.mxu0 %v2172
    %v2434 = vpop.f32.mrf.mxu0
    %v2435 = vadd.f32 0.0, %v2434
    %2436 = vmatmul.f32.gmra.mxu0 %v2175
    %v2437 = vpop.f32.mrf.mxu0
    %v2438 = vadd.f32 0.0, %v2437
    %2439 = vmatmul.f32.gmra.mxu0 %v2178
    %v2440 = vpop.f32.mrf.mxu0
    %v2441 = vadd.f32 0.0, %v2440
    %2442 = vmatmul.f32.gmra.mxu0 %v2181
    %v2443 = vpop.f32.mrf.mxu0
    %v2444 = vadd.f32 0.0, %v2443
    %2445 = vmatmul.f32.gmra.mxu0 %v2184
    %v2446 = vpop.f32.mrf.mxu0
    %v2447 = vadd.f32 0.0, %v2446
    %2448 = vmatmul.f32.gmra.mxu0 %v2187
    %v2449 = vpop.f32.mrf.mxu0
    %v2450 = vadd.f32 0.0, %v2449
    %2451 = vmatmul.f32.gmra.mxu0 %v2190
    %v2452 = vpop.f32.mrf.mxu0
    %v2453 = vadd.f32 0.0, %v2452
    %2454 = vmatmul.f32.gmra.mxu0 %v2193
    %v2455 = vpop.f32.mrf.mxu0
    %v2456 = vadd.f32 0.0, %v2455
    %2457 = vmatmul.f32.gmra.mxu0 %v2196
    %v2458 = vpop.f32.mrf.mxu0
    %v2459 = vadd.f32 0.0, %v2458
    %2460 = vmatmul.f32.gmra.mxu0 %v2199
    %v2461 = vpop.f32.mrf.mxu0
    %v2462 = vadd.f32 0.0, %v2461
    %2463 = vmatmul.f32.gmra.mxu0 %v2202
    %v2464 = vpop.f32.mrf.mxu0
    %v2465 = vadd.f32 0.0, %v2464
    %2466 = vmatmul.f32.gmra.mxu0 %v2205
    %v2467 = vpop.f32.mrf.mxu0
    %v2468 = vadd.f32 0.0, %v2467
    %2469 = vmatmul.f32.gmra.mxu0 %v2208
    %v2470 = vpop.f32.mrf.mxu0
    %v2471 = vadd.f32 0.0, %v2470
    %2472 = vmatmul.f32.gmra.mxu0 %v2211
    %v2473 = vpop.f32.mrf.mxu0
    %v2474 = vadd.f32 0.0, %v2473
    %2475 = vmatmul.f32.gmra.mxu0 %v2214
    %v2476 = vpop.f32.mrf.mxu0
    %v2477 = vadd.f32 0.0, %v2476
    %2478 = vmatmul.f32.gmra.mxu0 %v2217
    %v2479 = vpop.f32.mrf.mxu0
    %v2480 = vadd.f32 0.0, %v2479
    %2481 = vmatmul.f32.gmra.mxu0 %v2220
    %v2482 = vpop.f32.mrf.mxu0
    %v2483 = vadd.f32 0.0, %v2482
    %2484 = vmatmul.f32.gmra.mxu0 %v2223
    %v2485 = vpop.f32.mrf.mxu0
    %v2486 = vadd.f32 0.0, %v2485
    %2487 = vmatmul.f32.gmra.mxu0 %v2226
    %v2488 = vpop.f32.mrf.mxu0
    %v2489 = vadd.f32 0.0, %v2488
    %2490 = vmatmul.f32.gmra.mxu0 %v2229
    %v2491 = vpop.f32.mrf.mxu0
    %v2492 = vadd.f32 0.0, %v2491
    %2493 = vmatmul.f32.gmra.mxu0 %v2232
    %v2494 = vpop.f32.mrf.mxu0
    %v2495 = vadd.f32 0.0, %v2494
    %2496 = vmatmul.f32.gmra.mxu0 %v2235
    %v2497 = vpop.f32.mrf.mxu0
    %v2498 = vadd.f32 0.0, %v2497
    %2499 = vmatmul.f32.gmra.mxu0 %v2238
    %v2500 = vpop.f32.mrf.mxu0
    %v2501 = vadd.f32 0.0, %v2500
    %2502 = vmatmul.f32.gmra.mxu0 %v2241
    %v2503 = vpop.f32.mrf.mxu0
    %v2504 = vadd.f32 0.0, %v2503
    %2505 = vmatmul.f32.gmra.mxu0 %v2244
    %v2506 = vpop.f32.mrf.mxu0
    %v2507 = vadd.f32 0.0, %v2506
    %2508 = vmatmul.f32.gmra.mxu0 %v2247
    %v2509 = vpop.f32.mrf.mxu0
    %v2510 = vadd.f32 0.0, %v2509
    %2511 = vmatmul.f32.gmra.mxu0 %v2250
    %v2512 = vpop.f32.mrf.mxu0
    %v2513 = vadd.f32 0.0, %v2512
    %2514 = vmatmul.f32.gmra.mxu0 %v2253
    %v2515 = vpop.f32.mrf.mxu0
    %v2516 = vadd.f32 0.0, %v2515
    %2517 = vmatmul.f32.gmra.mxu0 %v2256
    %v2518 = vpop.f32.mrf.mxu0
    %v2519 = vadd.f32 0.0, %v2518
    %2520 = vmatmul.f32.gmra.mxu0 %v2259
    %v2521 = vpop.f32.mrf.mxu0
    %v2522 = vadd.f32 0.0, %v2521
    %2523 = vmatmul.f32.gmra.mxu0 %v2262
    %v2524 = vpop.f32.mrf.mxu0
    %v2525 = vadd.f32 0.0, %v2524
    %2526 = vmatmul.f32.gmra.mxu0 %v2265
    %v2527 = vpop.f32.mrf.mxu0
    %v2528 = vadd.f32 0.0, %v2527
    %2529 = vmatmul.f32.gmra.mxu0 %v2268
    %v2530 = vpop.f32.mrf.mxu0
    %v2531 = vadd.f32 0.0, %v2530
    %2532 = vmatmul.f32.gmra.mxu0 %v2271
    %v2533 = vpop.f32.mrf.mxu0
    %v2534 = vadd.f32 0.0, %v2533
    %2535 = vmatmul.f32.gmra.mxu0 %v2274
    %v2536 = vpop.f32.mrf.mxu0
    %v2537 = vadd.f32 0.0, %v2536
    %2538 = vmatmul.f32.gmra.mxu0 %v2277
    %v2539 = vpop.f32.mrf.mxu0
    %v2540 = vadd.f32 0.0, %v2539
    %2541 = vdwg.mxu0
    %v2542 = vadd.f32 %v1872, %v2300
    %v2543 = vadd.f32 %v1873, %v2303
    %v2544 = vadd.f32 %v1874, %v2306
    %v2545 = vadd.f32 %v1875, %v2309
    %v2546 = vadd.f32 %v1876, %v2312
    %v2547 = vadd.f32 %v1877, %v2315
    %v2548 = vadd.f32 %v1878, %v2318
    %v2549 = vadd.f32 %v1879, %v2321
    %v2550 = vadd.f32 %v1880, %v2324
    %v2551 = vadd.f32 %v1881, %v2327
    %v2552 = vadd.f32 %v1882, %v2330
    %v2553 = vadd.f32 %v1883, %v2333
    %v2554 = vadd.f32 %v1884, %v2336
    %v2555 = vadd.f32 %v1885, %v2339
    %v2556 = vadd.f32 %v1886, %v2342
    %v2557 = vadd.f32 %v1887, %v2345
    %v2558 = vadd.f32 %v1888, %v2348
    %v2559 = vadd.f32 %v1889, %v2351
    %v2560 = vadd.f32 %v1890, %v2354
    %v2561 = vadd.f32 %v1891, %v2357
    %v2562 = vadd.f32 %v1892, %v2360
    %v2563 = vadd.f32 %v1893, %v2363
    %v2564 = vadd.f32 %v1894, %v2366
    %v2565 = vadd.f32 %v1895, %v2369
    %v2566 = vadd.f32 %v1896, %v2372
    %v2567 = vadd.f32 %v1897, %v2375
    %v2568 = vadd.f32 %v1898, %v2378
    %v2569 = vadd.f32 %v1899, %v2381
    %v2570 = vadd.f32 %v1900, %v2384
    %v2571 = vadd.f32 %v1901, %v2387
    %v2572 = vadd.f32 %v1902, %v2390
    %v2573 = vadd.f32 %v1903, %v2393
    %v2574 = vadd.f32 %v1904, %v2396
    %v2575 = vadd.f32 %v1905, %v2399
    %v2576 = vadd.f32 %v1906, %v2402
    %v2577 = vadd.f32 %v1907, %v2405
    %v2578 = vadd.f32 %v1908, %v2408
    %v2579 = vadd.f32 %v1909, %v2411
    %v2580 = vadd.f32 %v1910, %v2414
    %v2581 = vadd.f32 %v1911, %v2417
    %v2582 = vadd.f32 %v1912, %v2420
    %v2583 = vadd.f32 %v1913, %v2423
    %v2584 = vadd.f32 %v1914, %v2426
    %v2585 = vadd.f32 %v1915, %v2429
    %v2586 = vadd.f32 %v1916, %v2432
    %v2587 = vadd.f32 %v1917, %v2435
    %v2588 = vadd.f32 %v1918, %v2438
    %v2589 = vadd.f32 %v1919, %v2441
    %v2590 = vadd.f32 %v1920, %v2444
    %v2591 = vadd.f32 %v1921, %v2447
    %v2592 = vadd.f32 %v1922, %v2450
    %v2593 = vadd.f32 %v1923, %v2453
    %v2594 = vadd.f32 %v1924, %v2456
    %v2595 = vadd.f32 %v1925, %v2459
    %v2596 = vadd.f32 %v1926, %v2462
    %v2597 = vadd.f32 %v1927, %v2465
    %v2598 = vadd.f32 %v1928, %v2468
    %v2599 = vadd.f32 %v1929, %v2471
    %v2600 = vadd.f32 %v1930, %v2474
    %v2601 = vadd.f32 %v1931, %v2477
    %v2602 = vadd.f32 %v1932, %v2480
    %v2603 = vadd.f32 %v1933, %v2483
    %v2604 = vadd.f32 %v1934, %v2486
    %v2605 = vadd.f32 %v1935, %v2489
    %v2606 = vadd.f32 %v1936, %v2492
    %v2607 = vadd.f32 %v1937, %v2495
    %v2608 = vadd.f32 %v1938, %v2498
    %v2609 = vadd.f32 %v1939, %v2501
    %v2610 = vadd.f32 %v1940, %v2504
    %v2611 = vadd.f32 %v1941, %v2507
    %v2612 = vadd.f32 %v1942, %v2510
    %v2613 = vadd.f32 %v1943, %v2513
    %v2614 = vadd.f32 %v1944, %v2516
    %v2615 = vadd.f32 %v1945, %v2519
    %v2616 = vadd.f32 %v1946, %v2522
    %v2617 = vadd.f32 %v1947, %v2525
    %v2618 = vadd.f32 %v1948, %v2528
    %v2619 = vadd.f32 %v1949, %v2531
    %v2620 = vadd.f32 %v1950, %v2534
    %v2621 = vadd.f32 %v1951, %v2537
    %v2622 = vadd.f32 %v1952, %v2540
    %v2623 = vld [vmem:[%s0 + $0x14] sm:$0xff]
    %v2624 = vld [vmem:[%s0 + $0x1c] sm:$0xff]
    %v2625 = vld [vmem:[%s0 + $0x24] sm:$0xff]
    %v2626 = vld [vmem:[%s0 + $0x2c] sm:$0xff]
    %v2627 = vld [vmem:[%s0 + $0x34] sm:$0xff]
    %v2628 = vld [vmem:[%s0 + $0x3c] sm:$0xff]
    %v2629 = vld [vmem:[%s0 + $0x44] sm:$0xff]
    %v2630 = vld [vmem:[%s0 + $0x4c] sm:$0xff]
    %v2631 = vld [vmem:[%s0 + $0x54] sm:$0xff]
    %v2632 = vld [vmem:[%s0 + $0x5c] sm:$0xff]
    %v2633 = vld [vmem:[%s0 + $0x64] sm:$0xff]
    %v2634 = vld [vmem:[%s0 + $0x6c] sm:$0xff]
    %v2635 = vld [vmem:[%s0 + $0x74] sm:$0xff]
    %v2636 = vld [vmem:[%s0 + $0x7c] sm:$0xff]
    %v2637 = vld [vmem:[%s0 + $0x84] sm:$0xff]
    %v2638 = vld [vmem:[%s0 + $0x8c] sm:$0xff]
    %v2639 = vld [vmem:[%s0 + $0x94] sm:$0xff]
    %v2640 = vld [vmem:[%s0 + $0x9c] sm:$0xff]
    %v2641 = vld [vmem:[%s0 + $0xa4] sm:$0xff]
    %v2642 = vld [vmem:[%s0 + $0xac] sm:$0xff]
    %v2643 = vld [vmem:[%s0 + $0xb4] sm:$0xff]
    %v2644 = vld [vmem:[%s0 + $0xbc] sm:$0xff]
    %v2645 = vld [vmem:[%s0 + $0xc4] sm:$0xff]
    %v2646 = vld [vmem:[%s0 + $0xcc] sm:$0xff]
    %v2647 = vld [vmem:[%s0 + $0xd4] sm:$0xff]
    %v2648 = vld [vmem:[%s0 + $0xdc] sm:$0xff]
    %v2649 = vld [vmem:[%s0 + $0xe4] sm:$0xff]
    %v2650 = vld [vmem:[%s0 + $0xec] sm:$0xff]
    %v2651 = vld [vmem:[%s0 + $0xf4] sm:$0xff]
    %v2652 = vld [vmem:[%s0 + $0xfc] sm:$0xff]
    %v2653 = vld [vmem:[%s0 + $0x104] sm:$0xff]
    %v2654 = vld [vmem:[%s0 + $0x10c] sm:$0xff]
    %v2655 = vld [vmem:[%s0 + $0x114] sm:$0xff]
    %v2656 = vld [vmem:[%s0 + $0x11c] sm:$0xff]
    %v2657 = vld [vmem:[%s0 + $0x124] sm:$0xff]
    %v2658 = vld [vmem:[%s0 + $0x12c] sm:$0xff]
    %v2659 = vld [vmem:[%s0 + $0x134] sm:$0xff]
    %v2660 = vld [vmem:[%s0 + $0x13c] sm:$0xff]
    %v2661 = vld [vmem:[%s0 + $0x144] sm:$0xff]
    %v2662 = vld [vmem:[%s0 + $0x14c] sm:$0xff]
    %v2663 = vld [vmem:[%s0 + $0x154] sm:$0xff]
    %v2664 = vld [vmem:[%s0 + $0x15c] sm:$0xff]
    %v2665 = vld [vmem:[%s0 + $0x164] sm:$0xff]
    %v2666 = vld [vmem:[%s0 + $0x16c] sm:$0xff]
    %v2667 = vld [vmem:[%s0 + $0x174] sm:$0xff]
    %v2668 = vld [vmem:[%s0 + $0x17c] sm:$0xff]
    %v2669 = vld [vmem:[%s0 + $0x184] sm:$0xff]
    %v2670 = vld [vmem:[%s0 + $0x18c] sm:$0xff]
    %v2671 = vld [vmem:[%s0 + $0x194] sm:$0xff]
    %v2672 = vld [vmem:[%s0 + $0x19c] sm:$0xff]
    %v2673 = vld [vmem:[%s0 + $0x1a4] sm:$0xff]
    %v2674 = vld [vmem:[%s0 + $0x1ac] sm:$0xff]
    %v2675 = vld [vmem:[%s0 + $0x1b4] sm:$0xff]
    %v2676 = vld [vmem:[%s0 + $0x1bc] sm:$0xff]
    %v2677 = vld [vmem:[%s0 + $0x1c4] sm:$0xff]
    %v2678 = vld [vmem:[%s0 + $0x1cc] sm:$0xff]
    %v2679 = vld [vmem:[%s0 + $0x1d4] sm:$0xff]
    %v2680 = vld [vmem:[%s0 + $0x1dc] sm:$0xff]
    %v2681 = vld [vmem:[%s0 + $0x1e4] sm:$0xff]
    %v2682 = vld [vmem:[%s0 + $0x1ec] sm:$0xff]
    %v2683 = vld [vmem:[%s0 + $0x1f4] sm:$0xff]
    %v2684 = vld [vmem:[%s0 + $0x1fc] sm:$0xff]
    %v2685 = vld [vmem:[%s0 + $0x204] sm:$0xff]
    %v2686 = vld [vmem:[%s0 + $0x20c] sm:$0xff]
    %v2687 = vld [vmem:[%s0 + $0x214] sm:$0xff]
    %v2688 = vld [vmem:[%s0 + $0x21c] sm:$0xff]
    %v2689 = vld [vmem:[%s0 + $0x224] sm:$0xff]
    %v2690 = vld [vmem:[%s0 + $0x22c] sm:$0xff]
    %v2691 = vld [vmem:[%s0 + $0x234] sm:$0xff]
    %v2692 = vld [vmem:[%s0 + $0x23c] sm:$0xff]
    %v2693 = vld [vmem:[%s0 + $0x244] sm:$0xff]
    %v2694 = vld [vmem:[%s0 + $0x24c] sm:$0xff]
    %v2695 = vld [vmem:[%s0 + $0x254] sm:$0xff]
    %v2696 = vld [vmem:[%s0 + $0x25c] sm:$0xff]
    %v2697 = vld [vmem:[%s0 + $0x264] sm:$0xff]
    %v2698 = vld [vmem:[%s0 + $0x26c] sm:$0xff]
    %v2699 = vld [vmem:[%s0 + $0x274] sm:$0xff]
    %v2700 = vld [vmem:[%s0 + $0x27c] sm:$0xff]
    %v2701 = vld [vmem:[%s0 + $0x284] sm:$0xff]
    %v2702 = vld [vmem:[%s0 + $0x28c] sm:$0xff]
    %v2703 = vld [vmem:[%s0 + $0x294] sm:$0xff]
    %s2704 = scalar_lea.vmem %s1, 16
    %v2705 = vld [vmem:[%s2704] sm:$0x7]
    %v2707 = vsel %vm269, %v2623, 0
    %v2710 = vsel %vm269, %v2624, 0
    %v2713 = vsel %vm269, %v2625, 0
    %v2716 = vsel %vm269, %v2626, 0
    %v2719 = vsel %vm269, %v2627, 0
    %v2722 = vsel %vm269, %v2628, 0
    %v2725 = vsel %vm269, %v2629, 0
    %v2728 = vsel %vm269, %v2630, 0
    %v2731 = vsel %vm269, %v2631, 0
    %v2734 = vsel %vm269, %v2632, 0
    %v2737 = vsel %vm269, %v2633, 0
    %v2740 = vsel %vm269, %v2634, 0
    %v2743 = vsel %vm269, %v2635, 0
    %v2746 = vsel %vm269, %v2636, 0
    %v2749 = vsel %vm269, %v2637, 0
    %v2752 = vsel %vm269, %v2638, 0
    %v2755 = vsel %vm269, %v2639, 0
    %v2758 = vsel %vm269, %v2640, 0
    %v2761 = vsel %vm269, %v2641, 0
    %v2764 = vsel %vm269, %v2642, 0
    %v2767 = vsel %vm269, %v2643, 0
    %v2770 = vsel %vm269, %v2644, 0
    %v2773 = vsel %vm269, %v2645, 0
    %v2776 = vsel %vm269, %v2646, 0
    %v2779 = vsel %vm269, %v2647, 0
    %v2782 = vsel %vm269, %v2648, 0
    %v2785 = vsel %vm269, %v2649, 0
    %v2788 = vsel %vm269, %v2650, 0
    %v2791 = vsel %vm269, %v2651, 0
    %v2794 = vsel %vm269, %v2652, 0
    %v2797 = vsel %vm269, %v2653, 0
    %v2800 = vsel %vm269, %v2654, 0
    %v2803 = vsel %vm269, %v2655, 0
    %v2806 = vsel %vm269, %v2656, 0
    %v2809 = vsel %vm269, %v2657, 0
    %v2812 = vsel %vm269, %v2658, 0
    %v2815 = vsel %vm269, %v2659, 0
    %v2818 = vsel %vm269, %v2660, 0
    %v2821 = vsel %vm269, %v2661, 0
    %v2824 = vsel %vm269, %v2662, 0
    %v2827 = vsel %vm269, %v2663, 0
    %v2830 = vsel %vm269, %v2664, 0
    %v2833 = vsel %vm269, %v2665, 0
    %v2836 = vsel %vm269, %v2666, 0
    %v2839 = vsel %vm269, %v2667, 0
    %v2842 = vsel %vm269, %v2668, 0
    %v2845 = vsel %vm269, %v2669, 0
    %v2848 = vsel %vm269, %v2670, 0
    %v2851 = vsel %vm269, %v2671, 0
    %v2854 = vsel %vm269, %v2672, 0
    %v2857 = vsel %vm269, %v2673, 0
    %v2860 = vsel %vm269, %v2674, 0
    %v2863 = vsel %vm269, %v2675, 0
    %v2866 = vsel %vm269, %v2676, 0
    %v2869 = vsel %vm269, %v2677, 0
    %v2872 = vsel %vm269, %v2678, 0
    %v2875 = vsel %vm269, %v2679, 0
    %v2878 = vsel %vm269, %v2680, 0
    %v2881 = vsel %vm269, %v2681, 0
    %v2884 = vsel %vm269, %v2682, 0
    %v2887 = vsel %vm269, %v2683, 0
    %v2890 = vsel %vm269, %v2684, 0
    %v2893 = vsel %vm269, %v2685, 0
    %v2896 = vsel %vm269, %v2686, 0
    %v2899 = vsel %vm269, %v2687, 0
    %v2902 = vsel %vm269, %v2688, 0
    %v2905 = vsel %vm269, %v2689, 0
    %v2908 = vsel %vm269, %v2690, 0
    %v2911 = vsel %vm269, %v2691, 0
    %v2914 = vsel %vm269, %v2692, 0
    %v2917 = vsel %vm269, %v2693, 0
    %v2920 = vsel %vm269, %v2694, 0
    %v2923 = vsel %vm269, %v2695, 0
    %v2926 = vsel %vm269, %v2696, 0
    %v2929 = vsel %vm269, %v2697, 0
    %v2932 = vsel %vm269, %v2698, 0
    %v2935 = vsel %vm269, %v2699, 0
    %v2938 = vsel %vm269, %v2700, 0
    %v2941 = vsel %vm269, %v2701, 0
    %v2944 = vsel %vm269, %v2702, 0
    %v2947 = vsel %vm269, %v2703, 0
    %v2950 = vsel %vm513, %v2705, 0
    %2952 = vmatpush.msra.mxu0 0.0
    %2953 = vmatpush.msra.mxu0 0.0
    %2954 = vmatpush.msra.mxu0 0.0
    %2955 = vmatpush.msra.mxu0 0.0
    %2956 = vmatpush.msra.mxu0 0.0
    %2957 = vmatpush.msra.mxu0 0.0
    %2958 = vmatpush.msra.mxu0 0.0
    %2959 = vmatpush.msra.mxu0 0.0
    %2960 = vmatpush.msra.mxu0 0.0
    %2961 = vmatpush.msra.mxu0 0.0
    %2962 = vmatpush.msra.mxu0 0.0
    %2963 = vmatpush.msra.mxu0 0.0
    %2964 = vmatpush.msra.mxu0 0.0
    %2965 = vmatpush.msra.mxu0 0.0
    %2966 = vmatpush.msra.mxu0 0.0
    %2967 = vmatpush.msra.mxu0 %v2950
    %2968 = vmatmul.f32.gmra.mxu0 %v2707
    %v2969 = vpop.f32.mrf.mxu0
    %v2970 = vadd.f32 0.0, %v2969
    %2971 = vmatmul.f32.gmra.mxu0 %v2710
    %v2972 = vpop.f32.mrf.mxu0
    %v2973 = vadd.f32 0.0, %v2972
    %2974 = vmatmul.f32.gmra.mxu0 %v2713
    %v2975 = vpop.f32.mrf.mxu0
    %v2976 = vadd.f32 0.0, %v2975
    %2977 = vmatmul.f32.gmra.mxu0 %v2716
    %v2978 = vpop.f32.mrf.mxu0
    %v2979 = vadd.f32 0.0, %v2978
    %2980 = vmatmul.f32.gmra.mxu0 %v2719
    %v2981 = vpop.f32.mrf.mxu0
    %v2982 = vadd.f32 0.0, %v2981
    %2983 = vmatmul.f32.gmra.mxu0 %v2722
    %v2984 = vpop.f32.mrf.mxu0
    %v2985 = vadd.f32 0.0, %v2984
    %2986 = vmatmul.f32.gmra.mxu0 %v2725
    %v2987 = vpop.f32.mrf.mxu0
    %v2988 = vadd.f32 0.0, %v2987
    %2989 = vmatmul.f32.gmra.mxu0 %v2728
    %v2990 = vpop.f32.mrf.mxu0
    %v2991 = vadd.f32 0.0, %v2990
    %2992 = vmatmul.f32.gmra.mxu0 %v2731
    %v2993 = vpop.f32.mrf.mxu0
    %v2994 = vadd.f32 0.0, %v2993
    %2995 = vmatmul.f32.gmra.mxu0 %v2734
    %v2996 = vpop.f32.mrf.mxu0
    %v2997 = vadd.f32 0.0, %v2996
    %2998 = vmatmul.f32.gmra.mxu0 %v2737
    %v2999 = vpop.f32.mrf.mxu0
    %v3000 = vadd.f32 0.0, %v2999
    %3001 = vmatmul.f32.gmra.mxu0 %v2740
    %v3002 = vpop.f32.mrf.mxu0
    %v3003 = vadd.f32 0.0, %v3002
    %3004 = vmatmul.f32.gmra.mxu0 %v2743
    %v3005 = vpop.f32.mrf.mxu0
    %v3006 = vadd.f32 0.0, %v3005
    %3007 = vmatmul.f32.gmra.mxu0 %v2746
    %v3008 = vpop.f32.mrf.mxu0
    %v3009 = vadd.f32 0.0, %v3008
    %3010 = vmatmul.f32.gmra.mxu0 %v2749
    %v3011 = vpop.f32.mrf.mxu0
    %v3012 = vadd.f32 0.0, %v3011
    %3013 = vmatmul.f32.gmra.mxu0 %v2752
    %v3014 = vpop.f32.mrf.mxu0
    %v3015 = vadd.f32 0.0, %v3014
    %3016 = vmatmul.f32.gmra.mxu0 %v2755
    %v3017 = vpop.f32.mrf.mxu0
    %v3018 = vadd.f32 0.0, %v3017
    %3019 = vmatmul.f32.gmra.mxu0 %v2758
    %v3020 = vpop.f32.mrf.mxu0
    %v3021 = vadd.f32 0.0, %v3020
    %3022 = vmatmul.f32.gmra.mxu0 %v2761
    %v3023 = vpop.f32.mrf.mxu0
    %v3024 = vadd.f32 0.0, %v3023
    %3025 = vmatmul.f32.gmra.mxu0 %v2764
    %v3026 = vpop.f32.mrf.mxu0
    %v3027 = vadd.f32 0.0, %v3026
    %3028 = vmatmul.f32.gmra.mxu0 %v2767
    %v3029 = vpop.f32.mrf.mxu0
    %v3030 = vadd.f32 0.0, %v3029
    %3031 = vmatmul.f32.gmra.mxu0 %v2770
    %v3032 = vpop.f32.mrf.mxu0
    %v3033 = vadd.f32 0.0, %v3032
    %3034 = vmatmul.f32.gmra.mxu0 %v2773
    %v3035 = vpop.f32.mrf.mxu0
    %v3036 = vadd.f32 0.0, %v3035
    %3037 = vmatmul.f32.gmra.mxu0 %v2776
    %v3038 = vpop.f32.mrf.mxu0
    %v3039 = vadd.f32 0.0, %v3038
    %3040 = vmatmul.f32.gmra.mxu0 %v2779
    %v3041 = vpop.f32.mrf.mxu0
    %v3042 = vadd.f32 0.0, %v3041
    %3043 = vmatmul.f32.gmra.mxu0 %v2782
    %v3044 = vpop.f32.mrf.mxu0
    %v3045 = vadd.f32 0.0, %v3044
    %3046 = vmatmul.f32.gmra.mxu0 %v2785
    %v3047 = vpop.f32.mrf.mxu0
    %v3048 = vadd.f32 0.0, %v3047
    %3049 = vmatmul.f32.gmra.mxu0 %v2788
    %v3050 = vpop.f32.mrf.mxu0
    %v3051 = vadd.f32 0.0, %v3050
    %3052 = vmatmul.f32.gmra.mxu0 %v2791
    %v3053 = vpop.f32.mrf.mxu0
    %v3054 = vadd.f32 0.0, %v3053
    %3055 = vmatmul.f32.gmra.mxu0 %v2794
    %v3056 = vpop.f32.mrf.mxu0
    %v3057 = vadd.f32 0.0, %v3056
    %3058 = vmatmul.f32.gmra.mxu0 %v2797
    %v3059 = vpop.f32.mrf.mxu0
    %v3060 = vadd.f32 0.0, %v3059
    %3061 = vmatmul.f32.gmra.mxu0 %v2800
    %v3062 = vpop.f32.mrf.mxu0
    %v3063 = vadd.f32 0.0, %v3062
    %3064 = vmatmul.f32.gmra.mxu0 %v2803
    %v3065 = vpop.f32.mrf.mxu0
    %v3066 = vadd.f32 0.0, %v3065
    %3067 = vmatmul.f32.gmra.mxu0 %v2806
    %v3068 = vpop.f32.mrf.mxu0
    %v3069 = vadd.f32 0.0, %v3068
    %3070 = vmatmul.f32.gmra.mxu0 %v2809
    %v3071 = vpop.f32.mrf.mxu0
    %v3072 = vadd.f32 0.0, %v3071
    %3073 = vmatmul.f32.gmra.mxu0 %v2812
    %v3074 = vpop.f32.mrf.mxu0
    %v3075 = vadd.f32 0.0, %v3074
    %3076 = vmatmul.f32.gmra.mxu0 %v2815
    %v3077 = vpop.f32.mrf.mxu0
    %v3078 = vadd.f32 0.0, %v3077
    %3079 = vmatmul.f32.gmra.mxu0 %v2818
    %v3080 = vpop.f32.mrf.mxu0
    %v3081 = vadd.f32 0.0, %v3080
    %3082 = vmatmul.f32.gmra.mxu0 %v2821
    %v3083 = vpop.f32.mrf.mxu0
    %v3084 = vadd.f32 0.0, %v3083
    %3085 = vmatmul.f32.gmra.mxu0 %v2824
    %v3086 = vpop.f32.mrf.mxu0
    %v3087 = vadd.f32 0.0, %v3086
    %3088 = vmatmul.f32.gmra.mxu0 %v2827
    %v3089 = vpop.f32.mrf.mxu0
    %v3090 = vadd.f32 0.0, %v3089
    %3091 = vmatmul.f32.gmra.mxu0 %v2830
    %v3092 = vpop.f32.mrf.mxu0
    %v3093 = vadd.f32 0.0, %v3092
    %3094 = vmatmul.f32.gmra.mxu0 %v2833
    %v3095 = vpop.f32.mrf.mxu0
    %v3096 = vadd.f32 0.0, %v3095
    %3097 = vmatmul.f32.gmra.mxu0 %v2836
    %v3098 = vpop.f32.mrf.mxu0
    %v3099 = vadd.f32 0.0, %v3098
    %3100 = vmatmul.f32.gmra.mxu0 %v2839
    %v3101 = vpop.f32.mrf.mxu0
    %v3102 = vadd.f32 0.0, %v3101
    %3103 = vmatmul.f32.gmra.mxu0 %v2842
    %v3104 = vpop.f32.mrf.mxu0
    %v3105 = vadd.f32 0.0, %v3104
    %3106 = vmatmul.f32.gmra.mxu0 %v2845
    %v3107 = vpop.f32.mrf.mxu0
    %v3108 = vadd.f32 0.0, %v3107
    %3109 = vmatmul.f32.gmra.mxu0 %v2848
    %v3110 = vpop.f32.mrf.mxu0
    %v3111 = vadd.f32 0.0, %v3110
    %3112 = vmatmul.f32.gmra.mxu0 %v2851
    %v3113 = vpop.f32.mrf.mxu0
    %v3114 = vadd.f32 0.0, %v3113
    %3115 = vmatmul.f32.gmra.mxu0 %v2854
    %v3116 = vpop.f32.mrf.mxu0
    %v3117 = vadd.f32 0.0, %v3116
    %3118 = vmatmul.f32.gmra.mxu0 %v2857
    %v3119 = vpop.f32.mrf.mxu0
    %v3120 = vadd.f32 0.0, %v3119
    %3121 = vmatmul.f32.gmra.mxu0 %v2860
    %v3122 = vpop.f32.mrf.mxu0
    %v3123 = vadd.f32 0.0, %v3122
    %3124 = vmatmul.f32.gmra.mxu0 %v2863
    %v3125 = vpop.f32.mrf.mxu0
    %v3126 = vadd.f32 0.0, %v3125
    %3127 = vmatmul.f32.gmra.mxu0 %v2866
    %v3128 = vpop.f32.mrf.mxu0
    %v3129 = vadd.f32 0.0, %v3128
    %3130 = vmatmul.f32.gmra.mxu0 %v2869
    %v3131 = vpop.f32.mrf.mxu0
    %v3132 = vadd.f32 0.0, %v3131
    %3133 = vmatmul.f32.gmra.mxu0 %v2872
    %v3134 = vpop.f32.mrf.mxu0
    %v3135 = vadd.f32 0.0, %v3134
    %3136 = vmatmul.f32.gmra.mxu0 %v2875
    %v3137 = vpop.f32.mrf.mxu0
    %v3138 = vadd.f32 0.0, %v3137
    %3139 = vmatmul.f32.gmra.mxu0 %v2878
    %v3140 = vpop.f32.mrf.mxu0
    %v3141 = vadd.f32 0.0, %v3140
    %3142 = vmatmul.f32.gmra.mxu0 %v2881
    %v3143 = vpop.f32.mrf.mxu0
    %v3144 = vadd.f32 0.0, %v3143
    %3145 = vmatmul.f32.gmra.mxu0 %v2884
    %v3146 = vpop.f32.mrf.mxu0
    %v3147 = vadd.f32 0.0, %v3146
    %3148 = vmatmul.f32.gmra.mxu0 %v2887
    %v3149 = vpop.f32.mrf.mxu0
    %v3150 = vadd.f32 0.0, %v3149
    %3151 = vmatmul.f32.gmra.mxu0 %v2890
    %v3152 = vpop.f32.mrf.mxu0
    %v3153 = vadd.f32 0.0, %v3152
    %3154 = vmatmul.f32.gmra.mxu0 %v2893
    %v3155 = vpop.f32.mrf.mxu0
    %v3156 = vadd.f32 0.0, %v3155
    %3157 = vmatmul.f32.gmra.mxu0 %v2896
    %v3158 = vpop.f32.mrf.mxu0
    %v3159 = vadd.f32 0.0, %v3158
    %3160 = vmatmul.f32.gmra.mxu0 %v2899
    %v3161 = vpop.f32.mrf.mxu0
    %v3162 = vadd.f32 0.0, %v3161
    %3163 = vmatmul.f32.gmra.mxu0 %v2902
    %v3164 = vpop.f32.mrf.mxu0
    %v3165 = vadd.f32 0.0, %v3164
    %3166 = vmatmul.f32.gmra.mxu0 %v2905
    %v3167 = vpop.f32.mrf.mxu0
    %v3168 = vadd.f32 0.0, %v3167
    %3169 = vmatmul.f32.gmra.mxu0 %v2908
    %v3170 = vpop.f32.mrf.mxu0
    %v3171 = vadd.f32 0.0, %v3170
    %3172 = vmatmul.f32.gmra.mxu0 %v2911
    %v3173 = vpop.f32.mrf.mxu0
    %v3174 = vadd.f32 0.0, %v3173
    %3175 = vmatmul.f32.gmra.mxu0 %v2914
    %v3176 = vpop.f32.mrf.mxu0
    %v3177 = vadd.f32 0.0, %v3176
    %3178 = vmatmul.f32.gmra.mxu0 %v2917
    %v3179 = vpop.f32.mrf.mxu0
    %v3180 = vadd.f32 0.0, %v3179
    %3181 = vmatmul.f32.gmra.mxu0 %v2920
    %v3182 = vpop.f32.mrf.mxu0
    %v3183 = vadd.f32 0.0, %v3182
    %3184 = vmatmul.f32.gmra.mxu0 %v2923
    %v3185 = vpop.f32.mrf.mxu0
    %v3186 = vadd.f32 0.0, %v3185
    %3187 = vmatmul.f32.gmra.mxu0 %v2926
    %v3188 = vpop.f32.mrf.mxu0
    %v3189 = vadd.f32 0.0, %v3188
    %3190 = vmatmul.f32.gmra.mxu0 %v2929
    %v3191 = vpop.f32.mrf.mxu0
    %v3192 = vadd.f32 0.0, %v3191
    %3193 = vmatmul.f32.gmra.mxu0 %v2932
    %v3194 = vpop.f32.mrf.mxu0
    %v3195 = vadd.f32 0.0, %v3194
    %3196 = vmatmul.f32.gmra.mxu0 %v2935
    %v3197 = vpop.f32.mrf.mxu0
    %v3198 = vadd.f32 0.0, %v3197
    %3199 = vmatmul.f32.gmra.mxu0 %v2938
    %v3200 = vpop.f32.mrf.mxu0
    %v3201 = vadd.f32 0.0, %v3200
    %3202 = vmatmul.f32.gmra.mxu0 %v2941
    %v3203 = vpop.f32.mrf.mxu0
    %v3204 = vadd.f32 0.0, %v3203
    %3205 = vmatmul.f32.gmra.mxu0 %v2944
    %v3206 = vpop.f32.mrf.mxu0
    %v3207 = vadd.f32 0.0, %v3206
    %3208 = vmatmul.f32.gmra.mxu0 %v2947
    %v3209 = vpop.f32.mrf.mxu0
    %v3210 = vadd.f32 0.0, %v3209
    %3211 = vdwg.mxu0
    %v3212 = vadd.f32 %v2542, %v2970
    %v3213 = vadd.f32 %v2543, %v2973
    %v3214 = vadd.f32 %v2544, %v2976
    %v3215 = vadd.f32 %v2545, %v2979
    %v3216 = vadd.f32 %v2546, %v2982
    %v3217 = vadd.f32 %v2547, %v2985
    %v3218 = vadd.f32 %v2548, %v2988
    %v3219 = vadd.f32 %v2549, %v2991
    %v3220 = vadd.f32 %v2550, %v2994
    %v3221 = vadd.f32 %v2551, %v2997
    %v3222 = vadd.f32 %v2552, %v3000
    %v3223 = vadd.f32 %v2553, %v3003
    %v3224 = vadd.f32 %v2554, %v3006
    %v3225 = vadd.f32 %v2555, %v3009
    %v3226 = vadd.f32 %v2556, %v3012
    %v3227 = vadd.f32 %v2557, %v3015
    %v3228 = vadd.f32 %v2558, %v3018
    %v3229 = vadd.f32 %v2559, %v3021
    %v3230 = vadd.f32 %v2560, %v3024
    %v3231 = vadd.f32 %v2561, %v3027
    %v3232 = vadd.f32 %v2562, %v3030
    %v3233 = vadd.f32 %v2563, %v3033
    %v3234 = vadd.f32 %v2564, %v3036
    %v3235 = vadd.f32 %v2565, %v3039
    %v3236 = vadd.f32 %v2566, %v3042
    %v3237 = vadd.f32 %v2567, %v3045
    %v3238 = vadd.f32 %v2568, %v3048
    %v3239 = vadd.f32 %v2569, %v3051
    %v3240 = vadd.f32 %v2570, %v3054
    %v3241 = vadd.f32 %v2571, %v3057
    %v3242 = vadd.f32 %v2572, %v3060
    %v3243 = vadd.f32 %v2573, %v3063
    %v3244 = vadd.f32 %v2574, %v3066
    %v3245 = vadd.f32 %v2575, %v3069
    %v3246 = vadd.f32 %v2576, %v3072
    %v3247 = vadd.f32 %v2577, %v3075
    %v3248 = vadd.f32 %v2578, %v3078
    %v3249 = vadd.f32 %v2579, %v3081
    %v3250 = vadd.f32 %v2580, %v3084
    %v3251 = vadd.f32 %v2581, %v3087
    %v3252 = vadd.f32 %v2582, %v3090
    %v3253 = vadd.f32 %v2583, %v3093
    %v3254 = vadd.f32 %v2584, %v3096
    %v3255 = vadd.f32 %v2585, %v3099
    %v3256 = vadd.f32 %v2586, %v3102
    %v3257 = vadd.f32 %v2587, %v3105
    %v3258 = vadd.f32 %v2588, %v3108
    %v3259 = vadd.f32 %v2589, %v3111
    %v3260 = vadd.f32 %v2590, %v3114
    %v3261 = vadd.f32 %v2591, %v3117
    %v3262 = vadd.f32 %v2592, %v3120
    %v3263 = vadd.f32 %v2593, %v3123
    %v3264 = vadd.f32 %v2594, %v3126
    %v3265 = vadd.f32 %v2595, %v3129
    %v3266 = vadd.f32 %v2596, %v3132
    %v3267 = vadd.f32 %v2597, %v3135
    %v3268 = vadd.f32 %v2598, %v3138
    %v3269 = vadd.f32 %v2599, %v3141
    %v3270 = vadd.f32 %v2600, %v3144
    %v3271 = vadd.f32 %v2601, %v3147
    %v3272 = vadd.f32 %v2602, %v3150
    %v3273 = vadd.f32 %v2603, %v3153
    %v3274 = vadd.f32 %v2604, %v3156
    %v3275 = vadd.f32 %v2605, %v3159
    %v3276 = vadd.f32 %v2606, %v3162
    %v3277 = vadd.f32 %v2607, %v3165
    %v3278 = vadd.f32 %v2608, %v3168
    %v3279 = vadd.f32 %v2609, %v3171
    %v3280 = vadd.f32 %v2610, %v3174
    %v3281 = vadd.f32 %v2611, %v3177
    %v3282 = vadd.f32 %v2612, %v3180
    %v3283 = vadd.f32 %v2613, %v3183
    %v3284 = vadd.f32 %v2614, %v3186
    %v3285 = vadd.f32 %v2615, %v3189
    %v3286 = vadd.f32 %v2616, %v3192
    %v3287 = vadd.f32 %v2617, %v3195
    %v3288 = vadd.f32 %v2618, %v3198
    %v3289 = vadd.f32 %v2619, %v3201
    %v3290 = vadd.f32 %v2620, %v3204
    %v3291 = vadd.f32 %v2621, %v3207
    %v3292 = vadd.f32 %v2622, %v3210
    %v3293 = vld [vmem:[%s0 + $0x15] sm:$0xff]
    %v3294 = vld [vmem:[%s0 + $0x1d] sm:$0xff]
    %v3295 = vld [vmem:[%s0 + $0x25] sm:$0xff]
    %v3296 = vld [vmem:[%s0 + $0x2d] sm:$0xff]
    %v3297 = vld [vmem:[%s0 + $0x35] sm:$0xff]
    %v3298 = vld [vmem:[%s0 + $0x3d] sm:$0xff]
    %v3299 = vld [vmem:[%s0 + $0x45] sm:$0xff]
    %v3300 = vld [vmem:[%s0 + $0x4d] sm:$0xff]
    %v3301 = vld [vmem:[%s0 + $0x55] sm:$0xff]
    %v3302 = vld [vmem:[%s0 + $0x5d] sm:$0xff]
    %v3303 = vld [vmem:[%s0 + $0x65] sm:$0xff]
    %v3304 = vld [vmem:[%s0 + $0x6d] sm:$0xff]
    %v3305 = vld [vmem:[%s0 + $0x75] sm:$0xff]
    %v3306 = vld [vmem:[%s0 + $0x7d] sm:$0xff]
    %v3307 = vld [vmem:[%s0 + $0x85] sm:$0xff]
    %v3308 = vld [vmem:[%s0 + $0x8d] sm:$0xff]
    %v3309 = vld [vmem:[%s0 + $0x95] sm:$0xff]
    %v3310 = vld [vmem:[%s0 + $0x9d] sm:$0xff]
    %v3311 = vld [vmem:[%s0 + $0xa5] sm:$0xff]
    %v3312 = vld [vmem:[%s0 + $0xad] sm:$0xff]
    %v3313 = vld [vmem:[%s0 + $0xb5] sm:$0xff]
    %v3314 = vld [vmem:[%s0 + $0xbd] sm:$0xff]
    %v3315 = vld [vmem:[%s0 + $0xc5] sm:$0xff]
    %v3316 = vld [vmem:[%s0 + $0xcd] sm:$0xff]
    %v3317 = vld [vmem:[%s0 + $0xd5] sm:$0xff]
    %v3318 = vld [vmem:[%s0 + $0xdd] sm:$0xff]
    %v3319 = vld [vmem:[%s0 + $0xe5] sm:$0xff]
    %v3320 = vld [vmem:[%s0 + $0xed] sm:$0xff]
    %v3321 = vld [vmem:[%s0 + $0xf5] sm:$0xff]
    %v3322 = vld [vmem:[%s0 + $0xfd] sm:$0xff]
    %v3323 = vld [vmem:[%s0 + $0x105] sm:$0xff]
    %v3324 = vld [vmem:[%s0 + $0x10d] sm:$0xff]
    %v3325 = vld [vmem:[%s0 + $0x115] sm:$0xff]
    %v3326 = vld [vmem:[%s0 + $0x11d] sm:$0xff]
    %v3327 = vld [vmem:[%s0 + $0x125] sm:$0xff]
    %v3328 = vld [vmem:[%s0 + $0x12d] sm:$0xff]
    %v3329 = vld [vmem:[%s0 + $0x135] sm:$0xff]
    %v3330 = vld [vmem:[%s0 + $0x13d] sm:$0xff]
    %v3331 = vld [vmem:[%s0 + $0x145] sm:$0xff]
    %v3332 = vld [vmem:[%s0 + $0x14d] sm:$0xff]
    %v3333 = vld [vmem:[%s0 + $0x155] sm:$0xff]
    %v3334 = vld [vmem:[%s0 + $0x15d] sm:$0xff]
    %v3335 = vld [vmem:[%s0 + $0x165] sm:$0xff]
    %v3336 = vld [vmem:[%s0 + $0x16d] sm:$0xff]
    %v3337 = vld [vmem:[%s0 + $0x175] sm:$0xff]
    %v3338 = vld [vmem:[%s0 + $0x17d] sm:$0xff]
    %v3339 = vld [vmem:[%s0 + $0x185] sm:$0xff]
    %v3340 = vld [vmem:[%s0 + $0x18d] sm:$0xff]
    %v3341 = vld [vmem:[%s0 + $0x195] sm:$0xff]
    %v3342 = vld [vmem:[%s0 + $0x19d] sm:$0xff]
    %v3343 = vld [vmem:[%s0 + $0x1a5] sm:$0xff]
    %v3344 = vld [vmem:[%s0 + $0x1ad] sm:$0xff]
    %v3345 = vld [vmem:[%s0 + $0x1b5] sm:$0xff]
    %v3346 = vld [vmem:[%s0 + $0x1bd] sm:$0xff]
    %v3347 = vld [vmem:[%s0 + $0x1c5] sm:$0xff]
    %v3348 = vld [vmem:[%s0 + $0x1cd] sm:$0xff]
    %v3349 = vld [vmem:[%s0 + $0x1d5] sm:$0xff]
    %v3350 = vld [vmem:[%s0 + $0x1dd] sm:$0xff]
    %v3351 = vld [vmem:[%s0 + $0x1e5] sm:$0xff]
    %v3352 = vld [vmem:[%s0 + $0x1ed] sm:$0xff]
    %v3353 = vld [vmem:[%s0 + $0x1f5] sm:$0xff]
    %v3354 = vld [vmem:[%s0 + $0x1fd] sm:$0xff]
    %v3355 = vld [vmem:[%s0 + $0x205] sm:$0xff]
    %v3356 = vld [vmem:[%s0 + $0x20d] sm:$0xff]
    %v3357 = vld [vmem:[%s0 + $0x215] sm:$0xff]
    %v3358 = vld [vmem:[%s0 + $0x21d] sm:$0xff]
    %v3359 = vld [vmem:[%s0 + $0x225] sm:$0xff]
    %v3360 = vld [vmem:[%s0 + $0x22d] sm:$0xff]
    %v3361 = vld [vmem:[%s0 + $0x235] sm:$0xff]
    %v3362 = vld [vmem:[%s0 + $0x23d] sm:$0xff]
    %v3363 = vld [vmem:[%s0 + $0x245] sm:$0xff]
    %v3364 = vld [vmem:[%s0 + $0x24d] sm:$0xff]
    %v3365 = vld [vmem:[%s0 + $0x255] sm:$0xff]
    %v3366 = vld [vmem:[%s0 + $0x25d] sm:$0xff]
    %v3367 = vld [vmem:[%s0 + $0x265] sm:$0xff]
    %v3368 = vld [vmem:[%s0 + $0x26d] sm:$0xff]
    %v3369 = vld [vmem:[%s0 + $0x275] sm:$0xff]
    %v3370 = vld [vmem:[%s0 + $0x27d] sm:$0xff]
    %v3371 = vld [vmem:[%s0 + $0x285] sm:$0xff]
    %v3372 = vld [vmem:[%s0 + $0x28d] sm:$0xff]
    %v3373 = vld [vmem:[%s0 + $0x295] sm:$0xff]
    %s3374 = scalar_lea.vmem %s1, 20
    %v3375 = vld [vmem:[%s3374] sm:$0x7]
    %v3377 = vsel %vm269, %v3293, 0
    %v3380 = vsel %vm269, %v3294, 0
    %v3383 = vsel %vm269, %v3295, 0
    %v3386 = vsel %vm269, %v3296, 0
    %v3389 = vsel %vm269, %v3297, 0
    %v3392 = vsel %vm269, %v3298, 0
    %v3395 = vsel %vm269, %v3299, 0
    %v3398 = vsel %vm269, %v3300, 0
    %v3401 = vsel %vm269, %v3301, 0
    %v3404 = vsel %vm269, %v3302, 0
    %v3407 = vsel %vm269, %v3303, 0
    %v3410 = vsel %vm269, %v3304, 0
    %v3413 = vsel %vm269, %v3305, 0
    %v3416 = vsel %vm269, %v3306, 0
    %v3419 = vsel %vm269, %v3307, 0
    %v3422 = vsel %vm269, %v3308, 0
    %v3425 = vsel %vm269, %v3309, 0
    %v3428 = vsel %vm269, %v3310, 0
    %v3431 = vsel %vm269, %v3311, 0
    %v3434 = vsel %vm269, %v3312, 0
    %v3437 = vsel %vm269, %v3313, 0
    %v3440 = vsel %vm269, %v3314, 0
    %v3443 = vsel %vm269, %v3315, 0
    %v3446 = vsel %vm269, %v3316, 0
    %v3449 = vsel %vm269, %v3317, 0
    %v3452 = vsel %vm269, %v3318, 0
    %v3455 = vsel %vm269, %v3319, 0
    %v3458 = vsel %vm269, %v3320, 0
    %v3461 = vsel %vm269, %v3321, 0
    %v3464 = vsel %vm269, %v3322, 0
    %v3467 = vsel %vm269, %v3323, 0
    %v3470 = vsel %vm269, %v3324, 0
    %v3473 = vsel %vm269, %v3325, 0
    %v3476 = vsel %vm269, %v3326, 0
    %v3479 = vsel %vm269, %v3327, 0
    %v3482 = vsel %vm269, %v3328, 0
    %v3485 = vsel %vm269, %v3329, 0
    %v3488 = vsel %vm269, %v3330, 0
    %v3491 = vsel %vm269, %v3331, 0
    %v3494 = vsel %vm269, %v3332, 0
    %v3497 = vsel %vm269, %v3333, 0
    %v3500 = vsel %vm269, %v3334, 0
    %v3503 = vsel %vm269, %v3335, 0
    %v3506 = vsel %vm269, %v3336, 0
    %v3509 = vsel %vm269, %v3337, 0
    %v3512 = vsel %vm269, %v3338, 0
    %v3515 = vsel %vm269, %v3339, 0
    %v3518 = vsel %vm269, %v3340, 0
    %v3521 = vsel %vm269, %v3341, 0
    %v3524 = vsel %vm269, %v3342, 0
    %v3527 = vsel %vm269, %v3343, 0
    %v3530 = vsel %vm269, %v3344, 0
    %v3533 = vsel %vm269, %v3345, 0
    %v3536 = vsel %vm269, %v3346, 0
    %v3539 = vsel %vm269, %v3347, 0
    %v3542 = vsel %vm269, %v3348, 0
    %v3545 = vsel %vm269, %v3349, 0
    %v3548 = vsel %vm269, %v3350, 0
    %v3551 = vsel %vm269, %v3351, 0
    %v3554 = vsel %vm269, %v3352, 0
    %v3557 = vsel %vm269, %v3353, 0
    %v3560 = vsel %vm269, %v3354, 0
    %v3563 = vsel %vm269, %v3355, 0
    %v3566 = vsel %vm269, %v3356, 0
    %v3569 = vsel %vm269, %v3357, 0
    %v3572 = vsel %vm269, %v3358, 0
    %v3575 = vsel %vm269, %v3359, 0
    %v3578 = vsel %vm269, %v3360, 0
    %v3581 = vsel %vm269, %v3361, 0
    %v3584 = vsel %vm269, %v3362, 0
    %v3587 = vsel %vm269, %v3363, 0
    %v3590 = vsel %vm269, %v3364, 0
    %v3593 = vsel %vm269, %v3365, 0
    %v3596 = vsel %vm269, %v3366, 0
    %v3599 = vsel %vm269, %v3367, 0
    %v3602 = vsel %vm269, %v3368, 0
    %v3605 = vsel %vm269, %v3369, 0
    %v3608 = vsel %vm269, %v3370, 0
    %v3611 = vsel %vm269, %v3371, 0
    %v3614 = vsel %vm269, %v3372, 0
    %v3617 = vsel %vm269, %v3373, 0
    %v3620 = vsel %vm513, %v3375, 0
    %3622 = vmatpush.msra.mxu0 0.0
    %3623 = vmatpush.msra.mxu0 0.0
    %3624 = vmatpush.msra.mxu0 0.0
    %3625 = vmatpush.msra.mxu0 0.0
    %3626 = vmatpush.msra.mxu0 0.0
    %3627 = vmatpush.msra.mxu0 0.0
    %3628 = vmatpush.msra.mxu0 0.0
    %3629 = vmatpush.msra.mxu0 0.0
    %3630 = vmatpush.msra.mxu0 0.0
    %3631 = vmatpush.msra.mxu0 0.0
    %3632 = vmatpush.msra.mxu0 0.0
    %3633 = vmatpush.msra.mxu0 0.0
    %3634 = vmatpush.msra.mxu0 0.0
    %3635 = vmatpush.msra.mxu0 0.0
    %3636 = vmatpush.msra.mxu0 0.0
    %3637 = vmatpush.msra.mxu0 %v3620
    %3638 = vmatmul.f32.gmra.mxu0 %v3377
    %v3639 = vpop.f32.mrf.mxu0
    %v3640 = vadd.f32 0.0, %v3639
    %3641 = vmatmul.f32.gmra.mxu0 %v3380
    %v3642 = vpop.f32.mrf.mxu0
    %v3643 = vadd.f32 0.0, %v3642
    %3644 = vmatmul.f32.gmra.mxu0 %v3383
    %v3645 = vpop.f32.mrf.mxu0
    %v3646 = vadd.f32 0.0, %v3645
    %3647 = vmatmul.f32.gmra.mxu0 %v3386
    %v3648 = vpop.f32.mrf.mxu0
    %v3649 = vadd.f32 0.0, %v3648
    %3650 = vmatmul.f32.gmra.mxu0 %v3389
    %v3651 = vpop.f32.mrf.mxu0
    %v3652 = vadd.f32 0.0, %v3651
    %3653 = vmatmul.f32.gmra.mxu0 %v3392
    %v3654 = vpop.f32.mrf.mxu0
    %v3655 = vadd.f32 0.0, %v3654
    %3656 = vmatmul.f32.gmra.mxu0 %v3395
    %v3657 = vpop.f32.mrf.mxu0
    %v3658 = vadd.f32 0.0, %v3657
    %3659 = vmatmul.f32.gmra.mxu0 %v3398
    %v3660 = vpop.f32.mrf.mxu0
    %v3661 = vadd.f32 0.0, %v3660
    %3662 = vmatmul.f32.gmra.mxu0 %v3401
    %v3663 = vpop.f32.mrf.mxu0
    %v3664 = vadd.f32 0.0, %v3663
    %3665 = vmatmul.f32.gmra.mxu0 %v3404
    %v3666 = vpop.f32.mrf.mxu0
    %v3667 = vadd.f32 0.0, %v3666
    %3668 = vmatmul.f32.gmra.mxu0 %v3407
    %v3669 = vpop.f32.mrf.mxu0
    %v3670 = vadd.f32 0.0, %v3669
    %3671 = vmatmul.f32.gmra.mxu0 %v3410
    %v3672 = vpop.f32.mrf.mxu0
    %v3673 = vadd.f32 0.0, %v3672
    %3674 = vmatmul.f32.gmra.mxu0 %v3413
    %v3675 = vpop.f32.mrf.mxu0
    %v3676 = vadd.f32 0.0, %v3675
    %3677 = vmatmul.f32.gmra.mxu0 %v3416
    %v3678 = vpop.f32.mrf.mxu0
    %v3679 = vadd.f32 0.0, %v3678
    %3680 = vmatmul.f32.gmra.mxu0 %v3419
    %v3681 = vpop.f32.mrf.mxu0
    %v3682 = vadd.f32 0.0, %v3681
    %3683 = vmatmul.f32.gmra.mxu0 %v3422
    %v3684 = vpop.f32.mrf.mxu0
    %v3685 = vadd.f32 0.0, %v3684
    %3686 = vmatmul.f32.gmra.mxu0 %v3425
    %v3687 = vpop.f32.mrf.mxu0
    %v3688 = vadd.f32 0.0, %v3687
    %3689 = vmatmul.f32.gmra.mxu0 %v3428
    %v3690 = vpop.f32.mrf.mxu0
    %v3691 = vadd.f32 0.0, %v3690
    %3692 = vmatmul.f32.gmra.mxu0 %v3431
    %v3693 = vpop.f32.mrf.mxu0
    %v3694 = vadd.f32 0.0, %v3693
    %3695 = vmatmul.f32.gmra.mxu0 %v3434
    %v3696 = vpop.f32.mrf.mxu0
    %v3697 = vadd.f32 0.0, %v3696
    %3698 = vmatmul.f32.gmra.mxu0 %v3437
    %v3699 = vpop.f32.mrf.mxu0
    %v3700 = vadd.f32 0.0, %v3699
    %3701 = vmatmul.f32.gmra.mxu0 %v3440
    %v3702 = vpop.f32.mrf.mxu0
    %v3703 = vadd.f32 0.0, %v3702
    %3704 = vmatmul.f32.gmra.mxu0 %v3443
    %v3705 = vpop.f32.mrf.mxu0
    %v3706 = vadd.f32 0.0, %v3705
    %3707 = vmatmul.f32.gmra.mxu0 %v3446
    %v3708 = vpop.f32.mrf.mxu0
    %v3709 = vadd.f32 0.0, %v3708
    %3710 = vmatmul.f32.gmra.mxu0 %v3449
    %v3711 = vpop.f32.mrf.mxu0
    %v3712 = vadd.f32 0.0, %v3711
    %3713 = vmatmul.f32.gmra.mxu0 %v3452
    %v3714 = vpop.f32.mrf.mxu0
    %v3715 = vadd.f32 0.0, %v3714
    %3716 = vmatmul.f32.gmra.mxu0 %v3455
    %v3717 = vpop.f32.mrf.mxu0
    %v3718 = vadd.f32 0.0, %v3717
    %3719 = vmatmul.f32.gmra.mxu0 %v3458
    %v3720 = vpop.f32.mrf.mxu0
    %v3721 = vadd.f32 0.0, %v3720
    %3722 = vmatmul.f32.gmra.mxu0 %v3461
    %v3723 = vpop.f32.mrf.mxu0
    %v3724 = vadd.f32 0.0, %v3723
    %3725 = vmatmul.f32.gmra.mxu0 %v3464
    %v3726 = vpop.f32.mrf.mxu0
    %v3727 = vadd.f32 0.0, %v3726
    %3728 = vmatmul.f32.gmra.mxu0 %v3467
    %v3729 = vpop.f32.mrf.mxu0
    %v3730 = vadd.f32 0.0, %v3729
    %3731 = vmatmul.f32.gmra.mxu0 %v3470
    %v3732 = vpop.f32.mrf.mxu0
    %v3733 = vadd.f32 0.0, %v3732
    %3734 = vmatmul.f32.gmra.mxu0 %v3473
    %v3735 = vpop.f32.mrf.mxu0
    %v3736 = vadd.f32 0.0, %v3735
    %3737 = vmatmul.f32.gmra.mxu0 %v3476
    %v3738 = vpop.f32.mrf.mxu0
    %v3739 = vadd.f32 0.0, %v3738
    %3740 = vmatmul.f32.gmra.mxu0 %v3479
    %v3741 = vpop.f32.mrf.mxu0
    %v3742 = vadd.f32 0.0, %v3741
    %3743 = vmatmul.f32.gmra.mxu0 %v3482
    %v3744 = vpop.f32.mrf.mxu0
    %v3745 = vadd.f32 0.0, %v3744
    %3746 = vmatmul.f32.gmra.mxu0 %v3485
    %v3747 = vpop.f32.mrf.mxu0
    %v3748 = vadd.f32 0.0, %v3747
    %3749 = vmatmul.f32.gmra.mxu0 %v3488
    %v3750 = vpop.f32.mrf.mxu0
    %v3751 = vadd.f32 0.0, %v3750
    %3752 = vmatmul.f32.gmra.mxu0 %v3491
    %v3753 = vpop.f32.mrf.mxu0
    %v3754 = vadd.f32 0.0, %v3753
    %3755 = vmatmul.f32.gmra.mxu0 %v3494
    %v3756 = vpop.f32.mrf.mxu0
    %v3757 = vadd.f32 0.0, %v3756
    %3758 = vmatmul.f32.gmra.mxu0 %v3497
    %v3759 = vpop.f32.mrf.mxu0
    %v3760 = vadd.f32 0.0, %v3759
    %3761 = vmatmul.f32.gmra.mxu0 %v3500
    %v3762 = vpop.f32.mrf.mxu0
    %v3763 = vadd.f32 0.0, %v3762
    %3764 = vmatmul.f32.gmra.mxu0 %v3503
    %v3765 = vpop.f32.mrf.mxu0
    %v3766 = vadd.f32 0.0, %v3765
    %3767 = vmatmul.f32.gmra.mxu0 %v3506
    %v3768 = vpop.f32.mrf.mxu0
    %v3769 = vadd.f32 0.0, %v3768
    %3770 = vmatmul.f32.gmra.mxu0 %v3509
    %v3771 = vpop.f32.mrf.mxu0
    %v3772 = vadd.f32 0.0, %v3771
    %3773 = vmatmul.f32.gmra.mxu0 %v3512
    %v3774 = vpop.f32.mrf.mxu0
    %v3775 = vadd.f32 0.0, %v3774
    %3776 = vmatmul.f32.gmra.mxu0 %v3515
    %v3777 = vpop.f32.mrf.mxu0
    %v3778 = vadd.f32 0.0, %v3777
    %3779 = vmatmul.f32.gmra.mxu0 %v3518
    %v3780 = vpop.f32.mrf.mxu0
    %v3781 = vadd.f32 0.0, %v3780
    %3782 = vmatmul.f32.gmra.mxu0 %v3521
    %v3783 = vpop.f32.mrf.mxu0
    %v3784 = vadd.f32 0.0, %v3783
    %3785 = vmatmul.f32.gmra.mxu0 %v3524
    %v3786 = vpop.f32.mrf.mxu0
    %v3787 = vadd.f32 0.0, %v3786
    %3788 = vmatmul.f32.gmra.mxu0 %v3527
    %v3789 = vpop.f32.mrf.mxu0
    %v3790 = vadd.f32 0.0, %v3789
    %3791 = vmatmul.f32.gmra.mxu0 %v3530
    %v3792 = vpop.f32.mrf.mxu0
    %v3793 = vadd.f32 0.0, %v3792
    %3794 = vmatmul.f32.gmra.mxu0 %v3533
    %v3795 = vpop.f32.mrf.mxu0
    %v3796 = vadd.f32 0.0, %v3795
    %3797 = vmatmul.f32.gmra.mxu0 %v3536
    %v3798 = vpop.f32.mrf.mxu0
    %v3799 = vadd.f32 0.0, %v3798
    %3800 = vmatmul.f32.gmra.mxu0 %v3539
    %v3801 = vpop.f32.mrf.mxu0
    %v3802 = vadd.f32 0.0, %v3801
    %3803 = vmatmul.f32.gmra.mxu0 %v3542
    %v3804 = vpop.f32.mrf.mxu0
    %v3805 = vadd.f32 0.0, %v3804
    %3806 = vmatmul.f32.gmra.mxu0 %v3545
    %v3807 = vpop.f32.mrf.mxu0
    %v3808 = vadd.f32 0.0, %v3807
    %3809 = vmatmul.f32.gmra.mxu0 %v3548
    %v3810 = vpop.f32.mrf.mxu0
    %v3811 = vadd.f32 0.0, %v3810
    %3812 = vmatmul.f32.gmra.mxu0 %v3551
    %v3813 = vpop.f32.mrf.mxu0
    %v3814 = vadd.f32 0.0, %v3813
    %3815 = vmatmul.f32.gmra.mxu0 %v3554
    %v3816 = vpop.f32.mrf.mxu0
    %v3817 = vadd.f32 0.0, %v3816
    %3818 = vmatmul.f32.gmra.mxu0 %v3557
    %v3819 = vpop.f32.mrf.mxu0
    %v3820 = vadd.f32 0.0, %v3819
    %3821 = vmatmul.f32.gmra.mxu0 %v3560
    %v3822 = vpop.f32.mrf.mxu0
    %v3823 = vadd.f32 0.0, %v3822
    %3824 = vmatmul.f32.gmra.mxu0 %v3563
    %v3825 = vpop.f32.mrf.mxu0
    %v3826 = vadd.f32 0.0, %v3825
    %3827 = vmatmul.f32.gmra.mxu0 %v3566
    %v3828 = vpop.f32.mrf.mxu0
    %v3829 = vadd.f32 0.0, %v3828
    %3830 = vmatmul.f32.gmra.mxu0 %v3569
    %v3831 = vpop.f32.mrf.mxu0
    %v3832 = vadd.f32 0.0, %v3831
    %3833 = vmatmul.f32.gmra.mxu0 %v3572
    %v3834 = vpop.f32.mrf.mxu0
    %v3835 = vadd.f32 0.0, %v3834
    %3836 = vmatmul.f32.gmra.mxu0 %v3575
    %v3837 = vpop.f32.mrf.mxu0
    %v3838 = vadd.f32 0.0, %v3837
    %3839 = vmatmul.f32.gmra.mxu0 %v3578
    %v3840 = vpop.f32.mrf.mxu0
    %v3841 = vadd.f32 0.0, %v3840
    %3842 = vmatmul.f32.gmra.mxu0 %v3581
    %v3843 = vpop.f32.mrf.mxu0
    %v3844 = vadd.f32 0.0, %v3843
    %3845 = vmatmul.f32.gmra.mxu0 %v3584
    %v3846 = vpop.f32.mrf.mxu0
    %v3847 = vadd.f32 0.0, %v3846
    %3848 = vmatmul.f32.gmra.mxu0 %v3587
    %v3849 = vpop.f32.mrf.mxu0
    %v3850 = vadd.f32 0.0, %v3849
    %3851 = vmatmul.f32.gmra.mxu0 %v3590
    %v3852 = vpop.f32.mrf.mxu0
    %v3853 = vadd.f32 0.0, %v3852
    %3854 = vmatmul.f32.gmra.mxu0 %v3593
    %v3855 = vpop.f32.mrf.mxu0
    %v3856 = vadd.f32 0.0, %v3855
    %3857 = vmatmul.f32.gmra.mxu0 %v3596
    %v3858 = vpop.f32.mrf.mxu0
    %v3859 = vadd.f32 0.0, %v3858
    %3860 = vmatmul.f32.gmra.mxu0 %v3599
    %v3861 = vpop.f32.mrf.mxu0
    %v3862 = vadd.f32 0.0, %v3861
    %3863 = vmatmul.f32.gmra.mxu0 %v3602
    %v3864 = vpop.f32.mrf.mxu0
    %v3865 = vadd.f32 0.0, %v3864
    %3866 = vmatmul.f32.gmra.mxu0 %v3605
    %v3867 = vpop.f32.mrf.mxu0
    %v3868 = vadd.f32 0.0, %v3867
    %3869 = vmatmul.f32.gmra.mxu0 %v3608
    %v3870 = vpop.f32.mrf.mxu0
    %v3871 = vadd.f32 0.0, %v3870
    %3872 = vmatmul.f32.gmra.mxu0 %v3611
    %v3873 = vpop.f32.mrf.mxu0
    %v3874 = vadd.f32 0.0, %v3873
    %3875 = vmatmul.f32.gmra.mxu0 %v3614
    %v3876 = vpop.f32.mrf.mxu0
    %v3877 = vadd.f32 0.0, %v3876
    %3878 = vmatmul.f32.gmra.mxu0 %v3617
    %v3879 = vpop.f32.mrf.mxu0
    %v3880 = vadd.f32 0.0, %v3879
    %3881 = vdwg.mxu0
    %v3882 = vadd.f32 %v3212, %v3640
    %v3883 = vadd.f32 %v3213, %v3643
    %v3884 = vadd.f32 %v3214, %v3646
    %v3885 = vadd.f32 %v3215, %v3649
    %v3886 = vadd.f32 %v3216, %v3652
    %v3887 = vadd.f32 %v3217, %v3655
    %v3888 = vadd.f32 %v3218, %v3658
    %v3889 = vadd.f32 %v3219, %v3661
    %v3890 = vadd.f32 %v3220, %v3664
    %v3891 = vadd.f32 %v3221, %v3667
    %v3892 = vadd.f32 %v3222, %v3670
    %v3893 = vadd.f32 %v3223, %v3673
    %v3894 = vadd.f32 %v3224, %v3676
    %v3895 = vadd.f32 %v3225, %v3679
    %v3896 = vadd.f32 %v3226, %v3682
    %v3897 = vadd.f32 %v3227, %v3685
    %v3898 = vadd.f32 %v3228, %v3688
    %v3899 = vadd.f32 %v3229, %v3691
    %v3900 = vadd.f32 %v3230, %v3694
    %v3901 = vadd.f32 %v3231, %v3697
    %v3902 = vadd.f32 %v3232, %v3700
    %v3903 = vadd.f32 %v3233, %v3703
    %v3904 = vadd.f32 %v3234, %v3706
    %v3905 = vadd.f32 %v3235, %v3709
    %v3906 = vadd.f32 %v3236, %v3712
    %v3907 = vadd.f32 %v3237, %v3715
    %v3908 = vadd.f32 %v3238, %v3718
    %v3909 = vadd.f32 %v3239, %v3721
    %v3910 = vadd.f32 %v3240, %v3724
    %v3911 = vadd.f32 %v3241, %v3727
    %v3912 = vadd.f32 %v3242, %v3730
    %v3913 = vadd.f32 %v3243, %v3733
    %v3914 = vadd.f32 %v3244, %v3736
    %v3915 = vadd.f32 %v3245, %v3739
    %v3916 = vadd.f32 %v3246, %v3742
    %v3917 = vadd.f32 %v3247, %v3745
    %v3918 = vadd.f32 %v3248, %v3748
    %v3919 = vadd.f32 %v3249, %v3751
    %v3920 = vadd.f32 %v3250, %v3754
    %v3921 = vadd.f32 %v3251, %v3757
    %v3922 = vadd.f32 %v3252, %v3760
    %v3923 = vadd.f32 %v3253, %v3763
    %v3924 = vadd.f32 %v3254, %v3766
    %v3925 = vadd.f32 %v3255, %v3769
    %v3926 = vadd.f32 %v3256, %v3772
    %v3927 = vadd.f32 %v3257, %v3775
    %v3928 = vadd.f32 %v3258, %v3778
    %v3929 = vadd.f32 %v3259, %v3781
    %v3930 = vadd.f32 %v3260, %v3784
    %v3931 = vadd.f32 %v3261, %v3787
    %v3932 = vadd.f32 %v3262, %v3790
    %v3933 = vadd.f32 %v3263, %v3793
    %v3934 = vadd.f32 %v3264, %v3796
    %v3935 = vadd.f32 %v3265, %v3799
    %v3936 = vadd.f32 %v3266, %v3802
    %v3937 = vadd.f32 %v3267, %v3805
    %v3938 = vadd.f32 %v3268, %v3808
    %v3939 = vadd.f32 %v3269, %v3811
    %v3940 = vadd.f32 %v3270, %v3814
    %v3941 = vadd.f32 %v3271, %v3817
    %v3942 = vadd.f32 %v3272, %v3820
    %v3943 = vadd.f32 %v3273, %v3823
    %v3944 = vadd.f32 %v3274, %v3826
    %v3945 = vadd.f32 %v3275, %v3829
    %v3946 = vadd.f32 %v3276, %v3832
    %v3947 = vadd.f32 %v3277, %v3835
    %v3948 = vadd.f32 %v3278, %v3838
    %v3949 = vadd.f32 %v3279, %v3841
    %v3950 = vadd.f32 %v3280, %v3844
    %v3951 = vadd.f32 %v3281, %v3847
    %v3952 = vadd.f32 %v3282, %v3850
    %v3953 = vadd.f32 %v3283, %v3853
    %v3954 = vadd.f32 %v3284, %v3856
    %v3955 = vadd.f32 %v3285, %v3859
    %v3956 = vadd.f32 %v3286, %v3862
    %v3957 = vadd.f32 %v3287, %v3865
    %v3958 = vadd.f32 %v3288, %v3868
    %v3959 = vadd.f32 %v3289, %v3871
    %v3960 = vadd.f32 %v3290, %v3874
    %v3961 = vadd.f32 %v3291, %v3877
    %v3962 = vadd.f32 %v3292, %v3880
    %v3963 = vld [vmem:[%s0 + $0x25] sm:$0xff]
    %v3964 = vld [vmem:[%s0 + $0x2d] sm:$0xff]
    %v3965 = vld [vmem:[%s0 + $0x35] sm:$0xff]
    %v3966 = vld [vmem:[%s0 + $0x3d] sm:$0xff]
    %v3967 = vld [vmem:[%s0 + $0x45] sm:$0xff]
    %v3968 = vld [vmem:[%s0 + $0x4d] sm:$0xff]
    %v3969 = vld [vmem:[%s0 + $0x55] sm:$0xff]
    %v3970 = vld [vmem:[%s0 + $0x5d] sm:$0xff]
    %v3971 = vld [vmem:[%s0 + $0x65] sm:$0xff]
    %v3972 = vld [vmem:[%s0 + $0x6d] sm:$0xff]
    %v3973 = vld [vmem:[%s0 + $0x75] sm:$0xff]
    %v3974 = vld [vmem:[%s0 + $0x7d] sm:$0xff]
    %v3975 = vld [vmem:[%s0 + $0x85] sm:$0xff]
    %v3976 = vld [vmem:[%s0 + $0x8d] sm:$0xff]
    %v3977 = vld [vmem:[%s0 + $0x95] sm:$0xff]
    %v3978 = vld [vmem:[%s0 + $0x9d] sm:$0xff]
    %v3979 = vld [vmem:[%s0 + $0xa5] sm:$0xff]
    %v3980 = vld [vmem:[%s0 + $0xad] sm:$0xff]
    %v3981 = vld [vmem:[%s0 + $0xb5] sm:$0xff]
    %v3982 = vld [vmem:[%s0 + $0xbd] sm:$0xff]
    %v3983 = vld [vmem:[%s0 + $0xc5] sm:$0xff]
    %v3984 = vld [vmem:[%s0 + $0xcd] sm:$0xff]
    %v3985 = vld [vmem:[%s0 + $0xd5] sm:$0xff]
    %v3986 = vld [vmem:[%s0 + $0xdd] sm:$0xff]
    %v3987 = vld [vmem:[%s0 + $0xe5] sm:$0xff]
    %v3988 = vld [vmem:[%s0 + $0xed] sm:$0xff]
    %v3989 = vld [vmem:[%s0 + $0xf5] sm:$0xff]
    %v3990 = vld [vmem:[%s0 + $0xfd] sm:$0xff]
    %v3991 = vld [vmem:[%s0 + $0x105] sm:$0xff]
    %v3992 = vld [vmem:[%s0 + $0x10d] sm:$0xff]
    %v3993 = vld [vmem:[%s0 + $0x115] sm:$0xff]
    %v3994 = vld [vmem:[%s0 + $0x11d] sm:$0xff]
    %v3995 = vld [vmem:[%s0 + $0x125] sm:$0xff]
    %v3996 = vld [vmem:[%s0 + $0x12d] sm:$0xff]
    %v3997 = vld [vmem:[%s0 + $0x135] sm:$0xff]
    %v3998 = vld [vmem:[%s0 + $0x13d] sm:$0xff]
    %v3999 = vld [vmem:[%s0 + $0x145] sm:$0xff]
    %v4000 = vld [vmem:[%s0 + $0x14d] sm:$0xff]
    %v4001 = vld [vmem:[%s0 + $0x155] sm:$0xff]
    %v4002 = vld [vmem:[%s0 + $0x15d] sm:$0xff]
    %v4003 = vld [vmem:[%s0 + $0x165] sm:$0xff]
    %v4004 = vld [vmem:[%s0 + $0x16d] sm:$0xff]
    %v4005 = vld [vmem:[%s0 + $0x175] sm:$0xff]
    %v4006 = vld [vmem:[%s0 + $0x17d] sm:$0xff]
    %v4007 = vld [vmem:[%s0 + $0x185] sm:$0xff]
    %v4008 = vld [vmem:[%s0 + $0x18d] sm:$0xff]
    %v4009 = vld [vmem:[%s0 + $0x195] sm:$0xff]
    %v4010 = vld [vmem:[%s0 + $0x19d] sm:$0xff]
    %v4011 = vld [vmem:[%s0 + $0x1a5] sm:$0xff]
    %v4012 = vld [vmem:[%s0 + $0x1ad] sm:$0xff]
    %v4013 = vld [vmem:[%s0 + $0x1b5] sm:$0xff]
    %v4014 = vld [vmem:[%s0 + $0x1bd] sm:$0xff]
    %v4015 = vld [vmem:[%s0 + $0x1c5] sm:$0xff]
    %v4016 = vld [vmem:[%s0 + $0x1cd] sm:$0xff]
    %v4017 = vld [vmem:[%s0 + $0x1d5] sm:$0xff]
    %v4018 = vld [vmem:[%s0 + $0x1dd] sm:$0xff]
    %v4019 = vld [vmem:[%s0 + $0x1e5] sm:$0xff]
    %v4020 = vld [vmem:[%s0 + $0x1ed] sm:$0xff]
    %v4021 = vld [vmem:[%s0 + $0x1f5] sm:$0xff]
    %v4022 = vld [vmem:[%s0 + $0x1fd] sm:$0xff]
    %v4023 = vld [vmem:[%s0 + $0x205] sm:$0xff]
    %v4024 = vld [vmem:[%s0 + $0x20d] sm:$0xff]
    %v4025 = vld [vmem:[%s0 + $0x215] sm:$0xff]
    %v4026 = vld [vmem:[%s0 + $0x21d] sm:$0xff]
    %v4027 = vld [vmem:[%s0 + $0x225] sm:$0xff]
    %v4028 = vld [vmem:[%s0 + $0x22d] sm:$0xff]
    %v4029 = vld [vmem:[%s0 + $0x235] sm:$0xff]
    %v4030 = vld [vmem:[%s0 + $0x23d] sm:$0xff]
    %v4031 = vld [vmem:[%s0 + $0x245] sm:$0xff]
    %v4032 = vld [vmem:[%s0 + $0x24d] sm:$0xff]
    %v4033 = vld [vmem:[%s0 + $0x255] sm:$0xff]
    %v4034 = vld [vmem:[%s0 + $0x25d] sm:$0xff]
    %v4035 = vld [vmem:[%s0 + $0x265] sm:$0xff]
    %v4036 = vld [vmem:[%s0 + $0x26d] sm:$0xff]
    %v4037 = vld [vmem:[%s0 + $0x275] sm:$0xff]
    %v4038 = vld [vmem:[%s0 + $0x27d] sm:$0xff]
    %v4039 = vld [vmem:[%s0 + $0x285] sm:$0xff]
    %v4040 = vld [vmem:[%s0 + $0x28d] sm:$0xff]
    %v4041 = vld [vmem:[%s0 + $0x295] sm:$0xff]
    %v4042 = vld [vmem:[%s0 + $0x29d] sm:$0xff]
    %v4043 = vld [vmem:[%s0 + $0x2a5] sm:$0xff]
    %s4044 = scalar_lea.vmem %s1, 24
    %v4045 = vld [vmem:[%s4044] sm:$0x7]
    %v4047 = vsel %vm269, %v3963, 0
    %v4050 = vsel %vm269, %v3964, 0
    %v4053 = vsel %vm269, %v3965, 0
    %v4056 = vsel %vm269, %v3966, 0
    %v4059 = vsel %vm269, %v3967, 0
    %v4062 = vsel %vm269, %v3968, 0
    %v4065 = vsel %vm269, %v3969, 0
    %v4068 = vsel %vm269, %v3970, 0
    %v4071 = vsel %vm269, %v3971, 0
    %v4074 = vsel %vm269, %v3972, 0
    %v4077 = vsel %vm269, %v3973, 0
    %v4080 = vsel %vm269, %v3974, 0
    %v4083 = vsel %vm269, %v3975, 0
    %v4086 = vsel %vm269, %v3976, 0
    %v4089 = vsel %vm269, %v3977, 0
    %v4092 = vsel %vm269, %v3978, 0
    %v4095 = vsel %vm269, %v3979, 0
    %v4098 = vsel %vm269, %v3980, 0
    %v4101 = vsel %vm269, %v3981, 0
    %v4104 = vsel %vm269, %v3982, 0
    %v4107 = vsel %vm269, %v3983, 0
    %v4110 = vsel %vm269, %v3984, 0
    %v4113 = vsel %vm269, %v3985, 0
    %v4116 = vsel %vm269, %v3986, 0
    %v4119 = vsel %vm269, %v3987, 0
    %v4122 = vsel %vm269, %v3988, 0
    %v4125 = vsel %vm269, %v3989, 0
    %v4128 = vsel %vm269, %v3990, 0
    %v4131 = vsel %vm269, %v3991, 0
    %v4134 = vsel %vm269, %v3992, 0
    %v4137 = vsel %vm269, %v3993, 0
    %v4140 = vsel %vm269, %v3994, 0
    %v4143 = vsel %vm269, %v3995, 0
    %v4146 = vsel %vm269, %v3996, 0
    %v4149 = vsel %vm269, %v3997, 0
    %v4152 = vsel %vm269, %v3998, 0
    %v4155 = vsel %vm269, %v3999, 0
    %v4158 = vsel %vm269, %v4000, 0
    %v4161 = vsel %vm269, %v4001, 0
    %v4164 = vsel %vm269, %v4002, 0
    %v4167 = vsel %vm269, %v4003, 0
    %v4170 = vsel %vm269, %v4004, 0
    %v4173 = vsel %vm269, %v4005, 0
    %v4176 = vsel %vm269, %v4006, 0
    %v4179 = vsel %vm269, %v4007, 0
    %v4182 = vsel %vm269, %v4008, 0
    %v4185 = vsel %vm269, %v4009, 0
    %v4188 = vsel %vm269, %v4010, 0
    %v4191 = vsel %vm269, %v4011, 0
    %v4194 = vsel %vm269, %v4012, 0
    %v4197 = vsel %vm269, %v4013, 0
    %v4200 = vsel %vm269, %v4014, 0
    %v4203 = vsel %vm269, %v4015, 0
    %v4206 = vsel %vm269, %v4016, 0
    %v4209 = vsel %vm269, %v4017, 0
    %v4212 = vsel %vm269, %v4018, 0
    %v4215 = vsel %vm269, %v4019, 0
    %v4218 = vsel %vm269, %v4020, 0
    %v4221 = vsel %vm269, %v4021, 0
    %v4224 = vsel %vm269, %v4022, 0
    %v4227 = vsel %vm269, %v4023, 0
    %v4230 = vsel %vm269, %v4024, 0
    %v4233 = vsel %vm269, %v4025, 0
    %v4236 = vsel %vm269, %v4026, 0
    %v4239 = vsel %vm269, %v4027, 0
    %v4242 = vsel %vm269, %v4028, 0
    %v4245 = vsel %vm269, %v4029, 0
    %v4248 = vsel %vm269, %v4030, 0
    %v4251 = vsel %vm269, %v4031, 0
    %v4254 = vsel %vm269, %v4032, 0
    %v4257 = vsel %vm269, %v4033, 0
    %v4260 = vsel %vm269, %v4034, 0
    %v4263 = vsel %vm269, %v4035, 0
    %v4266 = vsel %vm269, %v4036, 0
    %v4269 = vsel %vm269, %v4037, 0
    %v4272 = vsel %vm269, %v4038, 0
    %v4275 = vsel %vm269, %v4039, 0
    %v4278 = vsel %vm269, %v4040, 0
    %v4281 = vsel %vm269, %v4041, 0
    %v4284 = vsel %vm269, %v4042, 0
    %v4287 = vsel %vm269, %v4043, 0
    %v4290 = vsel %vm513, %v4045, 0
    %4292 = vmatpush.msra.mxu0 0.0
    %4293 = vmatpush.msra.mxu0 0.0
    %4294 = vmatpush.msra.mxu0 0.0
    %4295 = vmatpush.msra.mxu0 0.0
    %4296 = vmatpush.msra.mxu0 0.0
    %4297 = vmatpush.msra.mxu0 0.0
    %4298 = vmatpush.msra.mxu0 0.0
    %4299 = vmatpush.msra.mxu0 0.0
    %4300 = vmatpush.msra.mxu0 0.0
    %4301 = vmatpush.msra.mxu0 0.0
    %4302 = vmatpush.msra.mxu0 0.0
    %4303 = vmatpush.msra.mxu0 0.0
    %4304 = vmatpush.msra.mxu0 0.0
    %4305 = vmatpush.msra.mxu0 0.0
    %4306 = vmatpush.msra.mxu0 0.0
    %4307 = vmatpush.msra.mxu0 %v4290
    %4308 = vmatmul.f32.gmra.mxu0 %v4047
    %v4309 = vpop.f32.mrf.mxu0
    %v4310 = vadd.f32 0.0, %v4309
    %4311 = vmatmul.f32.gmra.mxu0 %v4050
    %v4312 = vpop.f32.mrf.mxu0
    %v4313 = vadd.f32 0.0, %v4312
    %4314 = vmatmul.f32.gmra.mxu0 %v4053
    %v4315 = vpop.f32.mrf.mxu0
    %v4316 = vadd.f32 0.0, %v4315
    %4317 = vmatmul.f32.gmra.mxu0 %v4056
    %v4318 = vpop.f32.mrf.mxu0
    %v4319 = vadd.f32 0.0, %v4318
    %4320 = vmatmul.f32.gmra.mxu0 %v4059
    %v4321 = vpop.f32.mrf.mxu0
    %v4322 = vadd.f32 0.0, %v4321
    %4323 = vmatmul.f32.gmra.mxu0 %v4062
    %v4324 = vpop.f32.mrf.mxu0
    %v4325 = vadd.f32 0.0, %v4324
    %4326 = vmatmul.f32.gmra.mxu0 %v4065
    %v4327 = vpop.f32.mrf.mxu0
    %v4328 = vadd.f32 0.0, %v4327
    %4329 = vmatmul.f32.gmra.mxu0 %v4068
    %v4330 = vpop.f32.mrf.mxu0
    %v4331 = vadd.f32 0.0, %v4330
    %4332 = vmatmul.f32.gmra.mxu0 %v4071
    %v4333 = vpop.f32.mrf.mxu0
    %v4334 = vadd.f32 0.0, %v4333
    %4335 = vmatmul.f32.gmra.mxu0 %v4074
    %v4336 = vpop.f32.mrf.mxu0
    %v4337 = vadd.f32 0.0, %v4336
    %4338 = vmatmul.f32.gmra.mxu0 %v4077
    %v4339 = vpop.f32.mrf.mxu0
    %v4340 = vadd.f32 0.0, %v4339
    %4341 = vmatmul.f32.gmra.mxu0 %v4080
    %v4342 = vpop.f32.mrf.mxu0
    %v4343 = vadd.f32 0.0, %v4342
    %4344 = vmatmul.f32.gmra.mxu0 %v4083
    %v4345 = vpop.f32.mrf.mxu0
    %v4346 = vadd.f32 0.0, %v4345
    %4347 = vmatmul.f32.gmra.mxu0 %v4086
    %v4348 = vpop.f32.mrf.mxu0
    %v4349 = vadd.f32 0.0, %v4348
    %4350 = vmatmul.f32.gmra.mxu0 %v4089
    %v4351 = vpop.f32.mrf.mxu0
    %v4352 = vadd.f32 0.0, %v4351
    %4353 = vmatmul.f32.gmra.mxu0 %v4092
    %v4354 = vpop.f32.mrf.mxu0
    %v4355 = vadd.f32 0.0, %v4354
    %4356 = vmatmul.f32.gmra.mxu0 %v4095
    %v4357 = vpop.f32.mrf.mxu0
    %v4358 = vadd.f32 0.0, %v4357
    %4359 = vmatmul.f32.gmra.mxu0 %v4098
    %v4360 = vpop.f32.mrf.mxu0
    %v4361 = vadd.f32 0.0, %v4360
    %4362 = vmatmul.f32.gmra.mxu0 %v4101
    %v4363 = vpop.f32.mrf.mxu0
    %v4364 = vadd.f32 0.0, %v4363
    %4365 = vmatmul.f32.gmra.mxu0 %v4104
    %v4366 = vpop.f32.mrf.mxu0
    %v4367 = vadd.f32 0.0, %v4366
    %4368 = vmatmul.f32.gmra.mxu0 %v4107
    %v4369 = vpop.f32.mrf.mxu0
    %v4370 = vadd.f32 0.0, %v4369
    %4371 = vmatmul.f32.gmra.mxu0 %v4110
    %v4372 = vpop.f32.mrf.mxu0
    %v4373 = vadd.f32 0.0, %v4372
    %4374 = vmatmul.f32.gmra.mxu0 %v4113
    %v4375 = vpop.f32.mrf.mxu0
    %v4376 = vadd.f32 0.0, %v4375
    %4377 = vmatmul.f32.gmra.mxu0 %v4116
    %v4378 = vpop.f32.mrf.mxu0
    %v4379 = vadd.f32 0.0, %v4378
    %4380 = vmatmul.f32.gmra.mxu0 %v4119
    %v4381 = vpop.f32.mrf.mxu0
    %v4382 = vadd.f32 0.0, %v4381
    %4383 = vmatmul.f32.gmra.mxu0 %v4122
    %v4384 = vpop.f32.mrf.mxu0
    %v4385 = vadd.f32 0.0, %v4384
    %4386 = vmatmul.f32.gmra.mxu0 %v4125
    %v4387 = vpop.f32.mrf.mxu0
    %v4388 = vadd.f32 0.0, %v4387
    %4389 = vmatmul.f32.gmra.mxu0 %v4128
    %v4390 = vpop.f32.mrf.mxu0
    %v4391 = vadd.f32 0.0, %v4390
    %4392 = vmatmul.f32.gmra.mxu0 %v4131
    %v4393 = vpop.f32.mrf.mxu0
    %v4394 = vadd.f32 0.0, %v4393
    %4395 = vmatmul.f32.gmra.mxu0 %v4134
    %v4396 = vpop.f32.mrf.mxu0
    %v4397 = vadd.f32 0.0, %v4396
    %4398 = vmatmul.f32.gmra.mxu0 %v4137
    %v4399 = vpop.f32.mrf.mxu0
    %v4400 = vadd.f32 0.0, %v4399
    %4401 = vmatmul.f32.gmra.mxu0 %v4140
    %v4402 = vpop.f32.mrf.mxu0
    %v4403 = vadd.f32 0.0, %v4402
    %4404 = vmatmul.f32.gmra.mxu0 %v4143
    %v4405 = vpop.f32.mrf.mxu0
    %v4406 = vadd.f32 0.0, %v4405
    %4407 = vmatmul.f32.gmra.mxu0 %v4146
    %v4408 = vpop.f32.mrf.mxu0
    %v4409 = vadd.f32 0.0, %v4408
    %4410 = vmatmul.f32.gmra.mxu0 %v4149
    %v4411 = vpop.f32.mrf.mxu0
    %v4412 = vadd.f32 0.0, %v4411
    %4413 = vmatmul.f32.gmra.mxu0 %v4152
    %v4414 = vpop.f32.mrf.mxu0
    %v4415 = vadd.f32 0.0, %v4414
    %4416 = vmatmul.f32.gmra.mxu0 %v4155
    %v4417 = vpop.f32.mrf.mxu0
    %v4418 = vadd.f32 0.0, %v4417
    %4419 = vmatmul.f32.gmra.mxu0 %v4158
    %v4420 = vpop.f32.mrf.mxu0
    %v4421 = vadd.f32 0.0, %v4420
    %4422 = vmatmul.f32.gmra.mxu0 %v4161
    %v4423 = vpop.f32.mrf.mxu0
    %v4424 = vadd.f32 0.0, %v4423
    %4425 = vmatmul.f32.gmra.mxu0 %v4164
    %v4426 = vpop.f32.mrf.mxu0
    %v4427 = vadd.f32 0.0, %v4426
    %4428 = vmatmul.f32.gmra.mxu0 %v4167
    %v4429 = vpop.f32.mrf.mxu0
    %v4430 = vadd.f32 0.0, %v4429
    %4431 = vmatmul.f32.gmra.mxu0 %v4170
    %v4432 = vpop.f32.mrf.mxu0
    %v4433 = vadd.f32 0.0, %v4432
    %4434 = vmatmul.f32.gmra.mxu0 %v4173
    %v4435 = vpop.f32.mrf.mxu0
    %v4436 = vadd.f32 0.0, %v4435
    %4437 = vmatmul.f32.gmra.mxu0 %v4176
    %v4438 = vpop.f32.mrf.mxu0
    %v4439 = vadd.f32 0.0, %v4438
    %4440 = vmatmul.f32.gmra.mxu0 %v4179
    %v4441 = vpop.f32.mrf.mxu0
    %v4442 = vadd.f32 0.0, %v4441
    %4443 = vmatmul.f32.gmra.mxu0 %v4182
    %v4444 = vpop.f32.mrf.mxu0
    %v4445 = vadd.f32 0.0, %v4444
    %4446 = vmatmul.f32.gmra.mxu0 %v4185
    %v4447 = vpop.f32.mrf.mxu0
    %v4448 = vadd.f32 0.0, %v4447
    %4449 = vmatmul.f32.gmra.mxu0 %v4188
    %v4450 = vpop.f32.mrf.mxu0
    %v4451 = vadd.f32 0.0, %v4450
    %4452 = vmatmul.f32.gmra.mxu0 %v4191
    %v4453 = vpop.f32.mrf.mxu0
    %v4454 = vadd.f32 0.0, %v4453
    %4455 = vmatmul.f32.gmra.mxu0 %v4194
    %v4456 = vpop.f32.mrf.mxu0
    %v4457 = vadd.f32 0.0, %v4456
    %4458 = vmatmul.f32.gmra.mxu0 %v4197
    %v4459 = vpop.f32.mrf.mxu0
    %v4460 = vadd.f32 0.0, %v4459
    %4461 = vmatmul.f32.gmra.mxu0 %v4200
    %v4462 = vpop.f32.mrf.mxu0
    %v4463 = vadd.f32 0.0, %v4462
    %4464 = vmatmul.f32.gmra.mxu0 %v4203
    %v4465 = vpop.f32.mrf.mxu0
    %v4466 = vadd.f32 0.0, %v4465
    %4467 = vmatmul.f32.gmra.mxu0 %v4206
    %v4468 = vpop.f32.mrf.mxu0
    %v4469 = vadd.f32 0.0, %v4468
    %4470 = vmatmul.f32.gmra.mxu0 %v4209
    %v4471 = vpop.f32.mrf.mxu0
    %v4472 = vadd.f32 0.0, %v4471
    %4473 = vmatmul.f32.gmra.mxu0 %v4212
    %v4474 = vpop.f32.mrf.mxu0
    %v4475 = vadd.f32 0.0, %v4474
    %4476 = vmatmul.f32.gmra.mxu0 %v4215
    %v4477 = vpop.f32.mrf.mxu0
    %v4478 = vadd.f32 0.0, %v4477
    %4479 = vmatmul.f32.gmra.mxu0 %v4218
    %v4480 = vpop.f32.mrf.mxu0
    %v4481 = vadd.f32 0.0, %v4480
    %4482 = vmatmul.f32.gmra.mxu0 %v4221
    %v4483 = vpop.f32.mrf.mxu0
    %v4484 = vadd.f32 0.0, %v4483
    %4485 = vmatmul.f32.gmra.mxu0 %v4224
    %v4486 = vpop.f32.mrf.mxu0
    %v4487 = vadd.f32 0.0, %v4486
    %4488 = vmatmul.f32.gmra.mxu0 %v4227
    %v4489 = vpop.f32.mrf.mxu0
    %v4490 = vadd.f32 0.0, %v4489
    %4491 = vmatmul.f32.gmra.mxu0 %v4230
    %v4492 = vpop.f32.mrf.mxu0
    %v4493 = vadd.f32 0.0, %v4492
    %4494 = vmatmul.f32.gmra.mxu0 %v4233
    %v4495 = vpop.f32.mrf.mxu0
    %v4496 = vadd.f32 0.0, %v4495
    %4497 = vmatmul.f32.gmra.mxu0 %v4236
    %v4498 = vpop.f32.mrf.mxu0
    %v4499 = vadd.f32 0.0, %v4498
    %4500 = vmatmul.f32.gmra.mxu0 %v4239
    %v4501 = vpop.f32.mrf.mxu0
    %v4502 = vadd.f32 0.0, %v4501
    %4503 = vmatmul.f32.gmra.mxu0 %v4242
    %v4504 = vpop.f32.mrf.mxu0
    %v4505 = vadd.f32 0.0, %v4504
    %4506 = vmatmul.f32.gmra.mxu0 %v4245
    %v4507 = vpop.f32.mrf.mxu0
    %v4508 = vadd.f32 0.0, %v4507
    %4509 = vmatmul.f32.gmra.mxu0 %v4248
    %v4510 = vpop.f32.mrf.mxu0
    %v4511 = vadd.f32 0.0, %v4510
    %4512 = vmatmul.f32.gmra.mxu0 %v4251
    %v4513 = vpop.f32.mrf.mxu0
    %v4514 = vadd.f32 0.0, %v4513
    %4515 = vmatmul.f32.gmra.mxu0 %v4254
    %v4516 = vpop.f32.mrf.mxu0
    %v4517 = vadd.f32 0.0, %v4516
    %4518 = vmatmul.f32.gmra.mxu0 %v4257
    %v4519 = vpop.f32.mrf.mxu0
    %v4520 = vadd.f32 0.0, %v4519
    %4521 = vmatmul.f32.gmra.mxu0 %v4260
    %v4522 = vpop.f32.mrf.mxu0
    %v4523 = vadd.f32 0.0, %v4522
    %4524 = vmatmul.f32.gmra.mxu0 %v4263
    %v4525 = vpop.f32.mrf.mxu0
    %v4526 = vadd.f32 0.0, %v4525
    %4527 = vmatmul.f32.gmra.mxu0 %v4266
    %v4528 = vpop.f32.mrf.mxu0
    %v4529 = vadd.f32 0.0, %v4528
    %4530 = vmatmul.f32.gmra.mxu0 %v4269
    %v4531 = vpop.f32.mrf.mxu0
    %v4532 = vadd.f32 0.0, %v4531
    %4533 = vmatmul.f32.gmra.mxu0 %v4272
    %v4534 = vpop.f32.mrf.mxu0
    %v4535 = vadd.f32 0.0, %v4534
    %4536 = vmatmul.f32.gmra.mxu0 %v4275
    %v4537 = vpop.f32.mrf.mxu0
    %v4538 = vadd.f32 0.0, %v4537
    %4539 = vmatmul.f32.gmra.mxu0 %v4278
    %v4540 = vpop.f32.mrf.mxu0
    %v4541 = vadd.f32 0.0, %v4540
    %4542 = vmatmul.f32.gmra.mxu0 %v4281
    %v4543 = vpop.f32.mrf.mxu0
    %v4544 = vadd.f32 0.0, %v4543
    %4545 = vmatmul.f32.gmra.mxu0 %v4284
    %v4546 = vpop.f32.mrf.mxu0
    %v4547 = vadd.f32 0.0, %v4546
    %4548 = vmatmul.f32.gmra.mxu0 %v4287
    %v4549 = vpop.f32.mrf.mxu0
    %v4550 = vadd.f32 0.0, %v4549
    %4551 = vdwg.mxu0
    %v4552 = vadd.f32 %v3882, %v4310
    %v4553 = vadd.f32 %v3883, %v4313
    %v4554 = vadd.f32 %v3884, %v4316
    %v4555 = vadd.f32 %v3885, %v4319
    %v4556 = vadd.f32 %v3886, %v4322
    %v4557 = vadd.f32 %v3887, %v4325
    %v4558 = vadd.f32 %v3888, %v4328
    %v4559 = vadd.f32 %v3889, %v4331
    %v4560 = vadd.f32 %v3890, %v4334
    %v4561 = vadd.f32 %v3891, %v4337
    %v4562 = vadd.f32 %v3892, %v4340
    %v4563 = vadd.f32 %v3893, %v4343
    %v4564 = vadd.f32 %v3894, %v4346
    %v4565 = vadd.f32 %v3895, %v4349
    %v4566 = vadd.f32 %v3896, %v4352
    %v4567 = vadd.f32 %v3897, %v4355
    %v4568 = vadd.f32 %v3898, %v4358
    %v4569 = vadd.f32 %v3899, %v4361
    %v4570 = vadd.f32 %v3900, %v4364
    %v4571 = vadd.f32 %v3901, %v4367
    %v4572 = vadd.f32 %v3902, %v4370
    %v4573 = vadd.f32 %v3903, %v4373
    %v4574 = vadd.f32 %v3904, %v4376
    %v4575 = vadd.f32 %v3905, %v4379
    %v4576 = vadd.f32 %v3906, %v4382
    %v4577 = vadd.f32 %v3907, %v4385
    %v4578 = vadd.f32 %v3908, %v4388
    %v4579 = vadd.f32 %v3909, %v4391
    %v4580 = vadd.f32 %v3910, %v4394
    %v4581 = vadd.f32 %v3911, %v4397
    %v4582 = vadd.f32 %v3912, %v4400
    %v4583 = vadd.f32 %v3913, %v4403
    %v4584 = vadd.f32 %v3914, %v4406
    %v4585 = vadd.f32 %v3915, %v4409
    %v4586 = vadd.f32 %v3916, %v4412
    %v4587 = vadd.f32 %v3917, %v4415
    %v4588 = vadd.f32 %v3918, %v4418
    %v4589 = vadd.f32 %v3919, %v4421
    %v4590 = vadd.f32 %v3920, %v4424
    %v4591 = vadd.f32 %v3921, %v4427
    %v4592 = vadd.f32 %v3922, %v4430
    %v4593 = vadd.f32 %v3923, %v4433
    %v4594 = vadd.f32 %v3924, %v4436
    %v4595 = vadd.f32 %v3925, %v4439
    %v4596 = vadd.f32 %v3926, %v4442
    %v4597 = vadd.f32 %v3927, %v4445
    %v4598 = vadd.f32 %v3928, %v4448
    %v4599 = vadd.f32 %v3929, %v4451
    %v4600 = vadd.f32 %v3930, %v4454
    %v4601 = vadd.f32 %v3931, %v4457
    %v4602 = vadd.f32 %v3932, %v4460
    %v4603 = vadd.f32 %v3933, %v4463
    %v4604 = vadd.f32 %v3934, %v4466
    %v4605 = vadd.f32 %v3935, %v4469
    %v4606 = vadd.f32 %v3936, %v4472
    %v4607 = vadd.f32 %v3937, %v4475
    %v4608 = vadd.f32 %v3938, %v4478
    %v4609 = vadd.f32 %v3939, %v4481
    %v4610 = vadd.f32 %v3940, %v4484
    %v4611 = vadd.f32 %v3941, %v4487
    %v4612 = vadd.f32 %v3942, %v4490
    %v4613 = vadd.f32 %v3943, %v4493
    %v4614 = vadd.f32 %v3944, %v4496
    %v4615 = vadd.f32 %v3945, %v4499
    %v4616 = vadd.f32 %v3946, %v4502
    %v4617 = vadd.f32 %v3947, %v4505
    %v4618 = vadd.f32 %v3948, %v4508
    %v4619 = vadd.f32 %v3949, %v4511
    %v4620 = vadd.f32 %v3950, %v4514
    %v4621 = vadd.f32 %v3951, %v4517
    %v4622 = vadd.f32 %v3952, %v4520
    %v4623 = vadd.f32 %v3953, %v4523
    %v4624 = vadd.f32 %v3954, %v4526
    %v4625 = vadd.f32 %v3955, %v4529
    %v4626 = vadd.f32 %v3956, %v4532
    %v4627 = vadd.f32 %v3957, %v4535
    %v4628 = vadd.f32 %v3958, %v4538
    %v4629 = vadd.f32 %v3959, %v4541
    %v4630 = vadd.f32 %v3960, %v4544
    %v4631 = vadd.f32 %v3961, %v4547
    %v4632 = vadd.f32 %v3962, %v4550
    %v4633 = vld [vmem:[%s0 + $0x26] sm:$0xff]
    %v4634 = vld [vmem:[%s0 + $0x2e] sm:$0xff]
    %v4635 = vld [vmem:[%s0 + $0x36] sm:$0xff]
    %v4636 = vld [vmem:[%s0 + $0x3e] sm:$0xff]
    %v4637 = vld [vmem:[%s0 + $0x46] sm:$0xff]
    %v4638 = vld [vmem:[%s0 + $0x4e] sm:$0xff]
    %v4639 = vld [vmem:[%s0 + $0x56] sm:$0xff]
    %v4640 = vld [vmem:[%s0 + $0x5e] sm:$0xff]
    %v4641 = vld [vmem:[%s0 + $0x66] sm:$0xff]
    %v4642 = vld [vmem:[%s0 + $0x6e] sm:$0xff]
    %v4643 = vld [vmem:[%s0 + $0x76] sm:$0xff]
    %v4644 = vld [vmem:[%s0 + $0x7e] sm:$0xff]
    %v4645 = vld [vmem:[%s0 + $0x86] sm:$0xff]
    %v4646 = vld [vmem:[%s0 + $0x8e] sm:$0xff]
    %v4647 = vld [vmem:[%s0 + $0x96] sm:$0xff]
    %v4648 = vld [vmem:[%s0 + $0x9e] sm:$0xff]
    %v4649 = vld [vmem:[%s0 + $0xa6] sm:$0xff]
    %v4650 = vld [vmem:[%s0 + $0xae] sm:$0xff]
    %v4651 = vld [vmem:[%s0 + $0xb6] sm:$0xff]
    %v4652 = vld [vmem:[%s0 + $0xbe] sm:$0xff]
    %v4653 = vld [vmem:[%s0 + $0xc6] sm:$0xff]
    %v4654 = vld [vmem:[%s0 + $0xce] sm:$0xff]
    %v4655 = vld [vmem:[%s0 + $0xd6] sm:$0xff]
    %v4656 = vld [vmem:[%s0 + $0xde] sm:$0xff]
    %v4657 = vld [vmem:[%s0 + $0xe6] sm:$0xff]
    %v4658 = vld [vmem:[%s0 + $0xee] sm:$0xff]
    %v4659 = vld [vmem:[%s0 + $0xf6] sm:$0xff]
    %v4660 = vld [vmem:[%s0 + $0xfe] sm:$0xff]
    %v4661 = vld [vmem:[%s0 + $0x106] sm:$0xff]
    %v4662 = vld [vmem:[%s0 + $0x10e] sm:$0xff]
    %v4663 = vld [vmem:[%s0 + $0x116] sm:$0xff]
    %v4664 = vld [vmem:[%s0 + $0x11e] sm:$0xff]
    %v4665 = vld [vmem:[%s0 + $0x126] sm:$0xff]
    %v4666 = vld [vmem:[%s0 + $0x12e] sm:$0xff]
    %v4667 = vld [vmem:[%s0 + $0x136] sm:$0xff]
    %v4668 = vld [vmem:[%s0 + $0x13e] sm:$0xff]
    %v4669 = vld [vmem:[%s0 + $0x146] sm:$0xff]
    %v4670 = vld [vmem:[%s0 + $0x14e] sm:$0xff]
    %v4671 = vld [vmem:[%s0 + $0x156] sm:$0xff]
    %v4672 = vld [vmem:[%s0 + $0x15e] sm:$0xff]
    %v4673 = vld [vmem:[%s0 + $0x166] sm:$0xff]
    %v4674 = vld [vmem:[%s0 + $0x16e] sm:$0xff]
    %v4675 = vld [vmem:[%s0 + $0x176] sm:$0xff]
    %v4676 = vld [vmem:[%s0 + $0x17e] sm:$0xff]
    %v4677 = vld [vmem:[%s0 + $0x186] sm:$0xff]
    %v4678 = vld [vmem:[%s0 + $0x18e] sm:$0xff]
    %v4679 = vld [vmem:[%s0 + $0x196] sm:$0xff]
    %v4680 = vld [vmem:[%s0 + $0x19e] sm:$0xff]
    %v4681 = vld [vmem:[%s0 + $0x1a6] sm:$0xff]
    %v4682 = vld [vmem:[%s0 + $0x1ae] sm:$0xff]
    %v4683 = vld [vmem:[%s0 + $0x1b6] sm:$0xff]
    %v4684 = vld [vmem:[%s0 + $0x1be] sm:$0xff]
    %v4685 = vld [vmem:[%s0 + $0x1c6] sm:$0xff]
    %v4686 = vld [vmem:[%s0 + $0x1ce] sm:$0xff]
    %v4687 = vld [vmem:[%s0 + $0x1d6] sm:$0xff]
    %v4688 = vld [vmem:[%s0 + $0x1de] sm:$0xff]
    %v4689 = vld [vmem:[%s0 + $0x1e6] sm:$0xff]
    %v4690 = vld [vmem:[%s0 + $0x1ee] sm:$0xff]
    %v4691 = vld [vmem:[%s0 + $0x1f6] sm:$0xff]
    %v4692 = vld [vmem:[%s0 + $0x1fe] sm:$0xff]
    %v4693 = vld [vmem:[%s0 + $0x206] sm:$0xff]
    %v4694 = vld [vmem:[%s0 + $0x20e] sm:$0xff]
    %v4695 = vld [vmem:[%s0 + $0x216] sm:$0xff]
    %v4696 = vld [vmem:[%s0 + $0x21e] sm:$0xff]
    %v4697 = vld [vmem:[%s0 + $0x226] sm:$0xff]
    %v4698 = vld [vmem:[%s0 + $0x22e] sm:$0xff]
    %v4699 = vld [vmem:[%s0 + $0x236] sm:$0xff]
    %v4700 = vld [vmem:[%s0 + $0x23e] sm:$0xff]
    %v4701 = vld [vmem:[%s0 + $0x246] sm:$0xff]
    %v4702 = vld [vmem:[%s0 + $0x24e] sm:$0xff]
    %v4703 = vld [vmem:[%s0 + $0x256] sm:$0xff]
    %v4704 = vld [vmem:[%s0 + $0x25e] sm:$0xff]
    %v4705 = vld [vmem:[%s0 + $0x266] sm:$0xff]
    %v4706 = vld [vmem:[%s0 + $0x26e] sm:$0xff]
    %v4707 = vld [vmem:[%s0 + $0x276] sm:$0xff]
    %v4708 = vld [vmem:[%s0 + $0x27e] sm:$0xff]
    %v4709 = vld [vmem:[%s0 + $0x286] sm:$0xff]
    %v4710 = vld [vmem:[%s0 + $0x28e] sm:$0xff]
    %v4711 = vld [vmem:[%s0 + $0x296] sm:$0xff]
    %v4712 = vld [vmem:[%s0 + $0x29e] sm:$0xff]
    %v4713 = vld [vmem:[%s0 + $0x2a6] sm:$0xff]
    %s4714 = scalar_lea.vmem %s1, 28
    %v4715 = vld [vmem:[%s4714] sm:$0x7]
    %v4717 = vsel %vm269, %v4633, 0
    %v4720 = vsel %vm269, %v4634, 0
    %v4723 = vsel %vm269, %v4635, 0
    %v4726 = vsel %vm269, %v4636, 0
    %v4729 = vsel %vm269, %v4637, 0
    %v4732 = vsel %vm269, %v4638, 0
    %v4735 = vsel %vm269, %v4639, 0
    %v4738 = vsel %vm269, %v4640, 0
    %v4741 = vsel %vm269, %v4641, 0
    %v4744 = vsel %vm269, %v4642, 0
    %v4747 = vsel %vm269, %v4643, 0
    %v4750 = vsel %vm269, %v4644, 0
    %v4753 = vsel %vm269, %v4645, 0
    %v4756 = vsel %vm269, %v4646, 0
    %v4759 = vsel %vm269, %v4647, 0
    %v4762 = vsel %vm269, %v4648, 0
    %v4765 = vsel %vm269, %v4649, 0
    %v4768 = vsel %vm269, %v4650, 0
    %v4771 = vsel %vm269, %v4651, 0
    %v4774 = vsel %vm269, %v4652, 0
    %v4777 = vsel %vm269, %v4653, 0
    %v4780 = vsel %vm269, %v4654, 0
    %v4783 = vsel %vm269, %v4655, 0
    %v4786 = vsel %vm269, %v4656, 0
    %v4789 = vsel %vm269, %v4657, 0
    %v4792 = vsel %vm269, %v4658, 0
    %v4795 = vsel %vm269, %v4659, 0
    %v4798 = vsel %vm269, %v4660, 0
    %v4801 = vsel %vm269, %v4661, 0
    %v4804 = vsel %vm269, %v4662, 0
    %v4807 = vsel %vm269, %v4663, 0
    %v4810 = vsel %vm269, %v4664, 0
    %v4813 = vsel %vm269, %v4665, 0
    %v4816 = vsel %vm269, %v4666, 0
    %v4819 = vsel %vm269, %v4667, 0
    %v4822 = vsel %vm269, %v4668, 0
    %v4825 = vsel %vm269, %v4669, 0
    %v4828 = vsel %vm269, %v4670, 0
    %v4831 = vsel %vm269, %v4671, 0
    %v4834 = vsel %vm269, %v4672, 0
    %v4837 = vsel %vm269, %v4673, 0
    %v4840 = vsel %vm269, %v4674, 0
    %v4843 = vsel %vm269, %v4675, 0
    %v4846 = vsel %vm269, %v4676, 0
    %v4849 = vsel %vm269, %v4677, 0
    %v4852 = vsel %vm269, %v4678, 0
    %v4855 = vsel %vm269, %v4679, 0
    %v4858 = vsel %vm269, %v4680, 0
    %v4861 = vsel %vm269, %v4681, 0
    %v4864 = vsel %vm269, %v4682, 0
    %v4867 = vsel %vm269, %v4683, 0
    %v4870 = vsel %vm269, %v4684, 0
    %v4873 = vsel %vm269, %v4685, 0
    %v4876 = vsel %vm269, %v4686, 0
    %v4879 = vsel %vm269, %v4687, 0
    %v4882 = vsel %vm269, %v4688, 0
    %v4885 = vsel %vm269, %v4689, 0
    %v4888 = vsel %vm269, %v4690, 0
    %v4891 = vsel %vm269, %v4691, 0
    %v4894 = vsel %vm269, %v4692, 0
    %v4897 = vsel %vm269, %v4693, 0
    %v4900 = vsel %vm269, %v4694, 0
    %v4903 = vsel %vm269, %v4695, 0
    %v4906 = vsel %vm269, %v4696, 0
    %v4909 = vsel %vm269, %v4697, 0
    %v4912 = vsel %vm269, %v4698, 0
    %v4915 = vsel %vm269, %v4699, 0
    %v4918 = vsel %vm269, %v4700, 0
    %v4921 = vsel %vm269, %v4701, 0
    %v4924 = vsel %vm269, %v4702, 0
    %v4927 = vsel %vm269, %v4703, 0
    %v4930 = vsel %vm269, %v4704, 0
    %v4933 = vsel %vm269, %v4705, 0
    %v4936 = vsel %vm269, %v4706, 0
    %v4939 = vsel %vm269, %v4707, 0
    %v4942 = vsel %vm269, %v4708, 0
    %v4945 = vsel %vm269, %v4709, 0
    %v4948 = vsel %vm269, %v4710, 0
    %v4951 = vsel %vm269, %v4711, 0
    %v4954 = vsel %vm269, %v4712, 0
    %v4957 = vsel %vm269, %v4713, 0
    %v4960 = vsel %vm513, %v4715, 0
    %4962 = vmatpush.msra.mxu0 0.0
    %4963 = vmatpush.msra.mxu0 0.0
    %4964 = vmatpush.msra.mxu0 0.0
    %4965 = vmatpush.msra.mxu0 0.0
    %4966 = vmatpush.msra.mxu0 0.0
    %4967 = vmatpush.msra.mxu0 0.0
    %4968 = vmatpush.msra.mxu0 0.0
    %4969 = vmatpush.msra.mxu0 0.0
    %4970 = vmatpush.msra.mxu0 0.0
    %4971 = vmatpush.msra.mxu0 0.0
    %4972 = vmatpush.msra.mxu0 0.0
    %4973 = vmatpush.msra.mxu0 0.0
    %4974 = vmatpush.msra.mxu0 0.0
    %4975 = vmatpush.msra.mxu0 0.0
    %4976 = vmatpush.msra.mxu0 0.0
    %4977 = vmatpush.msra.mxu0 %v4960
    %4978 = vmatmul.f32.gmra.mxu0 %v4717
    %v4979 = vpop.f32.mrf.mxu0
    %v4980 = vadd.f32 0.0, %v4979
    %4981 = vmatmul.f32.gmra.mxu0 %v4720
    %v4982 = vpop.f32.mrf.mxu0
    %v4983 = vadd.f32 0.0, %v4982
    %4984 = vmatmul.f32.gmra.mxu0 %v4723
    %v4985 = vpop.f32.mrf.mxu0
    %v4986 = vadd.f32 0.0, %v4985
    %4987 = vmatmul.f32.gmra.mxu0 %v4726
    %v4988 = vpop.f32.mrf.mxu0
    %v4989 = vadd.f32 0.0, %v4988
    %4990 = vmatmul.f32.gmra.mxu0 %v4729
    %v4991 = vpop.f32.mrf.mxu0
    %v4992 = vadd.f32 0.0, %v4991
    %4993 = vmatmul.f32.gmra.mxu0 %v4732
    %v4994 = vpop.f32.mrf.mxu0
    %v4995 = vadd.f32 0.0, %v4994
    %4996 = vmatmul.f32.gmra.mxu0 %v4735
    %v4997 = vpop.f32.mrf.mxu0
    %v4998 = vadd.f32 0.0, %v4997
    %4999 = vmatmul.f32.gmra.mxu0 %v4738
    %v5000 = vpop.f32.mrf.mxu0
    %v5001 = vadd.f32 0.0, %v5000
    %5002 = vmatmul.f32.gmra.mxu0 %v4741
    %v5003 = vpop.f32.mrf.mxu0
    %v5004 = vadd.f32 0.0, %v5003
    %5005 = vmatmul.f32.gmra.mxu0 %v4744
    %v5006 = vpop.f32.mrf.mxu0
    %v5007 = vadd.f32 0.0, %v5006
    %5008 = vmatmul.f32.gmra.mxu0 %v4747
    %v5009 = vpop.f32.mrf.mxu0
    %v5010 = vadd.f32 0.0, %v5009
    %5011 = vmatmul.f32.gmra.mxu0 %v4750
    %v5012 = vpop.f32.mrf.mxu0
    %v5013 = vadd.f32 0.0, %v5012
    %5014 = vmatmul.f32.gmra.mxu0 %v4753
    %v5015 = vpop.f32.mrf.mxu0
    %v5016 = vadd.f32 0.0, %v5015
    %5017 = vmatmul.f32.gmra.mxu0 %v4756
    %v5018 = vpop.f32.mrf.mxu0
    %v5019 = vadd.f32 0.0, %v5018
    %5020 = vmatmul.f32.gmra.mxu0 %v4759
    %v5021 = vpop.f32.mrf.mxu0
    %v5022 = vadd.f32 0.0, %v5021
    %5023 = vmatmul.f32.gmra.mxu0 %v4762
    %v5024 = vpop.f32.mrf.mxu0
    %v5025 = vadd.f32 0.0, %v5024
    %5026 = vmatmul.f32.gmra.mxu0 %v4765
    %v5027 = vpop.f32.mrf.mxu0
    %v5028 = vadd.f32 0.0, %v5027
    %5029 = vmatmul.f32.gmra.mxu0 %v4768
    %v5030 = vpop.f32.mrf.mxu0
    %v5031 = vadd.f32 0.0, %v5030
    %5032 = vmatmul.f32.gmra.mxu0 %v4771
    %v5033 = vpop.f32.mrf.mxu0
    %v5034 = vadd.f32 0.0, %v5033
    %5035 = vmatmul.f32.gmra.mxu0 %v4774
    %v5036 = vpop.f32.mrf.mxu0
    %v5037 = vadd.f32 0.0, %v5036
    %5038 = vmatmul.f32.gmra.mxu0 %v4777
    %v5039 = vpop.f32.mrf.mxu0
    %v5040 = vadd.f32 0.0, %v5039
    %5041 = vmatmul.f32.gmra.mxu0 %v4780
    %v5042 = vpop.f32.mrf.mxu0
    %v5043 = vadd.f32 0.0, %v5042
    %5044 = vmatmul.f32.gmra.mxu0 %v4783
    %v5045 = vpop.f32.mrf.mxu0
    %v5046 = vadd.f32 0.0, %v5045
    %5047 = vmatmul.f32.gmra.mxu0 %v4786
    %v5048 = vpop.f32.mrf.mxu0
    %v5049 = vadd.f32 0.0, %v5048
    %5050 = vmatmul.f32.gmra.mxu0 %v4789
    %v5051 = vpop.f32.mrf.mxu0
    %v5052 = vadd.f32 0.0, %v5051
    %5053 = vmatmul.f32.gmra.mxu0 %v4792
    %v5054 = vpop.f32.mrf.mxu0
    %v5055 = vadd.f32 0.0, %v5054
    %5056 = vmatmul.f32.gmra.mxu0 %v4795
    %v5057 = vpop.f32.mrf.mxu0
    %v5058 = vadd.f32 0.0, %v5057
    %5059 = vmatmul.f32.gmra.mxu0 %v4798
    %v5060 = vpop.f32.mrf.mxu0
    %v5061 = vadd.f32 0.0, %v5060
    %5062 = vmatmul.f32.gmra.mxu0 %v4801
    %v5063 = vpop.f32.mrf.mxu0
    %v5064 = vadd.f32 0.0, %v5063
    %5065 = vmatmul.f32.gmra.mxu0 %v4804
    %v5066 = vpop.f32.mrf.mxu0
    %v5067 = vadd.f32 0.0, %v5066
    %5068 = vmatmul.f32.gmra.mxu0 %v4807
    %v5069 = vpop.f32.mrf.mxu0
    %v5070 = vadd.f32 0.0, %v5069
    %5071 = vmatmul.f32.gmra.mxu0 %v4810
    %v5072 = vpop.f32.mrf.mxu0
    %v5073 = vadd.f32 0.0, %v5072
    %5074 = vmatmul.f32.gmra.mxu0 %v4813
    %v5075 = vpop.f32.mrf.mxu0
    %v5076 = vadd.f32 0.0, %v5075
    %5077 = vmatmul.f32.gmra.mxu0 %v4816
    %v5078 = vpop.f32.mrf.mxu0
    %v5079 = vadd.f32 0.0, %v5078
    %5080 = vmatmul.f32.gmra.mxu0 %v4819
    %v5081 = vpop.f32.mrf.mxu0
    %v5082 = vadd.f32 0.0, %v5081
    %5083 = vmatmul.f32.gmra.mxu0 %v4822
    %v5084 = vpop.f32.mrf.mxu0
    %v5085 = vadd.f32 0.0, %v5084
    %5086 = vmatmul.f32.gmra.mxu0 %v4825
    %v5087 = vpop.f32.mrf.mxu0
    %v5088 = vadd.f32 0.0, %v5087
    %5089 = vmatmul.f32.gmra.mxu0 %v4828
    %v5090 = vpop.f32.mrf.mxu0
    %v5091 = vadd.f32 0.0, %v5090
    %5092 = vmatmul.f32.gmra.mxu0 %v4831
    %v5093 = vpop.f32.mrf.mxu0
    %v5094 = vadd.f32 0.0, %v5093
    %5095 = vmatmul.f32.gmra.mxu0 %v4834
    %v5096 = vpop.f32.mrf.mxu0
    %v5097 = vadd.f32 0.0, %v5096
    %5098 = vmatmul.f32.gmra.mxu0 %v4837
    %v5099 = vpop.f32.mrf.mxu0
    %v5100 = vadd.f32 0.0, %v5099
    %5101 = vmatmul.f32.gmra.mxu0 %v4840
    %v5102 = vpop.f32.mrf.mxu0
    %v5103 = vadd.f32 0.0, %v5102
    %5104 = vmatmul.f32.gmra.mxu0 %v4843
    %v5105 = vpop.f32.mrf.mxu0
    %v5106 = vadd.f32 0.0, %v5105
    %5107 = vmatmul.f32.gmra.mxu0 %v4846
    %v5108 = vpop.f32.mrf.mxu0
    %v5109 = vadd.f32 0.0, %v5108
    %5110 = vmatmul.f32.gmra.mxu0 %v4849
    %v5111 = vpop.f32.mrf.mxu0
    %v5112 = vadd.f32 0.0, %v5111
    %5113 = vmatmul.f32.gmra.mxu0 %v4852
    %v5114 = vpop.f32.mrf.mxu0
    %v5115 = vadd.f32 0.0, %v5114
    %5116 = vmatmul.f32.gmra.mxu0 %v4855
    %v5117 = vpop.f32.mrf.mxu0
    %v5118 = vadd.f32 0.0, %v5117
    %5119 = vmatmul.f32.gmra.mxu0 %v4858
    %v5120 = vpop.f32.mrf.mxu0
    %v5121 = vadd.f32 0.0, %v5120
    %5122 = vmatmul.f32.gmra.mxu0 %v4861
    %v5123 = vpop.f32.mrf.mxu0
    %v5124 = vadd.f32 0.0, %v5123
    %5125 = vmatmul.f32.gmra.mxu0 %v4864
    %v5126 = vpop.f32.mrf.mxu0
    %v5127 = vadd.f32 0.0, %v5126
    %5128 = vmatmul.f32.gmra.mxu0 %v4867
    %v5129 = vpop.f32.mrf.mxu0
    %v5130 = vadd.f32 0.0, %v5129
    %5131 = vmatmul.f32.gmra.mxu0 %v4870
    %v5132 = vpop.f32.mrf.mxu0
    %v5133 = vadd.f32 0.0, %v5132
    %5134 = vmatmul.f32.gmra.mxu0 %v4873
    %v5135 = vpop.f32.mrf.mxu0
    %v5136 = vadd.f32 0.0, %v5135
    %5137 = vmatmul.f32.gmra.mxu0 %v4876
    %v5138 = vpop.f32.mrf.mxu0
    %v5139 = vadd.f32 0.0, %v5138
    %5140 = vmatmul.f32.gmra.mxu0 %v4879
    %v5141 = vpop.f32.mrf.mxu0
    %v5142 = vadd.f32 0.0, %v5141
    %5143 = vmatmul.f32.gmra.mxu0 %v4882
    %v5144 = vpop.f32.mrf.mxu0
    %v5145 = vadd.f32 0.0, %v5144
    %5146 = vmatmul.f32.gmra.mxu0 %v4885
    %v5147 = vpop.f32.mrf.mxu0
    %v5148 = vadd.f32 0.0, %v5147
    %5149 = vmatmul.f32.gmra.mxu0 %v4888
    %v5150 = vpop.f32.mrf.mxu0
    %v5151 = vadd.f32 0.0, %v5150
    %5152 = vmatmul.f32.gmra.mxu0 %v4891
    %v5153 = vpop.f32.mrf.mxu0
    %v5154 = vadd.f32 0.0, %v5153
    %5155 = vmatmul.f32.gmra.mxu0 %v4894
    %v5156 = vpop.f32.mrf.mxu0
    %v5157 = vadd.f32 0.0, %v5156
    %5158 = vmatmul.f32.gmra.mxu0 %v4897
    %v5159 = vpop.f32.mrf.mxu0
    %v5160 = vadd.f32 0.0, %v5159
    %5161 = vmatmul.f32.gmra.mxu0 %v4900
    %v5162 = vpop.f32.mrf.mxu0
    %v5163 = vadd.f32 0.0, %v5162
    %5164 = vmatmul.f32.gmra.mxu0 %v4903
    %v5165 = vpop.f32.mrf.mxu0
    %v5166 = vadd.f32 0.0, %v5165
    %5167 = vmatmul.f32.gmra.mxu0 %v4906
    %v5168 = vpop.f32.mrf.mxu0
    %v5169 = vadd.f32 0.0, %v5168
    %5170 = vmatmul.f32.gmra.mxu0 %v4909
    %v5171 = vpop.f32.mrf.mxu0
    %v5172 = vadd.f32 0.0, %v5171
    %5173 = vmatmul.f32.gmra.mxu0 %v4912
    %v5174 = vpop.f32.mrf.mxu0
    %v5175 = vadd.f32 0.0, %v5174
    %5176 = vmatmul.f32.gmra.mxu0 %v4915
    %v5177 = vpop.f32.mrf.mxu0
    %v5178 = vadd.f32 0.0, %v5177
    %5179 = vmatmul.f32.gmra.mxu0 %v4918
    %v5180 = vpop.f32.mrf.mxu0
    %v5181 = vadd.f32 0.0, %v5180
    %5182 = vmatmul.f32.gmra.mxu0 %v4921
    %v5183 = vpop.f32.mrf.mxu0
    %v5184 = vadd.f32 0.0, %v5183
    %5185 = vmatmul.f32.gmra.mxu0 %v4924
    %v5186 = vpop.f32.mrf.mxu0
    %v5187 = vadd.f32 0.0, %v5186
    %5188 = vmatmul.f32.gmra.mxu0 %v4927
    %v5189 = vpop.f32.mrf.mxu0
    %v5190 = vadd.f32 0.0, %v5189
    %5191 = vmatmul.f32.gmra.mxu0 %v4930
    %v5192 = vpop.f32.mrf.mxu0
    %v5193 = vadd.f32 0.0, %v5192
    %5194 = vmatmul.f32.gmra.mxu0 %v4933
    %v5195 = vpop.f32.mrf.mxu0
    %v5196 = vadd.f32 0.0, %v5195
    %5197 = vmatmul.f32.gmra.mxu0 %v4936
    %v5198 = vpop.f32.mrf.mxu0
    %v5199 = vadd.f32 0.0, %v5198
    %5200 = vmatmul.f32.gmra.mxu0 %v4939
    %v5201 = vpop.f32.mrf.mxu0
    %v5202 = vadd.f32 0.0, %v5201
    %5203 = vmatmul.f32.gmra.mxu0 %v4942
    %v5204 = vpop.f32.mrf.mxu0
    %v5205 = vadd.f32 0.0, %v5204
    %5206 = vmatmul.f32.gmra.mxu0 %v4945
    %v5207 = vpop.f32.mrf.mxu0
    %v5208 = vadd.f32 0.0, %v5207
    %5209 = vmatmul.f32.gmra.mxu0 %v4948
    %v5210 = vpop.f32.mrf.mxu0
    %v5211 = vadd.f32 0.0, %v5210
    %5212 = vmatmul.f32.gmra.mxu0 %v4951
    %v5213 = vpop.f32.mrf.mxu0
    %v5214 = vadd.f32 0.0, %v5213
    %5215 = vmatmul.f32.gmra.mxu0 %v4954
    %v5216 = vpop.f32.mrf.mxu0
    %v5217 = vadd.f32 0.0, %v5216
    %5218 = vmatmul.f32.gmra.mxu0 %v4957
    %v5219 = vpop.f32.mrf.mxu0
    %v5220 = vadd.f32 0.0, %v5219
    %5221 = vdwg.mxu0
    %v5222 = vadd.f32 %v4552, %v4980
    %v5223 = vadd.f32 %v4553, %v4983
    %v5224 = vadd.f32 %v4554, %v4986
    %v5225 = vadd.f32 %v4555, %v4989
    %v5226 = vadd.f32 %v4556, %v4992
    %v5227 = vadd.f32 %v4557, %v4995
    %v5228 = vadd.f32 %v4558, %v4998
    %v5229 = vadd.f32 %v4559, %v5001
    %v5230 = vadd.f32 %v4560, %v5004
    %v5231 = vadd.f32 %v4561, %v5007
    %v5232 = vadd.f32 %v4562, %v5010
    %v5233 = vadd.f32 %v4563, %v5013
    %v5234 = vadd.f32 %v4564, %v5016
    %v5235 = vadd.f32 %v4565, %v5019
    %v5236 = vadd.f32 %v4566, %v5022
    %v5237 = vadd.f32 %v4567, %v5025
    %v5238 = vadd.f32 %v4568, %v5028
    %v5239 = vadd.f32 %v4569, %v5031
    %v5240 = vadd.f32 %v4570, %v5034
    %v5241 = vadd.f32 %v4571, %v5037
    %v5242 = vadd.f32 %v4572, %v5040
    %v5243 = vadd.f32 %v4573, %v5043
    %v5244 = vadd.f32 %v4574, %v5046
    %v5245 = vadd.f32 %v4575, %v5049
    %v5246 = vadd.f32 %v4576, %v5052
    %v5247 = vadd.f32 %v4577, %v5055
    %v5248 = vadd.f32 %v4578, %v5058
    %v5249 = vadd.f32 %v4579, %v5061
    %v5250 = vadd.f32 %v4580, %v5064
    %v5251 = vadd.f32 %v4581, %v5067
    %v5252 = vadd.f32 %v4582, %v5070
    %v5253 = vadd.f32 %v4583, %v5073
    %v5254 = vadd.f32 %v4584, %v5076
    %v5255 = vadd.f32 %v4585, %v5079
    %v5256 = vadd.f32 %v4586, %v5082
    %v5257 = vadd.f32 %v4587, %v5085
    %v5258 = vadd.f32 %v4588, %v5088
    %v5259 = vadd.f32 %v4589, %v5091
    %v5260 = vadd.f32 %v4590, %v5094
    %v5261 = vadd.f32 %v4591, %v5097
    %v5262 = vadd.f32 %v4592, %v5100
    %v5263 = vadd.f32 %v4593, %v5103
    %v5264 = vadd.f32 %v4594, %v5106
    %v5265 = vadd.f32 %v4595, %v5109
    %v5266 = vadd.f32 %v4596, %v5112
    %v5267 = vadd.f32 %v4597, %v5115
    %v5268 = vadd.f32 %v4598, %v5118
    %v5269 = vadd.f32 %v4599, %v5121
    %v5270 = vadd.f32 %v4600, %v5124
    %v5271 = vadd.f32 %v4601, %v5127
    %v5272 = vadd.f32 %v4602, %v5130
    %v5273 = vadd.f32 %v4603, %v5133
    %v5274 = vadd.f32 %v4604, %v5136
    %v5275 = vadd.f32 %v4605, %v5139
    %v5276 = vadd.f32 %v4606, %v5142
    %v5277 = vadd.f32 %v4607, %v5145
    %v5278 = vadd.f32 %v4608, %v5148
    %v5279 = vadd.f32 %v4609, %v5151
    %v5280 = vadd.f32 %v4610, %v5154
    %v5281 = vadd.f32 %v4611, %v5157
    %v5282 = vadd.f32 %v4612, %v5160
    %v5283 = vadd.f32 %v4613, %v5163
    %v5284 = vadd.f32 %v4614, %v5166
    %v5285 = vadd.f32 %v4615, %v5169
    %v5286 = vadd.f32 %v4616, %v5172
    %v5287 = vadd.f32 %v4617, %v5175
    %v5288 = vadd.f32 %v4618, %v5178
    %v5289 = vadd.f32 %v4619, %v5181
    %v5290 = vadd.f32 %v4620, %v5184
    %v5291 = vadd.f32 %v4621, %v5187
    %v5292 = vadd.f32 %v4622, %v5190
    %v5293 = vadd.f32 %v4623, %v5193
    %v5294 = vadd.f32 %v4624, %v5196
    %v5295 = vadd.f32 %v4625, %v5199
    %v5296 = vadd.f32 %v4626, %v5202
    %v5297 = vadd.f32 %v4627, %v5205
    %v5298 = vadd.f32 %v4628, %v5208
    %v5299 = vadd.f32 %v4629, %v5211
    %v5300 = vadd.f32 %v4630, %v5214
    %v5301 = vadd.f32 %v4631, %v5217
    %v5302 = vadd.f32 %v4632, %v5220
    %v5303 = vld [vmem:[%s0 + $0x27] sm:$0xff]
    %v5304 = vld [vmem:[%s0 + $0x2f] sm:$0xff]
    %v5305 = vld [vmem:[%s0 + $0x37] sm:$0xff]
    %v5306 = vld [vmem:[%s0 + $0x3f] sm:$0xff]
    %v5307 = vld [vmem:[%s0 + $0x47] sm:$0xff]
    %v5308 = vld [vmem:[%s0 + $0x4f] sm:$0xff]
    %v5309 = vld [vmem:[%s0 + $0x57] sm:$0xff]
    %v5310 = vld [vmem:[%s0 + $0x5f] sm:$0xff]
    %v5311 = vld [vmem:[%s0 + $0x67] sm:$0xff]
    %v5312 = vld [vmem:[%s0 + $0x6f] sm:$0xff]
    %v5313 = vld [vmem:[%s0 + $0x77] sm:$0xff]
    %v5314 = vld [vmem:[%s0 + $0x7f] sm:$0xff]
    %v5315 = vld [vmem:[%s0 + $0x87] sm:$0xff]
    %v5316 = vld [vmem:[%s0 + $0x8f] sm:$0xff]
    %v5317 = vld [vmem:[%s0 + $0x97] sm:$0xff]
    %v5318 = vld [vmem:[%s0 + $0x9f] sm:$0xff]
    %v5319 = vld [vmem:[%s0 + $0xa7] sm:$0xff]
    %v5320 = vld [vmem:[%s0 + $0xaf] sm:$0xff]
    %v5321 = vld [vmem:[%s0 + $0xb7] sm:$0xff]
    %v5322 = vld [vmem:[%s0 + $0xbf] sm:$0xff]
    %v5323 = vld [vmem:[%s0 + $0xc7] sm:$0xff]
    %v5324 = vld [vmem:[%s0 + $0xcf] sm:$0xff]
    %v5325 = vld [vmem:[%s0 + $0xd7] sm:$0xff]
    %v5326 = vld [vmem:[%s0 + $0xdf] sm:$0xff]
    %v5327 = vld [vmem:[%s0 + $0xe7] sm:$0xff]
    %v5328 = vld [vmem:[%s0 + $0xef] sm:$0xff]
    %v5329 = vld [vmem:[%s0 + $0xf7] sm:$0xff]
    %v5330 = vld [vmem:[%s0 + $0xff] sm:$0xff]
    %v5331 = vld [vmem:[%s0 + $0x107] sm:$0xff]
    %v5332 = vld [vmem:[%s0 + $0x10f] sm:$0xff]
    %v5333 = vld [vmem:[%s0 + $0x117] sm:$0xff]
    %v5334 = vld [vmem:[%s0 + $0x11f] sm:$0xff]
    %v5335 = vld [vmem:[%s0 + $0x127] sm:$0xff]
    %v5336 = vld [vmem:[%s0 + $0x12f] sm:$0xff]
    %v5337 = vld [vmem:[%s0 + $0x137] sm:$0xff]
    %v5338 = vld [vmem:[%s0 + $0x13f] sm:$0xff]
    %v5339 = vld [vmem:[%s0 + $0x147] sm:$0xff]
    %v5340 = vld [vmem:[%s0 + $0x14f] sm:$0xff]
    %v5341 = vld [vmem:[%s0 + $0x157] sm:$0xff]
    %v5342 = vld [vmem:[%s0 + $0x15f] sm:$0xff]
    %v5343 = vld [vmem:[%s0 + $0x167] sm:$0xff]
    %v5344 = vld [vmem:[%s0 + $0x16f] sm:$0xff]
    %v5345 = vld [vmem:[%s0 + $0x177] sm:$0xff]
    %v5346 = vld [vmem:[%s0 + $0x17f] sm:$0xff]
    %v5347 = vld [vmem:[%s0 + $0x187] sm:$0xff]
    %v5348 = vld [vmem:[%s0 + $0x18f] sm:$0xff]
    %v5349 = vld [vmem:[%s0 + $0x197] sm:$0xff]
    %v5350 = vld [vmem:[%s0 + $0x19f] sm:$0xff]
    %v5351 = vld [vmem:[%s0 + $0x1a7] sm:$0xff]
    %v5352 = vld [vmem:[%s0 + $0x1af] sm:$0xff]
    %v5353 = vld [vmem:[%s0 + $0x1b7] sm:$0xff]
    %v5354 = vld [vmem:[%s0 + $0x1bf] sm:$0xff]
    %v5355 = vld [vmem:[%s0 + $0x1c7] sm:$0xff]
    %v5356 = vld [vmem:[%s0 + $0x1cf] sm:$0xff]
    %v5357 = vld [vmem:[%s0 + $0x1d7] sm:$0xff]
    %v5358 = vld [vmem:[%s0 + $0x1df] sm:$0xff]
    %v5359 = vld [vmem:[%s0 + $0x1e7] sm:$0xff]
    %v5360 = vld [vmem:[%s0 + $0x1ef] sm:$0xff]
    %v5361 = vld [vmem:[%s0 + $0x1f7] sm:$0xff]
    %v5362 = vld [vmem:[%s0 + $0x1ff] sm:$0xff]
    %v5363 = vld [vmem:[%s0 + $0x207] sm:$0xff]
    %v5364 = vld [vmem:[%s0 + $0x20f] sm:$0xff]
    %v5365 = vld [vmem:[%s0 + $0x217] sm:$0xff]
    %v5366 = vld [vmem:[%s0 + $0x21f] sm:$0xff]
    %v5367 = vld [vmem:[%s0 + $0x227] sm:$0xff]
    %v5368 = vld [vmem:[%s0 + $0x22f] sm:$0xff]
    %v5369 = vld [vmem:[%s0 + $0x237] sm:$0xff]
    %v5370 = vld [vmem:[%s0 + $0x23f] sm:$0xff]
    %v5371 = vld [vmem:[%s0 + $0x247] sm:$0xff]
    %v5372 = vld [vmem:[%s0 + $0x24f] sm:$0xff]
    %v5373 = vld [vmem:[%s0 + $0x257] sm:$0xff]
    %v5374 = vld [vmem:[%s0 + $0x25f] sm:$0xff]
    %v5375 = vld [vmem:[%s0 + $0x267] sm:$0xff]
    %v5376 = vld [vmem:[%s0 + $0x26f] sm:$0xff]
    %v5377 = vld [vmem:[%s0 + $0x277] sm:$0xff]
    %v5378 = vld [vmem:[%s0 + $0x27f] sm:$0xff]
    %v5379 = vld [vmem:[%s0 + $0x287] sm:$0xff]
    %v5380 = vld [vmem:[%s0 + $0x28f] sm:$0xff]
    %v5381 = vld [vmem:[%s0 + $0x297] sm:$0xff]
    %v5382 = vld [vmem:[%s0 + $0x29f] sm:$0xff]
    %v5383 = vld [vmem:[%s0 + $0x2a7] sm:$0xff]
    %s5384 = scalar_lea.vmem %s1, 32
    %v5385 = vld [vmem:[%s5384] sm:$0x7]
    %v5387 = vsel %vm269, %v5303, 0
    %v5390 = vsel %vm269, %v5304, 0
    %v5393 = vsel %vm269, %v5305, 0
    %v5396 = vsel %vm269, %v5306, 0
    %v5399 = vsel %vm269, %v5307, 0
    %v5402 = vsel %vm269, %v5308, 0
    %v5405 = vsel %vm269, %v5309, 0
    %v5408 = vsel %vm269, %v5310, 0
    %v5411 = vsel %vm269, %v5311, 0
    %v5414 = vsel %vm269, %v5312, 0
    %v5417 = vsel %vm269, %v5313, 0
    %v5420 = vsel %vm269, %v5314, 0
    %v5423 = vsel %vm269, %v5315, 0
    %v5426 = vsel %vm269, %v5316, 0
    %v5429 = vsel %vm269, %v5317, 0
    %v5432 = vsel %vm269, %v5318, 0
    %v5435 = vsel %vm269, %v5319, 0
    %v5438 = vsel %vm269, %v5320, 0
    %v5441 = vsel %vm269, %v5321, 0
    %v5444 = vsel %vm269, %v5322, 0
    %v5447 = vsel %vm269, %v5323, 0
    %v5450 = vsel %vm269, %v5324, 0
    %v5453 = vsel %vm269, %v5325, 0
    %v5456 = vsel %vm269, %v5326, 0
    %v5459 = vsel %vm269, %v5327, 0
    %v5462 = vsel %vm269, %v5328, 0
    %v5465 = vsel %vm269, %v5329, 0
    %v5468 = vsel %vm269, %v5330, 0
    %v5471 = vsel %vm269, %v5331, 0
    %v5474 = vsel %vm269, %v5332, 0
    %v5477 = vsel %vm269, %v5333, 0
    %v5480 = vsel %vm269, %v5334, 0
    %v5483 = vsel %vm269, %v5335, 0
    %v5486 = vsel %vm269, %v5336, 0
    %v5489 = vsel %vm269, %v5337, 0
    %v5492 = vsel %vm269, %v5338, 0
    %v5495 = vsel %vm269, %v5339, 0
    %v5498 = vsel %vm269, %v5340, 0
    %v5501 = vsel %vm269, %v5341, 0
    %v5504 = vsel %vm269, %v5342, 0
    %v5507 = vsel %vm269, %v5343, 0
    %v5510 = vsel %vm269, %v5344, 0
    %v5513 = vsel %vm269, %v5345, 0
    %v5516 = vsel %vm269, %v5346, 0
    %v5519 = vsel %vm269, %v5347, 0
    %v5522 = vsel %vm269, %v5348, 0
    %v5525 = vsel %vm269, %v5349, 0
    %v5528 = vsel %vm269, %v5350, 0
    %v5531 = vsel %vm269, %v5351, 0
    %v5534 = vsel %vm269, %v5352, 0
    %v5537 = vsel %vm269, %v5353, 0
    %v5540 = vsel %vm269, %v5354, 0
    %v5543 = vsel %vm269, %v5355, 0
    %v5546 = vsel %vm269, %v5356, 0
    %v5549 = vsel %vm269, %v5357, 0
    %v5552 = vsel %vm269, %v5358, 0
    %v5555 = vsel %vm269, %v5359, 0
    %v5558 = vsel %vm269, %v5360, 0
    %v5561 = vsel %vm269, %v5361, 0
    %v5564 = vsel %vm269, %v5362, 0
    %v5567 = vsel %vm269, %v5363, 0
    %v5570 = vsel %vm269, %v5364, 0
    %v5573 = vsel %vm269, %v5365, 0
    %v5576 = vsel %vm269, %v5366, 0
    %v5579 = vsel %vm269, %v5367, 0
    %v5582 = vsel %vm269, %v5368, 0
    %v5585 = vsel %vm269, %v5369, 0
    %v5588 = vsel %vm269, %v5370, 0
    %v5591 = vsel %vm269, %v5371, 0
    %v5594 = vsel %vm269, %v5372, 0
    %v5597 = vsel %vm269, %v5373, 0
    %v5600 = vsel %vm269, %v5374, 0
    %v5603 = vsel %vm269, %v5375, 0
    %v5606 = vsel %vm269, %v5376, 0
    %v5609 = vsel %vm269, %v5377, 0
    %v5612 = vsel %vm269, %v5378, 0
    %v5615 = vsel %vm269, %v5379, 0
    %v5618 = vsel %vm269, %v5380, 0
    %v5621 = vsel %vm269, %v5381, 0
    %v5624 = vsel %vm269, %v5382, 0
    %v5627 = vsel %vm269, %v5383, 0
    %v5630 = vsel %vm513, %v5385, 0
    %5632 = vmatpush.msra.mxu0 0.0
    %5633 = vmatpush.msra.mxu0 0.0
    %5634 = vmatpush.msra.mxu0 0.0
    %5635 = vmatpush.msra.mxu0 0.0
    %5636 = vmatpush.msra.mxu0 0.0
    %5637 = vmatpush.msra.mxu0 0.0
    %5638 = vmatpush.msra.mxu0 0.0
    %5639 = vmatpush.msra.mxu0 0.0
    %5640 = vmatpush.msra.mxu0 0.0
    %5641 = vmatpush.msra.mxu0 0.0
    %5642 = vmatpush.msra.mxu0 0.0
    %5643 = vmatpush.msra.mxu0 0.0
    %5644 = vmatpush.msra.mxu0 0.0
    %5645 = vmatpush.msra.mxu0 0.0
    %5646 = vmatpush.msra.mxu0 0.0
    %5647 = vmatpush.msra.mxu0 %v5630
    %5648 = vmatmul.f32.gmra.mxu0 %v5387
    %v5649 = vpop.f32.mrf.mxu0
    %v5650 = vadd.f32 0.0, %v5649
    %5651 = vmatmul.f32.gmra.mxu0 %v5390
    %v5652 = vpop.f32.mrf.mxu0
    %v5653 = vadd.f32 0.0, %v5652
    %5654 = vmatmul.f32.gmra.mxu0 %v5393
    %v5655 = vpop.f32.mrf.mxu0
    %v5656 = vadd.f32 0.0, %v5655
    %5657 = vmatmul.f32.gmra.mxu0 %v5396
    %v5658 = vpop.f32.mrf.mxu0
    %v5659 = vadd.f32 0.0, %v5658
    %5660 = vmatmul.f32.gmra.mxu0 %v5399
    %v5661 = vpop.f32.mrf.mxu0
    %v5662 = vadd.f32 0.0, %v5661
    %5663 = vmatmul.f32.gmra.mxu0 %v5402
    %v5664 = vpop.f32.mrf.mxu0
    %v5665 = vadd.f32 0.0, %v5664
    %5666 = vmatmul.f32.gmra.mxu0 %v5405
    %v5667 = vpop.f32.mrf.mxu0
    %v5668 = vadd.f32 0.0, %v5667
    %5669 = vmatmul.f32.gmra.mxu0 %v5408
    %v5670 = vpop.f32.mrf.mxu0
    %v5671 = vadd.f32 0.0, %v5670
    %5672 = vmatmul.f32.gmra.mxu0 %v5411
    %v5673 = vpop.f32.mrf.mxu0
    %v5674 = vadd.f32 0.0, %v5673
    %5675 = vmatmul.f32.gmra.mxu0 %v5414
    %v5676 = vpop.f32.mrf.mxu0
    %v5677 = vadd.f32 0.0, %v5676
    %5678 = vmatmul.f32.gmra.mxu0 %v5417
    %v5679 = vpop.f32.mrf.mxu0
    %v5680 = vadd.f32 0.0, %v5679
    %5681 = vmatmul.f32.gmra.mxu0 %v5420
    %v5682 = vpop.f32.mrf.mxu0
    %v5683 = vadd.f32 0.0, %v5682
    %5684 = vmatmul.f32.gmra.mxu0 %v5423
    %v5685 = vpop.f32.mrf.mxu0
    %v5686 = vadd.f32 0.0, %v5685
    %5687 = vmatmul.f32.gmra.mxu0 %v5426
    %v5688 = vpop.f32.mrf.mxu0
    %v5689 = vadd.f32 0.0, %v5688
    %5690 = vmatmul.f32.gmra.mxu0 %v5429
    %v5691 = vpop.f32.mrf.mxu0
    %v5692 = vadd.f32 0.0, %v5691
    %5693 = vmatmul.f32.gmra.mxu0 %v5432
    %v5694 = vpop.f32.mrf.mxu0
    %v5695 = vadd.f32 0.0, %v5694
    %5696 = vmatmul.f32.gmra.mxu0 %v5435
    %v5697 = vpop.f32.mrf.mxu0
    %v5698 = vadd.f32 0.0, %v5697
    %5699 = vmatmul.f32.gmra.mxu0 %v5438
    %v5700 = vpop.f32.mrf.mxu0
    %v5701 = vadd.f32 0.0, %v5700
    %5702 = vmatmul.f32.gmra.mxu0 %v5441
    %v5703 = vpop.f32.mrf.mxu0
    %v5704 = vadd.f32 0.0, %v5703
    %5705 = vmatmul.f32.gmra.mxu0 %v5444
    %v5706 = vpop.f32.mrf.mxu0
    %v5707 = vadd.f32 0.0, %v5706
    %5708 = vmatmul.f32.gmra.mxu0 %v5447
    %v5709 = vpop.f32.mrf.mxu0
    %v5710 = vadd.f32 0.0, %v5709
    %5711 = vmatmul.f32.gmra.mxu0 %v5450
    %v5712 = vpop.f32.mrf.mxu0
    %v5713 = vadd.f32 0.0, %v5712
    %5714 = vmatmul.f32.gmra.mxu0 %v5453
    %v5715 = vpop.f32.mrf.mxu0
    %v5716 = vadd.f32 0.0, %v5715
    %5717 = vmatmul.f32.gmra.mxu0 %v5456
    %v5718 = vpop.f32.mrf.mxu0
    %v5719 = vadd.f32 0.0, %v5718
    %5720 = vmatmul.f32.gmra.mxu0 %v5459
    %v5721 = vpop.f32.mrf.mxu0
    %v5722 = vadd.f32 0.0, %v5721
    %5723 = vmatmul.f32.gmra.mxu0 %v5462
    %v5724 = vpop.f32.mrf.mxu0
    %v5725 = vadd.f32 0.0, %v5724
    %5726 = vmatmul.f32.gmra.mxu0 %v5465
    %v5727 = vpop.f32.mrf.mxu0
    %v5728 = vadd.f32 0.0, %v5727
    %5729 = vmatmul.f32.gmra.mxu0 %v5468
    %v5730 = vpop.f32.mrf.mxu0
    %v5731 = vadd.f32 0.0, %v5730
    %5732 = vmatmul.f32.gmra.mxu0 %v5471
    %v5733 = vpop.f32.mrf.mxu0
    %v5734 = vadd.f32 0.0, %v5733
    %5735 = vmatmul.f32.gmra.mxu0 %v5474
    %v5736 = vpop.f32.mrf.mxu0
    %v5737 = vadd.f32 0.0, %v5736
    %5738 = vmatmul.f32.gmra.mxu0 %v5477
    %v5739 = vpop.f32.mrf.mxu0
    %v5740 = vadd.f32 0.0, %v5739
    %5741 = vmatmul.f32.gmra.mxu0 %v5480
    %v5742 = vpop.f32.mrf.mxu0
    %v5743 = vadd.f32 0.0, %v5742
    %5744 = vmatmul.f32.gmra.mxu0 %v5483
    %v5745 = vpop.f32.mrf.mxu0
    %v5746 = vadd.f32 0.0, %v5745
    %5747 = vmatmul.f32.gmra.mxu0 %v5486
    %v5748 = vpop.f32.mrf.mxu0
    %v5749 = vadd.f32 0.0, %v5748
    %5750 = vmatmul.f32.gmra.mxu0 %v5489
    %v5751 = vpop.f32.mrf.mxu0
    %v5752 = vadd.f32 0.0, %v5751
    %5753 = vmatmul.f32.gmra.mxu0 %v5492
    %v5754 = vpop.f32.mrf.mxu0
    %v5755 = vadd.f32 0.0, %v5754
    %5756 = vmatmul.f32.gmra.mxu0 %v5495
    %v5757 = vpop.f32.mrf.mxu0
    %v5758 = vadd.f32 0.0, %v5757
    %5759 = vmatmul.f32.gmra.mxu0 %v5498
    %v5760 = vpop.f32.mrf.mxu0
    %v5761 = vadd.f32 0.0, %v5760
    %5762 = vmatmul.f32.gmra.mxu0 %v5501
    %v5763 = vpop.f32.mrf.mxu0
    %v5764 = vadd.f32 0.0, %v5763
    %5765 = vmatmul.f32.gmra.mxu0 %v5504
    %v5766 = vpop.f32.mrf.mxu0
    %v5767 = vadd.f32 0.0, %v5766
    %5768 = vmatmul.f32.gmra.mxu0 %v5507
    %v5769 = vpop.f32.mrf.mxu0
    %v5770 = vadd.f32 0.0, %v5769
    %5771 = vmatmul.f32.gmra.mxu0 %v5510
    %v5772 = vpop.f32.mrf.mxu0
    %v5773 = vadd.f32 0.0, %v5772
    %5774 = vmatmul.f32.gmra.mxu0 %v5513
    %v5775 = vpop.f32.mrf.mxu0
    %v5776 = vadd.f32 0.0, %v5775
    %5777 = vmatmul.f32.gmra.mxu0 %v5516
    %v5778 = vpop.f32.mrf.mxu0
    %v5779 = vadd.f32 0.0, %v5778
    %5780 = vmatmul.f32.gmra.mxu0 %v5519
    %v5781 = vpop.f32.mrf.mxu0
    %v5782 = vadd.f32 0.0, %v5781
    %5783 = vmatmul.f32.gmra.mxu0 %v5522
    %v5784 = vpop.f32.mrf.mxu0
    %v5785 = vadd.f32 0.0, %v5784
    %5786 = vmatmul.f32.gmra.mxu0 %v5525
    %v5787 = vpop.f32.mrf.mxu0
    %v5788 = vadd.f32 0.0, %v5787
    %5789 = vmatmul.f32.gmra.mxu0 %v5528
    %v5790 = vpop.f32.mrf.mxu0
    %v5791 = vadd.f32 0.0, %v5790
    %5792 = vmatmul.f32.gmra.mxu0 %v5531
    %v5793 = vpop.f32.mrf.mxu0
    %v5794 = vadd.f32 0.0, %v5793
    %5795 = vmatmul.f32.gmra.mxu0 %v5534
    %v5796 = vpop.f32.mrf.mxu0
    %v5797 = vadd.f32 0.0, %v5796
    %5798 = vmatmul.f32.gmra.mxu0 %v5537
    %v5799 = vpop.f32.mrf.mxu0
    %v5800 = vadd.f32 0.0, %v5799
    %5801 = vmatmul.f32.gmra.mxu0 %v5540
    %v5802 = vpop.f32.mrf.mxu0
    %v5803 = vadd.f32 0.0, %v5802
    %5804 = vmatmul.f32.gmra.mxu0 %v5543
    %v5805 = vpop.f32.mrf.mxu0
    %v5806 = vadd.f32 0.0, %v5805
    %5807 = vmatmul.f32.gmra.mxu0 %v5546
    %v5808 = vpop.f32.mrf.mxu0
    %v5809 = vadd.f32 0.0, %v5808
    %5810 = vmatmul.f32.gmra.mxu0 %v5549
    %v5811 = vpop.f32.mrf.mxu0
    %v5812 = vadd.f32 0.0, %v5811
    %5813 = vmatmul.f32.gmra.mxu0 %v5552
    %v5814 = vpop.f32.mrf.mxu0
    %v5815 = vadd.f32 0.0, %v5814
    %5816 = vmatmul.f32.gmra.mxu0 %v5555
    %v5817 = vpop.f32.mrf.mxu0
    %v5818 = vadd.f32 0.0, %v5817
    %5819 = vmatmul.f32.gmra.mxu0 %v5558
    %v5820 = vpop.f32.mrf.mxu0
    %v5821 = vadd.f32 0.0, %v5820
    %5822 = vmatmul.f32.gmra.mxu0 %v5561
    %v5823 = vpop.f32.mrf.mxu0
    %v5824 = vadd.f32 0.0, %v5823
    %5825 = vmatmul.f32.gmra.mxu0 %v5564
    %v5826 = vpop.f32.mrf.mxu0
    %v5827 = vadd.f32 0.0, %v5826
    %5828 = vmatmul.f32.gmra.mxu0 %v5567
    %v5829 = vpop.f32.mrf.mxu0
    %v5830 = vadd.f32 0.0, %v5829
    %5831 = vmatmul.f32.gmra.mxu0 %v5570
    %v5832 = vpop.f32.mrf.mxu0
    %v5833 = vadd.f32 0.0, %v5832
    %5834 = vmatmul.f32.gmra.mxu0 %v5573
    %v5835 = vpop.f32.mrf.mxu0
    %v5836 = vadd.f32 0.0, %v5835
    %5837 = vmatmul.f32.gmra.mxu0 %v5576
    %v5838 = vpop.f32.mrf.mxu0
    %v5839 = vadd.f32 0.0, %v5838
    %5840 = vmatmul.f32.gmra.mxu0 %v5579
    %v5841 = vpop.f32.mrf.mxu0
    %v5842 = vadd.f32 0.0, %v5841
    %5843 = vmatmul.f32.gmra.mxu0 %v5582
    %v5844 = vpop.f32.mrf.mxu0
    %v5845 = vadd.f32 0.0, %v5844
    %5846 = vmatmul.f32.gmra.mxu0 %v5585
    %v5847 = vpop.f32.mrf.mxu0
    %v5848 = vadd.f32 0.0, %v5847
    %5849 = vmatmul.f32.gmra.mxu0 %v5588
    %v5850 = vpop.f32.mrf.mxu0
    %v5851 = vadd.f32 0.0, %v5850
    %5852 = vmatmul.f32.gmra.mxu0 %v5591
    %v5853 = vpop.f32.mrf.mxu0
    %v5854 = vadd.f32 0.0, %v5853
    %5855 = vmatmul.f32.gmra.mxu0 %v5594
    %v5856 = vpop.f32.mrf.mxu0
    %v5857 = vadd.f32 0.0, %v5856
    %5858 = vmatmul.f32.gmra.mxu0 %v5597
    %v5859 = vpop.f32.mrf.mxu0
    %v5860 = vadd.f32 0.0, %v5859
    %5861 = vmatmul.f32.gmra.mxu0 %v5600
    %v5862 = vpop.f32.mrf.mxu0
    %v5863 = vadd.f32 0.0, %v5862
    %5864 = vmatmul.f32.gmra.mxu0 %v5603
    %v5865 = vpop.f32.mrf.mxu0
    %v5866 = vadd.f32 0.0, %v5865
    %5867 = vmatmul.f32.gmra.mxu0 %v5606
    %v5868 = vpop.f32.mrf.mxu0
    %v5869 = vadd.f32 0.0, %v5868
    %5870 = vmatmul.f32.gmra.mxu0 %v5609
    %v5871 = vpop.f32.mrf.mxu0
    %v5872 = vadd.f32 0.0, %v5871
    %5873 = vmatmul.f32.gmra.mxu0 %v5612
    %v5874 = vpop.f32.mrf.mxu0
    %v5875 = vadd.f32 0.0, %v5874
    %5876 = vmatmul.f32.gmra.mxu0 %v5615
    %v5877 = vpop.f32.mrf.mxu0
    %v5878 = vadd.f32 0.0, %v5877
    %5879 = vmatmul.f32.gmra.mxu0 %v5618
    %v5880 = vpop.f32.mrf.mxu0
    %v5881 = vadd.f32 0.0, %v5880
    %5882 = vmatmul.f32.gmra.mxu0 %v5621
    %v5883 = vpop.f32.mrf.mxu0
    %v5884 = vadd.f32 0.0, %v5883
    %5885 = vmatmul.f32.gmra.mxu0 %v5624
    %v5886 = vpop.f32.mrf.mxu0
    %v5887 = vadd.f32 0.0, %v5886
    %5888 = vmatmul.f32.gmra.mxu0 %v5627
    %v5889 = vpop.f32.mrf.mxu0
    %v5890 = vadd.f32 0.0, %v5889
    %5891 = vdwg.mxu0
    %v5892 = vadd.f32 %v5222, %v5650
    %v5893 = vadd.f32 %v5223, %v5653
    %v5894 = vadd.f32 %v5224, %v5656
    %v5895 = vadd.f32 %v5225, %v5659
    %v5896 = vadd.f32 %v5226, %v5662
    %v5897 = vadd.f32 %v5227, %v5665
    %v5898 = vadd.f32 %v5228, %v5668
    %v5899 = vadd.f32 %v5229, %v5671
    %v5900 = vadd.f32 %v5230, %v5674
    %v5901 = vadd.f32 %v5231, %v5677
    %v5902 = vadd.f32 %v5232, %v5680
    %v5903 = vadd.f32 %v5233, %v5683
    %v5904 = vadd.f32 %v5234, %v5686
    %v5905 = vadd.f32 %v5235, %v5689
    %v5906 = vadd.f32 %v5236, %v5692
    %v5907 = vadd.f32 %v5237, %v5695
    %v5908 = vadd.f32 %v5238, %v5698
    %v5909 = vadd.f32 %v5239, %v5701
    %v5910 = vadd.f32 %v5240, %v5704
    %v5911 = vadd.f32 %v5241, %v5707
    %v5912 = vadd.f32 %v5242, %v5710
    %v5913 = vadd.f32 %v5243, %v5713
    %v5914 = vadd.f32 %v5244, %v5716
    %v5915 = vadd.f32 %v5245, %v5719
    %v5916 = vadd.f32 %v5246, %v5722
    %v5917 = vadd.f32 %v5247, %v5725
    %v5918 = vadd.f32 %v5248, %v5728
    %v5919 = vadd.f32 %v5249, %v5731
    %v5920 = vadd.f32 %v5250, %v5734
    %v5921 = vadd.f32 %v5251, %v5737
    %v5922 = vadd.f32 %v5252, %v5740
    %v5923 = vadd.f32 %v5253, %v5743
    %v5924 = vadd.f32 %v5254, %v5746
    %v5925 = vadd.f32 %v5255, %v5749
    %v5926 = vadd.f32 %v5256, %v5752
    %v5927 = vadd.f32 %v5257, %v5755
    %v5928 = vadd.f32 %v5258, %v5758
    %v5929 = vadd.f32 %v5259, %v5761
    %v5930 = vadd.f32 %v5260, %v5764
    %v5931 = vadd.f32 %v5261, %v5767
    %v5932 = vadd.f32 %v5262, %v5770
    %v5933 = vadd.f32 %v5263, %v5773
    %v5934 = vadd.f32 %v5264, %v5776
    %v5935 = vadd.f32 %v5265, %v5779
    %v5936 = vadd.f32 %v5266, %v5782
    %v5937 = vadd.f32 %v5267, %v5785
    %v5938 = vadd.f32 %v5268, %v5788
    %v5939 = vadd.f32 %v5269, %v5791
    %v5940 = vadd.f32 %v5270, %v5794
    %v5941 = vadd.f32 %v5271, %v5797
    %v5942 = vadd.f32 %v5272, %v5800
    %v5943 = vadd.f32 %v5273, %v5803
    %v5944 = vadd.f32 %v5274, %v5806
    %v5945 = vadd.f32 %v5275, %v5809
    %v5946 = vadd.f32 %v5276, %v5812
    %v5947 = vadd.f32 %v5277, %v5815
    %v5948 = vadd.f32 %v5278, %v5818
    %v5949 = vadd.f32 %v5279, %v5821
    %v5950 = vadd.f32 %v5280, %v5824
    %v5951 = vadd.f32 %v5281, %v5827
    %v5952 = vadd.f32 %v5282, %v5830
    %v5953 = vadd.f32 %v5283, %v5833
    %v5954 = vadd.f32 %v5284, %v5836
    %v5955 = vadd.f32 %v5285, %v5839
    %v5956 = vadd.f32 %v5286, %v5842
    %v5957 = vadd.f32 %v5287, %v5845
    %v5958 = vadd.f32 %v5288, %v5848
    %v5959 = vadd.f32 %v5289, %v5851
    %v5960 = vadd.f32 %v5290, %v5854
    %v5961 = vadd.f32 %v5291, %v5857
    %v5962 = vadd.f32 %v5292, %v5860
    %v5963 = vadd.f32 %v5293, %v5863
    %v5964 = vadd.f32 %v5294, %v5866
    %v5965 = vadd.f32 %v5295, %v5869
    %v5966 = vadd.f32 %v5296, %v5872
    %v5967 = vadd.f32 %v5297, %v5875
    %v5968 = vadd.f32 %v5298, %v5878
    %v5969 = vadd.f32 %v5299, %v5881
    %v5970 = vadd.f32 %v5300, %v5884
    %v5971 = vadd.f32 %v5301, %v5887
    %v5972 = vadd.f32 %v5302, %v5890
    %v5973 = vperm.slane %v103, 0
    %v5974 = vadd.f32 %v5892, %v5973
    %v5975 = vadd.f32 %v5893, %v5973
    %v5976 = vadd.f32 %v5894, %v5973
    %v5977 = vadd.f32 %v5895, %v5973
    %v5978 = vadd.f32 %v5896, %v5973
    %v5979 = vadd.f32 %v5897, %v5973
    %v5980 = vadd.f32 %v5898, %v5973
    %v5981 = vadd.f32 %v5899, %v5973
    %v5982 = vadd.f32 %v5900, %v5973
    %v5983 = vadd.f32 %v5901, %v5973
    %v5984 = vadd.f32 %v5902, %v5973
    %v5985 = vadd.f32 %v5903, %v5973
    %v5986 = vadd.f32 %v5904, %v5973
    %v5987 = vadd.f32 %v5905, %v5973
    %v5988 = vadd.f32 %v5906, %v5973
    %v5989 = vadd.f32 %v5907, %v5973
    %v5990 = vadd.f32 %v5908, %v5973
    %v5991 = vadd.f32 %v5909, %v5973
    %v5992 = vadd.f32 %v5910, %v5973
    %v5993 = vadd.f32 %v5911, %v5973
    %v5994 = vadd.f32 %v5912, %v5973
    %v5995 = vadd.f32 %v5913, %v5973
    %v5996 = vadd.f32 %v5914, %v5973
    %v5997 = vadd.f32 %v5915, %v5973
    %v5998 = vadd.f32 %v5916, %v5973
    %v5999 = vadd.f32 %v5917, %v5973
    %v6000 = vadd.f32 %v5918, %v5973
    %v6001 = vadd.f32 %v5919, %v5973
    %v6002 = vadd.f32 %v5920, %v5973
    %v6003 = vadd.f32 %v5921, %v5973
    %v6004 = vadd.f32 %v5922, %v5973
    %v6005 = vadd.f32 %v5923, %v5973
    %v6006 = vadd.f32 %v5924, %v5973
    %v6007 = vadd.f32 %v5925, %v5973
    %v6008 = vadd.f32 %v5926, %v5973
    %v6009 = vadd.f32 %v5927, %v5973
    %v6010 = vadd.f32 %v5928, %v5973
    %v6011 = vadd.f32 %v5929, %v5973
    %v6012 = vadd.f32 %v5930, %v5973
    %v6013 = vadd.f32 %v5931, %v5973
    %v6014 = vadd.f32 %v5932, %v5973
    %v6015 = vadd.f32 %v5933, %v5973
    %v6016 = vadd.f32 %v5934, %v5973
    %v6017 = vadd.f32 %v5935, %v5973
    %v6018 = vadd.f32 %v5936, %v5973
    %v6019 = vadd.f32 %v5937, %v5973
    %v6020 = vadd.f32 %v5938, %v5973
    %v6021 = vadd.f32 %v5939, %v5973
    %v6022 = vadd.f32 %v5940, %v5973
    %v6023 = vadd.f32 %v5941, %v5973
    %v6024 = vadd.f32 %v5942, %v5973
    %v6025 = vadd.f32 %v5943, %v5973
    %v6026 = vadd.f32 %v5944, %v5973
    %v6027 = vadd.f32 %v5945, %v5973
    %v6028 = vadd.f32 %v5946, %v5973
    %v6029 = vadd.f32 %v5947, %v5973
    %v6030 = vadd.f32 %v5948, %v5973
    %v6031 = vadd.f32 %v5949, %v5973
    %v6032 = vadd.f32 %v5950, %v5973
    %v6033 = vadd.f32 %v5951, %v5973
    %v6034 = vadd.f32 %v5952, %v5973
    %v6035 = vadd.f32 %v5953, %v5973
    %v6036 = vadd.f32 %v5954, %v5973
    %v6037 = vadd.f32 %v5955, %v5973
    %v6038 = vadd.f32 %v5956, %v5973
    %v6039 = vadd.f32 %v5957, %v5973
    %v6040 = vadd.f32 %v5958, %v5973
    %v6041 = vadd.f32 %v5959, %v5973
    %v6042 = vadd.f32 %v5960, %v5973
    %v6043 = vadd.f32 %v5961, %v5973
    %v6044 = vadd.f32 %v5962, %v5973
    %v6045 = vadd.f32 %v5963, %v5973
    %v6046 = vadd.f32 %v5964, %v5973
    %v6047 = vadd.f32 %v5965, %v5973
    %v6048 = vadd.f32 %v5966, %v5973
    %v6049 = vadd.f32 %v5967, %v5973
    %v6050 = vadd.f32 %v5968, %v5973
    %v6051 = vadd.f32 %v5969, %v5973
    %v6052 = vadd.f32 %v5970, %v5973
    %v6053 = vadd.f32 %v5971, %v5973
    %v6054 = vadd.f32 %v5972, %v5973
    %v6055 = vmax.f32 %v5974, 0.0
    %v6056 = vmax.f32 %v5975, 0.0
    %v6057 = vmax.f32 %v5976, 0.0
    %v6058 = vmax.f32 %v5977, 0.0
    %v6059 = vmax.f32 %v5978, 0.0
    %v6060 = vmax.f32 %v5979, 0.0
    %v6061 = vmax.f32 %v5980, 0.0
    %v6062 = vmax.f32 %v5981, 0.0
    %v6063 = vmax.f32 %v5982, 0.0
    %v6064 = vmax.f32 %v5983, 0.0
    %v6065 = vmax.f32 %v5984, 0.0
    %v6066 = vmax.f32 %v5985, 0.0
    %v6067 = vmax.f32 %v5986, 0.0
    %v6068 = vmax.f32 %v5987, 0.0
    %v6069 = vmax.f32 %v5988, 0.0
    %v6070 = vmax.f32 %v5989, 0.0
    %v6071 = vmax.f32 %v5990, 0.0
    %v6072 = vmax.f32 %v5991, 0.0
    %v6073 = vmax.f32 %v5992, 0.0
    %v6074 = vmax.f32 %v5993, 0.0
    %v6075 = vmax.f32 %v5994, 0.0
    %v6076 = vmax.f32 %v5995, 0.0
    %v6077 = vmax.f32 %v5996, 0.0
    %v6078 = vmax.f32 %v5997, 0.0
    %v6079 = vmax.f32 %v5998, 0.0
    %v6080 = vmax.f32 %v5999, 0.0
    %v6081 = vmax.f32 %v6000, 0.0
    %v6082 = vmax.f32 %v6001, 0.0
    %v6083 = vmax.f32 %v6002, 0.0
    %v6084 = vmax.f32 %v6003, 0.0
    %v6085 = vmax.f32 %v6004, 0.0
    %v6086 = vmax.f32 %v6005, 0.0
    %v6087 = vmax.f32 %v6006, 0.0
    %v6088 = vmax.f32 %v6007, 0.0
    %v6089 = vmax.f32 %v6008, 0.0
    %v6090 = vmax.f32 %v6009, 0.0
    %v6091 = vmax.f32 %v6010, 0.0
    %v6092 = vmax.f32 %v6011, 0.0
    %v6093 = vmax.f32 %v6012, 0.0
    %v6094 = vmax.f32 %v6013, 0.0
    %v6095 = vmax.f32 %v6014, 0.0
    %v6096 = vmax.f32 %v6015, 0.0
    %v6097 = vmax.f32 %v6016, 0.0
    %v6098 = vmax.f32 %v6017, 0.0
    %v6099 = vmax.f32 %v6018, 0.0
    %v6100 = vmax.f32 %v6019, 0.0
    %v6101 = vmax.f32 %v6020, 0.0
    %v6102 = vmax.f32 %v6021, 0.0
    %v6103 = vmax.f32 %v6022, 0.0
    %v6104 = vmax.f32 %v6023, 0.0
    %v6105 = vmax.f32 %v6024, 0.0
    %v6106 = vmax.f32 %v6025, 0.0
    %v6107 = vmax.f32 %v6026, 0.0
    %v6108 = vmax.f32 %v6027, 0.0
    %v6109 = vmax.f32 %v6028, 0.0
    %v6110 = vmax.f32 %v6029, 0.0
    %v6111 = vmax.f32 %v6030, 0.0
    %v6112 = vmax.f32 %v6031, 0.0
    %v6113 = vmax.f32 %v6032, 0.0
    %v6114 = vmax.f32 %v6033, 0.0
    %v6115 = vmax.f32 %v6034, 0.0
    %v6116 = vmax.f32 %v6035, 0.0
    %v6117 = vmax.f32 %v6036, 0.0
    %v6118 = vmax.f32 %v6037, 0.0
    %v6119 = vmax.f32 %v6038, 0.0
    %v6120 = vmax.f32 %v6039, 0.0
    %v6121 = vmax.f32 %v6040, 0.0
    %v6122 = vmax.f32 %v6041, 0.0
    %v6123 = vmax.f32 %v6042, 0.0
    %v6124 = vmax.f32 %v6043, 0.0
    %v6125 = vmax.f32 %v6044, 0.0
    %v6126 = vmax.f32 %v6045, 0.0
    %v6127 = vmax.f32 %v6046, 0.0
    %v6128 = vmax.f32 %v6047, 0.0
    %v6129 = vmax.f32 %v6048, 0.0
    %v6130 = vmax.f32 %v6049, 0.0
    %v6131 = vmax.f32 %v6050, 0.0
    %v6132 = vmax.f32 %v6051, 0.0
    %v6133 = vmax.f32 %v6052, 0.0
    %v6134 = vmax.f32 %v6053, 0.0
    %v6135 = vmax.f32 %v6054, 0.0
    %vm6136 = vcmask 130048
    %6137 = vst.msk [vmem:[#allocation5] sm:$0xff] %vm6136, %v6055
    %6138 = vst.msk [vmem:[#allocation5 + $0x8] sm:$0xff] %vm6136, %v6056
    %6139 = vst.msk [vmem:[#allocation5 + $0x10] sm:$0xff] %vm6136, %v6057
    %6140 = vst.msk [vmem:[#allocation5 + $0x18] sm:$0xff] %vm6136, %v6058
    %6141 = vst.msk [vmem:[#allocation5 + $0x20] sm:$0xff] %vm6136, %v6059
    %6142 = vst.msk [vmem:[#allocation5 + $0x28] sm:$0xff] %vm6136, %v6060
    %6143 = vst.msk [vmem:[#allocation5 + $0x30] sm:$0xff] %vm6136, %v6061
    %6144 = vst.msk [vmem:[#allocation5 + $0x38] sm:$0xff] %vm6136, %v6062
    %6145 = vst.msk [vmem:[#allocation5 + $0x40] sm:$0xff] %vm6136, %v6063
    %6146 = vst.msk [vmem:[#allocation5 + $0x48] sm:$0xff] %vm6136, %v6064
    %6147 = vst.msk [vmem:[#allocation5 + $0x50] sm:$0xff] %vm6136, %v6065
    %6148 = vst.msk [vmem:[#allocation5 + $0x58] sm:$0xff] %vm6136, %v6066
    %6149 = vst.msk [vmem:[#allocation5 + $0x60] sm:$0xff] %vm6136, %v6067
    %6150 = vst.msk [vmem:[#allocation5 + $0x68] sm:$0xff] %vm6136, %v6068
    %6151 = vst.msk [vmem:[#allocation5 + $0x70] sm:$0xff] %vm6136, %v6069
    %6152 = vst.msk [vmem:[#allocation5 + $0x78] sm:$0xff] %vm6136, %v6070
    %6153 = vst.msk [vmem:[#allocation5 + $0x80] sm:$0xff] %vm6136, %v6071
    %6154 = vst.msk [vmem:[#allocation5 + $0x88] sm:$0xff] %vm6136, %v6072
    %6155 = vst.msk [vmem:[#allocation5 + $0x90] sm:$0xff] %vm6136, %v6073
    %6156 = vst.msk [vmem:[#allocation5 + $0x98] sm:$0xff] %vm6136, %v6074
    %6157 = vst.msk [vmem:[#allocation5 + $0xa0] sm:$0xff] %vm6136, %v6075
    %6158 = vst.msk [vmem:[#allocation5 + $0xa8] sm:$0xff] %vm6136, %v6076
    %6159 = vst.msk [vmem:[#allocation5 + $0xb0] sm:$0xff] %vm6136, %v6077
    %6160 = vst.msk [vmem:[#allocation5 + $0xb8] sm:$0xff] %vm6136, %v6078
    %6161 = vst.msk [vmem:[#allocation5 + $0xc0] sm:$0xff] %vm6136, %v6079
    %6162 = vst.msk [vmem:[#allocation5 + $0xc8] sm:$0xff] %vm6136, %v6080
    %6163 = vst.msk [vmem:[#allocation5 + $0xd0] sm:$0xff] %vm6136, %v6081
    %6164 = vst.msk [vmem:[#allocation5 + $0xd8] sm:$0xff] %vm6136, %v6082
    %6165 = vst.msk [vmem:[#allocation5 + $0xe0] sm:$0xff] %vm6136, %v6083
    %6166 = vst.msk [vmem:[#allocation5 + $0xe8] sm:$0xff] %vm6136, %v6084
    %6167 = vst.msk [vmem:[#allocation5 + $0xf0] sm:$0xff] %vm6136, %v6085
    %6168 = vst.msk [vmem:[#allocation5 + $0xf8] sm:$0xff] %vm6136, %v6086
    %6169 = vst.msk [vmem:[#allocation5 + $0x100] sm:$0xff] %vm6136, %v6087
    %6170 = vst.msk [vmem:[#allocation5 + $0x108] sm:$0xff] %vm6136, %v6088
    %6171 = vst.msk [vmem:[#allocation5 + $0x110] sm:$0xff] %vm6136, %v6089
    %6172 = vst.msk [vmem:[#allocation5 + $0x118] sm:$0xff] %vm6136, %v6090
    %6173 = vst.msk [vmem:[#allocation5 + $0x120] sm:$0xff] %vm6136, %v6091
    %6174 = vst.msk [vmem:[#allocation5 + $0x128] sm:$0xff] %vm6136, %v6092
    %6175 = vst.msk [vmem:[#allocation5 + $0x130] sm:$0xff] %vm6136, %v6093
    %6176 = vst.msk [vmem:[#allocation5 + $0x138] sm:$0xff] %vm6136, %v6094
    %6177 = vst.msk [vmem:[#allocation5 + $0x140] sm:$0xff] %vm6136, %v6095
    %6178 = vst.msk [vmem:[#allocation5 + $0x148] sm:$0xff] %vm6136, %v6096
    %6179 = vst.msk [vmem:[#allocation5 + $0x150] sm:$0xff] %vm6136, %v6097
    %6180 = vst.msk [vmem:[#allocation5 + $0x158] sm:$0xff] %vm6136, %v6098
    %6181 = vst.msk [vmem:[#allocation5 + $0x160] sm:$0xff] %vm6136, %v6099
    %6182 = vst.msk [vmem:[#allocation5 + $0x168] sm:$0xff] %vm6136, %v6100
    %6183 = vst.msk [vmem:[#allocation5 + $0x170] sm:$0xff] %vm6136, %v6101
    %6184 = vst.msk [vmem:[#allocation5 + $0x178] sm:$0xff] %vm6136, %v6102
    %6185 = vst.msk [vmem:[#allocation5 + $0x180] sm:$0xff] %vm6136, %v6103
    %6186 = vst.msk [vmem:[#allocation5 + $0x188] sm:$0xff] %vm6136, %v6104
    %6187 = vst.msk [vmem:[#allocation5 + $0x190] sm:$0xff] %vm6136, %v6105
    %6188 = vst.msk [vmem:[#allocation5 + $0x198] sm:$0xff] %vm6136, %v6106
    %6189 = vst.msk [vmem:[#allocation5 + $0x1a0] sm:$0xff] %vm6136, %v6107
    %6190 = vst.msk [vmem:[#allocation5 + $0x1a8] sm:$0xff] %vm6136, %v6108
    %6191 = vst.msk [vmem:[#allocation5 + $0x1b0] sm:$0xff] %vm6136, %v6109
    %6192 = vst.msk [vmem:[#allocation5 + $0x1b8] sm:$0xff] %vm6136, %v6110
    %6193 = vst.msk [vmem:[#allocation5 + $0x1c0] sm:$0xff] %vm6136, %v6111
    %6194 = vst.msk [vmem:[#allocation5 + $0x1c8] sm:$0xff] %vm6136, %v6112
    %6195 = vst.msk [vmem:[#allocation5 + $0x1d0] sm:$0xff] %vm6136, %v6113
    %6196 = vst.msk [vmem:[#allocation5 + $0x1d8] sm:$0xff] %vm6136, %v6114
    %6197 = vst.msk [vmem:[#allocation5 + $0x1e0] sm:$0xff] %vm6136, %v6115
    %6198 = vst.msk [vmem:[#allocation5 + $0x1e8] sm:$0xff] %vm6136, %v6116
    %6199 = vst.msk [vmem:[#allocation5 + $0x1f0] sm:$0xff] %vm6136, %v6117
    %6200 = vst.msk [vmem:[#allocation5 + $0x1f8] sm:$0xff] %vm6136, %v6118
    %6201 = vst.msk [vmem:[#allocation5 + $0x200] sm:$0xff] %vm6136, %v6119
    %6202 = vst.msk [vmem:[#allocation5 + $0x208] sm:$0xff] %vm6136, %v6120
    %6203 = vst.msk [vmem:[#allocation5 + $0x210] sm:$0xff] %vm6136, %v6121
    %6204 = vst.msk [vmem:[#allocation5 + $0x218] sm:$0xff] %vm6136, %v6122
    %6205 = vst.msk [vmem:[#allocation5 + $0x220] sm:$0xff] %vm6136, %v6123
    %6206 = vst.msk [vmem:[#allocation5 + $0x228] sm:$0xff] %vm6136, %v6124
    %6207 = vst.msk [vmem:[#allocation5 + $0x230] sm:$0xff] %vm6136, %v6125
    %6208 = vst.msk [vmem:[#allocation5 + $0x238] sm:$0xff] %vm6136, %v6126
    %6209 = vst.msk [vmem:[#allocation5 + $0x240] sm:$0xff] %vm6136, %v6127
    %6210 = vst.msk [vmem:[#allocation5 + $0x248] sm:$0xff] %vm6136, %v6128
    %6211 = vst.msk [vmem:[#allocation5 + $0x250] sm:$0xff] %vm6136, %v6129
    %6212 = vst.msk [vmem:[#allocation5 + $0x258] sm:$0xff] %vm6136, %v6130
    %6213 = vst.msk [vmem:[#allocation5 + $0x260] sm:$0xff] %vm6136, %v6131
    %6214 = vst.msk [vmem:[#allocation5 + $0x268] sm:$0xff] %vm6136, %v6132
    %6215 = vst.msk [vmem:[#allocation5 + $0x270] sm:$0xff] %vm6136, %v6133
    %6216 = vst.msk [vmem:[#allocation5 + $0x278] sm:$0xff] %vm6136, %v6134
    %6217 = vst.msk [vmem:[#allocation5 + $0x280] sm:$0xff] %vm6136, %v6135
    %s6218 = scalar_lea.vmem [#allocation5], 19
    %v6219 = vld [vmem:[%s6218] ss:$2 sm:$0xff]
    %s6220 = scalar_lea.vmem [#allocation5], 20
    %v6221 = vld [vmem:[%s6220] ss:$2 sm:$0xff]
    %v6222 = vmax.f32 %v6219, %v6221
    %s6223 = scalar_lea.vmem [#allocation5], 37
    %v6224 = vld [vmem:[%s6223] ss:$2 sm:$0xff]
    %s6225 = scalar_lea.vmem [#allocation5], 38
    %v6226 = vld [vmem:[%s6225] ss:$2 sm:$0xff]
    %v6227 = vmax.f32 %v6224, %v6226
    %v6228 = vmax.f32 %v6222, %v6227
    %6229 = vst.msk [vmem:[#allocation2 + $0x17] sm:$0xff] %vm6136, %v6228
    %s6230 = scalar_lea.vmem [#allocation5], 55
    %v6231 = vld [vmem:[%s6230] ss:$2 sm:$0xff]
    %s6232 = scalar_lea.vmem [#allocation5], 56
    %v6233 = vld [vmem:[%s6232] ss:$2 sm:$0xff]
    %v6234 = vmax.f32 %v6231, %v6233
    %s6235 = scalar_lea.vmem [#allocation5], 73
    %v6236 = vld [vmem:[%s6235] ss:$2 sm:$0xff]
    %s6237 = scalar_lea.vmem [#allocation5], 74
    %v6238 = vld [vmem:[%s6237] ss:$2 sm:$0xff]
    %v6239 = vmax.f32 %v6236, %v6238
    %v6240 = vmax.f32 %v6234, %v6239
    %6241 = vst.msk [vmem:[#allocation2 + $0x21] sm:$0xff] %vm6136, %v6240
    %s6242 = scalar_lea.vmem [#allocation5], 91
    %v6243 = vld [vmem:[%s6242] ss:$2 sm:$0xff]
    %s6244 = scalar_lea.vmem [#allocation5], 92
    %v6245 = vld [vmem:[%s6244] ss:$2 sm:$0xff]
    %v6246 = vmax.f32 %v6243, %v6245
    %s6247 = scalar_lea.vmem [#allocation5], 109
    %v6248 = vld [vmem:[%s6247] ss:$2 sm:$0xff]
    %s6249 = scalar_lea.vmem [#allocation5], 110
    %v6250 = vld [vmem:[%s6249] ss:$2 sm:$0xff]
    %v6251 = vmax.f32 %v6248, %v6250
    %v6252 = vmax.f32 %v6246, %v6251
    %6253 = vst.msk [vmem:[#allocation2 + $0x2b] sm:$0xff] %vm6136, %v6252
    %s6254 = scalar_lea.vmem [#allocation5], 127
    %v6255 = vld [vmem:[%s6254] ss:$2 sm:$0xff]
    %s6256 = scalar_lea.vmem [#allocation5], 128
    %v6257 = vld [vmem:[%s6256] ss:$2 sm:$0xff]
    %v6258 = vmax.f32 %v6255, %v6257
    %s6259 = scalar_lea.vmem [#allocation5], 145
    %v6260 = vld [vmem:[%s6259] ss:$2 sm:$0xff]
    %s6261 = scalar_lea.vmem [#allocation5], 146
    %v6262 = vld [vmem:[%s6261] ss:$2 sm:$0xff]
    %v6263 = vmax.f32 %v6260, %v6262
    %v6264 = vmax.f32 %v6258, %v6263
    %6265 = vst.msk [vmem:[#allocation2 + $0x35] sm:$0xff] %vm6136, %v6264
    %s6266 = scalar_lea.vmem [#allocation5], 163
    %v6267 = vld [vmem:[%s6266] ss:$2 sm:$0xff]
    %s6268 = scalar_lea.vmem [#allocation5], 164
    %v6269 = vld [vmem:[%s6268] ss:$2 sm:$0xff]
    %v6270 = vmax.f32 %v6267, %v6269
    %s6271 = scalar_lea.vmem [#allocation5], 181
    %v6272 = vld [vmem:[%s6271] ss:$2 sm:$0xff]
    %s6273 = scalar_lea.vmem [#allocation5], 182
    %v6274 = vld [vmem:[%s6273] ss:$2 sm:$0xff]
    %v6275 = vmax.f32 %v6272, %v6274
    %v6276 = vmax.f32 %v6270, %v6275
    %6277 = vst.msk [vmem:[#allocation2 + $0x3f] sm:$0xff] %vm6136, %v6276
    %s6278 = scalar_lea.vmem [#allocation5], 199
    %v6279 = vld [vmem:[%s6278] ss:$2 sm:$0xff]
    %s6280 = scalar_lea.vmem [#allocation5], 200
    %v6281 = vld [vmem:[%s6280] ss:$2 sm:$0xff]
    %v6282 = vmax.f32 %v6279, %v6281
    %s6283 = scalar_lea.vmem [#allocation5], 217
    %v6284 = vld [vmem:[%s6283] ss:$2 sm:$0xff]
    %s6285 = scalar_lea.vmem [#allocation5], 218
    %v6286 = vld [vmem:[%s6285] ss:$2 sm:$0xff]
    %v6287 = vmax.f32 %v6284, %v6286
    %v6288 = vmax.f32 %v6282, %v6287
    %6289 = vst.msk [vmem:[#allocation2 + $0x49] sm:$0xff] %vm6136, %v6288
    %s6290 = scalar_lea.vmem [#allocation5], 235
    %v6291 = vld [vmem:[%s6290] ss:$2 sm:$0xff]
    %s6292 = scalar_lea.vmem [#allocation5], 236
    %v6293 = vld [vmem:[%s6292] ss:$2 sm:$0xff]
    %v6294 = vmax.f32 %v6291, %v6293
    %s6295 = scalar_lea.vmem [#allocation5], 253
    %v6296 = vld [vmem:[%s6295] ss:$2 sm:$0xff]
    %s6297 = scalar_lea.vmem [#allocation5], 254
    %v6298 = vld [vmem:[%s6297] ss:$2 sm:$0xff]
    %v6299 = vmax.f32 %v6296, %v6298
    %v6300 = vmax.f32 %v6294, %v6299
    %6301 = vst.msk [vmem:[#allocation2 + $0x53] sm:$0xff] %vm6136, %v6300
    %s6302 = scalar_lea.vmem [#allocation5], 271
    %v6303 = vld [vmem:[%s6302] ss:$2 sm:$0xff]
    %s6304 = scalar_lea.vmem [#allocation5], 272
    %v6305 = vld [vmem:[%s6304] ss:$2 sm:$0xff]
    %v6306 = vmax.f32 %v6303, %v6305
    %s6307 = scalar_lea.vmem [#allocation5], 289
    %v6308 = vld [vmem:[%s6307] ss:$2 sm:$0xff]
    %s6309 = scalar_lea.vmem [#allocation5], 290
    %v6310 = vld [vmem:[%s6309] ss:$2 sm:$0xff]
    %v6311 = vmax.f32 %v6308, %v6310
    %v6312 = vmax.f32 %v6306, %v6311
    %6313 = vst.msk [vmem:[#allocation2 + $0x5d] sm:$0xff] %vm6136, %v6312
    %s6314 = scalar_lea.vmem [#allocation5], 343
    %v6315 = vld [vmem:[%s6314] ss:$2 sm:$0xff]
    %s6316 = scalar_lea.vmem [#allocation5], 344
    %v6317 = vld [vmem:[%s6316] ss:$2 sm:$0xff]
    %v6318 = vmax.f32 %v6315, %v6317
    %s6319 = scalar_lea.vmem [#allocation5], 361
    %v6320 = vld [vmem:[%s6319] ss:$2 sm:$0xff]
    %s6321 = scalar_lea.vmem [#allocation5], 362
    %v6322 = vld [vmem:[%s6321] ss:$2 sm:$0xff]
    %v6323 = vmax.f32 %v6320, %v6322
    %v6324 = vmax.f32 %v6318, %v6323
    %6325 = vst.msk [vmem:[#allocation2 + $0x7b] sm:$0xff] %vm6136, %v6324
    %s6326 = scalar_lea.vmem [#allocation5], 379
    %v6327 = vld [vmem:[%s6326] ss:$2 sm:$0xff]
    %s6328 = scalar_lea.vmem [#allocation5], 380
    %v6329 = vld [vmem:[%s6328] ss:$2 sm:$0xff]
    %v6330 = vmax.f32 %v6327, %v6329
    %s6331 = scalar_lea.vmem [#allocation5], 397
    %v6332 = vld [vmem:[%s6331] ss:$2 sm:$0xff]
    %s6333 = scalar_lea.vmem [#allocation5], 398
    %v6334 = vld [vmem:[%s6333] ss:$2 sm:$0xff]
    %v6335 = vmax.f32 %v6332, %v6334
    %v6336 = vmax.f32 %v6330, %v6335
    %6337 = vst.msk [vmem:[#allocation2 + $0x85] sm:$0xff] %vm6136, %v6336
    %s6338 = scalar_lea.vmem [#allocation5], 415
    %v6339 = vld [vmem:[%s6338] ss:$2 sm:$0xff]
    %s6340 = scalar_lea.vmem [#allocation5], 416
    %v6341 = vld [vmem:[%s6340] ss:$2 sm:$0xff]
    %v6342 = vmax.f32 %v6339, %v6341
    %s6343 = scalar_lea.vmem [#allocation5], 433
    %v6344 = vld [vmem:[%s6343] ss:$2 sm:$0xff]
    %s6345 = scalar_lea.vmem [#allocation5], 434
    %v6346 = vld [vmem:[%s6345] ss:$2 sm:$0xff]
    %v6347 = vmax.f32 %v6344, %v6346
    %v6348 = vmax.f32 %v6342, %v6347
    %6349 = vst.msk [vmem:[#allocation2 + $0x8f] sm:$0xff] %vm6136, %v6348
    %s6350 = scalar_lea.vmem [#allocation5], 451
    %v6351 = vld [vmem:[%s6350] ss:$2 sm:$0xff]
    %s6352 = scalar_lea.vmem [#allocation5], 452
    %v6353 = vld [vmem:[%s6352] ss:$2 sm:$0xff]
    %v6354 = vmax.f32 %v6351, %v6353
    %s6355 = scalar_lea.vmem [#allocation5], 469
    %v6356 = vld [vmem:[%s6355] ss:$2 sm:$0xff]
    %s6357 = scalar_lea.vmem [#allocation5], 470
    %v6358 = vld [vmem:[%s6357] ss:$2 sm:$0xff]
    %v6359 = vmax.f32 %v6356, %v6358
    %v6360 = vmax.f32 %v6354, %v6359
    %6361 = vst.msk [vmem:[#allocation2 + $0x99] sm:$0xff] %vm6136, %v6360
    %s6362 = scalar_lea.vmem [#allocation5], 487
    %v6363 = vld [vmem:[%s6362] ss:$2 sm:$0xff]
    %s6364 = scalar_lea.vmem [#allocation5], 488
    %v6365 = vld [vmem:[%s6364] ss:$2 sm:$0xff]
    %v6366 = vmax.f32 %v6363, %v6365
    %s6367 = scalar_lea.vmem [#allocation5], 505
    %v6368 = vld [vmem:[%s6367] ss:$2 sm:$0xff]
    %s6369 = scalar_lea.vmem [#allocation5], 506
    %v6370 = vld [vmem:[%s6369] ss:$2 sm:$0xff]
    %v6371 = vmax.f32 %v6368, %v6370
    %v6372 = vmax.f32 %v6366, %v6371
    %6373 = vst.msk [vmem:[#allocation2 + $0xa3] sm:$0xff] %vm6136, %v6372
    %s6374 = scalar_lea.vmem [#allocation5], 523
    %v6375 = vld [vmem:[%s6374] ss:$2 sm:$0xff]
    %s6376 = scalar_lea.vmem [#allocation5], 524
    %v6377 = vld [vmem:[%s6376] ss:$2 sm:$0xff]
    %v6378 = vmax.f32 %v6375, %v6377
    %s6379 = scalar_lea.vmem [#allocation5], 541
    %v6380 = vld [vmem:[%s6379] ss:$2 sm:$0xff]
    %s6381 = scalar_lea.vmem [#allocation5], 542
    %v6382 = vld [vmem:[%s6381] ss:$2 sm:$0xff]
    %v6383 = vmax.f32 %v6380, %v6382
    %v6384 = vmax.f32 %v6378, %v6383
    %6385 = vst.msk [vmem:[#allocation2 + $0xad] sm:$0xff] %vm6136, %v6384
    %s6386 = scalar_lea.vmem [#allocation5], 559
    %v6387 = vld [vmem:[%s6386] ss:$2 sm:$0xff]
    %s6388 = scalar_lea.vmem [#allocation5], 560
    %v6389 = vld [vmem:[%s6388] ss:$2 sm:$0xff]
    %v6390 = vmax.f32 %v6387, %v6389
    %s6391 = scalar_lea.vmem [#allocation5], 577
    %v6392 = vld [vmem:[%s6391] ss:$2 sm:$0xff]
    %s6393 = scalar_lea.vmem [#allocation5], 578
    %v6394 = vld [vmem:[%s6393] ss:$2 sm:$0xff]
    %v6395 = vmax.f32 %v6392, %v6394
    %v6396 = vmax.f32 %v6390, %v6395
    %6397 = vst.msk [vmem:[#allocation2 + $0xb7] sm:$0xff] %vm6136, %v6396
    %s6398 = scalar_lea.vmem [#allocation5], 595
    %v6399 = vld [vmem:[%s6398] ss:$2 sm:$0xff]
    %s6400 = scalar_lea.vmem [#allocation5], 596
    %v6401 = vld [vmem:[%s6400] ss:$2 sm:$0xff]
    %v6402 = vmax.f32 %v6399, %v6401
    %s6403 = scalar_lea.vmem [#allocation5], 613
    %v6404 = vld [vmem:[%s6403] ss:$2 sm:$0xff]
    %s6405 = scalar_lea.vmem [#allocation5], 614
    %v6406 = vld [vmem:[%s6405] ss:$2 sm:$0xff]
    %v6407 = vmax.f32 %v6404, %v6406
    %v6408 = vmax.f32 %v6402, %v6407
    %6409 = vst.msk [vmem:[#allocation2 + $0xc1] sm:$0xff] %vm6136, %v6408
    %v6410 = vld [vmem:[%s8 + $0x1] sm:$0x1]
    %v6411 = vld [vmem:[%s8 + $0x2] sm:$0x1]
    %v6412 = vld [vmem:[%s8 + $0x3] sm:$0x1]
    %v6413 = vld [vmem:[#allocation2 + $0x1] sm:$0xff]
    %v6414 = vld [vmem:[#allocation2 + $0x9] sm:$0xff]
    %v6415 = vld [vmem:[#allocation2 + $0x11] sm:$0xff]
    %v6416 = vld [vmem:[#allocation2 + $0x19] sm:$0xff]
    %v6417 = vld [vmem:[#allocation2 + $0x21] sm:$0xff]
    %v6418 = vld [vmem:[#allocation2 + $0x29] sm:$0xff]
    %v6419 = vld [vmem:[#allocation2 + $0x31] sm:$0xff]
    %v6420 = vld [vmem:[#allocation2 + $0x39] sm:$0xff]
    %v6421 = vld [vmem:[#allocation2 + $0x41] sm:$0xff]
    %v6422 = vld [vmem:[#allocation2 + $0x49] sm:$0xff]
    %v6423 = vld [vmem:[#allocation2 + $0x51] sm:$0xff]
    %v6424 = vld [vmem:[#allocation2 + $0x59] sm:$0xff]
    %v6425 = vld [vmem:[#allocation2 + $0x61] sm:$0xff]
    %v6426 = vld [vmem:[#allocation2 + $0x69] sm:$0xff]
    %v6427 = vld [vmem:[#allocation2 + $0x71] sm:$0xff]
    %v6428 = vld [vmem:[#allocation2 + $0x79] sm:$0xff]
    %v6429 = vld [vmem:[#allocation2 + $0x81] sm:$0xff]
    %v6430 = vld [vmem:[#allocation2 + $0x89] sm:$0xff]
    %v6431 = vld [vmem:[#allocation2 + $0x91] sm:$0xff]
    %v6432 = vld [vmem:[#allocation2 + $0x99] sm:$0xff]
    %v6433 = vld [vmem:[#allocation2 + $0xa1] sm:$0xff]
    %v6434 = vld [vmem:[#allocation2 + $0xa9] sm:$0xff]
    %v6435 = vld [vmem:[#allocation2 + $0xb1] sm:$0xff]
    %v6436 = vld [vmem:[#allocation2 + $0xb9] sm:$0xff]
    %v6437 = vld [vmem:[#allocation2 + $0xc1] sm:$0xff]
    %v6438 = vld [vmem:[%s2] sm:$0xff]
    %v6439 = vld [vmem:[%s2 + $0x8] sm:$0xff]
    %v6440 = vld [vmem:[#allocation2 + $0x2] sm:$0xff]
    %v6441 = vld [vmem:[#allocation2 + $0xa] sm:$0xff]
    %v6442 = vld [vmem:[#allocation2 + $0x12] sm:$0xff]
    %v6443 = vld [vmem:[#allocation2 + $0x1a] sm:$0xff]
    %v6444 = vld [vmem:[#allocation2 + $0x22] sm:$0xff]
    %v6445 = vld [vmem:[#allocation2 + $0x2a] sm:$0xff]
    %v6446 = vld [vmem:[#allocation2 + $0x32] sm:$0xff]
    %v6447 = vld [vmem:[#allocation2 + $0x3a] sm:$0xff]
    %v6448 = vld [vmem:[#allocation2 + $0x42] sm:$0xff]
    %v6449 = vld [vmem:[#allocation2 + $0x4a] sm:$0xff]
    %v6450 = vld [vmem:[#allocation2 + $0x52] sm:$0xff]
    %v6451 = vld [vmem:[#allocation2 + $0x5a] sm:$0xff]
    %v6452 = vld [vmem:[#allocation2 + $0x62] sm:$0xff]
    %v6453 = vld [vmem:[#allocation2 + $0x6a] sm:$0xff]
    %v6454 = vld [vmem:[#allocation2 + $0x72] sm:$0xff]
    %v6455 = vld [vmem:[#allocation2 + $0x7a] sm:$0xff]
    %v6456 = vld [vmem:[#allocation2 + $0x82] sm:$0xff]
    %v6457 = vld [vmem:[#allocation2 + $0x8a] sm:$0xff]
    %v6458 = vld [vmem:[#allocation2 + $0x92] sm:$0xff]
    %v6459 = vld [vmem:[#allocation2 + $0x9a] sm:$0xff]
    %v6460 = vld [vmem:[#allocation2 + $0xa2] sm:$0xff]
    %v6461 = vld [vmem:[#allocation2 + $0xaa] sm:$0xff]
    %v6462 = vld [vmem:[#allocation2 + $0xb2] sm:$0xff]
    %v6463 = vld [vmem:[#allocation2 + $0xba] sm:$0xff]
    %v6464 = vld [vmem:[#allocation2 + $0xc2] sm:$0xff]
    %s6465 = scalar_lea.vmem %s2, 16
    %v6466 = vld [vmem:[%s6465] sm:$0xff]
    %v6467 = vld [vmem:[%s6465 + $0x8] sm:$0xff]
    %v6469 = vsel %vm6136, %v6440, 0
    %v6472 = vsel %vm6136, %v6441, 0
    %v6475 = vsel %vm6136, %v6442, 0
    %v6478 = vsel %vm6136, %v6443, 0
    %v6481 = vsel %vm6136, %v6444, 0
    %v6484 = vsel %vm6136, %v6445, 0
    %v6487 = vsel %vm6136, %v6446, 0
    %v6490 = vsel %vm6136, %v6447, 0
    %v6493 = vsel %vm6136, %v6448, 0
    %v6496 = vsel %vm6136, %v6449, 0
    %v6499 = vsel %vm6136, %v6450, 0
    %v6502 = vsel %vm6136, %v6451, 0
    %v6505 = vsel %vm6136, %v6452, 0
    %v6508 = vsel %vm6136, %v6453, 0
    %v6511 = vsel %vm6136, %v6454, 0
    %v6514 = vsel %vm6136, %v6455, 0
    %v6517 = vsel %vm6136, %v6456, 0
    %v6520 = vsel %vm6136, %v6457, 0
    %v6523 = vsel %vm6136, %v6458, 0
    %v6526 = vsel %vm6136, %v6459, 0
    %v6529 = vsel %vm6136, %v6460, 0
    %v6532 = vsel %vm6136, %v6461, 0
    %v6535 = vsel %vm6136, %v6462, 0
    %v6538 = vsel %vm6136, %v6463, 0
    %v6541 = vsel %vm6136, %v6464, 0
    %6543 = vmatpush.msra.mxu0 0.0
    %6544 = vmatpush.msra.mxu0 0.0
    %6545 = vmatpush.msra.mxu0 0.0
    %6546 = vmatpush.msra.mxu0 0.0
    %6547 = vmatpush.msra.mxu0 0.0
    %6548 = vmatpush.msra.mxu0 0.0
    %6549 = vmatpush.msra.mxu0 0.0
    %6550 = vmatpush.msra.mxu0 0.0
    %6551 = vmatpush.msra.mxu0 0.0
    %6552 = vmatpush.msra.mxu0 0.0
    %6553 = vmatpush.msra.mxu0 0.0
    %6554 = vmatpush.msra.mxu0 0.0
    %6555 = vmatpush.msra.mxu0 0.0
    %6556 = vmatpush.msra.mxu0 0.0
    %6557 = vmatpush.msra.mxu0 %v6467
    %6558 = vmatpush.msra.mxu0 %v6466
    %6559 = vmatmul.f32.gmra.mxu0 %v6469
    %v6560 = vpop.f32.mrf.mxu0
    %v6561 = vadd.f32 0.0, %v6560
    %6562 = vmatmul.f32.gmra.mxu0 %v6472
    %v6563 = vpop.f32.mrf.mxu0
    %v6564 = vadd.f32 0.0, %v6563
    %6565 = vmatmul.f32.gmra.mxu0 %v6475
    %v6566 = vpop.f32.mrf.mxu0
    %v6567 = vadd.f32 0.0, %v6566
    %6568 = vmatmul.f32.gmra.mxu0 %v6478
    %v6569 = vpop.f32.mrf.mxu0
    %v6570 = vadd.f32 0.0, %v6569
    %6571 = vmatmul.f32.gmra.mxu0 %v6481
    %v6572 = vpop.f32.mrf.mxu0
    %v6573 = vadd.f32 0.0, %v6572
    %6574 = vmatmul.f32.gmra.mxu0 %v6484
    %v6575 = vpop.f32.mrf.mxu0
    %v6576 = vadd.f32 0.0, %v6575
    %6577 = vmatmul.f32.gmra.mxu0 %v6487
    %v6578 = vpop.f32.mrf.mxu0
    %v6579 = vadd.f32 0.0, %v6578
    %6580 = vmatmul.f32.gmra.mxu0 %v6490
    %v6581 = vpop.f32.mrf.mxu0
    %v6582 = vadd.f32 0.0, %v6581
    %6583 = vmatmul.f32.gmra.mxu0 %v6493
    %v6584 = vpop.f32.mrf.mxu0
    %v6585 = vadd.f32 0.0, %v6584
    %6586 = vmatmul.f32.gmra.mxu0 %v6496
    %v6587 = vpop.f32.mrf.mxu0
    %v6588 = vadd.f32 0.0, %v6587
    %6589 = vmatmul.f32.gmra.mxu0 %v6499
    %v6590 = vpop.f32.mrf.mxu0
    %v6591 = vadd.f32 0.0, %v6590
    %6592 = vmatmul.f32.gmra.mxu0 %v6502
    %v6593 = vpop.f32.mrf.mxu0
    %v6594 = vadd.f32 0.0, %v6593
    %6595 = vmatmul.f32.gmra.mxu0 %v6505
    %v6596 = vpop.f32.mrf.mxu0
    %v6597 = vadd.f32 0.0, %v6596
    %6598 = vmatmul.f32.gmra.mxu0 %v6508
    %v6599 = vpop.f32.mrf.mxu0
    %v6600 = vadd.f32 0.0, %v6599
    %6601 = vmatmul.f32.gmra.mxu0 %v6511
    %v6602 = vpop.f32.mrf.mxu0
    %v6603 = vadd.f32 0.0, %v6602
    %6604 = vmatmul.f32.gmra.mxu0 %v6514
    %v6605 = vpop.f32.mrf.mxu0
    %v6606 = vadd.f32 0.0, %v6605
    %6607 = vmatmul.f32.gmra.mxu0 %v6517
    %v6608 = vpop.f32.mrf.mxu0
    %v6609 = vadd.f32 0.0, %v6608
    %6610 = vmatmul.f32.gmra.mxu0 %v6520
    %v6611 = vpop.f32.mrf.mxu0
    %v6612 = vadd.f32 0.0, %v6611
    %6613 = vmatmul.f32.gmra.mxu0 %v6523
    %v6614 = vpop.f32.mrf.mxu0
    %v6615 = vadd.f32 0.0, %v6614
    %6616 = vmatmul.f32.gmra.mxu0 %v6526
    %v6617 = vpop.f32.mrf.mxu0
    %v6618 = vadd.f32 0.0, %v6617
    %6619 = vmatmul.f32.gmra.mxu0 %v6529
    %v6620 = vpop.f32.mrf.mxu0
    %v6621 = vadd.f32 0.0, %v6620
    %6622 = vmatmul.f32.gmra.mxu0 %v6532
    %v6623 = vpop.f32.mrf.mxu0
    %v6624 = vadd.f32 0.0, %v6623
    %6625 = vmatmul.f32.gmra.mxu0 %v6535
    %v6626 = vpop.f32.mrf.mxu0
    %v6627 = vadd.f32 0.0, %v6626
    %6628 = vmatmul.f32.gmra.mxu0 %v6538
    %v6629 = vpop.f32.mrf.mxu0
    %v6630 = vadd.f32 0.0, %v6629
    %6631 = vmatmul.f32.gmra.mxu0 %v6541
    %v6632 = vpop.f32.mrf.mxu0
    %v6633 = vadd.f32 0.0, %v6632
    %6634 = vdwg.mxu0
    %v6636 = vsel %vm6136, %v6413, 0
    %v6639 = vsel %vm6136, %v6414, 0
    %v6642 = vsel %vm6136, %v6415, 0
    %v6645 = vsel %vm6136, %v6416, 0
    %v6648 = vsel %vm6136, %v6417, 0
    %v6651 = vsel %vm6136, %v6418, 0
    %v6654 = vsel %vm6136, %v6419, 0
    %v6657 = vsel %vm6136, %v6420, 0
    %v6660 = vsel %vm6136, %v6421, 0
    %v6663 = vsel %vm6136, %v6422, 0
    %v6666 = vsel %vm6136, %v6423, 0
    %v6669 = vsel %vm6136, %v6424, 0
    %v6672 = vsel %vm6136, %v6425, 0
    %v6675 = vsel %vm6136, %v6426, 0
    %v6678 = vsel %vm6136, %v6427, 0
    %v6681 = vsel %vm6136, %v6428, 0
    %v6684 = vsel %vm6136, %v6429, 0
    %v6687 = vsel %vm6136, %v6430, 0
    %v6690 = vsel %vm6136, %v6431, 0
    %v6693 = vsel %vm6136, %v6432, 0
    %v6696 = vsel %vm6136, %v6433, 0
    %v6699 = vsel %vm6136, %v6434, 0
    %v6702 = vsel %vm6136, %v6435, 0
    %v6705 = vsel %vm6136, %v6436, 0
    %v6708 = vsel %vm6136, %v6437, 0
    %6710 = vmatpush.msra.mxu0 0.0
    %6711 = vmatpush.msra.mxu0 0.0
    %6712 = vmatpush.msra.mxu0 0.0
    %6713 = vmatpush.msra.mxu0 0.0
    %6714 = vmatpush.msra.mxu0 0.0
    %6715 = vmatpush.msra.mxu0 0.0
    %6716 = vmatpush.msra.mxu0 0.0
    %6717 = vmatpush.msra.mxu0 0.0
    %6718 = vmatpush.msra.mxu0 0.0
    %6719 = vmatpush.msra.mxu0 0.0
    %6720 = vmatpush.msra.mxu0 0.0
    %6721 = vmatpush.msra.mxu0 0.0
    %6722 = vmatpush.msra.mxu0 0.0
    %6723 = vmatpush.msra.mxu0 0.0
    %6724 = vmatpush.msra.mxu0 %v6439
    %6725 = vmatpush.msra.mxu0 %v6438
    %6726 = vmatmul.f32.gmra.mxu0 %v6636
    %v6727 = vpop.f32.mrf.mxu0
    %v6728 = vadd.f32 %v6561, %v6727
    %6729 = vmatmul.f32.gmra.mxu0 %v6639
    %v6730 = vpop.f32.mrf.mxu0
    %v6731 = vadd.f32 %v6564, %v6730
    %6732 = vmatmul.f32.gmra.mxu0 %v6642
    %v6733 = vpop.f32.mrf.mxu0
    %v6734 = vadd.f32 %v6567, %v6733
    %6735 = vmatmul.f32.gmra.mxu0 %v6645
    %v6736 = vpop.f32.mrf.mxu0
    %v6737 = vadd.f32 %v6570, %v6736
    %6738 = vmatmul.f32.gmra.mxu0 %v6648
    %v6739 = vpop.f32.mrf.mxu0
    %v6740 = vadd.f32 %v6573, %v6739
    %6741 = vmatmul.f32.gmra.mxu0 %v6651
    %v6742 = vpop.f32.mrf.mxu0
    %v6743 = vadd.f32 %v6576, %v6742
    %6744 = vmatmul.f32.gmra.mxu0 %v6654
    %v6745 = vpop.f32.mrf.mxu0
    %v6746 = vadd.f32 %v6579, %v6745
    %6747 = vmatmul.f32.gmra.mxu0 %v6657
    %v6748 = vpop.f32.mrf.mxu0
    %v6749 = vadd.f32 %v6582, %v6748
    %6750 = vmatmul.f32.gmra.mxu0 %v6660
    %v6751 = vpop.f32.mrf.mxu0
    %v6752 = vadd.f32 %v6585, %v6751
    %6753 = vmatmul.f32.gmra.mxu0 %v6663
    %v6754 = vpop.f32.mrf.mxu0
    %v6755 = vadd.f32 %v6588, %v6754
    %6756 = vmatmul.f32.gmra.mxu0 %v6666
    %v6757 = vpop.f32.mrf.mxu0
    %v6758 = vadd.f32 %v6591, %v6757
    %6759 = vmatmul.f32.gmra.mxu0 %v6669
    %v6760 = vpop.f32.mrf.mxu0
    %v6761 = vadd.f32 %v6594, %v6760
    %6762 = vmatmul.f32.gmra.mxu0 %v6672
    %v6763 = vpop.f32.mrf.mxu0
    %v6764 = vadd.f32 %v6597, %v6763
    %6765 = vmatmul.f32.gmra.mxu0 %v6675
    %v6766 = vpop.f32.mrf.mxu0
    %v6767 = vadd.f32 %v6600, %v6766
    %6768 = vmatmul.f32.gmra.mxu0 %v6678
    %v6769 = vpop.f32.mrf.mxu0
    %v6770 = vadd.f32 %v6603, %v6769
    %6771 = vmatmul.f32.gmra.mxu0 %v6681
    %v6772 = vpop.f32.mrf.mxu0
    %v6773 = vadd.f32 %v6606, %v6772
    %6774 = vmatmul.f32.gmra.mxu0 %v6684
    %v6775 = vpop.f32.mrf.mxu0
    %v6776 = vadd.f32 %v6609, %v6775
    %6777 = vmatmul.f32.gmra.mxu0 %v6687
    %v6778 = vpop.f32.mrf.mxu0
    %v6779 = vadd.f32 %v6612, %v6778
    %6780 = vmatmul.f32.gmra.mxu0 %v6690
    %v6781 = vpop.f32.mrf.mxu0
    %v6782 = vadd.f32 %v6615, %v6781
    %6783 = vmatmul.f32.gmra.mxu0 %v6693
    %v6784 = vpop.f32.mrf.mxu0
    %v6785 = vadd.f32 %v6618, %v6784
    %6786 = vmatmul.f32.gmra.mxu0 %v6696
    %v6787 = vpop.f32.mrf.mxu0
    %v6788 = vadd.f32 %v6621, %v6787
    %6789 = vmatmul.f32.gmra.mxu0 %v6699
    %v6790 = vpop.f32.mrf.mxu0
    %v6791 = vadd.f32 %v6624, %v6790
    %6792 = vmatmul.f32.gmra.mxu0 %v6702
    %v6793 = vpop.f32.mrf.mxu0
    %v6794 = vadd.f32 %v6627, %v6793
    %6795 = vmatmul.f32.gmra.mxu0 %v6705
    %v6796 = vpop.f32.mrf.mxu0
    %v6797 = vadd.f32 %v6630, %v6796
    %6798 = vmatmul.f32.gmra.mxu0 %v6708
    %v6799 = vpop.f32.mrf.mxu0
    %v6800 = vadd.f32 %v6633, %v6799
    %6801 = vdwg.mxu0
    %v6802 = vld [vmem:[#allocation2 + $0x3] sm:$0xff]
    %v6803 = vld [vmem:[#allocation2 + $0xb] sm:$0xff]
    %v6804 = vld [vmem:[#allocation2 + $0x13] sm:$0xff]
    %v6805 = vld [vmem:[#allocation2 + $0x1b] sm:$0xff]
    %v6806 = vld [vmem:[#allocation2 + $0x23] sm:$0xff]
    %v6807 = vld [vmem:[#allocation2 + $0x2b] sm:$0xff]
    %v6808 = vld [vmem:[#allocation2 + $0x33] sm:$0xff]
    %v6809 = vld [vmem:[#allocation2 + $0x3b] sm:$0xff]
    %v6810 = vld [vmem:[#allocation2 + $0x43] sm:$0xff]
    %v6811 = vld [vmem:[#allocation2 + $0x4b] sm:$0xff]
    %v6812 = vld [vmem:[#allocation2 + $0x53] sm:$0xff]
    %v6813 = vld [vmem:[#allocation2 + $0x5b] sm:$0xff]
    %v6814 = vld [vmem:[#allocation2 + $0x63] sm:$0xff]
    %v6815 = vld [vmem:[#allocation2 + $0x6b] sm:$0xff]
    %v6816 = vld [vmem:[#allocation2 + $0x73] sm:$0xff]
    %v6817 = vld [vmem:[#allocation2 + $0x7b] sm:$0xff]
    %v6818 = vld [vmem:[#allocation2 + $0x83] sm:$0xff]
    %v6819 = vld [vmem:[#allocation2 + $0x8b] sm:$0xff]
    %v6820 = vld [vmem:[#allocation2 + $0x93] sm:$0xff]
    %v6821 = vld [vmem:[#allocation2 + $0x9b] sm:$0xff]
    %v6822 = vld [vmem:[#allocation2 + $0xa3] sm:$0xff]
    %v6823 = vld [vmem:[#allocation2 + $0xab] sm:$0xff]
    %v6824 = vld [vmem:[#allocation2 + $0xb3] sm:$0xff]
    %v6825 = vld [vmem:[#allocation2 + $0xbb] sm:$0xff]
    %v6826 = vld [vmem:[#allocation2 + $0xc3] sm:$0xff]
    %s6827 = scalar_lea.vmem %s2, 32
    %v6828 = vld [vmem:[%s6827] sm:$0xff]
    %v6829 = vld [vmem:[%s6827 + $0x8] sm:$0xff]
    %v6831 = vsel %vm6136, %v6802, 0
    %v6834 = vsel %vm6136, %v6803, 0
    %v6837 = vsel %vm6136, %v6804, 0
    %v6840 = vsel %vm6136, %v6805, 0
    %v6843 = vsel %vm6136, %v6806, 0
    %v6846 = vsel %vm6136, %v6807, 0
    %v6849 = vsel %vm6136, %v6808, 0
    %v6852 = vsel %vm6136, %v6809, 0
    %v6855 = vsel %vm6136, %v6810, 0
    %v6858 = vsel %vm6136, %v6811, 0
    %v6861 = vsel %vm6136, %v6812, 0
    %v6864 = vsel %vm6136, %v6813, 0
    %v6867 = vsel %vm6136, %v6814, 0
    %v6870 = vsel %vm6136, %v6815, 0
    %v6873 = vsel %vm6136, %v6816, 0
    %v6876 = vsel %vm6136, %v6817, 0
    %v6879 = vsel %vm6136, %v6818, 0
    %v6882 = vsel %vm6136, %v6819, 0
    %v6885 = vsel %vm6136, %v6820, 0
    %v6888 = vsel %vm6136, %v6821, 0
    %v6891 = vsel %vm6136, %v6822, 0
    %v6894 = vsel %vm6136, %v6823, 0
    %v6897 = vsel %vm6136, %v6824, 0
    %v6900 = vsel %vm6136, %v6825, 0
    %v6903 = vsel %vm6136, %v6826, 0
    %6905 = vmatpush.msra.mxu0 0.0
    %6906 = vmatpush.msra.mxu0 0.0
    %6907 = vmatpush.msra.mxu0 0.0
    %6908 = vmatpush.msra.mxu0 0.0
    %6909 = vmatpush.msra.mxu0 0.0
    %6910 = vmatpush.msra.mxu0 0.0
    %6911 = vmatpush.msra.mxu0 0.0
    %6912 = vmatpush.msra.mxu0 0.0
    %6913 = vmatpush.msra.mxu0 0.0
    %6914 = vmatpush.msra.mxu0 0.0
    %6915 = vmatpush.msra.mxu0 0.0
    %6916 = vmatpush.msra.mxu0 0.0
    %6917 = vmatpush.msra.mxu0 0.0
    %6918 = vmatpush.msra.mxu0 0.0
    %6919 = vmatpush.msra.mxu0 %v6829
    %6920 = vmatpush.msra.mxu0 %v6828
    %6921 = vmatmul.f32.gmra.mxu0 %v6831
    %v6922 = vpop.f32.mrf.mxu0
    %v6923 = vadd.f32 0.0, %v6922
    %6924 = vmatmul.f32.gmra.mxu0 %v6834
    %v6925 = vpop.f32.mrf.mxu0
    %v6926 = vadd.f32 0.0, %v6925
    %6927 = vmatmul.f32.gmra.mxu0 %v6837
    %v6928 = vpop.f32.mrf.mxu0
    %v6929 = vadd.f32 0.0, %v6928
    %6930 = vmatmul.f32.gmra.mxu0 %v6840
    %v6931 = vpop.f32.mrf.mxu0
    %v6932 = vadd.f32 0.0, %v6931
    %6933 = vmatmul.f32.gmra.mxu0 %v6843
    %v6934 = vpop.f32.mrf.mxu0
    %v6935 = vadd.f32 0.0, %v6934
    %6936 = vmatmul.f32.gmra.mxu0 %v6846
    %v6937 = vpop.f32.mrf.mxu0
    %v6938 = vadd.f32 0.0, %v6937
    %6939 = vmatmul.f32.gmra.mxu0 %v6849
    %v6940 = vpop.f32.mrf.mxu0
    %v6941 = vadd.f32 0.0, %v6940
    %6942 = vmatmul.f32.gmra.mxu0 %v6852
    %v6943 = vpop.f32.mrf.mxu0
    %v6944 = vadd.f32 0.0, %v6943
    %6945 = vmatmul.f32.gmra.mxu0 %v6855
    %v6946 = vpop.f32.mrf.mxu0
    %v6947 = vadd.f32 0.0, %v6946
    %6948 = vmatmul.f32.gmra.mxu0 %v6858
    %v6949 = vpop.f32.mrf.mxu0
    %v6950 = vadd.f32 0.0, %v6949
    %6951 = vmatmul.f32.gmra.mxu0 %v6861
    %v6952 = vpop.f32.mrf.mxu0
    %v6953 = vadd.f32 0.0, %v6952
    %6954 = vmatmul.f32.gmra.mxu0 %v6864
    %v6955 = vpop.f32.mrf.mxu0
    %v6956 = vadd.f32 0.0, %v6955
    %6957 = vmatmul.f32.gmra.mxu0 %v6867
    %v6958 = vpop.f32.mrf.mxu0
    %v6959 = vadd.f32 0.0, %v6958
    %6960 = vmatmul.f32.gmra.mxu0 %v6870
    %v6961 = vpop.f32.mrf.mxu0
    %v6962 = vadd.f32 0.0, %v6961
    %6963 = vmatmul.f32.gmra.mxu0 %v6873
    %v6964 = vpop.f32.mrf.mxu0
    %v6965 = vadd.f32 0.0, %v6964
    %6966 = vmatmul.f32.gmra.mxu0 %v6876
    %v6967 = vpop.f32.mrf.mxu0
    %v6968 = vadd.f32 0.0, %v6967
    %6969 = vmatmul.f32.gmra.mxu0 %v6879
    %v6970 = vpop.f32.mrf.mxu0
    %v6971 = vadd.f32 0.0, %v6970
    %6972 = vmatmul.f32.gmra.mxu0 %v6882
    %v6973 = vpop.f32.mrf.mxu0
    %v6974 = vadd.f32 0.0, %v6973
    %6975 = vmatmul.f32.gmra.mxu0 %v6885
    %v6976 = vpop.f32.mrf.mxu0
    %v6977 = vadd.f32 0.0, %v6976
    %6978 = vmatmul.f32.gmra.mxu0 %v6888
    %v6979 = vpop.f32.mrf.mxu0
    %v6980 = vadd.f32 0.0, %v6979
    %6981 = vmatmul.f32.gmra.mxu0 %v6891
    %v6982 = vpop.f32.mrf.mxu0
    %v6983 = vadd.f32 0.0, %v6982
    %6984 = vmatmul.f32.gmra.mxu0 %v6894
    %v6985 = vpop.f32.mrf.mxu0
    %v6986 = vadd.f32 0.0, %v6985
    %6987 = vmatmul.f32.gmra.mxu0 %v6897
    %v6988 = vpop.f32.mrf.mxu0
    %v6989 = vadd.f32 0.0, %v6988
    %6990 = vmatmul.f32.gmra.mxu0 %v6900
    %v6991 = vpop.f32.mrf.mxu0
    %v6992 = vadd.f32 0.0, %v6991
    %6993 = vmatmul.f32.gmra.mxu0 %v6903
    %v6994 = vpop.f32.mrf.mxu0
    %v6995 = vadd.f32 0.0, %v6994
    %6996 = vdwg.mxu0
    %v6997 = vadd.f32 %v6728, %v6923
    %v6998 = vadd.f32 %v6731, %v6926
    %v6999 = vadd.f32 %v6734, %v6929
    %v7000 = vadd.f32 %v6737, %v6932
    %v7001 = vadd.f32 %v6740, %v6935
    %v7002 = vadd.f32 %v6743, %v6938
    %v7003 = vadd.f32 %v6746, %v6941
    %v7004 = vadd.f32 %v6749, %v6944
    %v7005 = vadd.f32 %v6752, %v6947
    %v7006 = vadd.f32 %v6755, %v6950
    %v7007 = vadd.f32 %v6758, %v6953
    %v7008 = vadd.f32 %v6761, %v6956
    %v7009 = vadd.f32 %v6764, %v6959
    %v7010 = vadd.f32 %v6767, %v6962
    %v7011 = vadd.f32 %v6770, %v6965
    %v7012 = vadd.f32 %v6773, %v6968
    %v7013 = vadd.f32 %v6776, %v6971
    %v7014 = vadd.f32 %v6779, %v6974
    %v7015 = vadd.f32 %v6782, %v6977
    %v7016 = vadd.f32 %v6785, %v6980
    %v7017 = vadd.f32 %v6788, %v6983
    %v7018 = vadd.f32 %v6791, %v6986
    %v7019 = vadd.f32 %v6794, %v6989
    %v7020 = vadd.f32 %v6797, %v6992
    %v7021 = vadd.f32 %v6800, %v6995
    %v7022 = vld [vmem:[#allocation2 + $0xb] sm:$0xff]
    %v7023 = vld [vmem:[#allocation2 + $0x13] sm:$0xff]
    %v7024 = vld [vmem:[#allocation2 + $0x1b] sm:$0xff]
    %v7025 = vld [vmem:[#allocation2 + $0x23] sm:$0xff]
    %v7026 = vld [vmem:[#allocation2 + $0x2b] sm:$0xff]
    %v7027 = vld [vmem:[#allocation2 + $0x33] sm:$0xff]
    %v7028 = vld [vmem:[#allocation2 + $0x3b] sm:$0xff]
    %v7029 = vld [vmem:[#allocation2 + $0x43] sm:$0xff]
    %v7030 = vld [vmem:[#allocation2 + $0x4b] sm:$0xff]
    %v7031 = vld [vmem:[#allocation2 + $0x53] sm:$0xff]
    %v7032 = vld [vmem:[#allocation2 + $0x5b] sm:$0xff]
    %v7033 = vld [vmem:[#allocation2 + $0x63] sm:$0xff]
    %v7034 = vld [vmem:[#allocation2 + $0x6b] sm:$0xff]
    %v7035 = vld [vmem:[#allocation2 + $0x73] sm:$0xff]
    %v7036 = vld [vmem:[#allocation2 + $0x7b] sm:$0xff]
    %v7037 = vld [vmem:[#allocation2 + $0x83] sm:$0xff]
    %v7038 = vld [vmem:[#allocation2 + $0x8b] sm:$0xff]
    %v7039 = vld [vmem:[#allocation2 + $0x93] sm:$0xff]
    %v7040 = vld [vmem:[#allocation2 + $0x9b] sm:$0xff]
    %v7041 = vld [vmem:[#allocation2 + $0xa3] sm:$0xff]
    %v7042 = vld [vmem:[#allocation2 + $0xab] sm:$0xff]
    %v7043 = vld [vmem:[#allocation2 + $0xb3] sm:$0xff]
    %v7044 = vld [vmem:[#allocation2 + $0xbb] sm:$0xff]
    %v7045 = vld [vmem:[#allocation2 + $0xc3] sm:$0xff]
    %v7046 = vld [vmem:[#allocation2 + $0xcb] sm:$0xff]
    %s7047 = scalar_lea.vmem %s2, 48
    %v7048 = vld [vmem:[%s7047] sm:$0xff]
    %v7049 = vld [vmem:[%s7047 + $0x8] sm:$0xff]
    %v7051 = vsel %vm6136, %v7022, 0
    %v7054 = vsel %vm6136, %v7023, 0
    %v7057 = vsel %vm6136, %v7024, 0
    %v7060 = vsel %vm6136, %v7025, 0
    %v7063 = vsel %vm6136, %v7026, 0
    %v7066 = vsel %vm6136, %v7027, 0
    %v7069 = vsel %vm6136, %v7028, 0
    %v7072 = vsel %vm6136, %v7029, 0
    %v7075 = vsel %vm6136, %v7030, 0
    %v7078 = vsel %vm6136, %v7031, 0
    %v7081 = vsel %vm6136, %v7032, 0
    %v7084 = vsel %vm6136, %v7033, 0
    %v7087 = vsel %vm6136, %v7034, 0
    %v7090 = vsel %vm6136, %v7035, 0
    %v7093 = vsel %vm6136, %v7036, 0
    %v7096 = vsel %vm6136, %v7037, 0
    %v7099 = vsel %vm6136, %v7038, 0
    %v7102 = vsel %vm6136, %v7039, 0
    %v7105 = vsel %vm6136, %v7040, 0
    %v7108 = vsel %vm6136, %v7041, 0
    %v7111 = vsel %vm6136, %v7042, 0
    %v7114 = vsel %vm6136, %v7043, 0
    %v7117 = vsel %vm6136, %v7044, 0
    %v7120 = vsel %vm6136, %v7045, 0
    %v7123 = vsel %vm6136, %v7046, 0
    %7125 = vmatpush.msra.mxu0 0.0
    %7126 = vmatpush.msra.mxu0 0.0
    %7127 = vmatpush.msra.mxu0 0.0
    %7128 = vmatpush.msra.mxu0 0.0
    %7129 = vmatpush.msra.mxu0 0.0
    %7130 = vmatpush.msra.mxu0 0.0
    %7131 = vmatpush.msra.mxu0 0.0
    %7132 = vmatpush.msra.mxu0 0.0
    %7133 = vmatpush.msra.mxu0 0.0
    %7134 = vmatpush.msra.mxu0 0.0
    %7135 = vmatpush.msra.mxu0 0.0
    %7136 = vmatpush.msra.mxu0 0.0
    %7137 = vmatpush.msra.mxu0 0.0
    %7138 = vmatpush.msra.mxu0 0.0
    %7139 = vmatpush.msra.mxu0 %v7049
    %7140 = vmatpush.msra.mxu0 %v7048
    %7141 = vmatmul.f32.gmra.mxu0 %v7051
    %v7142 = vpop.f32.mrf.mxu0
    %v7143 = vadd.f32 0.0, %v7142
    %7144 = vmatmul.f32.gmra.mxu0 %v7054
    %v7145 = vpop.f32.mrf.mxu0
    %v7146 = vadd.f32 0.0, %v7145
    %7147 = vmatmul.f32.gmra.mxu0 %v7057
    %v7148 = vpop.f32.mrf.mxu0
    %v7149 = vadd.f32 0.0, %v7148
    %7150 = vmatmul.f32.gmra.mxu0 %v7060
    %v7151 = vpop.f32.mrf.mxu0
    %v7152 = vadd.f32 0.0, %v7151
    %7153 = vmatmul.f32.gmra.mxu0 %v7063
    %v7154 = vpop.f32.mrf.mxu0
    %v7155 = vadd.f32 0.0, %v7154
    %7156 = vmatmul.f32.gmra.mxu0 %v7066
    %v7157 = vpop.f32.mrf.mxu0
    %v7158 = vadd.f32 0.0, %v7157
    %7159 = vmatmul.f32.gmra.mxu0 %v7069
    %v7160 = vpop.f32.mrf.mxu0
    %v7161 = vadd.f32 0.0, %v7160
    %7162 = vmatmul.f32.gmra.mxu0 %v7072
    %v7163 = vpop.f32.mrf.mxu0
    %v7164 = vadd.f32 0.0, %v7163
    %7165 = vmatmul.f32.gmra.mxu0 %v7075
    %v7166 = vpop.f32.mrf.mxu0
    %v7167 = vadd.f32 0.0, %v7166
    %7168 = vmatmul.f32.gmra.mxu0 %v7078
    %v7169 = vpop.f32.mrf.mxu0
    %v7170 = vadd.f32 0.0, %v7169
    %7171 = vmatmul.f32.gmra.mxu0 %v7081
    %v7172 = vpop.f32.mrf.mxu0
    %v7173 = vadd.f32 0.0, %v7172
    %7174 = vmatmul.f32.gmra.mxu0 %v7084
    %v7175 = vpop.f32.mrf.mxu0
    %v7176 = vadd.f32 0.0, %v7175
    %7177 = vmatmul.f32.gmra.mxu0 %v7087
    %v7178 = vpop.f32.mrf.mxu0
    %v7179 = vadd.f32 0.0, %v7178
    %7180 = vmatmul.f32.gmra.mxu0 %v7090
    %v7181 = vpop.f32.mrf.mxu0
    %v7182 = vadd.f32 0.0, %v7181
    %7183 = vmatmul.f32.gmra.mxu0 %v7093
    %v7184 = vpop.f32.mrf.mxu0
    %v7185 = vadd.f32 0.0, %v7184
    %7186 = vmatmul.f32.gmra.mxu0 %v7096
    %v7187 = vpop.f32.mrf.mxu0
    %v7188 = vadd.f32 0.0, %v7187
    %7189 = vmatmul.f32.gmra.mxu0 %v7099
    %v7190 = vpop.f32.mrf.mxu0
    %v7191 = vadd.f32 0.0, %v7190
    %7192 = vmatmul.f32.gmra.mxu0 %v7102
    %v7193 = vpop.f32.mrf.mxu0
    %v7194 = vadd.f32 0.0, %v7193
    %7195 = vmatmul.f32.gmra.mxu0 %v7105
    %v7196 = vpop.f32.mrf.mxu0
    %v7197 = vadd.f32 0.0, %v7196
    %7198 = vmatmul.f32.gmra.mxu0 %v7108
    %v7199 = vpop.f32.mrf.mxu0
    %v7200 = vadd.f32 0.0, %v7199
    %7201 = vmatmul.f32.gmra.mxu0 %v7111
    %v7202 = vpop.f32.mrf.mxu0
    %v7203 = vadd.f32 0.0, %v7202
    %7204 = vmatmul.f32.gmra.mxu0 %v7114
    %v7205 = vpop.f32.mrf.mxu0
    %v7206 = vadd.f32 0.0, %v7205
    %7207 = vmatmul.f32.gmra.mxu0 %v7117
    %v7208 = vpop.f32.mrf.mxu0
    %v7209 = vadd.f32 0.0, %v7208
    %7210 = vmatmul.f32.gmra.mxu0 %v7120
    %v7211 = vpop.f32.mrf.mxu0
    %v7212 = vadd.f32 0.0, %v7211
    %7213 = vmatmul.f32.gmra.mxu0 %v7123
    %v7214 = vpop.f32.mrf.mxu0
    %v7215 = vadd.f32 0.0, %v7214
    %7216 = vdwg.mxu0
    %v7217 = vadd.f32 %v6997, %v7143
    %v7218 = vadd.f32 %v6998, %v7146
    %v7219 = vadd.f32 %v6999, %v7149
    %v7220 = vadd.f32 %v7000, %v7152
    %v7221 = vadd.f32 %v7001, %v7155
    %v7222 = vadd.f32 %v7002, %v7158
    %v7223 = vadd.f32 %v7003, %v7161
    %v7224 = vadd.f32 %v7004, %v7164
    %v7225 = vadd.f32 %v7005, %v7167
    %v7226 = vadd.f32 %v7006, %v7170
    %v7227 = vadd.f32 %v7007, %v7173
    %v7228 = vadd.f32 %v7008, %v7176
    %v7229 = vadd.f32 %v7009, %v7179
    %v7230 = vadd.f32 %v7010, %v7182
    %v7231 = vadd.f32 %v7011, %v7185
    %v7232 = vadd.f32 %v7012, %v7188
    %v7233 = vadd.f32 %v7013, %v7191
    %v7234 = vadd.f32 %v7014, %v7194
    %v7235 = vadd.f32 %v7015, %v7197
    %v7236 = vadd.f32 %v7016, %v7200
    %v7237 = vadd.f32 %v7017, %v7203
    %v7238 = vadd.f32 %v7018, %v7206
    %v7239 = vadd.f32 %v7019, %v7209
    %v7240 = vadd.f32 %v7020, %v7212
    %v7241 = vadd.f32 %v7021, %v7215
    %v7242 = vld [vmem:[#allocation2 + $0xc] sm:$0xff]
    %v7243 = vld [vmem:[#allocation2 + $0x14] sm:$0xff]
    %v7244 = vld [vmem:[#allocation2 + $0x1c] sm:$0xff]
    %v7245 = vld [vmem:[#allocation2 + $0x24] sm:$0xff]
    %v7246 = vld [vmem:[#allocation2 + $0x2c] sm:$0xff]
    %v7247 = vld [vmem:[#allocation2 + $0x34] sm:$0xff]
    %v7248 = vld [vmem:[#allocation2 + $0x3c] sm:$0xff]
    %v7249 = vld [vmem:[#allocation2 + $0x44] sm:$0xff]
    %v7250 = vld [vmem:[#allocation2 + $0x4c] sm:$0xff]
    %v7251 = vld [vmem:[#allocation2 + $0x54] sm:$0xff]
    %v7252 = vld [vmem:[#allocation2 + $0x5c] sm:$0xff]
    %v7253 = vld [vmem:[#allocation2 + $0x64] sm:$0xff]
    %v7254 = vld [vmem:[#allocation2 + $0x6c] sm:$0xff]
    %v7255 = vld [vmem:[#allocation2 + $0x74] sm:$0xff]
    %v7256 = vld [vmem:[#allocation2 + $0x7c] sm:$0xff]
    %v7257 = vld [vmem:[#allocation2 + $0x84] sm:$0xff]
    %v7258 = vld [vmem:[#allocation2 + $0x8c] sm:$0xff]
    %v7259 = vld [vmem:[#allocation2 + $0x94] sm:$0xff]
    %v7260 = vld [vmem:[#allocation2 + $0x9c] sm:$0xff]
    %v7261 = vld [vmem:[#allocation2 + $0xa4] sm:$0xff]
    %v7262 = vld [vmem:[#allocation2 + $0xac] sm:$0xff]
    %v7263 = vld [vmem:[#allocation2 + $0xb4] sm:$0xff]
    %v7264 = vld [vmem:[#allocation2 + $0xbc] sm:$0xff]
    %v7265 = vld [vmem:[#allocation2 + $0xc4] sm:$0xff]
    %v7266 = vld [vmem:[#allocation2 + $0xcc] sm:$0xff]
    %s7267 = scalar_lea.vmem %s2, 64
    %v7268 = vld [vmem:[%s7267] sm:$0xff]
    %v7269 = vld [vmem:[%s7267 + $0x8] sm:$0xff]
    %v7271 = vsel %vm6136, %v7242, 0
    %v7274 = vsel %vm6136, %v7243, 0
    %v7277 = vsel %vm6136, %v7244, 0
    %v7280 = vsel %vm6136, %v7245, 0
    %v7283 = vsel %vm6136, %v7246, 0
    %v7286 = vsel %vm6136, %v7247, 0
    %v7289 = vsel %vm6136, %v7248, 0
    %v7292 = vsel %vm6136, %v7249, 0
    %v7295 = vsel %vm6136, %v7250, 0
    %v7298 = vsel %vm6136, %v7251, 0
    %v7301 = vsel %vm6136, %v7252, 0
    %v7304 = vsel %vm6136, %v7253, 0
    %v7307 = vsel %vm6136, %v7254, 0
    %v7310 = vsel %vm6136, %v7255, 0
    %v7313 = vsel %vm6136, %v7256, 0
    %v7316 = vsel %vm6136, %v7257, 0
    %v7319 = vsel %vm6136, %v7258, 0
    %v7322 = vsel %vm6136, %v7259, 0
    %v7325 = vsel %vm6136, %v7260, 0
    %v7328 = vsel %vm6136, %v7261, 0
    %v7331 = vsel %vm6136, %v7262, 0
    %v7334 = vsel %vm6136, %v7263, 0
    %v7337 = vsel %vm6136, %v7264, 0
    %v7340 = vsel %vm6136, %v7265, 0
    %v7343 = vsel %vm6136, %v7266, 0
    %7345 = vmatpush.msra.mxu0 0.0
    %7346 = vmatpush.msra.mxu0 0.0
    %7347 = vmatpush.msra.mxu0 0.0
    %7348 = vmatpush.msra.mxu0 0.0
    %7349 = vmatpush.msra.mxu0 0.0
    %7350 = vmatpush.msra.mxu0 0.0
    %7351 = vmatpush.msra.mxu0 0.0
    %7352 = vmatpush.msra.mxu0 0.0
    %7353 = vmatpush.msra.mxu0 0.0
    %7354 = vmatpush.msra.mxu0 0.0
    %7355 = vmatpush.msra.mxu0 0.0
    %7356 = vmatpush.msra.mxu0 0.0
    %7357 = vmatpush.msra.mxu0 0.0
    %7358 = vmatpush.msra.mxu0 0.0
    %7359 = vmatpush.msra.mxu0 %v7269
    %7360 = vmatpush.msra.mxu0 %v7268
    %7361 = vmatmul.f32.gmra.mxu0 %v7271
    %v7362 = vpop.f32.mrf.mxu0
    %v7363 = vadd.f32 0.0, %v7362
    %7364 = vmatmul.f32.gmra.mxu0 %v7274
    %v7365 = vpop.f32.mrf.mxu0
    %v7366 = vadd.f32 0.0, %v7365
    %7367 = vmatmul.f32.gmra.mxu0 %v7277
    %v7368 = vpop.f32.mrf.mxu0
    %v7369 = vadd.f32 0.0, %v7368
    %7370 = vmatmul.f32.gmra.mxu0 %v7280
    %v7371 = vpop.f32.mrf.mxu0
    %v7372 = vadd.f32 0.0, %v7371
    %7373 = vmatmul.f32.gmra.mxu0 %v7283
    %v7374 = vpop.f32.mrf.mxu0
    %v7375 = vadd.f32 0.0, %v7374
    %7376 = vmatmul.f32.gmra.mxu0 %v7286
    %v7377 = vpop.f32.mrf.mxu0
    %v7378 = vadd.f32 0.0, %v7377
    %7379 = vmatmul.f32.gmra.mxu0 %v7289
    %v7380 = vpop.f32.mrf.mxu0
    %v7381 = vadd.f32 0.0, %v7380
    %7382 = vmatmul.f32.gmra.mxu0 %v7292
    %v7383 = vpop.f32.mrf.mxu0
    %v7384 = vadd.f32 0.0, %v7383
    %7385 = vmatmul.f32.gmra.mxu0 %v7295
    %v7386 = vpop.f32.mrf.mxu0
    %v7387 = vadd.f32 0.0, %v7386
    %7388 = vmatmul.f32.gmra.mxu0 %v7298
    %v7389 = vpop.f32.mrf.mxu0
    %v7390 = vadd.f32 0.0, %v7389
    %7391 = vmatmul.f32.gmra.mxu0 %v7301
    %v7392 = vpop.f32.mrf.mxu0
    %v7393 = vadd.f32 0.0, %v7392
    %7394 = vmatmul.f32.gmra.mxu0 %v7304
    %v7395 = vpop.f32.mrf.mxu0
    %v7396 = vadd.f32 0.0, %v7395
    %7397 = vmatmul.f32.gmra.mxu0 %v7307
    %v7398 = vpop.f32.mrf.mxu0
    %v7399 = vadd.f32 0.0, %v7398
    %7400 = vmatmul.f32.gmra.mxu0 %v7310
    %v7401 = vpop.f32.mrf.mxu0
    %v7402 = vadd.f32 0.0, %v7401
    %7403 = vmatmul.f32.gmra.mxu0 %v7313
    %v7404 = vpop.f32.mrf.mxu0
    %v7405 = vadd.f32 0.0, %v7404
    %7406 = vmatmul.f32.gmra.mxu0 %v7316
    %v7407 = vpop.f32.mrf.mxu0
    %v7408 = vadd.f32 0.0, %v7407
    %7409 = vmatmul.f32.gmra.mxu0 %v7319
    %v7410 = vpop.f32.mrf.mxu0
    %v7411 = vadd.f32 0.0, %v7410
    %7412 = vmatmul.f32.gmra.mxu0 %v7322
    %v7413 = vpop.f32.mrf.mxu0
    %v7414 = vadd.f32 0.0, %v7413
    %7415 = vmatmul.f32.gmra.mxu0 %v7325
    %v7416 = vpop.f32.mrf.mxu0
    %v7417 = vadd.f32 0.0, %v7416
    %7418 = vmatmul.f32.gmra.mxu0 %v7328
    %v7419 = vpop.f32.mrf.mxu0
    %v7420 = vadd.f32 0.0, %v7419
    %7421 = vmatmul.f32.gmra.mxu0 %v7331
    %v7422 = vpop.f32.mrf.mxu0
    %v7423 = vadd.f32 0.0, %v7422
    %7424 = vmatmul.f32.gmra.mxu0 %v7334
    %v7425 = vpop.f32.mrf.mxu0
    %v7426 = vadd.f32 0.0, %v7425
    %7427 = vmatmul.f32.gmra.mxu0 %v7337
    %v7428 = vpop.f32.mrf.mxu0
    %v7429 = vadd.f32 0.0, %v7428
    %7430 = vmatmul.f32.gmra.mxu0 %v7340
    %v7431 = vpop.f32.mrf.mxu0
    %v7432 = vadd.f32 0.0, %v7431
    %7433 = vmatmul.f32.gmra.mxu0 %v7343
    %v7434 = vpop.f32.mrf.mxu0
    %v7435 = vadd.f32 0.0, %v7434
    %7436 = vdwg.mxu0
    %v7437 = vadd.f32 %v7217, %v7363
    %v7438 = vadd.f32 %v7218, %v7366
    %v7439 = vadd.f32 %v7219, %v7369
    %v7440 = vadd.f32 %v7220, %v7372
    %v7441 = vadd.f32 %v7221, %v7375
    %v7442 = vadd.f32 %v7222, %v7378
    %v7443 = vadd.f32 %v7223, %v7381
    %v7444 = vadd.f32 %v7224, %v7384
    %v7445 = vadd.f32 %v7225, %v7387
    %v7446 = vadd.f32 %v7226, %v7390
    %v7447 = vadd.f32 %v7227, %v7393
    %v7448 = vadd.f32 %v7228, %v7396
    %v7449 = vadd.f32 %v7229, %v7399
    %v7450 = vadd.f32 %v7230, %v7402
    %v7451 = vadd.f32 %v7231, %v7405
    %v7452 = vadd.f32 %v7232, %v7408
    %v7453 = vadd.f32 %v7233, %v7411
    %v7454 = vadd.f32 %v7234, %v7414
    %v7455 = vadd.f32 %v7235, %v7417
    %v7456 = vadd.f32 %v7236, %v7420
    %v7457 = vadd.f32 %v7237, %v7423
    %v7458 = vadd.f32 %v7238, %v7426
    %v7459 = vadd.f32 %v7239, %v7429
    %v7460 = vadd.f32 %v7240, %v7432
    %v7461 = vadd.f32 %v7241, %v7435
    %v7462 = vld [vmem:[#allocation2 + $0xd] sm:$0xff]
    %v7463 = vld [vmem:[#allocation2 + $0x15] sm:$0xff]
    %v7464 = vld [vmem:[#allocation2 + $0x1d] sm:$0xff]
    %v7465 = vld [vmem:[#allocation2 + $0x25] sm:$0xff]
    %v7466 = vld [vmem:[#allocation2 + $0x2d] sm:$0xff]
    %v7467 = vld [vmem:[#allocation2 + $0x35] sm:$0xff]
    %v7468 = vld [vmem:[#allocation2 + $0x3d] sm:$0xff]
    %v7469 = vld [vmem:[#allocation2 + $0x45] sm:$0xff]
    %v7470 = vld [vmem:[#allocation2 + $0x4d] sm:$0xff]
    %v7471 = vld [vmem:[#allocation2 + $0x55] sm:$0xff]
    %v7472 = vld [vmem:[#allocation2 + $0x5d] sm:$0xff]
    %v7473 = vld [vmem:[#allocation2 + $0x65] sm:$0xff]
    %v7474 = vld [vmem:[#allocation2 + $0x6d] sm:$0xff]
    %v7475 = vld [vmem:[#allocation2 + $0x75] sm:$0xff]
    %v7476 = vld [vmem:[#allocation2 + $0x7d] sm:$0xff]
    %v7477 = vld [vmem:[#allocation2 + $0x85] sm:$0xff]
    %v7478 = vld [vmem:[#allocation2 + $0x8d] sm:$0xff]
    %v7479 = vld [vmem:[#allocation2 + $0x95] sm:$0xff]
    %v7480 = vld [vmem:[#allocation2 + $0x9d] sm:$0xff]
    %v7481 = vld [vmem:[#allocation2 + $0xa5] sm:$0xff]
    %v7482 = vld [vmem:[#allocation2 + $0xad] sm:$0xff]
    %v7483 = vld [vmem:[#allocation2 + $0xb5] sm:$0xff]
    %v7484 = vld [vmem:[#allocation2 + $0xbd] sm:$0xff]
    %v7485 = vld [vmem:[#allocation2 + $0xc5] sm:$0xff]
    %v7486 = vld [vmem:[#allocation2 + $0xcd] sm:$0xff]
    %s7487 = scalar_lea.vmem %s2, 80
    %v7488 = vld [vmem:[%s7487] sm:$0xff]
    %v7489 = vld [vmem:[%s7487 + $0x8] sm:$0xff]
    %v7491 = vsel %vm6136, %v7462, 0
    %v7494 = vsel %vm6136, %v7463, 0
    %v7497 = vsel %vm6136, %v7464, 0
    %v7500 = vsel %vm6136, %v7465, 0
    %v7503 = vsel %vm6136, %v7466, 0
    %v7506 = vsel %vm6136, %v7467, 0
    %v7509 = vsel %vm6136, %v7468, 0
    %v7512 = vsel %vm6136, %v7469, 0
    %v7515 = vsel %vm6136, %v7470, 0
    %v7518 = vsel %vm6136, %v7471, 0
    %v7521 = vsel %vm6136, %v7472, 0
    %v7524 = vsel %vm6136, %v7473, 0
    %v7527 = vsel %vm6136, %v7474, 0
    %v7530 = vsel %vm6136, %v7475, 0
    %v7533 = vsel %vm6136, %v7476, 0
    %v7536 = vsel %vm6136, %v7477, 0
    %v7539 = vsel %vm6136, %v7478, 0
    %v7542 = vsel %vm6136, %v7479, 0
    %v7545 = vsel %vm6136, %v7480, 0
    %v7548 = vsel %vm6136, %v7481, 0
    %v7551 = vsel %vm6136, %v7482, 0
    %v7554 = vsel %vm6136, %v7483, 0
    %v7557 = vsel %vm6136, %v7484, 0
    %v7560 = vsel %vm6136, %v7485, 0
    %v7563 = vsel %vm6136, %v7486, 0
    %7565 = vmatpush.msra.mxu0 0.0
    %7566 = vmatpush.msra.mxu0 0.0
    %7567 = vmatpush.msra.mxu0 0.0
    %7568 = vmatpush.msra.mxu0 0.0
    %7569 = vmatpush.msra.mxu0 0.0
    %7570 = vmatpush.msra.mxu0 0.0
    %7571 = vmatpush.msra.mxu0 0.0
    %7572 = vmatpush.msra.mxu0 0.0
    %7573 = vmatpush.msra.mxu0 0.0
    %7574 = vmatpush.msra.mxu0 0.0
    %7575 = vmatpush.msra.mxu0 0.0
    %7576 = vmatpush.msra.mxu0 0.0
    %7577 = vmatpush.msra.mxu0 0.0
    %7578 = vmatpush.msra.mxu0 0.0
    %7579 = vmatpush.msra.mxu0 %v7489
    %7580 = vmatpush.msra.mxu0 %v7488
    %7581 = vmatmul.f32.gmra.mxu0 %v7491
    %v7582 = vpop.f32.mrf.mxu0
    %v7583 = vadd.f32 0.0, %v7582
    %7584 = vmatmul.f32.gmra.mxu0 %v7494
    %v7585 = vpop.f32.mrf.mxu0
    %v7586 = vadd.f32 0.0, %v7585
    %7587 = vmatmul.f32.gmra.mxu0 %v7497
    %v7588 = vpop.f32.mrf.mxu0
    %v7589 = vadd.f32 0.0, %v7588
    %7590 = vmatmul.f32.gmra.mxu0 %v7500
    %v7591 = vpop.f32.mrf.mxu0
    %v7592 = vadd.f32 0.0, %v7591
    %7593 = vmatmul.f32.gmra.mxu0 %v7503
    %v7594 = vpop.f32.mrf.mxu0
    %v7595 = vadd.f32 0.0, %v7594
    %7596 = vmatmul.f32.gmra.mxu0 %v7506
    %v7597 = vpop.f32.mrf.mxu0
    %v7598 = vadd.f32 0.0, %v7597
    %7599 = vmatmul.f32.gmra.mxu0 %v7509
    %v7600 = vpop.f32.mrf.mxu0
    %v7601 = vadd.f32 0.0, %v7600
    %7602 = vmatmul.f32.gmra.mxu0 %v7512
    %v7603 = vpop.f32.mrf.mxu0
    %v7604 = vadd.f32 0.0, %v7603
    %7605 = vmatmul.f32.gmra.mxu0 %v7515
    %v7606 = vpop.f32.mrf.mxu0
    %v7607 = vadd.f32 0.0, %v7606
    %7608 = vmatmul.f32.gmra.mxu0 %v7518
    %v7609 = vpop.f32.mrf.mxu0
    %v7610 = vadd.f32 0.0, %v7609
    %7611 = vmatmul.f32.gmra.mxu0 %v7521
    %v7612 = vpop.f32.mrf.mxu0
    %v7613 = vadd.f32 0.0, %v7612
    %7614 = vmatmul.f32.gmra.mxu0 %v7524
    %v7615 = vpop.f32.mrf.mxu0
    %v7616 = vadd.f32 0.0, %v7615
    %7617 = vmatmul.f32.gmra.mxu0 %v7527
    %v7618 = vpop.f32.mrf.mxu0
    %v7619 = vadd.f32 0.0, %v7618
    %7620 = vmatmul.f32.gmra.mxu0 %v7530
    %v7621 = vpop.f32.mrf.mxu0
    %v7622 = vadd.f32 0.0, %v7621
    %7623 = vmatmul.f32.gmra.mxu0 %v7533
    %v7624 = vpop.f32.mrf.mxu0
    %v7625 = vadd.f32 0.0, %v7624
    %7626 = vmatmul.f32.gmra.mxu0 %v7536
    %v7627 = vpop.f32.mrf.mxu0
    %v7628 = vadd.f32 0.0, %v7627
    %7629 = vmatmul.f32.gmra.mxu0 %v7539
    %v7630 = vpop.f32.mrf.mxu0
    %v7631 = vadd.f32 0.0, %v7630
    %7632 = vmatmul.f32.gmra.mxu0 %v7542
    %v7633 = vpop.f32.mrf.mxu0
    %v7634 = vadd.f32 0.0, %v7633
    %7635 = vmatmul.f32.gmra.mxu0 %v7545
    %v7636 = vpop.f32.mrf.mxu0
    %v7637 = vadd.f32 0.0, %v7636
    %7638 = vmatmul.f32.gmra.mxu0 %v7548
    %v7639 = vpop.f32.mrf.mxu0
    %v7640 = vadd.f32 0.0, %v7639
    %7641 = vmatmul.f32.gmra.mxu0 %v7551
    %v7642 = vpop.f32.mrf.mxu0
    %v7643 = vadd.f32 0.0, %v7642
    %7644 = vmatmul.f32.gmra.mxu0 %v7554
    %v7645 = vpop.f32.mrf.mxu0
    %v7646 = vadd.f32 0.0, %v7645
    %7647 = vmatmul.f32.gmra.mxu0 %v7557
    %v7648 = vpop.f32.mrf.mxu0
    %v7649 = vadd.f32 0.0, %v7648
    %7650 = vmatmul.f32.gmra.mxu0 %v7560
    %v7651 = vpop.f32.mrf.mxu0
    %v7652 = vadd.f32 0.0, %v7651
    %7653 = vmatmul.f32.gmra.mxu0 %v7563
    %v7654 = vpop.f32.mrf.mxu0
    %v7655 = vadd.f32 0.0, %v7654
    %7656 = vdwg.mxu0
    %v7657 = vadd.f32 %v7437, %v7583
    %v7658 = vadd.f32 %v7438, %v7586
    %v7659 = vadd.f32 %v7439, %v7589
    %v7660 = vadd.f32 %v7440, %v7592
    %v7661 = vadd.f32 %v7441, %v7595
    %v7662 = vadd.f32 %v7442, %v7598
    %v7663 = vadd.f32 %v7443, %v7601
    %v7664 = vadd.f32 %v7444, %v7604
    %v7665 = vadd.f32 %v7445, %v7607
    %v7666 = vadd.f32 %v7446, %v7610
    %v7667 = vadd.f32 %v7447, %v7613
    %v7668 = vadd.f32 %v7448, %v7616
    %v7669 = vadd.f32 %v7449, %v7619
    %v7670 = vadd.f32 %v7450, %v7622
    %v7671 = vadd.f32 %v7451, %v7625
    %v7672 = vadd.f32 %v7452, %v7628
    %v7673 = vadd.f32 %v7453, %v7631
    %v7674 = vadd.f32 %v7454, %v7634
    %v7675 = vadd.f32 %v7455, %v7637
    %v7676 = vadd.f32 %v7456, %v7640
    %v7677 = vadd.f32 %v7457, %v7643
    %v7678 = vadd.f32 %v7458, %v7646
    %v7679 = vadd.f32 %v7459, %v7649
    %v7680 = vadd.f32 %v7460, %v7652
    %v7681 = vadd.f32 %v7461, %v7655
    %v7682 = vld [vmem:[#allocation2 + $0x15] sm:$0xff]
    %v7683 = vld [vmem:[#allocation2 + $0x1d] sm:$0xff]
    %v7684 = vld [vmem:[#allocation2 + $0x25] sm:$0xff]
    %v7685 = vld [vmem:[#allocation2 + $0x2d] sm:$0xff]
    %v7686 = vld [vmem:[#allocation2 + $0x35] sm:$0xff]
    %v7687 = vld [vmem:[#allocation2 + $0x3d] sm:$0xff]
    %v7688 = vld [vmem:[#allocation2 + $0x45] sm:$0xff]
    %v7689 = vld [vmem:[#allocation2 + $0x4d] sm:$0xff]
    %v7690 = vld [vmem:[#allocation2 + $0x55] sm:$0xff]
    %v7691 = vld [vmem:[#allocation2 + $0x5d] sm:$0xff]
    %v7692 = vld [vmem:[#allocation2 + $0x65] sm:$0xff]
    %v7693 = vld [vmem:[#allocation2 + $0x6d] sm:$0xff]
    %v7694 = vld [vmem:[#allocation2 + $0x75] sm:$0xff]
    %v7695 = vld [vmem:[#allocation2 + $0x7d] sm:$0xff]
    %v7696 = vld [vmem:[#allocation2 + $0x85] sm:$0xff]
    %v7697 = vld [vmem:[#allocation2 + $0x8d] sm:$0xff]
    %v7698 = vld [vmem:[#allocation2 + $0x95] sm:$0xff]
    %v7699 = vld [vmem:[#allocation2 + $0x9d] sm:$0xff]
    %v7700 = vld [vmem:[#allocation2 + $0xa5] sm:$0xff]
    %v7701 = vld [vmem:[#allocation2 + $0xad] sm:$0xff]
    %v7702 = vld [vmem:[#allocation2 + $0xb5] sm:$0xff]
    %v7703 = vld [vmem:[#allocation2 + $0xbd] sm:$0xff]
    %v7704 = vld [vmem:[#allocation2 + $0xc5] sm:$0xff]
    %v7705 = vld [vmem:[#allocation2 + $0xcd] sm:$0xff]
    %v7706 = vld [vmem:[#allocation2 + $0xd5] sm:$0xff]
    %s7707 = scalar_lea.vmem %s2, 96
    %v7708 = vld [vmem:[%s7707] sm:$0xff]
    %v7709 = vld [vmem:[%s7707 + $0x8] sm:$0xff]
    %v7711 = vsel %vm6136, %v7682, 0
    %v7714 = vsel %vm6136, %v7683, 0
    %v7717 = vsel %vm6136, %v7684, 0
    %v7720 = vsel %vm6136, %v7685, 0
    %v7723 = vsel %vm6136, %v7686, 0
    %v7726 = vsel %vm6136, %v7687, 0
    %v7729 = vsel %vm6136, %v7688, 0
    %v7732 = vsel %vm6136, %v7689, 0
    %v7735 = vsel %vm6136, %v7690, 0
    %v7738 = vsel %vm6136, %v7691, 0
    %v7741 = vsel %vm6136, %v7692, 0
    %v7744 = vsel %vm6136, %v7693, 0
    %v7747 = vsel %vm6136, %v7694, 0
    %v7750 = vsel %vm6136, %v7695, 0
    %v7753 = vsel %vm6136, %v7696, 0
    %v7756 = vsel %vm6136, %v7697, 0
    %v7759 = vsel %vm6136, %v7698, 0
    %v7762 = vsel %vm6136, %v7699, 0
    %v7765 = vsel %vm6136, %v7700, 0
    %v7768 = vsel %vm6136, %v7701, 0
    %v7771 = vsel %vm6136, %v7702, 0
    %v7774 = vsel %vm6136, %v7703, 0
    %v7777 = vsel %vm6136, %v7704, 0
    %v7780 = vsel %vm6136, %v7705, 0
    %v7783 = vsel %vm6136, %v7706, 0
    %7785 = vmatpush.msra.mxu0 0.0
    %7786 = vmatpush.msra.mxu0 0.0
    %7787 = vmatpush.msra.mxu0 0.0
    %7788 = vmatpush.msra.mxu0 0.0
    %7789 = vmatpush.msra.mxu0 0.0
    %7790 = vmatpush.msra.mxu0 0.0
    %7791 = vmatpush.msra.mxu0 0.0
    %7792 = vmatpush.msra.mxu0 0.0
    %7793 = vmatpush.msra.mxu0 0.0
    %7794 = vmatpush.msra.mxu0 0.0
    %7795 = vmatpush.msra.mxu0 0.0
    %7796 = vmatpush.msra.mxu0 0.0
    %7797 = vmatpush.msra.mxu0 0.0
    %7798 = vmatpush.msra.mxu0 0.0
    %7799 = vmatpush.msra.mxu0 %v7709
    %7800 = vmatpush.msra.mxu0 %v7708
    %7801 = vmatmul.f32.gmra.mxu0 %v7711
    %v7802 = vpop.f32.mrf.mxu0
    %v7803 = vadd.f32 0.0, %v7802
    %7804 = vmatmul.f32.gmra.mxu0 %v7714
    %v7805 = vpop.f32.mrf.mxu0
    %v7806 = vadd.f32 0.0, %v7805
    %7807 = vmatmul.f32.gmra.mxu0 %v7717
    %v7808 = vpop.f32.mrf.mxu0
    %v7809 = vadd.f32 0.0, %v7808
    %7810 = vmatmul.f32.gmra.mxu0 %v7720
    %v7811 = vpop.f32.mrf.mxu0
    %v7812 = vadd.f32 0.0, %v7811
    %7813 = vmatmul.f32.gmra.mxu0 %v7723
    %v7814 = vpop.f32.mrf.mxu0
    %v7815 = vadd.f32 0.0, %v7814
    %7816 = vmatmul.f32.gmra.mxu0 %v7726
    %v7817 = vpop.f32.mrf.mxu0
    %v7818 = vadd.f32 0.0, %v7817
    %7819 = vmatmul.f32.gmra.mxu0 %v7729
    %v7820 = vpop.f32.mrf.mxu0
    %v7821 = vadd.f32 0.0, %v7820
    %7822 = vmatmul.f32.gmra.mxu0 %v7732
    %v7823 = vpop.f32.mrf.mxu0
    %v7824 = vadd.f32 0.0, %v7823
    %7825 = vmatmul.f32.gmra.mxu0 %v7735
    %v7826 = vpop.f32.mrf.mxu0
    %v7827 = vadd.f32 0.0, %v7826
    %7828 = vmatmul.f32.gmra.mxu0 %v7738
    %v7829 = vpop.f32.mrf.mxu0
    %v7830 = vadd.f32 0.0, %v7829
    %7831 = vmatmul.f32.gmra.mxu0 %v7741
    %v7832 = vpop.f32.mrf.mxu0
    %v7833 = vadd.f32 0.0, %v7832
    %7834 = vmatmul.f32.gmra.mxu0 %v7744
    %v7835 = vpop.f32.mrf.mxu0
    %v7836 = vadd.f32 0.0, %v7835
    %7837 = vmatmul.f32.gmra.mxu0 %v7747
    %v7838 = vpop.f32.mrf.mxu0
    %v7839 = vadd.f32 0.0, %v7838
    %7840 = vmatmul.f32.gmra.mxu0 %v7750
    %v7841 = vpop.f32.mrf.mxu0
    %v7842 = vadd.f32 0.0, %v7841
    %7843 = vmatmul.f32.gmra.mxu0 %v7753
    %v7844 = vpop.f32.mrf.mxu0
    %v7845 = vadd.f32 0.0, %v7844
    %7846 = vmatmul.f32.gmra.mxu0 %v7756
    %v7847 = vpop.f32.mrf.mxu0
    %v7848 = vadd.f32 0.0, %v7847
    %7849 = vmatmul.f32.gmra.mxu0 %v7759
    %v7850 = vpop.f32.mrf.mxu0
    %v7851 = vadd.f32 0.0, %v7850
    %7852 = vmatmul.f32.gmra.mxu0 %v7762
    %v7853 = vpop.f32.mrf.mxu0
    %v7854 = vadd.f32 0.0, %v7853
    %7855 = vmatmul.f32.gmra.mxu0 %v7765
    %v7856 = vpop.f32.mrf.mxu0
    %v7857 = vadd.f32 0.0, %v7856
    %7858 = vmatmul.f32.gmra.mxu0 %v7768
    %v7859 = vpop.f32.mrf.mxu0
    %v7860 = vadd.f32 0.0, %v7859
    %7861 = vmatmul.f32.gmra.mxu0 %v7771
    %v7862 = vpop.f32.mrf.mxu0
    %v7863 = vadd.f32 0.0, %v7862
    %7864 = vmatmul.f32.gmra.mxu0 %v7774
    %v7865 = vpop.f32.mrf.mxu0
    %v7866 = vadd.f32 0.0, %v7865
    %7867 = vmatmul.f32.gmra.mxu0 %v7777
    %v7868 = vpop.f32.mrf.mxu0
    %v7869 = vadd.f32 0.0, %v7868
    %7870 = vmatmul.f32.gmra.mxu0 %v7780
    %v7871 = vpop.f32.mrf.mxu0
    %v7872 = vadd.f32 0.0, %v7871
    %7873 = vmatmul.f32.gmra.mxu0 %v7783
    %v7874 = vpop.f32.mrf.mxu0
    %v7875 = vadd.f32 0.0, %v7874
    %7876 = vdwg.mxu0
    %v7877 = vadd.f32 %v7657, %v7803
    %v7878 = vadd.f32 %v7658, %v7806
    %v7879 = vadd.f32 %v7659, %v7809
    %v7880 = vadd.f32 %v7660, %v7812
    %v7881 = vadd.f32 %v7661, %v7815
    %v7882 = vadd.f32 %v7662, %v7818
    %v7883 = vadd.f32 %v7663, %v7821
    %v7884 = vadd.f32 %v7664, %v7824
    %v7885 = vadd.f32 %v7665, %v7827
    %v7886 = vadd.f32 %v7666, %v7830
    %v7887 = vadd.f32 %v7667, %v7833
    %v7888 = vadd.f32 %v7668, %v7836
    %v7889 = vadd.f32 %v7669, %v7839
    %v7890 = vadd.f32 %v7670, %v7842
    %v7891 = vadd.f32 %v7671, %v7845
    %v7892 = vadd.f32 %v7672, %v7848
    %v7893 = vadd.f32 %v7673, %v7851
    %v7894 = vadd.f32 %v7674, %v7854
    %v7895 = vadd.f32 %v7675, %v7857
    %v7896 = vadd.f32 %v7676, %v7860
    %v7897 = vadd.f32 %v7677, %v7863
    %v7898 = vadd.f32 %v7678, %v7866
    %v7899 = vadd.f32 %v7679, %v7869
    %v7900 = vadd.f32 %v7680, %v7872
    %v7901 = vadd.f32 %v7681, %v7875
    %v7902 = vld [vmem:[#allocation2 + $0x16] sm:$0xff]
    %v7903 = vld [vmem:[#allocation2 + $0x1e] sm:$0xff]
    %v7904 = vld [vmem:[#allocation2 + $0x26] sm:$0xff]
    %v7905 = vld [vmem:[#allocation2 + $0x2e] sm:$0xff]
    %v7906 = vld [vmem:[#allocation2 + $0x36] sm:$0xff]
    %v7907 = vld [vmem:[#allocation2 + $0x3e] sm:$0xff]
    %v7908 = vld [vmem:[#allocation2 + $0x46] sm:$0xff]
    %v7909 = vld [vmem:[#allocation2 + $0x4e] sm:$0xff]
    %v7910 = vld [vmem:[#allocation2 + $0x56] sm:$0xff]
    %v7911 = vld [vmem:[#allocation2 + $0x5e] sm:$0xff]
    %v7912 = vld [vmem:[#allocation2 + $0x66] sm:$0xff]
    %v7913 = vld [vmem:[#allocation2 + $0x6e] sm:$0xff]
    %v7914 = vld [vmem:[#allocation2 + $0x76] sm:$0xff]
    %v7915 = vld [vmem:[#allocation2 + $0x7e] sm:$0xff]
    %v7916 = vld [vmem:[#allocation2 + $0x86] sm:$0xff]
    %v7917 = vld [vmem:[#allocation2 + $0x8e] sm:$0xff]
    %v7918 = vld [vmem:[#allocation2 + $0x96] sm:$0xff]
    %v7919 = vld [vmem:[#allocation2 + $0x9e] sm:$0xff]
    %v7920 = vld [vmem:[#allocation2 + $0xa6] sm:$0xff]
    %v7921 = vld [vmem:[#allocation2 + $0xae] sm:$0xff]
    %v7922 = vld [vmem:[#allocation2 + $0xb6] sm:$0xff]
    %v7923 = vld [vmem:[#allocation2 + $0xbe] sm:$0xff]
    %v7924 = vld [vmem:[#allocation2 + $0xc6] sm:$0xff]
    %v7925 = vld [vmem:[#allocation2 + $0xce] sm:$0xff]
    %v7926 = vld [vmem:[#allocation2 + $0xd6] sm:$0xff]
    %s7927 = scalar_lea.vmem %s2, 112
    %v7928 = vld [vmem:[%s7927] sm:$0xff]
    %v7929 = vld [vmem:[%s7927 + $0x8] sm:$0xff]
    %v7931 = vsel %vm6136, %v7902, 0
    %v7934 = vsel %vm6136, %v7903, 0
    %v7937 = vsel %vm6136, %v7904, 0
    %v7940 = vsel %vm6136, %v7905, 0
    %v7943 = vsel %vm6136, %v7906, 0
    %v7946 = vsel %vm6136, %v7907, 0
    %v7949 = vsel %vm6136, %v7908, 0
    %v7952 = vsel %vm6136, %v7909, 0
    %v7955 = vsel %vm6136, %v7910, 0
    %v7958 = vsel %vm6136, %v7911, 0
    %v7961 = vsel %vm6136, %v7912, 0
    %v7964 = vsel %vm6136, %v7913, 0
    %v7967 = vsel %vm6136, %v7914, 0
    %v7970 = vsel %vm6136, %v7915, 0
    %v7973 = vsel %vm6136, %v7916, 0
    %v7976 = vsel %vm6136, %v7917, 0
    %v7979 = vsel %vm6136, %v7918, 0
    %v7982 = vsel %vm6136, %v7919, 0
    %v7985 = vsel %vm6136, %v7920, 0
    %v7988 = vsel %vm6136, %v7921, 0
    %v7991 = vsel %vm6136, %v7922, 0
    %v7994 = vsel %vm6136, %v7923, 0
    %v7997 = vsel %vm6136, %v7924, 0
    %v8000 = vsel %vm6136, %v7925, 0
    %v8003 = vsel %vm6136, %v7926, 0
    %8005 = vmatpush.msra.mxu0 0.0
    %8006 = vmatpush.msra.mxu0 0.0
    %8007 = vmatpush.msra.mxu0 0.0
    %8008 = vmatpush.msra.mxu0 0.0
    %8009 = vmatpush.msra.mxu0 0.0
    %8010 = vmatpush.msra.mxu0 0.0
    %8011 = vmatpush.msra.mxu0 0.0
    %8012 = vmatpush.msra.mxu0 0.0
    %8013 = vmatpush.msra.mxu0 0.0
    %8014 = vmatpush.msra.mxu0 0.0
    %8015 = vmatpush.msra.mxu0 0.0
    %8016 = vmatpush.msra.mxu0 0.0
    %8017 = vmatpush.msra.mxu0 0.0
    %8018 = vmatpush.msra.mxu0 0.0
    %8019 = vmatpush.msra.mxu0 %v7929
    %8020 = vmatpush.msra.mxu0 %v7928
    %8021 = vmatmul.f32.gmra.mxu0 %v7931
    %v8022 = vpop.f32.mrf.mxu0
    %v8023 = vadd.f32 0.0, %v8022
    %8024 = vmatmul.f32.gmra.mxu0 %v7934
    %v8025 = vpop.f32.mrf.mxu0
    %v8026 = vadd.f32 0.0, %v8025
    %8027 = vmatmul.f32.gmra.mxu0 %v7937
    %v8028 = vpop.f32.mrf.mxu0
    %v8029 = vadd.f32 0.0, %v8028
    %8030 = vmatmul.f32.gmra.mxu0 %v7940
    %v8031 = vpop.f32.mrf.mxu0
    %v8032 = vadd.f32 0.0, %v8031
    %8033 = vmatmul.f32.gmra.mxu0 %v7943
    %v8034 = vpop.f32.mrf.mxu0
    %v8035 = vadd.f32 0.0, %v8034
    %8036 = vmatmul.f32.gmra.mxu0 %v7946
    %v8037 = vpop.f32.mrf.mxu0
    %v8038 = vadd.f32 0.0, %v8037
    %8039 = vmatmul.f32.gmra.mxu0 %v7949
    %v8040 = vpop.f32.mrf.mxu0
    %v8041 = vadd.f32 0.0, %v8040
    %8042 = vmatmul.f32.gmra.mxu0 %v7952
    %v8043 = vpop.f32.mrf.mxu0
    %v8044 = vadd.f32 0.0, %v8043
    %8045 = vmatmul.f32.gmra.mxu0 %v7955
    %v8046 = vpop.f32.mrf.mxu0
    %v8047 = vadd.f32 0.0, %v8046
    %8048 = vmatmul.f32.gmra.mxu0 %v7958
    %v8049 = vpop.f32.mrf.mxu0
    %v8050 = vadd.f32 0.0, %v8049
    %8051 = vmatmul.f32.gmra.mxu0 %v7961
    %v8052 = vpop.f32.mrf.mxu0
    %v8053 = vadd.f32 0.0, %v8052
    %8054 = vmatmul.f32.gmra.mxu0 %v7964
    %v8055 = vpop.f32.mrf.mxu0
    %v8056 = vadd.f32 0.0, %v8055
    %8057 = vmatmul.f32.gmra.mxu0 %v7967
    %v8058 = vpop.f32.mrf.mxu0
    %v8059 = vadd.f32 0.0, %v8058
    %8060 = vmatmul.f32.gmra.mxu0 %v7970
    %v8061 = vpop.f32.mrf.mxu0
    %v8062 = vadd.f32 0.0, %v8061
    %8063 = vmatmul.f32.gmra.mxu0 %v7973
    %v8064 = vpop.f32.mrf.mxu0
    %v8065 = vadd.f32 0.0, %v8064
    %8066 = vmatmul.f32.gmra.mxu0 %v7976
    %v8067 = vpop.f32.mrf.mxu0
    %v8068 = vadd.f32 0.0, %v8067
    %8069 = vmatmul.f32.gmra.mxu0 %v7979
    %v8070 = vpop.f32.mrf.mxu0
    %v8071 = vadd.f32 0.0, %v8070
    %8072 = vmatmul.f32.gmra.mxu0 %v7982
    %v8073 = vpop.f32.mrf.mxu0
    %v8074 = vadd.f32 0.0, %v8073
    %8075 = vmatmul.f32.gmra.mxu0 %v7985
    %v8076 = vpop.f32.mrf.mxu0
    %v8077 = vadd.f32 0.0, %v8076
    %8078 = vmatmul.f32.gmra.mxu0 %v7988
    %v8079 = vpop.f32.mrf.mxu0
    %v8080 = vadd.f32 0.0, %v8079
    %8081 = vmatmul.f32.gmra.mxu0 %v7991
    %v8082 = vpop.f32.mrf.mxu0
    %v8083 = vadd.f32 0.0, %v8082
    %8084 = vmatmul.f32.gmra.mxu0 %v7994
    %v8085 = vpop.f32.mrf.mxu0
    %v8086 = vadd.f32 0.0, %v8085
    %8087 = vmatmul.f32.gmra.mxu0 %v7997
    %v8088 = vpop.f32.mrf.mxu0
    %v8089 = vadd.f32 0.0, %v8088
    %8090 = vmatmul.f32.gmra.mxu0 %v8000
    %v8091 = vpop.f32.mrf.mxu0
    %v8092 = vadd.f32 0.0, %v8091
    %8093 = vmatmul.f32.gmra.mxu0 %v8003
    %v8094 = vpop.f32.mrf.mxu0
    %v8095 = vadd.f32 0.0, %v8094
    %8096 = vdwg.mxu0
    %v8097 = vadd.f32 %v7877, %v8023
    %v8098 = vadd.f32 %v7878, %v8026
    %v8099 = vadd.f32 %v7879, %v8029
    %v8100 = vadd.f32 %v7880, %v8032
    %v8101 = vadd.f32 %v7881, %v8035
    %v8102 = vadd.f32 %v7882, %v8038
    %v8103 = vadd.f32 %v7883, %v8041
    %v8104 = vadd.f32 %v7884, %v8044
    %v8105 = vadd.f32 %v7885, %v8047
    %v8106 = vadd.f32 %v7886, %v8050
    %v8107 = vadd.f32 %v7887, %v8053
    %v8108 = vadd.f32 %v7888, %v8056
    %v8109 = vadd.f32 %v7889, %v8059
    %v8110 = vadd.f32 %v7890, %v8062
    %v8111 = vadd.f32 %v7891, %v8065
    %v8112 = vadd.f32 %v7892, %v8068
    %v8113 = vadd.f32 %v7893, %v8071
    %v8114 = vadd.f32 %v7894, %v8074
    %v8115 = vadd.f32 %v7895, %v8077
    %v8116 = vadd.f32 %v7896, %v8080
    %v8117 = vadd.f32 %v7897, %v8083
    %v8118 = vadd.f32 %v7898, %v8086
    %v8119 = vadd.f32 %v7899, %v8089
    %v8120 = vadd.f32 %v7900, %v8092
    %v8121 = vadd.f32 %v7901, %v8095
    %v8122 = vld [vmem:[#allocation2 + $0x17] sm:$0xff]
    %v8123 = vld [vmem:[#allocation2 + $0x1f] sm:$0xff]
    %v8124 = vld [vmem:[#allocation2 + $0x27] sm:$0xff]
    %v8125 = vld [vmem:[#allocation2 + $0x2f] sm:$0xff]
    %v8126 = vld [vmem:[#allocation2 + $0x37] sm:$0xff]
    %v8127 = vld [vmem:[#allocation2 + $0x3f] sm:$0xff]
    %v8128 = vld [vmem:[#allocation2 + $0x47] sm:$0xff]
    %v8129 = vld [vmem:[#allocation2 + $0x4f] sm:$0xff]
    %v8130 = vld [vmem:[#allocation2 + $0x57] sm:$0xff]
    %v8131 = vld [vmem:[#allocation2 + $0x5f] sm:$0xff]
    %v8132 = vld [vmem:[#allocation2 + $0x67] sm:$0xff]
    %v8133 = vld [vmem:[#allocation2 + $0x6f] sm:$0xff]
    %v8134 = vld [vmem:[#allocation2 + $0x77] sm:$0xff]
    %v8135 = vld [vmem:[#allocation2 + $0x7f] sm:$0xff]
    %v8136 = vld [vmem:[#allocation2 + $0x87] sm:$0xff]
    %v8137 = vld [vmem:[#allocation2 + $0x8f] sm:$0xff]
    %v8138 = vld [vmem:[#allocation2 + $0x97] sm:$0xff]
    %v8139 = vld [vmem:[#allocation2 + $0x9f] sm:$0xff]
    %v8140 = vld [vmem:[#allocation2 + $0xa7] sm:$0xff]
    %v8141 = vld [vmem:[#allocation2 + $0xaf] sm:$0xff]
    %v8142 = vld [vmem:[#allocation2 + $0xb7] sm:$0xff]
    %v8143 = vld [vmem:[#allocation2 + $0xbf] sm:$0xff]
    %v8144 = vld [vmem:[#allocation2 + $0xc7] sm:$0xff]
    %v8145 = vld [vmem:[#allocation2 + $0xcf] sm:$0xff]
    %v8146 = vld [vmem:[#allocation2 + $0xd7] sm:$0xff]
    %s8147 = scalar_lea.vmem %s2, 128
    %v8148 = vld [vmem:[%s8147] sm:$0xff]
    %v8149 = vld [vmem:[%s8147 + $0x8] sm:$0xff]
    %v8151 = vsel %vm6136, %v8122, 0
    %v8154 = vsel %vm6136, %v8123, 0
    %v8157 = vsel %vm6136, %v8124, 0
    %v8160 = vsel %vm6136, %v8125, 0
    %v8163 = vsel %vm6136, %v8126, 0
    %v8166 = vsel %vm6136, %v8127, 0
    %v8169 = vsel %vm6136, %v8128, 0
    %v8172 = vsel %vm6136, %v8129, 0
    %v8175 = vsel %vm6136, %v8130, 0
    %v8178 = vsel %vm6136, %v8131, 0
    %v8181 = vsel %vm6136, %v8132, 0
    %v8184 = vsel %vm6136, %v8133, 0
    %v8187 = vsel %vm6136, %v8134, 0
    %v8190 = vsel %vm6136, %v8135, 0
    %v8193 = vsel %vm6136, %v8136, 0
    %v8196 = vsel %vm6136, %v8137, 0
    %v8199 = vsel %vm6136, %v8138, 0
    %v8202 = vsel %vm6136, %v8139, 0
    %v8205 = vsel %vm6136, %v8140, 0
    %v8208 = vsel %vm6136, %v8141, 0
    %v8211 = vsel %vm6136, %v8142, 0
    %v8214 = vsel %vm6136, %v8143, 0
    %v8217 = vsel %vm6136, %v8144, 0
    %v8220 = vsel %vm6136, %v8145, 0
    %v8223 = vsel %vm6136, %v8146, 0
    %8225 = vmatpush.msra.mxu0 0.0
    %8226 = vmatpush.msra.mxu0 0.0
    %8227 = vmatpush.msra.mxu0 0.0
    %8228 = vmatpush.msra.mxu0 0.0
    %8229 = vmatpush.msra.mxu0 0.0
    %8230 = vmatpush.msra.mxu0 0.0
    %8231 = vmatpush.msra.mxu0 0.0
    %8232 = vmatpush.msra.mxu0 0.0
    %8233 = vmatpush.msra.mxu0 0.0
    %8234 = vmatpush.msra.mxu0 0.0
    %8235 = vmatpush.msra.mxu0 0.0
    %8236 = vmatpush.msra.mxu0 0.0
    %8237 = vmatpush.msra.mxu0 0.0
    %8238 = vmatpush.msra.mxu0 0.0
    %8239 = vmatpush.msra.mxu0 %v8149
    %8240 = vmatpush.msra.mxu0 %v8148
    %8241 = vmatmul.f32.gmra.mxu0 %v8151
    %v8242 = vpop.f32.mrf.mxu0
    %v8243 = vadd.f32 0.0, %v8242
    %8244 = vmatmul.f32.gmra.mxu0 %v8154
    %v8245 = vpop.f32.mrf.mxu0
    %v8246 = vadd.f32 0.0, %v8245
    %8247 = vmatmul.f32.gmra.mxu0 %v8157
    %v8248 = vpop.f32.mrf.mxu0
    %v8249 = vadd.f32 0.0, %v8248
    %8250 = vmatmul.f32.gmra.mxu0 %v8160
    %v8251 = vpop.f32.mrf.mxu0
    %v8252 = vadd.f32 0.0, %v8251
    %8253 = vmatmul.f32.gmra.mxu0 %v8163
    %v8254 = vpop.f32.mrf.mxu0
    %v8255 = vadd.f32 0.0, %v8254
    %8256 = vmatmul.f32.gmra.mxu0 %v8166
    %v8257 = vpop.f32.mrf.mxu0
    %v8258 = vadd.f32 0.0, %v8257
    %8259 = vmatmul.f32.gmra.mxu0 %v8169
    %v8260 = vpop.f32.mrf.mxu0
    %v8261 = vadd.f32 0.0, %v8260
    %8262 = vmatmul.f32.gmra.mxu0 %v8172
    %v8263 = vpop.f32.mrf.mxu0
    %v8264 = vadd.f32 0.0, %v8263
    %8265 = vmatmul.f32.gmra.mxu0 %v8175
    %v8266 = vpop.f32.mrf.mxu0
    %v8267 = vadd.f32 0.0, %v8266
    %8268 = vmatmul.f32.gmra.mxu0 %v8178
    %v8269 = vpop.f32.mrf.mxu0
    %v8270 = vadd.f32 0.0, %v8269
    %8271 = vmatmul.f32.gmra.mxu0 %v8181
    %v8272 = vpop.f32.mrf.mxu0
    %v8273 = vadd.f32 0.0, %v8272
    %8274 = vmatmul.f32.gmra.mxu0 %v8184
    %v8275 = vpop.f32.mrf.mxu0
    %v8276 = vadd.f32 0.0, %v8275
    %8277 = vmatmul.f32.gmra.mxu0 %v8187
    %v8278 = vpop.f32.mrf.mxu0
    %v8279 = vadd.f32 0.0, %v8278
    %8280 = vmatmul.f32.gmra.mxu0 %v8190
    %v8281 = vpop.f32.mrf.mxu0
    %v8282 = vadd.f32 0.0, %v8281
    %8283 = vmatmul.f32.gmra.mxu0 %v8193
    %v8284 = vpop.f32.mrf.mxu0
    %v8285 = vadd.f32 0.0, %v8284
    %8286 = vmatmul.f32.gmra.mxu0 %v8196
    %v8287 = vpop.f32.mrf.mxu0
    %v8288 = vadd.f32 0.0, %v8287
    %8289 = vmatmul.f32.gmra.mxu0 %v8199
    %v8290 = vpop.f32.mrf.mxu0
    %v8291 = vadd.f32 0.0, %v8290
    %8292 = vmatmul.f32.gmra.mxu0 %v8202
    %v8293 = vpop.f32.mrf.mxu0
    %v8294 = vadd.f32 0.0, %v8293
    %8295 = vmatmul.f32.gmra.mxu0 %v8205
    %v8296 = vpop.f32.mrf.mxu0
    %v8297 = vadd.f32 0.0, %v8296
    %8298 = vmatmul.f32.gmra.mxu0 %v8208
    %v8299 = vpop.f32.mrf.mxu0
    %v8300 = vadd.f32 0.0, %v8299
    %8301 = vmatmul.f32.gmra.mxu0 %v8211
    %v8302 = vpop.f32.mrf.mxu0
    %v8303 = vadd.f32 0.0, %v8302
    %8304 = vmatmul.f32.gmra.mxu0 %v8214
    %v8305 = vpop.f32.mrf.mxu0
    %v8306 = vadd.f32 0.0, %v8305
    %8307 = vmatmul.f32.gmra.mxu0 %v8217
    %v8308 = vpop.f32.mrf.mxu0
    %v8309 = vadd.f32 0.0, %v8308
    %8310 = vmatmul.f32.gmra.mxu0 %v8220
    %v8311 = vpop.f32.mrf.mxu0
    %v8312 = vadd.f32 0.0, %v8311
    %8313 = vmatmul.f32.gmra.mxu0 %v8223
    %v8314 = vpop.f32.mrf.mxu0
    %v8315 = vadd.f32 0.0, %v8314
    %8316 = vdwg.mxu0
    %v8317 = vadd.f32 %v8097, %v8243
    %v8318 = vadd.f32 %v8098, %v8246
    %v8319 = vadd.f32 %v8099, %v8249
    %v8320 = vadd.f32 %v8100, %v8252
    %v8321 = vadd.f32 %v8101, %v8255
    %v8322 = vadd.f32 %v8102, %v8258
    %v8323 = vadd.f32 %v8103, %v8261
    %v8324 = vadd.f32 %v8104, %v8264
    %v8325 = vadd.f32 %v8105, %v8267
    %v8326 = vadd.f32 %v8106, %v8270
    %v8327 = vadd.f32 %v8107, %v8273
    %v8328 = vadd.f32 %v8108, %v8276
    %v8329 = vadd.f32 %v8109, %v8279
    %v8330 = vadd.f32 %v8110, %v8282
    %v8331 = vadd.f32 %v8111, %v8285
    %v8332 = vadd.f32 %v8112, %v8288
    %v8333 = vadd.f32 %v8113, %v8291
    %v8334 = vadd.f32 %v8114, %v8294
    %v8335 = vadd.f32 %v8115, %v8297
    %v8336 = vadd.f32 %v8116, %v8300
    %v8337 = vadd.f32 %v8117, %v8303
    %v8338 = vadd.f32 %v8118, %v8306
    %v8339 = vadd.f32 %v8119, %v8309
    %v8340 = vadd.f32 %v8120, %v8312
    %v8341 = vadd.f32 %v8121, %v8315
    %v8342 = vperm.slane %v6410, 0
    %v8343 = vadd.f32 %v8317, %v8342
    %v8344 = vadd.f32 %v8318, %v8342
    %v8345 = vadd.f32 %v8319, %v8342
    %v8346 = vadd.f32 %v8320, %v8342
    %v8347 = vadd.f32 %v8321, %v8342
    %v8348 = vadd.f32 %v8322, %v8342
    %v8349 = vadd.f32 %v8323, %v8342
    %v8350 = vadd.f32 %v8324, %v8342
    %v8351 = vadd.f32 %v8325, %v8342
    %v8352 = vadd.f32 %v8326, %v8342
    %v8353 = vadd.f32 %v8327, %v8342
    %v8354 = vadd.f32 %v8328, %v8342
    %v8355 = vadd.f32 %v8329, %v8342
    %v8356 = vadd.f32 %v8330, %v8342
    %v8357 = vadd.f32 %v8331, %v8342
    %v8358 = vadd.f32 %v8332, %v8342
    %v8359 = vadd.f32 %v8333, %v8342
    %v8360 = vadd.f32 %v8334, %v8342
    %v8361 = vadd.f32 %v8335, %v8342
    %v8362 = vadd.f32 %v8336, %v8342
    %v8363 = vadd.f32 %v8337, %v8342
    %v8364 = vadd.f32 %v8338, %v8342
    %v8365 = vadd.f32 %v8339, %v8342
    %v8366 = vadd.f32 %v8340, %v8342
    %v8367 = vadd.f32 %v8341, %v8342
    %v8368 = vxor.u32 %v8343, 2147483648
    %v8369 = vxor.u32 %v8344, 2147483648
    %v8370 = vxor.u32 %v8345, 2147483648
    %v8371 = vxor.u32 %v8346, 2147483648
    %v8372 = vxor.u32 %v8347, 2147483648
    %v8373 = vxor.u32 %v8348, 2147483648
    %v8374 = vxor.u32 %v8349, 2147483648
    %v8375 = vxor.u32 %v8350, 2147483648
    %v8376 = vxor.u32 %v8351, 2147483648
    %v8377 = vxor.u32 %v8352, 2147483648
    %v8378 = vxor.u32 %v8353, 2147483648
    %v8379 = vxor.u32 %v8354, 2147483648
    %v8380 = vxor.u32 %v8355, 2147483648
    %v8381 = vxor.u32 %v8356, 2147483648
    %v8382 = vxor.u32 %v8357, 2147483648
    %v8383 = vxor.u32 %v8358, 2147483648
    %v8384 = vxor.u32 %v8359, 2147483648
    %v8385 = vxor.u32 %v8360, 2147483648
    %v8386 = vxor.u32 %v8361, 2147483648
    %v8387 = vxor.u32 %v8362, 2147483648
    %v8388 = vxor.u32 %v8363, 2147483648
    %v8389 = vxor.u32 %v8364, 2147483648
    %v8390 = vxor.u32 %v8365, 2147483648
    %v8391 = vxor.u32 %v8366, 2147483648
    %v8392 = vxor.u32 %v8367, 2147483648
    %v8393 = vmul.f32 %v8368, 1.442695
    %v8394 = vpow.pop %v8393
    %v8395 = vmul.f32 %v8369, 1.442695
    %v8396 = vpow.pop %v8395
    %v8397 = vmul.f32 %v8370, 1.442695
    %v8398 = vpow.pop %v8397
    %v8399 = vmul.f32 %v8371, 1.442695
    %v8400 = vpow.pop %v8399
    %v8401 = vmul.f32 %v8372, 1.442695
    %v8402 = vpow.pop %v8401
    %v8403 = vmul.f32 %v8373, 1.442695
    %v8404 = vpow.pop %v8403
    %v8405 = vmul.f32 %v8374, 1.442695
    %v8406 = vpow.pop %v8405
    %v8407 = vmul.f32 %v8375, 1.442695
    %v8408 = vpow.pop %v8407
    %v8409 = vmul.f32 %v8376, 1.442695
    %v8410 = vpow.pop %v8409
    %v8411 = vmul.f32 %v8377, 1.442695
    %v8412 = vpow.pop %v8411
    %v8413 = vmul.f32 %v8378, 1.442695
    %v8414 = vpow.pop %v8413
    %v8415 = vmul.f32 %v8379, 1.442695
    %v8416 = vpow.pop %v8415
    %v8417 = vmul.f32 %v8380, 1.442695
    %v8418 = vpow.pop %v8417
    %v8419 = vmul.f32 %v8381, 1.442695
    %v8420 = vpow.pop %v8419
    %v8421 = vmul.f32 %v8382, 1.442695
    %v8422 = vpow.pop %v8421
    %v8423 = vmul.f32 %v8383, 1.442695
    %v8424 = vpow.pop %v8423
    %v8425 = vmul.f32 %v8384, 1.442695
    %v8426 = vpow.pop %v8425
    %v8427 = vmul.f32 %v8385, 1.442695
    %v8428 = vpow.pop %v8427
    %v8429 = vmul.f32 %v8386, 1.442695
    %v8430 = vpow.pop %v8429
    %v8431 = vmul.f32 %v8387, 1.442695
    %v8432 = vpow.pop %v8431
    %v8433 = vmul.f32 %v8388, 1.442695
    %v8434 = vpow.pop %v8433
    %v8435 = vmul.f32 %v8389, 1.442695
    %v8436 = vpow.pop %v8435
    %v8437 = vmul.f32 %v8390, 1.442695
    %v8438 = vpow.pop %v8437
    %v8439 = vmul.f32 %v8391, 1.442695
    %v8440 = vpow.pop %v8439
    %v8441 = vmul.f32 %v8392, 1.442695
    %v8442 = vpow.pop %v8441
    %v8443 = vadd.f32 %v8394, 1.0
    %v8444 = vadd.f32 %v8396, 1.0
    %v8445 = vadd.f32 %v8398, 1.0
    %v8446 = vadd.f32 %v8400, 1.0
    %v8447 = vadd.f32 %v8402, 1.0
    %v8448 = vadd.f32 %v8404, 1.0
    %v8449 = vadd.f32 %v8406, 1.0
    %v8450 = vadd.f32 %v8408, 1.0
    %v8451 = vadd.f32 %v8410, 1.0
    %v8452 = vadd.f32 %v8412, 1.0
    %v8453 = vadd.f32 %v8414, 1.0
    %v8454 = vadd.f32 %v8416, 1.0
    %v8455 = vadd.f32 %v8418, 1.0
    %v8456 = vadd.f32 %v8420, 1.0
    %v8457 = vadd.f32 %v8422, 1.0
    %v8458 = vadd.f32 %v8424, 1.0
    %v8459 = vadd.f32 %v8426, 1.0
    %v8460 = vadd.f32 %v8428, 1.0
    %v8461 = vadd.f32 %v8430, 1.0
    %v8462 = vadd.f32 %v8432, 1.0
    %v8463 = vadd.f32 %v8434, 1.0
    %v8464 = vadd.f32 %v8436, 1.0
    %v8465 = vadd.f32 %v8438, 1.0
    %v8466 = vadd.f32 %v8440, 1.0
    %v8467 = vadd.f32 %v8442, 1.0
    %v8468 = vrcp.pop %v8443
    %v8469 = vmul.f32 %v8443, %v8468
    %v8470 = vsub.f32 1.0, %v8469
    %v8471 = vmul.f32 %v8468, %v8470
    %v8472 = vadd.f32 %v8468, %v8471
    %vm8473 = vweird.f32 %v8443
    %vm8474 = vweird.f32 %v8468
    %vm8475 = vmor %vm8473, %vm8474
    %v8476 = vsel %vm8475, %v8468, %v8472
    %v8477 = vand.u32 2147483647, %v8443
    %vm8478 = vcmp.eq.f32.partialorder %v8477, 8.507059e+37
    %v8479 = vand.u32 %v8443, 2147483648
    %v8480 = vor.u32 1.1754944e-38, %v8479
    %v8481 = vsel %vm8478, %v8480, %v8476
    %v8482 = vmul.f32 1.0, %v8481
    %v8483 = vrcp.pop %v8444
    %v8484 = vmul.f32 %v8444, %v8483
    %v8485 = vsub.f32 1.0, %v8484
    %v8486 = vmul.f32 %v8483, %v8485
    %v8487 = vadd.f32 %v8483, %v8486
    %vm8488 = vweird.f32 %v8444
    %vm8489 = vweird.f32 %v8483
    %vm8490 = vmor %vm8488, %vm8489
    %v8491 = vsel %vm8490, %v8483, %v8487
    %v8492 = vand.u32 2147483647, %v8444
    %vm8493 = vcmp.eq.f32.partialorder %v8492, 8.507059e+37
    %v8494 = vand.u32 %v8444, 2147483648
    %v8495 = vor.u32 1.1754944e-38, %v8494
    %v8496 = vsel %vm8493, %v8495, %v8491
    %v8497 = vmul.f32 1.0, %v8496
    %v8498 = vrcp.pop %v8445
    %v8499 = vmul.f32 %v8445, %v8498
    %v8500 = vsub.f32 1.0, %v8499
    %v8501 = vmul.f32 %v8498, %v8500
    %v8502 = vadd.f32 %v8498, %v8501
    %vm8503 = vweird.f32 %v8445
    %vm8504 = vweird.f32 %v8498
    %vm8505 = vmor %vm8503, %vm8504
    %v8506 = vsel %vm8505, %v8498, %v8502
    %v8507 = vand.u32 2147483647, %v8445
    %vm8508 = vcmp.eq.f32.partialorder %v8507, 8.507059e+37
    %v8509 = vand.u32 %v8445, 2147483648
    %v8510 = vor.u32 1.1754944e-38, %v8509
    %v8511 = vsel %vm8508, %v8510, %v8506
    %v8512 = vmul.f32 1.0, %v8511
    %v8513 = vrcp.pop %v8446
    %v8514 = vmul.f32 %v8446, %v8513
    %v8515 = vsub.f32 1.0, %v8514
    %v8516 = vmul.f32 %v8513, %v8515
    %v8517 = vadd.f32 %v8513, %v8516
    %vm8518 = vweird.f32 %v8446
    %vm8519 = vweird.f32 %v8513
    %vm8520 = vmor %vm8518, %vm8519
    %v8521 = vsel %vm8520, %v8513, %v8517
    %v8522 = vand.u32 2147483647, %v8446
    %vm8523 = vcmp.eq.f32.partialorder %v8522, 8.507059e+37
    %v8524 = vand.u32 %v8446, 2147483648
    %v8525 = vor.u32 1.1754944e-38, %v8524
    %v8526 = vsel %vm8523, %v8525, %v8521
    %v8527 = vmul.f32 1.0, %v8526
    %v8528 = vrcp.pop %v8447
    %v8529 = vmul.f32 %v8447, %v8528
    %v8530 = vsub.f32 1.0, %v8529
    %v8531 = vmul.f32 %v8528, %v8530
    %v8532 = vadd.f32 %v8528, %v8531
    %vm8533 = vweird.f32 %v8447
    %vm8534 = vweird.f32 %v8528
    %vm8535 = vmor %vm8533, %vm8534
    %v8536 = vsel %vm8535, %v8528, %v8532
    %v8537 = vand.u32 2147483647, %v8447
    %vm8538 = vcmp.eq.f32.partialorder %v8537, 8.507059e+37
    %v8539 = vand.u32 %v8447, 2147483648
    %v8540 = vor.u32 1.1754944e-38, %v8539
    %v8541 = vsel %vm8538, %v8540, %v8536
    %v8542 = vmul.f32 1.0, %v8541
    %v8543 = vrcp.pop %v8448
    %v8544 = vmul.f32 %v8448, %v8543
    %v8545 = vsub.f32 1.0, %v8544
    %v8546 = vmul.f32 %v8543, %v8545
    %v8547 = vadd.f32 %v8543, %v8546
    %vm8548 = vweird.f32 %v8448
    %vm8549 = vweird.f32 %v8543
    %vm8550 = vmor %vm8548, %vm8549
    %v8551 = vsel %vm8550, %v8543, %v8547
    %v8552 = vand.u32 2147483647, %v8448
    %vm8553 = vcmp.eq.f32.partialorder %v8552, 8.507059e+37
    %v8554 = vand.u32 %v8448, 2147483648
    %v8555 = vor.u32 1.1754944e-38, %v8554
    %v8556 = vsel %vm8553, %v8555, %v8551
    %v8557 = vmul.f32 1.0, %v8556
    %v8558 = vrcp.pop %v8449
    %v8559 = vmul.f32 %v8449, %v8558
    %v8560 = vsub.f32 1.0, %v8559
    %v8561 = vmul.f32 %v8558, %v8560
    %v8562 = vadd.f32 %v8558, %v8561
    %vm8563 = vweird.f32 %v8449
    %vm8564 = vweird.f32 %v8558
    %vm8565 = vmor %vm8563, %vm8564
    %v8566 = vsel %vm8565, %v8558, %v8562
    %v8567 = vand.u32 2147483647, %v8449
    %vm8568 = vcmp.eq.f32.partialorder %v8567, 8.507059e+37
    %v8569 = vand.u32 %v8449, 2147483648
    %v8570 = vor.u32 1.1754944e-38, %v8569
    %v8571 = vsel %vm8568, %v8570, %v8566
    %v8572 = vmul.f32 1.0, %v8571
    %v8573 = vrcp.pop %v8450
    %v8574 = vmul.f32 %v8450, %v8573
    %v8575 = vsub.f32 1.0, %v8574
    %v8576 = vmul.f32 %v8573, %v8575
    %v8577 = vadd.f32 %v8573, %v8576
    %vm8578 = vweird.f32 %v8450
    %vm8579 = vweird.f32 %v8573
    %vm8580 = vmor %vm8578, %vm8579
    %v8581 = vsel %vm8580, %v8573, %v8577
    %v8582 = vand.u32 2147483647, %v8450
    %vm8583 = vcmp.eq.f32.partialorder %v8582, 8.507059e+37
    %v8584 = vand.u32 %v8450, 2147483648
    %v8585 = vor.u32 1.1754944e-38, %v8584
    %v8586 = vsel %vm8583, %v8585, %v8581
    %v8587 = vmul.f32 1.0, %v8586
    %v8588 = vrcp.pop %v8451
    %v8589 = vmul.f32 %v8451, %v8588
    %v8590 = vsub.f32 1.0, %v8589
    %v8591 = vmul.f32 %v8588, %v8590
    %v8592 = vadd.f32 %v8588, %v8591
    %vm8593 = vweird.f32 %v8451
    %vm8594 = vweird.f32 %v8588
    %vm8595 = vmor %vm8593, %vm8594
    %v8596 = vsel %vm8595, %v8588, %v8592
    %v8597 = vand.u32 2147483647, %v8451
    %vm8598 = vcmp.eq.f32.partialorder %v8597, 8.507059e+37
    %v8599 = vand.u32 %v8451, 2147483648
    %v8600 = vor.u32 1.1754944e-38, %v8599
    %v8601 = vsel %vm8598, %v8600, %v8596
    %v8602 = vmul.f32 1.0, %v8601
    %v8603 = vrcp.pop %v8452
    %v8604 = vmul.f32 %v8452, %v8603
    %v8605 = vsub.f32 1.0, %v8604
    %v8606 = vmul.f32 %v8603, %v8605
    %v8607 = vadd.f32 %v8603, %v8606
    %vm8608 = vweird.f32 %v8452
    %vm8609 = vweird.f32 %v8603
    %vm8610 = vmor %vm8608, %vm8609
    %v8611 = vsel %vm8610, %v8603, %v8607
    %v8612 = vand.u32 2147483647, %v8452
    %vm8613 = vcmp.eq.f32.partialorder %v8612, 8.507059e+37
    %v8614 = vand.u32 %v8452, 2147483648
    %v8615 = vor.u32 1.1754944e-38, %v8614
    %v8616 = vsel %vm8613, %v8615, %v8611
    %v8617 = vmul.f32 1.0, %v8616
    %v8618 = vrcp.pop %v8453
    %v8619 = vmul.f32 %v8453, %v8618
    %v8620 = vsub.f32 1.0, %v8619
    %v8621 = vmul.f32 %v8618, %v8620
    %v8622 = vadd.f32 %v8618, %v8621
    %vm8623 = vweird.f32 %v8453
    %vm8624 = vweird.f32 %v8618
    %vm8625 = vmor %vm8623, %vm8624
    %v8626 = vsel %vm8625, %v8618, %v8622
    %v8627 = vand.u32 2147483647, %v8453
    %vm8628 = vcmp.eq.f32.partialorder %v8627, 8.507059e+37
    %v8629 = vand.u32 %v8453, 2147483648
    %v8630 = vor.u32 1.1754944e-38, %v8629
    %v8631 = vsel %vm8628, %v8630, %v8626
    %v8632 = vmul.f32 1.0, %v8631
    %v8633 = vrcp.pop %v8454
    %v8634 = vmul.f32 %v8454, %v8633
    %v8635 = vsub.f32 1.0, %v8634
    %v8636 = vmul.f32 %v8633, %v8635
    %v8637 = vadd.f32 %v8633, %v8636
    %vm8638 = vweird.f32 %v8454
    %vm8639 = vweird.f32 %v8633
    %vm8640 = vmor %vm8638, %vm8639
    %v8641 = vsel %vm8640, %v8633, %v8637
    %v8642 = vand.u32 2147483647, %v8454
    %vm8643 = vcmp.eq.f32.partialorder %v8642, 8.507059e+37
    %v8644 = vand.u32 %v8454, 2147483648
    %v8645 = vor.u32 1.1754944e-38, %v8644
    %v8646 = vsel %vm8643, %v8645, %v8641
    %v8647 = vmul.f32 1.0, %v8646
    %v8648 = vrcp.pop %v8455
    %v8649 = vmul.f32 %v8455, %v8648
    %v8650 = vsub.f32 1.0, %v8649
    %v8651 = vmul.f32 %v8648, %v8650
    %v8652 = vadd.f32 %v8648, %v8651
    %vm8653 = vweird.f32 %v8455
    %vm8654 = vweird.f32 %v8648
    %vm8655 = vmor %vm8653, %vm8654
    %v8656 = vsel %vm8655, %v8648, %v8652
    %v8657 = vand.u32 2147483647, %v8455
    %vm8658 = vcmp.eq.f32.partialorder %v8657, 8.507059e+37
    %v8659 = vand.u32 %v8455, 2147483648
    %v8660 = vor.u32 1.1754944e-38, %v8659
    %v8661 = vsel %vm8658, %v8660, %v8656
    %v8662 = vmul.f32 1.0, %v8661
    %v8663 = vrcp.pop %v8456
    %v8664 = vmul.f32 %v8456, %v8663
    %v8665 = vsub.f32 1.0, %v8664
    %v8666 = vmul.f32 %v8663, %v8665
    %v8667 = vadd.f32 %v8663, %v8666
    %vm8668 = vweird.f32 %v8456
    %vm8669 = vweird.f32 %v8663
    %vm8670 = vmor %vm8668, %vm8669
    %v8671 = vsel %vm8670, %v8663, %v8667
    %v8672 = vand.u32 2147483647, %v8456
    %vm8673 = vcmp.eq.f32.partialorder %v8672, 8.507059e+37
    %v8674 = vand.u32 %v8456, 2147483648
    %v8675 = vor.u32 1.1754944e-38, %v8674
    %v8676 = vsel %vm8673, %v8675, %v8671
    %v8677 = vmul.f32 1.0, %v8676
    %v8678 = vrcp.pop %v8457
    %v8679 = vmul.f32 %v8457, %v8678
    %v8680 = vsub.f32 1.0, %v8679
    %v8681 = vmul.f32 %v8678, %v8680
    %v8682 = vadd.f32 %v8678, %v8681
    %vm8683 = vweird.f32 %v8457
    %vm8684 = vweird.f32 %v8678
    %vm8685 = vmor %vm8683, %vm8684
    %v8686 = vsel %vm8685, %v8678, %v8682
    %v8687 = vand.u32 2147483647, %v8457
    %vm8688 = vcmp.eq.f32.partialorder %v8687, 8.507059e+37
    %v8689 = vand.u32 %v8457, 2147483648
    %v8690 = vor.u32 1.1754944e-38, %v8689
    %v8691 = vsel %vm8688, %v8690, %v8686
    %v8692 = vmul.f32 1.0, %v8691
    %v8693 = vrcp.pop %v8458
    %v8694 = vmul.f32 %v8458, %v8693
    %v8695 = vsub.f32 1.0, %v8694
    %v8696 = vmul.f32 %v8693, %v8695
    %v8697 = vadd.f32 %v8693, %v8696
    %vm8698 = vweird.f32 %v8458
    %vm8699 = vweird.f32 %v8693
    %vm8700 = vmor %vm8698, %vm8699
    %v8701 = vsel %vm8700, %v8693, %v8697
    %v8702 = vand.u32 2147483647, %v8458
    %vm8703 = vcmp.eq.f32.partialorder %v8702, 8.507059e+37
    %v8704 = vand.u32 %v8458, 2147483648
    %v8705 = vor.u32 1.1754944e-38, %v8704
    %v8706 = vsel %vm8703, %v8705, %v8701
    %v8707 = vmul.f32 1.0, %v8706
    %v8708 = vrcp.pop %v8459
    %v8709 = vmul.f32 %v8459, %v8708
    %v8710 = vsub.f32 1.0, %v8709
    %v8711 = vmul.f32 %v8708, %v8710
    %v8712 = vadd.f32 %v8708, %v8711
    %vm8713 = vweird.f32 %v8459
    %vm8714 = vweird.f32 %v8708
    %vm8715 = vmor %vm8713, %vm8714
    %v8716 = vsel %vm8715, %v8708, %v8712
    %v8717 = vand.u32 2147483647, %v8459
    %vm8718 = vcmp.eq.f32.partialorder %v8717, 8.507059e+37
    %v8719 = vand.u32 %v8459, 2147483648
    %v8720 = vor.u32 1.1754944e-38, %v8719
    %v8721 = vsel %vm8718, %v8720, %v8716
    %v8722 = vmul.f32 1.0, %v8721
    %v8723 = vrcp.pop %v8460
    %v8724 = vmul.f32 %v8460, %v8723
    %v8725 = vsub.f32 1.0, %v8724
    %v8726 = vmul.f32 %v8723, %v8725
    %v8727 = vadd.f32 %v8723, %v8726
    %vm8728 = vweird.f32 %v8460
    %vm8729 = vweird.f32 %v8723
    %vm8730 = vmor %vm8728, %vm8729
    %v8731 = vsel %vm8730, %v8723, %v8727
    %v8732 = vand.u32 2147483647, %v8460
    %vm8733 = vcmp.eq.f32.partialorder %v8732, 8.507059e+37
    %v8734 = vand.u32 %v8460, 2147483648
    %v8735 = vor.u32 1.1754944e-38, %v8734
    %v8736 = vsel %vm8733, %v8735, %v8731
    %v8737 = vmul.f32 1.0, %v8736
    %v8738 = vrcp.pop %v8461
    %v8739 = vmul.f32 %v8461, %v8738
    %v8740 = vsub.f32 1.0, %v8739
    %v8741 = vmul.f32 %v8738, %v8740
    %v8742 = vadd.f32 %v8738, %v8741
    %vm8743 = vweird.f32 %v8461
    %vm8744 = vweird.f32 %v8738
    %vm8745 = vmor %vm8743, %vm8744
    %v8746 = vsel %vm8745, %v8738, %v8742
    %v8747 = vand.u32 2147483647, %v8461
    %vm8748 = vcmp.eq.f32.partialorder %v8747, 8.507059e+37
    %v8749 = vand.u32 %v8461, 2147483648
    %v8750 = vor.u32 1.1754944e-38, %v8749
    %v8751 = vsel %vm8748, %v8750, %v8746
    %v8752 = vmul.f32 1.0, %v8751
    %v8753 = vrcp.pop %v8462
    %v8754 = vmul.f32 %v8462, %v8753
    %v8755 = vsub.f32 1.0, %v8754
    %v8756 = vmul.f32 %v8753, %v8755
    %v8757 = vadd.f32 %v8753, %v8756
    %vm8758 = vweird.f32 %v8462
    %vm8759 = vweird.f32 %v8753
    %vm8760 = vmor %vm8758, %vm8759
    %v8761 = vsel %vm8760, %v8753, %v8757
    %v8762 = vand.u32 2147483647, %v8462
    %vm8763 = vcmp.eq.f32.partialorder %v8762, 8.507059e+37
    %v8764 = vand.u32 %v8462, 2147483648
    %v8765 = vor.u32 1.1754944e-38, %v8764
    %v8766 = vsel %vm8763, %v8765, %v8761
    %v8767 = vmul.f32 1.0, %v8766
    %v8768 = vrcp.pop %v8463
    %v8769 = vmul.f32 %v8463, %v8768
    %v8770 = vsub.f32 1.0, %v8769
    %v8771 = vmul.f32 %v8768, %v8770
    %v8772 = vadd.f32 %v8768, %v8771
    %vm8773 = vweird.f32 %v8463
    %vm8774 = vweird.f32 %v8768
    %vm8775 = vmor %vm8773, %vm8774
    %v8776 = vsel %vm8775, %v8768, %v8772
    %v8777 = vand.u32 2147483647, %v8463
    %vm8778 = vcmp.eq.f32.partialorder %v8777, 8.507059e+37
    %v8779 = vand.u32 %v8463, 2147483648
    %v8780 = vor.u32 1.1754944e-38, %v8779
    %v8781 = vsel %vm8778, %v8780, %v8776
    %v8782 = vmul.f32 1.0, %v8781
    %v8783 = vrcp.pop %v8464
    %v8784 = vmul.f32 %v8464, %v8783
    %v8785 = vsub.f32 1.0, %v8784
    %v8786 = vmul.f32 %v8783, %v8785
    %v8787 = vadd.f32 %v8783, %v8786
    %vm8788 = vweird.f32 %v8464
    %vm8789 = vweird.f32 %v8783
    %vm8790 = vmor %vm8788, %vm8789
    %v8791 = vsel %vm8790, %v8783, %v8787
    %v8792 = vand.u32 2147483647, %v8464
    %vm8793 = vcmp.eq.f32.partialorder %v8792, 8.507059e+37
    %v8794 = vand.u32 %v8464, 2147483648
    %v8795 = vor.u32 1.1754944e-38, %v8794
    %v8796 = vsel %vm8793, %v8795, %v8791
    %v8797 = vmul.f32 1.0, %v8796
    %v8798 = vrcp.pop %v8465
    %v8799 = vmul.f32 %v8465, %v8798
    %v8800 = vsub.f32 1.0, %v8799
    %v8801 = vmul.f32 %v8798, %v8800
    %v8802 = vadd.f32 %v8798, %v8801
    %vm8803 = vweird.f32 %v8465
    %vm8804 = vweird.f32 %v8798
    %vm8805 = vmor %vm8803, %vm8804
    %v8806 = vsel %vm8805, %v8798, %v8802
    %v8807 = vand.u32 2147483647, %v8465
    %vm8808 = vcmp.eq.f32.partialorder %v8807, 8.507059e+37
    %v8809 = vand.u32 %v8465, 2147483648
    %v8810 = vor.u32 1.1754944e-38, %v8809
    %v8811 = vsel %vm8808, %v8810, %v8806
    %v8812 = vmul.f32 1.0, %v8811
    %v8813 = vrcp.pop %v8466
    %v8814 = vmul.f32 %v8466, %v8813
    %v8815 = vsub.f32 1.0, %v8814
    %v8816 = vmul.f32 %v8813, %v8815
    %v8817 = vadd.f32 %v8813, %v8816
    %vm8818 = vweird.f32 %v8466
    %vm8819 = vweird.f32 %v8813
    %vm8820 = vmor %vm8818, %vm8819
    %v8821 = vsel %vm8820, %v8813, %v8817
    %v8822 = vand.u32 2147483647, %v8466
    %vm8823 = vcmp.eq.f32.partialorder %v8822, 8.507059e+37
    %v8824 = vand.u32 %v8466, 2147483648
    %v8825 = vor.u32 1.1754944e-38, %v8824
    %v8826 = vsel %vm8823, %v8825, %v8821
    %v8827 = vmul.f32 1.0, %v8826
    %v8828 = vrcp.pop %v8467
    %v8829 = vmul.f32 %v8467, %v8828
    %v8830 = vsub.f32 1.0, %v8829
    %v8831 = vmul.f32 %v8828, %v8830
    %v8832 = vadd.f32 %v8828, %v8831
    %vm8833 = vweird.f32 %v8467
    %vm8834 = vweird.f32 %v8828
    %vm8835 = vmor %vm8833, %vm8834
    %v8836 = vsel %vm8835, %v8828, %v8832
    %v8837 = vand.u32 2147483647, %v8467
    %vm8838 = vcmp.eq.f32.partialorder %v8837, 8.507059e+37
    %v8839 = vand.u32 %v8467, 2147483648
    %v8840 = vor.u32 1.1754944e-38, %v8839
    %v8841 = vsel %vm8838, %v8840, %v8836
    %v8842 = vmul.f32 1.0, %v8841
    %v8843 = vmul.f32 %v8343, %v8482
    %v8844 = vmul.f32 %v8344, %v8497
    %v8845 = vmul.f32 %v8345, %v8512
    %v8846 = vmul.f32 %v8346, %v8527
    %v8847 = vmul.f32 %v8347, %v8542
    %v8848 = vmul.f32 %v8348, %v8557
    %v8849 = vmul.f32 %v8349, %v8572
    %v8850 = vmul.f32 %v8350, %v8587
    %v8851 = vmul.f32 %v8351, %v8602
    %v8852 = vmul.f32 %v8352, %v8617
    %v8853 = vmul.f32 %v8353, %v8632
    %v8854 = vmul.f32 %v8354, %v8647
    %v8855 = vmul.f32 %v8355, %v8662
    %v8856 = vmul.f32 %v8356, %v8677
    %v8857 = vmul.f32 %v8357, %v8692
    %v8858 = vmul.f32 %v8358, %v8707
    %v8859 = vmul.f32 %v8359, %v8722
    %v8860 = vmul.f32 %v8360, %v8737
    %v8861 = vmul.f32 %v8361, %v8752
    %v8862 = vmul.f32 %v8362, %v8767
    %v8863 = vmul.f32 %v8363, %v8782
    %v8864 = vmul.f32 %v8364, %v8797
    %v8865 = vmul.f32 %v8365, %v8812
    %v8866 = vmul.f32 %v8366, %v8827
    %v8867 = vmul.f32 %v8367, %v8842
    %v8868 = vperm.slane %v6411, 0
    %v8869 = vmul.f32 %v8843, %v8868
    %v8870 = vmul.f32 %v8844, %v8868
    %v8871 = vmul.f32 %v8845, %v8868
    %v8872 = vmul.f32 %v8846, %v8868
    %v8873 = vmul.f32 %v8847, %v8868
    %v8874 = vmul.f32 %v8848, %v8868
    %v8875 = vmul.f32 %v8849, %v8868
    %v8876 = vmul.f32 %v8850, %v8868
    %v8877 = vmul.f32 %v8851, %v8868
    %v8878 = vmul.f32 %v8852, %v8868
    %v8879 = vmul.f32 %v8853, %v8868
    %v8880 = vmul.f32 %v8854, %v8868
    %v8881 = vmul.f32 %v8855, %v8868
    %v8882 = vmul.f32 %v8856, %v8868
    %v8883 = vmul.f32 %v8857, %v8868
    %v8884 = vmul.f32 %v8858, %v8868
    %v8885 = vmul.f32 %v8859, %v8868
    %v8886 = vmul.f32 %v8860, %v8868
    %v8887 = vmul.f32 %v8861, %v8868
    %v8888 = vmul.f32 %v8862, %v8868
    %v8889 = vmul.f32 %v8863, %v8868
    %v8890 = vmul.f32 %v8864, %v8868
    %v8891 = vmul.f32 %v8865, %v8868
    %v8892 = vmul.f32 %v8866, %v8868
    %v8893 = vmul.f32 %v8867, %v8868
    %v8894 = vperm.slane %v6412, 0
    %v8895 = vadd.f32 %v8869, %v8894
    %v8896 = vadd.f32 %v8870, %v8894
    %v8897 = vadd.f32 %v8871, %v8894
    %v8898 = vadd.f32 %v8872, %v8894
    %v8899 = vadd.f32 %v8873, %v8894
    %v8900 = vadd.f32 %v8874, %v8894
    %v8901 = vadd.f32 %v8875, %v8894
    %v8902 = vadd.f32 %v8876, %v8894
    %v8903 = vadd.f32 %v8877, %v8894
    %v8904 = vadd.f32 %v8878, %v8894
    %v8905 = vadd.f32 %v8879, %v8894
    %v8906 = vadd.f32 %v8880, %v8894
    %v8907 = vadd.f32 %v8881, %v8894
    %v8908 = vadd.f32 %v8882, %v8894
    %v8909 = vadd.f32 %v8883, %v8894
    %v8910 = vadd.f32 %v8884, %v8894
    %v8911 = vadd.f32 %v8885, %v8894
    %v8912 = vadd.f32 %v8886, %v8894
    %v8913 = vadd.f32 %v8887, %v8894
    %v8914 = vadd.f32 %v8888, %v8894
    %v8915 = vadd.f32 %v8889, %v8894
    %v8916 = vadd.f32 %v8890, %v8894
    %v8917 = vadd.f32 %v8891, %v8894
    %v8918 = vadd.f32 %v8892, %v8894
    %v8919 = vadd.f32 %v8893, %v8894
    %v8920 = vmax.f32 %v8895, 0.0
    %v8921 = vmax.f32 %v8896, 0.0
    %v8922 = vmax.f32 %v8897, 0.0
    %v8923 = vmax.f32 %v8898, 0.0
    %v8924 = vmax.f32 %v8899, 0.0
    %v8925 = vmax.f32 %v8900, 0.0
    %v8926 = vmax.f32 %v8901, 0.0
    %v8927 = vmax.f32 %v8902, 0.0
    %v8928 = vmax.f32 %v8903, 0.0
    %v8929 = vmax.f32 %v8904, 0.0
    %v8930 = vmax.f32 %v8905, 0.0
    %v8931 = vmax.f32 %v8906, 0.0
    %v8932 = vmax.f32 %v8907, 0.0
    %v8933 = vmax.f32 %v8908, 0.0
    %v8934 = vmax.f32 %v8909, 0.0
    %v8935 = vmax.f32 %v8910, 0.0
    %v8936 = vmax.f32 %v8911, 0.0
    %v8937 = vmax.f32 %v8912, 0.0
    %v8938 = vmax.f32 %v8913, 0.0
    %v8939 = vmax.f32 %v8914, 0.0
    %v8940 = vmax.f32 %v8915, 0.0
    %v8941 = vmax.f32 %v8916, 0.0
    %v8942 = vmax.f32 %v8917, 0.0
    %v8943 = vmax.f32 %v8918, 0.0
    %v8944 = vmax.f32 %v8919, 0.0
    %vm8945 = vcmask 261120
    %8946 = vst.msk [vmem:[#allocation6] sm:$0xff] %vm8945, %v8920
    %8947 = vst.msk [vmem:[#allocation6 + $0x8] sm:$0xff] %vm8945, %v8921
    %8948 = vst.msk [vmem:[#allocation6 + $0x10] sm:$0xff] %vm8945, %v8922
    %8949 = vst.msk [vmem:[#allocation6 + $0x18] sm:$0xff] %vm8945, %v8923
    %8950 = vst.msk [vmem:[#allocation6 + $0x20] sm:$0xff] %vm8945, %v8924
    %8951 = vst.msk [vmem:[#allocation6 + $0x28] sm:$0xff] %vm8945, %v8925
    %8952 = vst.msk [vmem:[#allocation6 + $0x30] sm:$0xff] %vm8945, %v8926
    %8953 = vst.msk [vmem:[#allocation6 + $0x38] sm:$0xff] %vm8945, %v8927
    %8954 = vst.msk [vmem:[#allocation6 + $0x40] sm:$0xff] %vm8945, %v8928
    %8955 = vst.msk [vmem:[#allocation6 + $0x48] sm:$0xff] %vm8945, %v8929
    %8956 = vst.msk [vmem:[#allocation6 + $0x50] sm:$0xff] %vm8945, %v8930
    %8957 = vst.msk [vmem:[#allocation6 + $0x58] sm:$0xff] %vm8945, %v8931
    %8958 = vst.msk [vmem:[#allocation6 + $0x60] sm:$0xff] %vm8945, %v8932
    %8959 = vst.msk [vmem:[#allocation6 + $0x68] sm:$0xff] %vm8945, %v8933
    %8960 = vst.msk [vmem:[#allocation6 + $0x70] sm:$0xff] %vm8945, %v8934
    %8961 = vst.msk [vmem:[#allocation6 + $0x78] sm:$0xff] %vm8945, %v8935
    %8962 = vst.msk [vmem:[#allocation6 + $0x80] sm:$0xff] %vm8945, %v8936
    %8963 = vst.msk [vmem:[#allocation6 + $0x88] sm:$0xff] %vm8945, %v8937
    %8964 = vst.msk [vmem:[#allocation6 + $0x90] sm:$0xff] %vm8945, %v8938
    %8965 = vst.msk [vmem:[#allocation6 + $0x98] sm:$0xff] %vm8945, %v8939
    %8966 = vst.msk [vmem:[#allocation6 + $0xa0] sm:$0xff] %vm8945, %v8940
    %8967 = vst.msk [vmem:[#allocation6 + $0xa8] sm:$0xff] %vm8945, %v8941
    %8968 = vst.msk [vmem:[#allocation6 + $0xb0] sm:$0xff] %vm8945, %v8942
    %8969 = vst.msk [vmem:[#allocation6 + $0xb8] sm:$0xff] %vm8945, %v8943
    %8970 = vst.msk [vmem:[#allocation6 + $0xc0] sm:$0xff] %vm8945, %v8944
    %s8971 = scalar_lea.vmem [#allocation6], 11
    %v8972 = vld [vmem:[%s8971] ss:$2 sm:$0xf]
    %s8973 = scalar_lea.vmem [#allocation6], 12
    %v8974 = vld [vmem:[%s8973] ss:$2 sm:$0xf]
    %v8975 = vmax.f32 %v8972, %v8974
    %s8976 = scalar_lea.vmem [#allocation6], 21
    %v8977 = vld [vmem:[%s8976] ss:$2 sm:$0xf]
    %s8978 = scalar_lea.vmem [#allocation6], 22
    %v8979 = vld [vmem:[%s8978] ss:$2 sm:$0xf]
    %v8980 = vmax.f32 %v8977, %v8979
    %v8981 = vmax.f32 %v8975, %v8980
    %vm8982 = vcmask 257024
    %8983 = vst.msk [vmem:[#allocation3 + $0xf] sm:$0xf] %vm8982, %v8981
    %s8984 = scalar_lea.vmem [#allocation6], 31
    %v8985 = vld [vmem:[%s8984] ss:$2 sm:$0xf]
    %s8986 = scalar_lea.vmem [#allocation6], 32
    %v8987 = vld [vmem:[%s8986] ss:$2 sm:$0xf]
    %v8988 = vmax.f32 %v8985, %v8987
    %s8989 = scalar_lea.vmem [#allocation6], 41
    %v8990 = vld [vmem:[%s8989] ss:$2 sm:$0xf]
    %s8991 = scalar_lea.vmem [#allocation6], 42
    %v8992 = vld [vmem:[%s8991] ss:$2 sm:$0xf]
    %v8993 = vmax.f32 %v8990, %v8992
    %v8994 = vmax.f32 %v8988, %v8993
    %8995 = vst.msk [vmem:[#allocation3 + $0x15] sm:$0xf] %vm8982, %v8994
    %s8996 = scalar_lea.vmem [#allocation6], 51
    %v8997 = vld [vmem:[%s8996] ss:$2 sm:$0xf]
    %s8998 = scalar_lea.vmem [#allocation6], 52
    %v8999 = vld [vmem:[%s8998] ss:$2 sm:$0xf]
    %v9000 = vmax.f32 %v8997, %v8999
    %s9001 = scalar_lea.vmem [#allocation6], 61
    %v9002 = vld [vmem:[%s9001] ss:$2 sm:$0xf]
    %s9003 = scalar_lea.vmem [#allocation6], 62
    %v9004 = vld [vmem:[%s9003] ss:$2 sm:$0xf]
    %v9005 = vmax.f32 %v9002, %v9004
    %v9006 = vmax.f32 %v9000, %v9005
    %9007 = vst.msk [vmem:[#allocation3 + $0x1b] sm:$0xf] %vm8982, %v9006
    %s9008 = scalar_lea.vmem [#allocation6], 71
    %v9009 = vld [vmem:[%s9008] ss:$2 sm:$0xf]
    %s9010 = scalar_lea.vmem [#allocation6], 72
    %v9011 = vld [vmem:[%s9010] ss:$2 sm:$0xf]
    %v9012 = vmax.f32 %v9009, %v9011
    %s9013 = scalar_lea.vmem [#allocation6], 81
    %v9014 = vld [vmem:[%s9013] ss:$2 sm:$0xf]
    %s9015 = scalar_lea.vmem [#allocation6], 82
    %v9016 = vld [vmem:[%s9015] ss:$2 sm:$0xf]
    %v9017 = vmax.f32 %v9014, %v9016
    %v9018 = vmax.f32 %v9012, %v9017
    %9019 = vst.msk [vmem:[#allocation3 + $0x21] sm:$0xf] %vm8982, %v9018
    %s9020 = scalar_lea.vmem [#allocation6], 111
    %v9021 = vld [vmem:[%s9020] ss:$2 sm:$0xf]
    %s9022 = scalar_lea.vmem [#allocation6], 112
    %v9023 = vld [vmem:[%s9022] ss:$2 sm:$0xf]
    %v9024 = vmax.f32 %v9021, %v9023
    %s9025 = scalar_lea.vmem [#allocation6], 121
    %v9026 = vld [vmem:[%s9025] ss:$2 sm:$0xf]
    %s9027 = scalar_lea.vmem [#allocation6], 122
    %v9028 = vld [vmem:[%s9027] ss:$2 sm:$0xf]
    %v9029 = vmax.f32 %v9026, %v9028
    %v9030 = vmax.f32 %v9024, %v9029
    %9031 = vst.msk [vmem:[#allocation3 + $0x33] sm:$0xf] %vm8982, %v9030
    %s9032 = scalar_lea.vmem [#allocation6], 131
    %v9033 = vld [vmem:[%s9032] ss:$2 sm:$0xf]
    %s9034 = scalar_lea.vmem [#allocation6], 132
    %v9035 = vld [vmem:[%s9034] ss:$2 sm:$0xf]
    %v9036 = vmax.f32 %v9033, %v9035
    %s9037 = scalar_lea.vmem [#allocation6], 141
    %v9038 = vld [vmem:[%s9037] ss:$2 sm:$0xf]
    %s9039 = scalar_lea.vmem [#allocation6], 142
    %v9040 = vld [vmem:[%s9039] ss:$2 sm:$0xf]
    %v9041 = vmax.f32 %v9038, %v9040
    %v9042 = vmax.f32 %v9036, %v9041
    %9043 = vst.msk [vmem:[#allocation3 + $0x39] sm:$0xf] %vm8982, %v9042
    %s9044 = scalar_lea.vmem [#allocation6], 151
    %v9045 = vld [vmem:[%s9044] ss:$2 sm:$0xf]
    %s9046 = scalar_lea.vmem [#allocation6], 152
    %v9047 = vld [vmem:[%s9046] ss:$2 sm:$0xf]
    %v9048 = vmax.f32 %v9045, %v9047
    %s9049 = scalar_lea.vmem [#allocation6], 161
    %v9050 = vld [vmem:[%s9049] ss:$2 sm:$0xf]
    %s9051 = scalar_lea.vmem [#allocation6], 162
    %v9052 = vld [vmem:[%s9051] ss:$2 sm:$0xf]
    %v9053 = vmax.f32 %v9050, %v9052
    %v9054 = vmax.f32 %v9048, %v9053
    %9055 = vst.msk [vmem:[#allocation3 + $0x3f] sm:$0xf] %vm8982, %v9054
    %s9056 = scalar_lea.vmem [#allocation6], 171
    %v9057 = vld [vmem:[%s9056] ss:$2 sm:$0xf]
    %s9058 = scalar_lea.vmem [#allocation6], 172
    %v9059 = vld [vmem:[%s9058] ss:$2 sm:$0xf]
    %v9060 = vmax.f32 %v9057, %v9059
    %s9061 = scalar_lea.vmem [#allocation6], 181
    %v9062 = vld [vmem:[%s9061] ss:$2 sm:$0xf]
    %s9063 = scalar_lea.vmem [#allocation6], 182
    %v9064 = vld [vmem:[%s9063] ss:$2 sm:$0xf]
    %v9065 = vmax.f32 %v9062, %v9064
    %v9066 = vmax.f32 %v9060, %v9065
    %9067 = vst.msk [vmem:[#allocation3 + $0x45] sm:$0xf] %vm8982, %v9066
    %v9068 = vld [vmem:[%s8 + $0x4] sm:$0x1]
    %v9069 = vld [vmem:[#allocation3 + $0x1] sm:$0xff]
    %v9070 = vld [vmem:[#allocation3 + $0x9] sm:$0xff]
    %v9071 = vld [vmem:[#allocation3 + $0x11] sm:$0xff]
    %v9072 = vld [vmem:[#allocation3 + $0x19] sm:$0xff]
    %v9073 = vld [vmem:[#allocation3 + $0x21] sm:$0xff]
    %v9074 = vld [vmem:[#allocation3 + $0x29] sm:$0xff]
    %v9075 = vld [vmem:[#allocation3 + $0x31] sm:$0xff]
    %v9076 = vld [vmem:[#allocation3 + $0x39] sm:$0xff]
    %v9077 = vld [vmem:[#allocation3 + $0x41] sm:$0xff]
    %v9078 = vld [vmem:[%s3] sm:$0xff]
    %v9079 = vld [vmem:[%s3 + $0x8] sm:$0xff]
    %v9080 = vld [vmem:[%s3 + $0x10] sm:$0xff]
    %v9081 = vld [vmem:[%s3 + $0x18] sm:$0xff]
    %v9082 = vld [vmem:[#allocation3 + $0x2] sm:$0xff]
    %v9083 = vld [vmem:[#allocation3 + $0xa] sm:$0xff]
    %v9084 = vld [vmem:[#allocation3 + $0x12] sm:$0xff]
    %v9085 = vld [vmem:[#allocation3 + $0x1a] sm:$0xff]
    %v9086 = vld [vmem:[#allocation3 + $0x22] sm:$0xff]
    %v9087 = vld [vmem:[#allocation3 + $0x2a] sm:$0xff]
    %v9088 = vld [vmem:[#allocation3 + $0x32] sm:$0xff]
    %v9089 = vld [vmem:[#allocation3 + $0x3a] sm:$0xff]
    %v9090 = vld [vmem:[#allocation3 + $0x42] sm:$0xff]
    %s9091 = scalar_lea.vmem %s3, 32
    %v9092 = vld [vmem:[%s9091] sm:$0xff]
    %v9093 = vld [vmem:[%s9091 + $0x8] sm:$0xff]
    %v9094 = vld [vmem:[%s9091 + $0x10] sm:$0xff]
    %v9095 = vld [vmem:[%s9091 + $0x18] sm:$0xff]
    %v9097 = vsel %vm8945, %v9082, 0
    %v9100 = vsel %vm8945, %v9083, 0
    %v9103 = vsel %vm8945, %v9084, 0
    %v9106 = vsel %vm8945, %v9085, 0
    %v9109 = vsel %vm8945, %v9086, 0
    %v9112 = vsel %vm8945, %v9087, 0
    %v9115 = vsel %vm8945, %v9088, 0
    %v9118 = vsel %vm8945, %v9089, 0
    %v9121 = vsel %vm8945, %v9090, 0
    %9123 = vmatpush.msra.mxu0 0.0
    %9124 = vmatpush.msra.mxu0 0.0
    %9125 = vmatpush.msra.mxu0 0.0
    %9126 = vmatpush.msra.mxu0 0.0
    %9127 = vmatpush.msra.mxu0 0.0
    %9128 = vmatpush.msra.mxu0 0.0
    %9129 = vmatpush.msra.mxu0 0.0
    %9130 = vmatpush.msra.mxu0 0.0
    %9131 = vmatpush.msra.mxu0 0.0
    %9132 = vmatpush.msra.mxu0 0.0
    %9133 = vmatpush.msra.mxu0 0.0
    %9134 = vmatpush.msra.mxu0 0.0
    %9135 = vmatpush.msra.mxu0 %v9095
    %9136 = vmatpush.msra.mxu0 %v9094
    %9137 = vmatpush.msra.mxu0 %v9093
    %9138 = vmatpush.msra.mxu0 %v9092
    %9139 = vmatmul.f32.gmra.mxu0 %v9097
    %v9140 = vpop.f32.mrf.mxu0
    %v9141 = vadd.f32 0.0, %v9140
    %9142 = vmatmul.f32.gmra.mxu0 %v9100
    %v9143 = vpop.f32.mrf.mxu0
    %v9144 = vadd.f32 0.0, %v9143
    %9145 = vmatmul.f32.gmra.mxu0 %v9103
    %v9146 = vpop.f32.mrf.mxu0
    %v9147 = vadd.f32 0.0, %v9146
    %9148 = vmatmul.f32.gmra.mxu0 %v9106
    %v9149 = vpop.f32.mrf.mxu0
    %v9150 = vadd.f32 0.0, %v9149
    %9151 = vmatmul.f32.gmra.mxu0 %v9109
    %v9152 = vpop.f32.mrf.mxu0
    %v9153 = vadd.f32 0.0, %v9152
    %9154 = vmatmul.f32.gmra.mxu0 %v9112
    %v9155 = vpop.f32.mrf.mxu0
    %v9156 = vadd.f32 0.0, %v9155
    %9157 = vmatmul.f32.gmra.mxu0 %v9115
    %v9158 = vpop.f32.mrf.mxu0
    %v9159 = vadd.f32 0.0, %v9158
    %9160 = vmatmul.f32.gmra.mxu0 %v9118
    %v9161 = vpop.f32.mrf.mxu0
    %v9162 = vadd.f32 0.0, %v9161
    %9163 = vmatmul.f32.gmra.mxu0 %v9121
    %v9164 = vpop.f32.mrf.mxu0
    %v9165 = vadd.f32 0.0, %v9164
    %9166 = vdwg.mxu0
    %v9168 = vsel %vm8945, %v9069, 0
    %v9171 = vsel %vm8945, %v9070, 0
    %v9174 = vsel %vm8945, %v9071, 0
    %v9177 = vsel %vm8945, %v9072, 0
    %v9180 = vsel %vm8945, %v9073, 0
    %v9183 = vsel %vm8945, %v9074, 0
    %v9186 = vsel %vm8945, %v9075, 0
    %v9189 = vsel %vm8945, %v9076, 0
    %v9192 = vsel %vm8945, %v9077, 0
    %9194 = vmatpush.msra.mxu0 0.0
    %9195 = vmatpush.msra.mxu0 0.0
    %9196 = vmatpush.msra.mxu0 0.0
    %9197 = vmatpush.msra.mxu0 0.0
    %9198 = vmatpush.msra.mxu0 0.0
    %9199 = vmatpush.msra.mxu0 0.0
    %9200 = vmatpush.msra.mxu0 0.0
    %9201 = vmatpush.msra.mxu0 0.0
    %9202 = vmatpush.msra.mxu0 0.0
    %9203 = vmatpush.msra.mxu0 0.0
    %9204 = vmatpush.msra.mxu0 0.0
    %9205 = vmatpush.msra.mxu0 0.0
    %9206 = vmatpush.msra.mxu0 %v9081
    %9207 = vmatpush.msra.mxu0 %v9080
    %9208 = vmatpush.msra.mxu0 %v9079
    %9209 = vmatpush.msra.mxu0 %v9078
    %9210 = vmatmul.f32.gmra.mxu0 %v9168
    %v9211 = vpop.f32.mrf.mxu0
    %v9212 = vadd.f32 %v9141, %v9211
    %9213 = vmatmul.f32.gmra.mxu0 %v9171
    %v9214 = vpop.f32.mrf.mxu0
    %v9215 = vadd.f32 %v9144, %v9214
    %9216 = vmatmul.f32.gmra.mxu0 %v9174
    %v9217 = vpop.f32.mrf.mxu0
    %v9218 = vadd.f32 %v9147, %v9217
    %9219 = vmatmul.f32.gmra.mxu0 %v9177
    %v9220 = vpop.f32.mrf.mxu0
    %v9221 = vadd.f32 %v9150, %v9220
    %9222 = vmatmul.f32.gmra.mxu0 %v9180
    %v9223 = vpop.f32.mrf.mxu0
    %v9224 = vadd.f32 %v9153, %v9223
    %9225 = vmatmul.f32.gmra.mxu0 %v9183
    %v9226 = vpop.f32.mrf.mxu0
    %v9227 = vadd.f32 %v9156, %v9226
    %9228 = vmatmul.f32.gmra.mxu0 %v9186
    %v9229 = vpop.f32.mrf.mxu0
    %v9230 = vadd.f32 %v9159, %v9229
    %9231 = vmatmul.f32.gmra.mxu0 %v9189
    %v9232 = vpop.f32.mrf.mxu0
    %v9233 = vadd.f32 %v9162, %v9232
    %9234 = vmatmul.f32.gmra.mxu0 %v9192
    %v9235 = vpop.f32.mrf.mxu0
    %v9236 = vadd.f32 %v9165, %v9235
    %9237 = vdwg.mxu0
    %v9238 = vld [vmem:[#allocation3 + $0x3] sm:$0xff]
    %v9239 = vld [vmem:[#allocation3 + $0xb] sm:$0xff]
    %v9240 = vld [vmem:[#allocation3 + $0x13] sm:$0xff]
    %v9241 = vld [vmem:[#allocation3 + $0x1b] sm:$0xff]
    %v9242 = vld [vmem:[#allocation3 + $0x23] sm:$0xff]
    %v9243 = vld [vmem:[#allocation3 + $0x2b] sm:$0xff]
    %v9244 = vld [vmem:[#allocation3 + $0x33] sm:$0xff]
    %v9245 = vld [vmem:[#allocation3 + $0x3b] sm:$0xff]
    %v9246 = vld [vmem:[#allocation3 + $0x43] sm:$0xff]
    %s9247 = scalar_lea.vmem %s3, 64
    %v9248 = vld [vmem:[%s9247] sm:$0xff]
    %v9249 = vld [vmem:[%s9247 + $0x8] sm:$0xff]
    %v9250 = vld [vmem:[%s9247 + $0x10] sm:$0xff]
    %v9251 = vld [vmem:[%s9247 + $0x18] sm:$0xff]
    %v9253 = vsel %vm8945, %v9238, 0
    %v9256 = vsel %vm8945, %v9239, 0
    %v9259 = vsel %vm8945, %v9240, 0
    %v9262 = vsel %vm8945, %v9241, 0
    %v9265 = vsel %vm8945, %v9242, 0
    %v9268 = vsel %vm8945, %v9243, 0
    %v9271 = vsel %vm8945, %v9244, 0
    %v9274 = vsel %vm8945, %v9245, 0
    %v9277 = vsel %vm8945, %v9246, 0
    %9279 = vmatpush.msra.mxu0 0.0
    %9280 = vmatpush.msra.mxu0 0.0
    %9281 = vmatpush.msra.mxu0 0.0
    %9282 = vmatpush.msra.mxu0 0.0
    %9283 = vmatpush.msra.mxu0 0.0
    %9284 = vmatpush.msra.mxu0 0.0
    %9285 = vmatpush.msra.mxu0 0.0
    %9286 = vmatpush.msra.mxu0 0.0
    %9287 = vmatpush.msra.mxu0 0.0
    %9288 = vmatpush.msra.mxu0 0.0
    %9289 = vmatpush.msra.mxu0 0.0
    %9290 = vmatpush.msra.mxu0 0.0
    %9291 = vmatpush.msra.mxu0 %v9251
    %9292 = vmatpush.msra.mxu0 %v9250
    %9293 = vmatpush.msra.mxu0 %v9249
    %9294 = vmatpush.msra.mxu0 %v9248
    %9295 = vmatmul.f32.gmra.mxu0 %v9253
    %v9296 = vpop.f32.mrf.mxu0
    %v9297 = vadd.f32 0.0, %v9296
    %9298 = vmatmul.f32.gmra.mxu0 %v9256
    %v9299 = vpop.f32.mrf.mxu0
    %v9300 = vadd.f32 0.0, %v9299
    %9301 = vmatmul.f32.gmra.mxu0 %v9259
    %v9302 = vpop.f32.mrf.mxu0
    %v9303 = vadd.f32 0.0, %v9302
    %9304 = vmatmul.f32.gmra.mxu0 %v9262
    %v9305 = vpop.f32.mrf.mxu0
    %v9306 = vadd.f32 0.0, %v9305
    %9307 = vmatmul.f32.gmra.mxu0 %v9265
    %v9308 = vpop.f32.mrf.mxu0
    %v9309 = vadd.f32 0.0, %v9308
    %9310 = vmatmul.f32.gmra.mxu0 %v9268
    %v9311 = vpop.f32.mrf.mxu0
    %v9312 = vadd.f32 0.0, %v9311
    %9313 = vmatmul.f32.gmra.mxu0 %v9271
    %v9314 = vpop.f32.mrf.mxu0
    %v9315 = vadd.f32 0.0, %v9314
    %9316 = vmatmul.f32.gmra.mxu0 %v9274
    %v9317 = vpop.f32.mrf.mxu0
    %v9318 = vadd.f32 0.0, %v9317
    %9319 = vmatmul.f32.gmra.mxu0 %v9277
    %v9320 = vpop.f32.mrf.mxu0
    %v9321 = vadd.f32 0.0, %v9320
    %9322 = vdwg.mxu0
    %v9323 = vadd.f32 %v9212, %v9297
    %v9324 = vadd.f32 %v9215, %v9300
    %v9325 = vadd.f32 %v9218, %v9303
    %v9326 = vadd.f32 %v9221, %v9306
    %v9327 = vadd.f32 %v9224, %v9309
    %v9328 = vadd.f32 %v9227, %v9312
    %v9329 = vadd.f32 %v9230, %v9315
    %v9330 = vadd.f32 %v9233, %v9318
    %v9331 = vadd.f32 %v9236, %v9321
    %v9332 = vld [vmem:[#allocation3 + $0x7] sm:$0xff]
    %v9333 = vld [vmem:[#allocation3 + $0xf] sm:$0xff]
    %v9334 = vld [vmem:[#allocation3 + $0x17] sm:$0xff]
    %v9335 = vld [vmem:[#allocation3 + $0x1f] sm:$0xff]
    %v9336 = vld [vmem:[#allocation3 + $0x27] sm:$0xff]
    %v9337 = vld [vmem:[#allocation3 + $0x2f] sm:$0xff]
    %v9338 = vld [vmem:[#allocation3 + $0x37] sm:$0xff]
    %v9339 = vld [vmem:[#allocation3 + $0x3f] sm:$0xff]
    %v9340 = vld [vmem:[#allocation3 + $0x47] sm:$0xff]
    %s9341 = scalar_lea.vmem %s3, 96
    %v9342 = vld [vmem:[%s9341] sm:$0xff]
    %v9343 = vld [vmem:[%s9341 + $0x8] sm:$0xff]
    %v9344 = vld [vmem:[%s9341 + $0x10] sm:$0xff]
    %v9345 = vld [vmem:[%s9341 + $0x18] sm:$0xff]
    %v9347 = vsel %vm8945, %v9332, 0
    %v9350 = vsel %vm8945, %v9333, 0
    %v9353 = vsel %vm8945, %v9334, 0
    %v9356 = vsel %vm8945, %v9335, 0
    %v9359 = vsel %vm8945, %v9336, 0
    %v9362 = vsel %vm8945, %v9337, 0
    %v9365 = vsel %vm8945, %v9338, 0
    %v9368 = vsel %vm8945, %v9339, 0
    %v9371 = vsel %vm8945, %v9340, 0
    %9373 = vmatpush.msra.mxu0 0.0
    %9374 = vmatpush.msra.mxu0 0.0
    %9375 = vmatpush.msra.mxu0 0.0
    %9376 = vmatpush.msra.mxu0 0.0
    %9377 = vmatpush.msra.mxu0 0.0
    %9378 = vmatpush.msra.mxu0 0.0
    %9379 = vmatpush.msra.mxu0 0.0
    %9380 = vmatpush.msra.mxu0 0.0
    %9381 = vmatpush.msra.mxu0 0.0
    %9382 = vmatpush.msra.mxu0 0.0
    %9383 = vmatpush.msra.mxu0 0.0
    %9384 = vmatpush.msra.mxu0 0.0
    %9385 = vmatpush.msra.mxu0 %v9345
    %9386 = vmatpush.msra.mxu0 %v9344
    %9387 = vmatpush.msra.mxu0 %v9343
    %9388 = vmatpush.msra.mxu0 %v9342
    %9389 = vmatmul.f32.gmra.mxu0 %v9347
    %v9390 = vpop.f32.mrf.mxu0
    %v9391 = vadd.f32 0.0, %v9390
    %9392 = vmatmul.f32.gmra.mxu0 %v9350
    %v9393 = vpop.f32.mrf.mxu0
    %v9394 = vadd.f32 0.0, %v9393
    %9395 = vmatmul.f32.gmra.mxu0 %v9353
    %v9396 = vpop.f32.mrf.mxu0
    %v9397 = vadd.f32 0.0, %v9396
    %9398 = vmatmul.f32.gmra.mxu0 %v9356
    %v9399 = vpop.f32.mrf.mxu0
    %v9400 = vadd.f32 0.0, %v9399
    %9401 = vmatmul.f32.gmra.mxu0 %v9359
    %v9402 = vpop.f32.mrf.mxu0
    %v9403 = vadd.f32 0.0, %v9402
    %9404 = vmatmul.f32.gmra.mxu0 %v9362
    %v9405 = vpop.f32.mrf.mxu0
    %v9406 = vadd.f32 0.0, %v9405
    %9407 = vmatmul.f32.gmra.mxu0 %v9365
    %v9408 = vpop.f32.mrf.mxu0
    %v9409 = vadd.f32 0.0, %v9408
    %9410 = vmatmul.f32.gmra.mxu0 %v9368
    %v9411 = vpop.f32.mrf.mxu0
    %v9412 = vadd.f32 0.0, %v9411
    %9413 = vmatmul.f32.gmra.mxu0 %v9371
    %v9414 = vpop.f32.mrf.mxu0
    %v9415 = vadd.f32 0.0, %v9414
    %9416 = vdwg.mxu0
    %v9417 = vadd.f32 %v9323, %v9391
    %v9418 = vadd.f32 %v9324, %v9394
    %v9419 = vadd.f32 %v9325, %v9397
    %v9420 = vadd.f32 %v9326, %v9400
    %v9421 = vadd.f32 %v9327, %v9403
    %v9422 = vadd.f32 %v9328, %v9406
    %v9423 = vadd.f32 %v9329, %v9409
    %v9424 = vadd.f32 %v9330, %v9412
    %v9425 = vadd.f32 %v9331, %v9415
    %v9426 = vld [vmem:[#allocation3 + $0x8] sm:$0xff]
    %v9427 = vld [vmem:[#allocation3 + $0x10] sm:$0xff]
    %v9428 = vld [vmem:[#allocation3 + $0x18] sm:$0xff]
    %v9429 = vld [vmem:[#allocation3 + $0x20] sm:$0xff]
    %v9430 = vld [vmem:[#allocation3 + $0x28] sm:$0xff]
    %v9431 = vld [vmem:[#allocation3 + $0x30] sm:$0xff]
    %v9432 = vld [vmem:[#allocation3 + $0x38] sm:$0xff]
    %v9433 = vld [vmem:[#allocation3 + $0x40] sm:$0xff]
    %v9434 = vld [vmem:[#allocation3 + $0x48] sm:$0xff]
    %s9435 = scalar_lea.vmem %s3, 128
    %v9436 = vld [vmem:[%s9435] sm:$0xff]
    %v9437 = vld [vmem:[%s9435 + $0x8] sm:$0xff]
    %v9438 = vld [vmem:[%s9435 + $0x10] sm:$0xff]
    %v9439 = vld [vmem:[%s9435 + $0x18] sm:$0xff]
    %v9441 = vsel %vm8945, %v9426, 0
    %v9444 = vsel %vm8945, %v9427, 0
    %v9447 = vsel %vm8945, %v9428, 0
    %v9450 = vsel %vm8945, %v9429, 0
    %v9453 = vsel %vm8945, %v9430, 0
    %v9456 = vsel %vm8945, %v9431, 0
    %v9459 = vsel %vm8945, %v9432, 0
    %v9462 = vsel %vm8945, %v9433, 0
    %v9465 = vsel %vm8945, %v9434, 0
    %9467 = vmatpush.msra.mxu0 0.0
    %9468 = vmatpush.msra.mxu0 0.0
    %9469 = vmatpush.msra.mxu0 0.0
    %9470 = vmatpush.msra.mxu0 0.0
    %9471 = vmatpush.msra.mxu0 0.0
    %9472 = vmatpush.msra.mxu0 0.0
    %9473 = vmatpush.msra.mxu0 0.0
    %9474 = vmatpush.msra.mxu0 0.0
    %9475 = vmatpush.msra.mxu0 0.0
    %9476 = vmatpush.msra.mxu0 0.0
    %9477 = vmatpush.msra.mxu0 0.0
    %9478 = vmatpush.msra.mxu0 0.0
    %9479 = vmatpush.msra.mxu0 %v9439
    %9480 = vmatpush.msra.mxu0 %v9438
    %9481 = vmatpush.msra.mxu0 %v9437
    %9482 = vmatpush.msra.mxu0 %v9436
    %9483 = vmatmul.f32.gmra.mxu0 %v9441
    %v9484 = vpop.f32.mrf.mxu0
    %v9485 = vadd.f32 0.0, %v9484
    %9486 = vmatmul.f32.gmra.mxu0 %v9444
    %v9487 = vpop.f32.mrf.mxu0
    %v9488 = vadd.f32 0.0, %v9487
    %9489 = vmatmul.f32.gmra.mxu0 %v9447
    %v9490 = vpop.f32.mrf.mxu0
    %v9491 = vadd.f32 0.0, %v9490
    %9492 = vmatmul.f32.gmra.mxu0 %v9450
    %v9493 = vpop.f32.mrf.mxu0
    %v9494 = vadd.f32 0.0, %v9493
    %9495 = vmatmul.f32.gmra.mxu0 %v9453
    %v9496 = vpop.f32.mrf.mxu0
    %v9497 = vadd.f32 0.0, %v9496
    %9498 = vmatmul.f32.gmra.mxu0 %v9456
    %v9499 = vpop.f32.mrf.mxu0
    %v9500 = vadd.f32 0.0, %v9499
    %9501 = vmatmul.f32.gmra.mxu0 %v9459
    %v9502 = vpop.f32.mrf.mxu0
    %v9503 = vadd.f32 0.0, %v9502
    %9504 = vmatmul.f32.gmra.mxu0 %v9462
    %v9505 = vpop.f32.mrf.mxu0
    %v9506 = vadd.f32 0.0, %v9505
    %9507 = vmatmul.f32.gmra.mxu0 %v9465
    %v9508 = vpop.f32.mrf.mxu0
    %v9509 = vadd.f32 0.0, %v9508
    %9510 = vdwg.mxu0
    %v9511 = vadd.f32 %v9417, %v9485
    %v9512 = vadd.f32 %v9418, %v9488
    %v9513 = vadd.f32 %v9419, %v9491
    %v9514 = vadd.f32 %v9420, %v9494
    %v9515 = vadd.f32 %v9421, %v9497
    %v9516 = vadd.f32 %v9422, %v9500
    %v9517 = vadd.f32 %v9423, %v9503
    %v9518 = vadd.f32 %v9424, %v9506
    %v9519 = vadd.f32 %v9425, %v9509
    %v9520 = vld [vmem:[#allocation3 + $0x9] sm:$0xff]
    %v9521 = vld [vmem:[#allocation3 + $0x11] sm:$0xff]
    %v9522 = vld [vmem:[#allocation3 + $0x19] sm:$0xff]
    %v9523 = vld [vmem:[#allocation3 + $0x21] sm:$0xff]
    %v9524 = vld [vmem:[#allocation3 + $0x29] sm:$0xff]
    %v9525 = vld [vmem:[#allocation3 + $0x31] sm:$0xff]
    %v9526 = vld [vmem:[#allocation3 + $0x39] sm:$0xff]
    %v9527 = vld [vmem:[#allocation3 + $0x41] sm:$0xff]
    %v9528 = vld [vmem:[#allocation3 + $0x49] sm:$0xff]
    %s9529 = scalar_lea.vmem %s3, 160
    %v9530 = vld [vmem:[%s9529] sm:$0xff]
    %v9531 = vld [vmem:[%s9529 + $0x8] sm:$0xff]
    %v9532 = vld [vmem:[%s9529 + $0x10] sm:$0xff]
    %v9533 = vld [vmem:[%s9529 + $0x18] sm:$0xff]
    %v9535 = vsel %vm8945, %v9520, 0
    %v9538 = vsel %vm8945, %v9521, 0
    %v9541 = vsel %vm8945, %v9522, 0
    %v9544 = vsel %vm8945, %v9523, 0
    %v9547 = vsel %vm8945, %v9524, 0
    %v9550 = vsel %vm8945, %v9525, 0
    %v9553 = vsel %vm8945, %v9526, 0
    %v9556 = vsel %vm8945, %v9527, 0
    %v9559 = vsel %vm8945, %v9528, 0
    %9561 = vmatpush.msra.mxu0 0.0
    %9562 = vmatpush.msra.mxu0 0.0
    %9563 = vmatpush.msra.mxu0 0.0
    %9564 = vmatpush.msra.mxu0 0.0
    %9565 = vmatpush.msra.mxu0 0.0
    %9566 = vmatpush.msra.mxu0 0.0
    %9567 = vmatpush.msra.mxu0 0.0
    %9568 = vmatpush.msra.mxu0 0.0
    %9569 = vmatpush.msra.mxu0 0.0
    %9570 = vmatpush.msra.mxu0 0.0
    %9571 = vmatpush.msra.mxu0 0.0
    %9572 = vmatpush.msra.mxu0 0.0
    %9573 = vmatpush.msra.mxu0 %v9533
    %9574 = vmatpush.msra.mxu0 %v9532
    %9575 = vmatpush.msra.mxu0 %v9531
    %9576 = vmatpush.msra.mxu0 %v9530
    %9577 = vmatmul.f32.gmra.mxu0 %v9535
    %v9578 = vpop.f32.mrf.mxu0
    %v9579 = vadd.f32 0.0, %v9578
    %9580 = vmatmul.f32.gmra.mxu0 %v9538
    %v9581 = vpop.f32.mrf.mxu0
    %v9582 = vadd.f32 0.0, %v9581
    %9583 = vmatmul.f32.gmra.mxu0 %v9541
    %v9584 = vpop.f32.mrf.mxu0
    %v9585 = vadd.f32 0.0, %v9584
    %9586 = vmatmul.f32.gmra.mxu0 %v9544
    %v9587 = vpop.f32.mrf.mxu0
    %v9588 = vadd.f32 0.0, %v9587
    %9589 = vmatmul.f32.gmra.mxu0 %v9547
    %v9590 = vpop.f32.mrf.mxu0
    %v9591 = vadd.f32 0.0, %v9590
    %9592 = vmatmul.f32.gmra.mxu0 %v9550
    %v9593 = vpop.f32.mrf.mxu0
    %v9594 = vadd.f32 0.0, %v9593
    %9595 = vmatmul.f32.gmra.mxu0 %v9553
    %v9596 = vpop.f32.mrf.mxu0
    %v9597 = vadd.f32 0.0, %v9596
    %9598 = vmatmul.f32.gmra.mxu0 %v9556
    %v9599 = vpop.f32.mrf.mxu0
    %v9600 = vadd.f32 0.0, %v9599
    %9601 = vmatmul.f32.gmra.mxu0 %v9559
    %v9602 = vpop.f32.mrf.mxu0
    %v9603 = vadd.f32 0.0, %v9602
    %9604 = vdwg.mxu0
    %v9605 = vadd.f32 %v9511, %v9579
    %v9606 = vadd.f32 %v9512, %v9582
    %v9607 = vadd.f32 %v9513, %v9585
    %v9608 = vadd.f32 %v9514, %v9588
    %v9609 = vadd.f32 %v9515, %v9591
    %v9610 = vadd.f32 %v9516, %v9594
    %v9611 = vadd.f32 %v9517, %v9597
    %v9612 = vadd.f32 %v9518, %v9600
    %v9613 = vadd.f32 %v9519, %v9603
    %v9614 = vld [vmem:[#allocation3 + $0xd] sm:$0xff]
    %v9615 = vld [vmem:[#allocation3 + $0x15] sm:$0xff]
    %v9616 = vld [vmem:[#allocation3 + $0x1d] sm:$0xff]
    %v9617 = vld [vmem:[#allocation3 + $0x25] sm:$0xff]
    %v9618 = vld [vmem:[#allocation3 + $0x2d] sm:$0xff]
    %v9619 = vld [vmem:[#allocation3 + $0x35] sm:$0xff]
    %v9620 = vld [vmem:[#allocation3 + $0x3d] sm:$0xff]
    %v9621 = vld [vmem:[#allocation3 + $0x45] sm:$0xff]
    %v9622 = vld [vmem:[#allocation3 + $0x4d] sm:$0xff]
    %s9623 = scalar_lea.vmem %s3, 192
    %v9624 = vld [vmem:[%s9623] sm:$0xff]
    %v9625 = vld [vmem:[%s9623 + $0x8] sm:$0xff]
    %v9626 = vld [vmem:[%s9623 + $0x10] sm:$0xff]
    %v9627 = vld [vmem:[%s9623 + $0x18] sm:$0xff]
    %v9629 = vsel %vm8945, %v9614, 0
    %v9632 = vsel %vm8945, %v9615, 0
    %v9635 = vsel %vm8945, %v9616, 0
    %v9638 = vsel %vm8945, %v9617, 0
    %v9641 = vsel %vm8945, %v9618, 0
    %v9644 = vsel %vm8945, %v9619, 0
    %v9647 = vsel %vm8945, %v9620, 0
    %v9650 = vsel %vm8945, %v9621, 0
    %v9653 = vsel %vm8945, %v9622, 0
    %9655 = vmatpush.msra.mxu0 0.0
    %9656 = vmatpush.msra.mxu0 0.0
    %9657 = vmatpush.msra.mxu0 0.0
    %9658 = vmatpush.msra.mxu0 0.0
    %9659 = vmatpush.msra.mxu0 0.0
    %9660 = vmatpush.msra.mxu0 0.0
    %9661 = vmatpush.msra.mxu0 0.0
    %9662 = vmatpush.msra.mxu0 0.0
    %9663 = vmatpush.msra.mxu0 0.0
    %9664 = vmatpush.msra.mxu0 0.0
    %9665 = vmatpush.msra.mxu0 0.0
    %9666 = vmatpush.msra.mxu0 0.0
    %9667 = vmatpush.msra.mxu0 %v9627
    %9668 = vmatpush.msra.mxu0 %v9626
    %9669 = vmatpush.msra.mxu0 %v9625
    %9670 = vmatpush.msra.mxu0 %v9624
    %9671 = vmatmul.f32.gmra.mxu0 %v9629
    %v9672 = vpop.f32.mrf.mxu0
    %v9673 = vadd.f32 0.0, %v9672
    %9674 = vmatmul.f32.gmra.mxu0 %v9632
    %v9675 = vpop.f32.mrf.mxu0
    %v9676 = vadd.f32 0.0, %v9675
    %9677 = vmatmul.f32.gmra.mxu0 %v9635
    %v9678 = vpop.f32.mrf.mxu0
    %v9679 = vadd.f32 0.0, %v9678
    %9680 = vmatmul.f32.gmra.mxu0 %v9638
    %v9681 = vpop.f32.mrf.mxu0
    %v9682 = vadd.f32 0.0, %v9681
    %9683 = vmatmul.f32.gmra.mxu0 %v9641
    %v9684 = vpop.f32.mrf.mxu0
    %v9685 = vadd.f32 0.0, %v9684
    %9686 = vmatmul.f32.gmra.mxu0 %v9644
    %v9687 = vpop.f32.mrf.mxu0
    %v9688 = vadd.f32 0.0, %v9687
    %9689 = vmatmul.f32.gmra.mxu0 %v9647
    %v9690 = vpop.f32.mrf.mxu0
    %v9691 = vadd.f32 0.0, %v9690
    %9692 = vmatmul.f32.gmra.mxu0 %v9650
    %v9693 = vpop.f32.mrf.mxu0
    %v9694 = vadd.f32 0.0, %v9693
    %9695 = vmatmul.f32.gmra.mxu0 %v9653
    %v9696 = vpop.f32.mrf.mxu0
    %v9697 = vadd.f32 0.0, %v9696
    %9698 = vdwg.mxu0
    %v9699 = vadd.f32 %v9605, %v9673
    %v9700 = vadd.f32 %v9606, %v9676
    %v9701 = vadd.f32 %v9607, %v9679
    %v9702 = vadd.f32 %v9608, %v9682
    %v9703 = vadd.f32 %v9609, %v9685
    %v9704 = vadd.f32 %v9610, %v9688
    %v9705 = vadd.f32 %v9611, %v9691
    %v9706 = vadd.f32 %v9612, %v9694
    %v9707 = vadd.f32 %v9613, %v9697
    %v9708 = vld [vmem:[#allocation3 + $0xe] sm:$0xff]
    %v9709 = vld [vmem:[#allocation3 + $0x16] sm:$0xff]
    %v9710 = vld [vmem:[#allocation3 + $0x1e] sm:$0xff]
    %v9711 = vld [vmem:[#allocation3 + $0x26] sm:$0xff]
    %v9712 = vld [vmem:[#allocation3 + $0x2e] sm:$0xff]
    %v9713 = vld [vmem:[#allocation3 + $0x36] sm:$0xff]
    %v9714 = vld [vmem:[#allocation3 + $0x3e] sm:$0xff]
    %v9715 = vld [vmem:[#allocation3 + $0x46] sm:$0xff]
    %v9716 = vld [vmem:[#allocation3 + $0x4e] sm:$0xff]
    %s9717 = scalar_lea.vmem %s3, 224
    %v9718 = vld [vmem:[%s9717] sm:$0xff]
    %v9719 = vld [vmem:[%s9717 + $0x8] sm:$0xff]
    %v9720 = vld [vmem:[%s9717 + $0x10] sm:$0xff]
    %v9721 = vld [vmem:[%s9717 + $0x18] sm:$0xff]
    %v9723 = vsel %vm8945, %v9708, 0
    %v9726 = vsel %vm8945, %v9709, 0
    %v9729 = vsel %vm8945, %v9710, 0
    %v9732 = vsel %vm8945, %v9711, 0
    %v9735 = vsel %vm8945, %v9712, 0
    %v9738 = vsel %vm8945, %v9713, 0
    %v9741 = vsel %vm8945, %v9714, 0
    %v9744 = vsel %vm8945, %v9715, 0
    %v9747 = vsel %vm8945, %v9716, 0
    %9749 = vmatpush.msra.mxu0 0.0
    %9750 = vmatpush.msra.mxu0 0.0
    %9751 = vmatpush.msra.mxu0 0.0
    %9752 = vmatpush.msra.mxu0 0.0
    %9753 = vmatpush.msra.mxu0 0.0
    %9754 = vmatpush.msra.mxu0 0.0
    %9755 = vmatpush.msra.mxu0 0.0
    %9756 = vmatpush.msra.mxu0 0.0
    %9757 = vmatpush.msra.mxu0 0.0
    %9758 = vmatpush.msra.mxu0 0.0
    %9759 = vmatpush.msra.mxu0 0.0
    %9760 = vmatpush.msra.mxu0 0.0
    %9761 = vmatpush.msra.mxu0 %v9721
    %9762 = vmatpush.msra.mxu0 %v9720
    %9763 = vmatpush.msra.mxu0 %v9719
    %9764 = vmatpush.msra.mxu0 %v9718
    %9765 = vmatmul.f32.gmra.mxu0 %v9723
    %v9766 = vpop.f32.mrf.mxu0
    %v9767 = vadd.f32 0.0, %v9766
    %9768 = vmatmul.f32.gmra.mxu0 %v9726
    %v9769 = vpop.f32.mrf.mxu0
    %v9770 = vadd.f32 0.0, %v9769
    %9771 = vmatmul.f32.gmra.mxu0 %v9729
    %v9772 = vpop.f32.mrf.mxu0
    %v9773 = vadd.f32 0.0, %v9772
    %9774 = vmatmul.f32.gmra.mxu0 %v9732
    %v9775 = vpop.f32.mrf.mxu0
    %v9776 = vadd.f32 0.0, %v9775
    %9777 = vmatmul.f32.gmra.mxu0 %v9735
    %v9778 = vpop.f32.mrf.mxu0
    %v9779 = vadd.f32 0.0, %v9778
    %9780 = vmatmul.f32.gmra.mxu0 %v9738
    %v9781 = vpop.f32.mrf.mxu0
    %v9782 = vadd.f32 0.0, %v9781
    %9783 = vmatmul.f32.gmra.mxu0 %v9741
    %v9784 = vpop.f32.mrf.mxu0
    %v9785 = vadd.f32 0.0, %v9784
    %9786 = vmatmul.f32.gmra.mxu0 %v9744
    %v9787 = vpop.f32.mrf.mxu0
    %v9788 = vadd.f32 0.0, %v9787
    %9789 = vmatmul.f32.gmra.mxu0 %v9747
    %v9790 = vpop.f32.mrf.mxu0
    %v9791 = vadd.f32 0.0, %v9790
    %9792 = vdwg.mxu0
    %v9793 = vadd.f32 %v9699, %v9767
    %v9794 = vadd.f32 %v9700, %v9770
    %v9795 = vadd.f32 %v9701, %v9773
    %v9796 = vadd.f32 %v9702, %v9776
    %v9797 = vadd.f32 %v9703, %v9779
    %v9798 = vadd.f32 %v9704, %v9782
    %v9799 = vadd.f32 %v9705, %v9785
    %v9800 = vadd.f32 %v9706, %v9788
    %v9801 = vadd.f32 %v9707, %v9791
    %v9802 = vld [vmem:[#allocation3 + $0xf] sm:$0xff]
    %v9803 = vld [vmem:[#allocation3 + $0x17] sm:$0xff]
    %v9804 = vld [vmem:[#allocation3 + $0x1f] sm:$0xff]
    %v9805 = vld [vmem:[#allocation3 + $0x27] sm:$0xff]
    %v9806 = vld [vmem:[#allocation3 + $0x2f] sm:$0xff]
    %v9807 = vld [vmem:[#allocation3 + $0x37] sm:$0xff]
    %v9808 = vld [vmem:[#allocation3 + $0x3f] sm:$0xff]
    %v9809 = vld [vmem:[#allocation3 + $0x47] sm:$0xff]
    %v9810 = vld [vmem:[#allocation3 + $0x4f] sm:$0xff]
    %s9811 = scalar_lea.vmem %s3, 256
    %v9812 = vld [vmem:[%s9811] sm:$0xff]
    %v9813 = vld [vmem:[%s9811 + $0x8] sm:$0xff]
    %v9814 = vld [vmem:[%s9811 + $0x10] sm:$0xff]
    %v9815 = vld [vmem:[%s9811 + $0x18] sm:$0xff]
    %v9817 = vsel %vm8945, %v9802, 0
    %v9820 = vsel %vm8945, %v9803, 0
    %v9823 = vsel %vm8945, %v9804, 0
    %v9826 = vsel %vm8945, %v9805, 0
    %v9829 = vsel %vm8945, %v9806, 0
    %v9832 = vsel %vm8945, %v9807, 0
    %v9835 = vsel %vm8945, %v9808, 0
    %v9838 = vsel %vm8945, %v9809, 0
    %v9841 = vsel %vm8945, %v9810, 0
    %9843 = vmatpush.msra.mxu0 0.0
    %9844 = vmatpush.msra.mxu0 0.0
    %9845 = vmatpush.msra.mxu0 0.0
    %9846 = vmatpush.msra.mxu0 0.0
    %9847 = vmatpush.msra.mxu0 0.0
    %9848 = vmatpush.msra.mxu0 0.0
    %9849 = vmatpush.msra.mxu0 0.0
    %9850 = vmatpush.msra.mxu0 0.0
    %9851 = vmatpush.msra.mxu0 0.0
    %9852 = vmatpush.msra.mxu0 0.0
    %9853 = vmatpush.msra.mxu0 0.0
    %9854 = vmatpush.msra.mxu0 0.0
    %9855 = vmatpush.msra.mxu0 %v9815
    %9856 = vmatpush.msra.mxu0 %v9814
    %9857 = vmatpush.msra.mxu0 %v9813
    %9858 = vmatpush.msra.mxu0 %v9812
    %9859 = vmatmul.f32.gmra.mxu0 %v9817
    %v9860 = vpop.f32.mrf.mxu0
    %v9861 = vadd.f32 0.0, %v9860
    %9862 = vmatmul.f32.gmra.mxu0 %v9820
    %v9863 = vpop.f32.mrf.mxu0
    %v9864 = vadd.f32 0.0, %v9863
    %9865 = vmatmul.f32.gmra.mxu0 %v9823
    %v9866 = vpop.f32.mrf.mxu0
    %v9867 = vadd.f32 0.0, %v9866
    %9868 = vmatmul.f32.gmra.mxu0 %v9826
    %v9869 = vpop.f32.mrf.mxu0
    %v9870 = vadd.f32 0.0, %v9869
    %9871 = vmatmul.f32.gmra.mxu0 %v9829
    %v9872 = vpop.f32.mrf.mxu0
    %v9873 = vadd.f32 0.0, %v9872
    %9874 = vmatmul.f32.gmra.mxu0 %v9832
    %v9875 = vpop.f32.mrf.mxu0
    %v9876 = vadd.f32 0.0, %v9875
    %9877 = vmatmul.f32.gmra.mxu0 %v9835
    %v9878 = vpop.f32.mrf.mxu0
    %v9879 = vadd.f32 0.0, %v9878
    %9880 = vmatmul.f32.gmra.mxu0 %v9838
    %v9881 = vpop.f32.mrf.mxu0
    %v9882 = vadd.f32 0.0, %v9881
    %9883 = vmatmul.f32.gmra.mxu0 %v9841
    %v9884 = vpop.f32.mrf.mxu0
    %v9885 = vadd.f32 0.0, %v9884
    %9886 = vdwg.mxu0
    %v9887 = vadd.f32 %v9793, %v9861
    %v9888 = vadd.f32 %v9794, %v9864
    %v9889 = vadd.f32 %v9795, %v9867
    %v9890 = vadd.f32 %v9796, %v9870
    %v9891 = vadd.f32 %v9797, %v9873
    %v9892 = vadd.f32 %v9798, %v9876
    %v9893 = vadd.f32 %v9799, %v9879
    %v9894 = vadd.f32 %v9800, %v9882
    %v9895 = vadd.f32 %v9801, %v9885
    %v9896 = vperm.slane %v9068, 0
    %v9897 = vadd.f32 %v9887, %v9896
    %v9898 = vadd.f32 %v9888, %v9896
    %v9899 = vadd.f32 %v9889, %v9896
    %v9900 = vadd.f32 %v9890, %v9896
    %v9901 = vadd.f32 %v9891, %v9896
    %v9902 = vadd.f32 %v9892, %v9896
    %v9903 = vadd.f32 %v9893, %v9896
    %v9904 = vadd.f32 %v9894, %v9896
    %v9905 = vadd.f32 %v9895, %v9896
    %v9906 = vmax.f32 %v9897, 0.0
    %v9907 = vmax.f32 %v9898, 0.0
    %v9908 = vmax.f32 %v9899, 0.0
    %v9909 = vmax.f32 %v9900, 0.0
    %v9910 = vmax.f32 %v9901, 0.0
    %v9911 = vmax.f32 %v9902, 0.0
    %v9912 = vmax.f32 %v9903, 0.0
    %v9913 = vmax.f32 %v9904, 0.0
    %v9914 = vmax.f32 %v9905, 0.0
    %vm9915 = vcmask 523264
    %9916 = vst.msk [vmem:[#allocation7] sm:$0xff] %vm9915, %v9906
    %9917 = vst.msk [vmem:[#allocation7 + $0x8] sm:$0xff] %vm9915, %v9907
    %9918 = vst.msk [vmem:[#allocation7 + $0x10] sm:$0xff] %vm9915, %v9908
    %9919 = vst.msk [vmem:[#allocation7 + $0x18] sm:$0xff] %vm9915, %v9909
    %9920 = vst.msk [vmem:[#allocation7 + $0x20] sm:$0xff] %vm9915, %v9910
    %9921 = vst.msk [vmem:[#allocation7 + $0x28] sm:$0xff] %vm9915, %v9911
    %9922 = vst.msk [vmem:[#allocation7 + $0x30] sm:$0xff] %vm9915, %v9912
    %9923 = vst.msk [vmem:[#allocation7 + $0x38] sm:$0xff] %vm9915, %v9913
    %9924 = vst.msk [vmem:[#allocation7 + $0x40] sm:$0xff] %vm9915, %v9914
    %s9925 = scalar_lea.vmem [#allocation7], 7
    %v9926 = vld [vmem:[%s9925] ss:$2 sm:$0x3]
    %s9927 = scalar_lea.vmem [#allocation7], 8
    %v9928 = vld [vmem:[%s9927] ss:$2 sm:$0x3]
    %v9929 = vmax.f32 %v9926, %v9928
    %s9930 = scalar_lea.vmem [#allocation7], 13
    %v9931 = vld [vmem:[%s9930] ss:$2 sm:$0x3]
    %s9932 = scalar_lea.vmem [#allocation7], 14
    %v9933 = vld [vmem:[%s9932] ss:$2 sm:$0x3]
    %v9934 = vmax.f32 %v9931, %v9933
    %v9935 = vmax.f32 %v9929, %v9934
    %vm9936 = vcmask 517120
    %9937 = vst.msk [vmem:[#allocation4 + $0xd] sm:$0x3] %vm9936, %v9935
    %s9938 = scalar_lea.vmem [#allocation7], 19
    %v9939 = vld [vmem:[%s9938] ss:$2 sm:$0x3]
    %s9940 = scalar_lea.vmem [#allocation7], 20
    %v9941 = vld [vmem:[%s9940] ss:$2 sm:$0x3]
    %v9942 = vmax.f32 %v9939, %v9941
    %s9943 = scalar_lea.vmem [#allocation7], 25
    %v9944 = vld [vmem:[%s9943] ss:$2 sm:$0x3]
    %s9945 = scalar_lea.vmem [#allocation7], 26
    %v9946 = vld [vmem:[%s9945] ss:$2 sm:$0x3]
    %v9947 = vmax.f32 %v9944, %v9946
    %v9948 = vmax.f32 %v9942, %v9947
    %9949 = vst.msk [vmem:[#allocation4 + $0x11] sm:$0x3] %vm9936, %v9948
    %s9950 = scalar_lea.vmem [#allocation7], 43
    %v9951 = vld [vmem:[%s9950] ss:$2 sm:$0x3]
    %s9952 = scalar_lea.vmem [#allocation7], 44
    %v9953 = vld [vmem:[%s9952] ss:$2 sm:$0x3]
    %v9954 = vmax.f32 %v9951, %v9953
    %s9955 = scalar_lea.vmem [#allocation7], 49
    %v9956 = vld [vmem:[%s9955] ss:$2 sm:$0x3]
    %s9957 = scalar_lea.vmem [#allocation7], 50
    %v9958 = vld [vmem:[%s9957] ss:$2 sm:$0x3]
    %v9959 = vmax.f32 %v9956, %v9958
    %v9960 = vmax.f32 %v9954, %v9959
    %9961 = vst.msk [vmem:[#allocation4 + $0x1d] sm:$0x3] %vm9936, %v9960
    %s9962 = scalar_lea.vmem [#allocation7], 55
    %v9963 = vld [vmem:[%s9962] ss:$2 sm:$0x3]
    %s9964 = scalar_lea.vmem [#allocation7], 56
    %v9965 = vld [vmem:[%s9964] ss:$2 sm:$0x3]
    %v9966 = vmax.f32 %v9963, %v9965
    %s9967 = scalar_lea.vmem [#allocation7], 61
    %v9968 = vld [vmem:[%s9967] ss:$2 sm:$0x3]
    %s9969 = scalar_lea.vmem [#allocation7], 62
    %v9970 = vld [vmem:[%s9969] ss:$2 sm:$0x3]
    %v9971 = vmax.f32 %v9968, %v9970
    %v9972 = vmax.f32 %v9966, %v9971
    %9973 = vst.msk [vmem:[#allocation4 + $0x21] sm:$0x3] %vm9936, %v9972
    %v9974 = vld [vmem:[%s8 + $0x5] sm:$0x1]
    %v9975 = vld [vmem:[%s8 + $0x6] sm:$0x1]
    %v9976 = vld [vmem:[%s8 + $0x7] sm:$0x1]
    %v9977 = vld [vmem:[#allocation4 + $0x3] sm:$0xff]
    %v9978 = vld [vmem:[#allocation4 + $0xb] sm:$0xff]
    %v9979 = vld [vmem:[#allocation4 + $0x13] sm:$0xff]
    %v9980 = vld [vmem:[#allocation4 + $0x1b] sm:$0xff]
    %v9981 = vld [vmem:[%s4] sm:$0xff]
    %v9982 = vld [vmem:[%s4 + $0x8] sm:$0xff]
    %v9983 = vld [vmem:[%s4 + $0x10] sm:$0xff]
    %v9984 = vld [vmem:[%s4 + $0x18] sm:$0xff]
    %v9985 = vld [vmem:[%s4 + $0x20] sm:$0xff]
    %v9986 = vld [vmem:[%s4 + $0x28] sm:$0xff]
    %v9987 = vld [vmem:[%s4 + $0x30] sm:$0xff]
    %v9988 = vld [vmem:[%s4 + $0x38] sm:$0xff]
    %v9989 = vld [vmem:[#allocation4 + $0x4] sm:$0xff]
    %v9990 = vld [vmem:[#allocation4 + $0xc] sm:$0xff]
    %v9991 = vld [vmem:[#allocation4 + $0x14] sm:$0xff]
    %v9992 = vld [vmem:[#allocation4 + $0x1c] sm:$0xff]
    %s9993 = scalar_lea.vmem %s4, 64
    %v9994 = vld [vmem:[%s9993] sm:$0xff]
    %v9995 = vld [vmem:[%s9993 + $0x8] sm:$0xff]
    %v9996 = vld [vmem:[%s9993 + $0x10] sm:$0xff]
    %v9997 = vld [vmem:[%s9993 + $0x18] sm:$0xff]
    %v9998 = vld [vmem:[%s9993 + $0x20] sm:$0xff]
    %v9999 = vld [vmem:[%s9993 + $0x28] sm:$0xff]
    %v10000 = vld [vmem:[%s9993 + $0x30] sm:$0xff]
    %v10001 = vld [vmem:[%s9993 + $0x38] sm:$0xff]
    %v10003 = vsel %vm9915, %v9989, 0
    %v10006 = vsel %vm9915, %v9990, 0
    %v10009 = vsel %vm9915, %v9991, 0
    %v10012 = vsel %vm9915, %v9992, 0
    %10014 = vmatpush.msra.mxu0 0.0
    %10015 = vmatpush.msra.mxu0 0.0
    %10016 = vmatpush.msra.mxu0 0.0
    %10017 = vmatpush.msra.mxu0 0.0
    %10018 = vmatpush.msra.mxu0 0.0
    %10019 = vmatpush.msra.mxu0 0.0
    %10020 = vmatpush.msra.mxu0 0.0
    %10021 = vmatpush.msra.mxu0 0.0
    %10022 = vmatpush.msra.mxu0 %v10001
    %10023 = vmatpush.msra.mxu0 %v10000
    %10024 = vmatpush.msra.mxu0 %v9999
    %10025 = vmatpush.msra.mxu0 %v9998
    %10026 = vmatpush.msra.mxu0 %v9997
    %10027 = vmatpush.msra.mxu0 %v9996
    %10028 = vmatpush.msra.mxu0 %v9995
    %10029 = vmatpush.msra.mxu0 %v9994
    %10030 = vmatmul.f32.gmra.mxu0 %v10003
    %v10031 = vpop.f32.mrf.mxu0
    %v10032 = vadd.f32 0.0, %v10031
    %10033 = vmatmul.f32.gmra.mxu0 %v10006
    %v10034 = vpop.f32.mrf.mxu0
    %v10035 = vadd.f32 0.0, %v10034
    %10036 = vmatmul.f32.gmra.mxu0 %v10009
    %v10037 = vpop.f32.mrf.mxu0
    %v10038 = vadd.f32 0.0, %v10037
    %10039 = vmatmul.f32.gmra.mxu0 %v10012
    %v10040 = vpop.f32.mrf.mxu0
    %v10041 = vadd.f32 0.0, %v10040
    %10042 = vdwg.mxu0
    %v10044 = vsel %vm9915, %v9977, 0
    %v10047 = vsel %vm9915, %v9978, 0
    %v10050 = vsel %vm9915, %v9979, 0
    %v10053 = vsel %vm9915, %v9980, 0
    %10055 = vmatpush.msra.mxu0 0.0
    %10056 = vmatpush.msra.mxu0 0.0
    %10057 = vmatpush.msra.mxu0 0.0
    %10058 = vmatpush.msra.mxu0 0.0
    %10059 = vmatpush.msra.mxu0 0.0
    %10060 = vmatpush.msra.mxu0 0.0
    %10061 = vmatpush.msra.mxu0 0.0
    %10062 = vmatpush.msra.mxu0 0.0
    %10063 = vmatpush.msra.mxu0 %v9988
    %10064 = vmatpush.msra.mxu0 %v9987
    %10065 = vmatpush.msra.mxu0 %v9986
    %10066 = vmatpush.msra.mxu0 %v9985
    %10067 = vmatpush.msra.mxu0 %v9984
    %10068 = vmatpush.msra.mxu0 %v9983
    %10069 = vmatpush.msra.mxu0 %v9982
    %10070 = vmatpush.msra.mxu0 %v9981
    %10071 = vmatmul.f32.gmra.mxu0 %v10044
    %v10072 = vpop.f32.mrf.mxu0
    %v10073 = vadd.f32 %v10032, %v10072
    %10074 = vmatmul.f32.gmra.mxu0 %v10047
    %v10075 = vpop.f32.mrf.mxu0
    %v10076 = vadd.f32 %v10035, %v10075
    %10077 = vmatmul.f32.gmra.mxu0 %v10050
    %v10078 = vpop.f32.mrf.mxu0
    %v10079 = vadd.f32 %v10038, %v10078
    %10080 = vmatmul.f32.gmra.mxu0 %v10053
    %v10081 = vpop.f32.mrf.mxu0
    %v10082 = vadd.f32 %v10041, %v10081
    %10083 = vdwg.mxu0
    %v10084 = vld [vmem:[#allocation4 + $0x5] sm:$0xff]
    %v10085 = vld [vmem:[#allocation4 + $0xd] sm:$0xff]
    %v10086 = vld [vmem:[#allocation4 + $0x15] sm:$0xff]
    %v10087 = vld [vmem:[#allocation4 + $0x1d] sm:$0xff]
    %s10088 = scalar_lea.vmem %s4, 128
    %v10089 = vld [vmem:[%s10088] sm:$0xff]
    %v10090 = vld [vmem:[%s10088 + $0x8] sm:$0xff]
    %v10091 = vld [vmem:[%s10088 + $0x10] sm:$0xff]
    %v10092 = vld [vmem:[%s10088 + $0x18] sm:$0xff]
    %v10093 = vld [vmem:[%s10088 + $0x20] sm:$0xff]
    %v10094 = vld [vmem:[%s10088 + $0x28] sm:$0xff]
    %v10095 = vld [vmem:[%s10088 + $0x30] sm:$0xff]
    %v10096 = vld [vmem:[%s10088 + $0x38] sm:$0xff]
    %v10098 = vsel %vm9915, %v10084, 0
    %v10101 = vsel %vm9915, %v10085, 0
    %v10104 = vsel %vm9915, %v10086, 0
    %v10107 = vsel %vm9915, %v10087, 0
    %10109 = vmatpush.msra.mxu0 0.0
    %10110 = vmatpush.msra.mxu0 0.0
    %10111 = vmatpush.msra.mxu0 0.0
    %10112 = vmatpush.msra.mxu0 0.0
    %10113 = vmatpush.msra.mxu0 0.0
    %10114 = vmatpush.msra.mxu0 0.0
    %10115 = vmatpush.msra.mxu0 0.0
    %10116 = vmatpush.msra.mxu0 0.0
    %10117 = vmatpush.msra.mxu0 %v10096
    %10118 = vmatpush.msra.mxu0 %v10095
    %10119 = vmatpush.msra.mxu0 %v10094
    %10120 = vmatpush.msra.mxu0 %v10093
    %10121 = vmatpush.msra.mxu0 %v10092
    %10122 = vmatpush.msra.mxu0 %v10091
    %10123 = vmatpush.msra.mxu0 %v10090
    %10124 = vmatpush.msra.mxu0 %v10089
    %10125 = vmatmul.f32.gmra.mxu0 %v10098
    %v10126 = vpop.f32.mrf.mxu0
    %v10127 = vadd.f32 0.0, %v10126
    %10128 = vmatmul.f32.gmra.mxu0 %v10101
    %v10129 = vpop.f32.mrf.mxu0
    %v10130 = vadd.f32 0.0, %v10129
    %10131 = vmatmul.f32.gmra.mxu0 %v10104
    %v10132 = vpop.f32.mrf.mxu0
    %v10133 = vadd.f32 0.0, %v10132
    %10134 = vmatmul.f32.gmra.mxu0 %v10107
    %v10135 = vpop.f32.mrf.mxu0
    %v10136 = vadd.f32 0.0, %v10135
    %10137 = vdwg.mxu0
    %v10138 = vadd.f32 %v10073, %v10127
    %v10139 = vadd.f32 %v10076, %v10130
    %v10140 = vadd.f32 %v10079, %v10133
    %v10141 = vadd.f32 %v10082, %v10136
    %v10142 = vld [vmem:[#allocation4 + $0x7] sm:$0xff]
    %v10143 = vld [vmem:[#allocation4 + $0xf] sm:$0xff]
    %v10144 = vld [vmem:[#allocation4 + $0x17] sm:$0xff]
    %v10145 = vld [vmem:[#allocation4 + $0x1f] sm:$0xff]
    %s10146 = scalar_lea.vmem %s4, 192
    %v10147 = vld [vmem:[%s10146] sm:$0xff]
    %v10148 = vld [vmem:[%s10146 + $0x8] sm:$0xff]
    %v10149 = vld [vmem:[%s10146 + $0x10] sm:$0xff]
    %v10150 = vld [vmem:[%s10146 + $0x18] sm:$0xff]
    %v10151 = vld [vmem:[%s10146 + $0x20] sm:$0xff]
    %v10152 = vld [vmem:[%s10146 + $0x28] sm:$0xff]
    %v10153 = vld [vmem:[%s10146 + $0x30] sm:$0xff]
    %v10154 = vld [vmem:[%s10146 + $0x38] sm:$0xff]
    %v10156 = vsel %vm9915, %v10142, 0
    %v10159 = vsel %vm9915, %v10143, 0
    %v10162 = vsel %vm9915, %v10144, 0
    %v10165 = vsel %vm9915, %v10145, 0
    %10167 = vmatpush.msra.mxu0 0.0
    %10168 = vmatpush.msra.mxu0 0.0
    %10169 = vmatpush.msra.mxu0 0.0
    %10170 = vmatpush.msra.mxu0 0.0
    %10171 = vmatpush.msra.mxu0 0.0
    %10172 = vmatpush.msra.mxu0 0.0
    %10173 = vmatpush.msra.mxu0 0.0
    %10174 = vmatpush.msra.mxu0 0.0
    %10175 = vmatpush.msra.mxu0 %v10154
    %10176 = vmatpush.msra.mxu0 %v10153
    %10177 = vmatpush.msra.mxu0 %v10152
    %10178 = vmatpush.msra.mxu0 %v10151
    %10179 = vmatpush.msra.mxu0 %v10150
    %10180 = vmatpush.msra.mxu0 %v10149
    %10181 = vmatpush.msra.mxu0 %v10148
    %10182 = vmatpush.msra.mxu0 %v10147
    %10183 = vmatmul.f32.gmra.mxu0 %v10156
    %v10184 = vpop.f32.mrf.mxu0
    %v10185 = vadd.f32 0.0, %v10184
    %10186 = vmatmul.f32.gmra.mxu0 %v10159
    %v10187 = vpop.f32.mrf.mxu0
    %v10188 = vadd.f32 0.0, %v10187
    %10189 = vmatmul.f32.gmra.mxu0 %v10162
    %v10190 = vpop.f32.mrf.mxu0
    %v10191 = vadd.f32 0.0, %v10190
    %10192 = vmatmul.f32.gmra.mxu0 %v10165
    %v10193 = vpop.f32.mrf.mxu0
    %v10194 = vadd.f32 0.0, %v10193
    %10195 = vdwg.mxu0
    %v10196 = vadd.f32 %v10138, %v10185
    %v10197 = vadd.f32 %v10139, %v10188
    %v10198 = vadd.f32 %v10140, %v10191
    %v10199 = vadd.f32 %v10141, %v10194
    %v10200 = vld [vmem:[#allocation4 + $0x8] sm:$0xff]
    %v10201 = vld [vmem:[#allocation4 + $0x10] sm:$0xff]
    %v10202 = vld [vmem:[#allocation4 + $0x18] sm:$0xff]
    %v10203 = vld [vmem:[#allocation4 + $0x20] sm:$0xff]
    %s10204 = scalar_lea.vmem %s4, 256
    %v10205 = vld [vmem:[%s10204] sm:$0xff]
    %v10206 = vld [vmem:[%s10204 + $0x8] sm:$0xff]
    %v10207 = vld [vmem:[%s10204 + $0x10] sm:$0xff]
    %v10208 = vld [vmem:[%s10204 + $0x18] sm:$0xff]
    %v10209 = vld [vmem:[%s10204 + $0x20] sm:$0xff]
    %v10210 = vld [vmem:[%s10204 + $0x28] sm:$0xff]
    %v10211 = vld [vmem:[%s10204 + $0x30] sm:$0xff]
    %v10212 = vld [vmem:[%s10204 + $0x38] sm:$0xff]
    %v10214 = vsel %vm9915, %v10200, 0
    %v10217 = vsel %vm9915, %v10201, 0
    %v10220 = vsel %vm9915, %v10202, 0
    %v10223 = vsel %vm9915, %v10203, 0
    %10225 = vmatpush.msra.mxu0 0.0
    %10226 = vmatpush.msra.mxu0 0.0
    %10227 = vmatpush.msra.mxu0 0.0
    %10228 = vmatpush.msra.mxu0 0.0
    %10229 = vmatpush.msra.mxu0 0.0
    %10230 = vmatpush.msra.mxu0 0.0
    %10231 = vmatpush.msra.mxu0 0.0
    %10232 = vmatpush.msra.mxu0 0.0
    %10233 = vmatpush.msra.mxu0 %v10212
    %10234 = vmatpush.msra.mxu0 %v10211
    %10235 = vmatpush.msra.mxu0 %v10210
    %10236 = vmatpush.msra.mxu0 %v10209
    %10237 = vmatpush.msra.mxu0 %v10208
    %10238 = vmatpush.msra.mxu0 %v10207
    %10239 = vmatpush.msra.mxu0 %v10206
    %10240 = vmatpush.msra.mxu0 %v10205
    %10241 = vmatmul.f32.gmra.mxu0 %v10214
    %v10242 = vpop.f32.mrf.mxu0
    %v10243 = vadd.f32 0.0, %v10242
    %10244 = vmatmul.f32.gmra.mxu0 %v10217
    %v10245 = vpop.f32.mrf.mxu0
    %v10246 = vadd.f32 0.0, %v10245
    %10247 = vmatmul.f32.gmra.mxu0 %v10220
    %v10248 = vpop.f32.mrf.mxu0
    %v10249 = vadd.f32 0.0, %v10248
    %10250 = vmatmul.f32.gmra.mxu0 %v10223
    %v10251 = vpop.f32.mrf.mxu0
    %v10252 = vadd.f32 0.0, %v10251
    %10253 = vdwg.mxu0
    %v10254 = vadd.f32 %v10196, %v10243
    %v10255 = vadd.f32 %v10197, %v10246
    %v10256 = vadd.f32 %v10198, %v10249
    %v10257 = vadd.f32 %v10199, %v10252
    %v10258 = vld [vmem:[#allocation4 + $0x9] sm:$0xff]
    %v10259 = vld [vmem:[#allocation4 + $0x11] sm:$0xff]
    %v10260 = vld [vmem:[#allocation4 + $0x19] sm:$0xff]
    %v10261 = vld [vmem:[#allocation4 + $0x21] sm:$0xff]
    %s10262 = scalar_lea.vmem %s4, 320
    %v10263 = vld [vmem:[%s10262] sm:$0xff]
    %v10264 = vld [vmem:[%s10262 + $0x8] sm:$0xff]
    %v10265 = vld [vmem:[%s10262 + $0x10] sm:$0xff]
    %v10266 = vld [vmem:[%s10262 + $0x18] sm:$0xff]
    %v10267 = vld [vmem:[%s10262 + $0x20] sm:$0xff]
    %v10268 = vld [vmem:[%s10262 + $0x28] sm:$0xff]
    %v10269 = vld [vmem:[%s10262 + $0x30] sm:$0xff]
    %v10270 = vld [vmem:[%s10262 + $0x38] sm:$0xff]
    %v10272 = vsel %vm9915, %v10258, 0
    %v10275 = vsel %vm9915, %v10259, 0
    %v10278 = vsel %vm9915, %v10260, 0
    %v10281 = vsel %vm9915, %v10261, 0
    %10283 = vmatpush.msra.mxu0 0.0
    %10284 = vmatpush.msra.mxu0 0.0
    %10285 = vmatpush.msra.mxu0 0.0
    %10286 = vmatpush.msra.mxu0 0.0
    %10287 = vmatpush.msra.mxu0 0.0
    %10288 = vmatpush.msra.mxu0 0.0
    %10289 = vmatpush.msra.mxu0 0.0
    %10290 = vmatpush.msra.mxu0 0.0
    %10291 = vmatpush.msra.mxu0 %v10270
    %10292 = vmatpush.msra.mxu0 %v10269
    %10293 = vmatpush.msra.mxu0 %v10268
    %10294 = vmatpush.msra.mxu0 %v10267
    %10295 = vmatpush.msra.mxu0 %v10266
    %10296 = vmatpush.msra.mxu0 %v10265
    %10297 = vmatpush.msra.mxu0 %v10264
    %10298 = vmatpush.msra.mxu0 %v10263
    %10299 = vmatmul.f32.gmra.mxu0 %v10272
    %v10300 = vpop.f32.mrf.mxu0
    %v10301 = vadd.f32 0.0, %v10300
    %10302 = vmatmul.f32.gmra.mxu0 %v10275
    %v10303 = vpop.f32.mrf.mxu0
    %v10304 = vadd.f32 0.0, %v10303
    %10305 = vmatmul.f32.gmra.mxu0 %v10278
    %v10306 = vpop.f32.mrf.mxu0
    %v10307 = vadd.f32 0.0, %v10306
    %10308 = vmatmul.f32.gmra.mxu0 %v10281
    %v10309 = vpop.f32.mrf.mxu0
    %v10310 = vadd.f32 0.0, %v10309
    %10311 = vdwg.mxu0
    %v10312 = vadd.f32 %v10254, %v10301
    %v10313 = vadd.f32 %v10255, %v10304
    %v10314 = vadd.f32 %v10256, %v10307
    %v10315 = vadd.f32 %v10257, %v10310
    %v10316 = vld [vmem:[#allocation4 + $0xb] sm:$0xff]
    %v10317 = vld [vmem:[#allocation4 + $0x13] sm:$0xff]
    %v10318 = vld [vmem:[#allocation4 + $0x1b] sm:$0xff]
    %v10319 = vld [vmem:[#allocation4 + $0x23] sm:$0xff]
    %s10320 = scalar_lea.vmem %s4, 384
    %v10321 = vld [vmem:[%s10320] sm:$0xff]
    %v10322 = vld [vmem:[%s10320 + $0x8] sm:$0xff]
    %v10323 = vld [vmem:[%s10320 + $0x10] sm:$0xff]
    %v10324 = vld [vmem:[%s10320 + $0x18] sm:$0xff]
    %v10325 = vld [vmem:[%s10320 + $0x20] sm:$0xff]
    %v10326 = vld [vmem:[%s10320 + $0x28] sm:$0xff]
    %v10327 = vld [vmem:[%s10320 + $0x30] sm:$0xff]
    %v10328 = vld [vmem:[%s10320 + $0x38] sm:$0xff]
    %v10330 = vsel %vm9915, %v10316, 0
    %v10333 = vsel %vm9915, %v10317, 0
    %v10336 = vsel %vm9915, %v10318, 0
    %v10339 = vsel %vm9915, %v10319, 0
    %10341 = vmatpush.msra.mxu0 0.0
    %10342 = vmatpush.msra.mxu0 0.0
    %10343 = vmatpush.msra.mxu0 0.0
    %10344 = vmatpush.msra.mxu0 0.0
    %10345 = vmatpush.msra.mxu0 0.0
    %10346 = vmatpush.msra.mxu0 0.0
    %10347 = vmatpush.msra.mxu0 0.0
    %10348 = vmatpush.msra.mxu0 0.0
    %10349 = vmatpush.msra.mxu0 %v10328
    %10350 = vmatpush.msra.mxu0 %v10327
    %10351 = vmatpush.msra.mxu0 %v10326
    %10352 = vmatpush.msra.mxu0 %v10325
    %10353 = vmatpush.msra.mxu0 %v10324
    %10354 = vmatpush.msra.mxu0 %v10323
    %10355 = vmatpush.msra.mxu0 %v10322
    %10356 = vmatpush.msra.mxu0 %v10321
    %10357 = vmatmul.f32.gmra.mxu0 %v10330
    %v10358 = vpop.f32.mrf.mxu0
    %v10359 = vadd.f32 0.0, %v10358
    %10360 = vmatmul.f32.gmra.mxu0 %v10333
    %v10361 = vpop.f32.mrf.mxu0
    %v10362 = vadd.f32 0.0, %v10361
    %10363 = vmatmul.f32.gmra.mxu0 %v10336
    %v10364 = vpop.f32.mrf.mxu0
    %v10365 = vadd.f32 0.0, %v10364
    %10366 = vmatmul.f32.gmra.mxu0 %v10339
    %v10367 = vpop.f32.mrf.mxu0
    %v10368 = vadd.f32 0.0, %v10367
    %10369 = vdwg.mxu0
    %v10370 = vadd.f32 %v10312, %v10359
    %v10371 = vadd.f32 %v10313, %v10362
    %v10372 = vadd.f32 %v10314, %v10365
    %v10373 = vadd.f32 %v10315, %v10368
    %v10374 = vld [vmem:[#allocation4 + $0xc] sm:$0xff]
    %v10375 = vld [vmem:[#allocation4 + $0x14] sm:$0xff]
    %v10376 = vld [vmem:[#allocation4 + $0x1c] sm:$0xff]
    %v10377 = vld [vmem:[#allocation4 + $0x24] sm:$0xff]
    %s10378 = scalar_lea.vmem %s4, 448
    %v10379 = vld [vmem:[%s10378] sm:$0xff]
    %v10380 = vld [vmem:[%s10378 + $0x8] sm:$0xff]
    %v10381 = vld [vmem:[%s10378 + $0x10] sm:$0xff]
    %v10382 = vld [vmem:[%s10378 + $0x18] sm:$0xff]
    %v10383 = vld [vmem:[%s10378 + $0x20] sm:$0xff]
    %v10384 = vld [vmem:[%s10378 + $0x28] sm:$0xff]
    %v10385 = vld [vmem:[%s10378 + $0x30] sm:$0xff]
    %v10386 = vld [vmem:[%s10378 + $0x38] sm:$0xff]
    %v10388 = vsel %vm9915, %v10374, 0
    %v10391 = vsel %vm9915, %v10375, 0
    %v10394 = vsel %vm9915, %v10376, 0
    %v10397 = vsel %vm9915, %v10377, 0
    %10399 = vmatpush.msra.mxu0 0.0
    %10400 = vmatpush.msra.mxu0 0.0
    %10401 = vmatpush.msra.mxu0 0.0
    %10402 = vmatpush.msra.mxu0 0.0
    %10403 = vmatpush.msra.mxu0 0.0
    %10404 = vmatpush.msra.mxu0 0.0
    %10405 = vmatpush.msra.mxu0 0.0
    %10406 = vmatpush.msra.mxu0 0.0
    %10407 = vmatpush.msra.mxu0 %v10386
    %10408 = vmatpush.msra.mxu0 %v10385
    %10409 = vmatpush.msra.mxu0 %v10384
    %10410 = vmatpush.msra.mxu0 %v10383
    %10411 = vmatpush.msra.mxu0 %v10382
    %10412 = vmatpush.msra.mxu0 %v10381
    %10413 = vmatpush.msra.mxu0 %v10380
    %10414 = vmatpush.msra.mxu0 %v10379
    %10415 = vmatmul.f32.gmra.mxu0 %v10388
    %v10416 = vpop.f32.mrf.mxu0
    %v10417 = vadd.f32 0.0, %v10416
    %10418 = vmatmul.f32.gmra.mxu0 %v10391
    %v10419 = vpop.f32.mrf.mxu0
    %v10420 = vadd.f32 0.0, %v10419
    %10421 = vmatmul.f32.gmra.mxu0 %v10394
    %v10422 = vpop.f32.mrf.mxu0
    %v10423 = vadd.f32 0.0, %v10422
    %10424 = vmatmul.f32.gmra.mxu0 %v10397
    %v10425 = vpop.f32.mrf.mxu0
    %v10426 = vadd.f32 0.0, %v10425
    %10427 = vdwg.mxu0
    %v10428 = vadd.f32 %v10370, %v10417
    %v10429 = vadd.f32 %v10371, %v10420
    %v10430 = vadd.f32 %v10372, %v10423
    %v10431 = vadd.f32 %v10373, %v10426
    %v10432 = vld [vmem:[#allocation4 + $0xd] sm:$0xff]
    %v10433 = vld [vmem:[#allocation4 + $0x15] sm:$0xff]
    %v10434 = vld [vmem:[#allocation4 + $0x1d] sm:$0xff]
    %v10435 = vld [vmem:[#allocation4 + $0x25] sm:$0xff]
    %s10436 = scalar_lea.vmem %s4, 512
    %v10437 = vld [vmem:[%s10436] sm:$0xff]
    %v10438 = vld [vmem:[%s10436 + $0x8] sm:$0xff]
    %v10439 = vld [vmem:[%s10436 + $0x10] sm:$0xff]
    %v10440 = vld [vmem:[%s10436 + $0x18] sm:$0xff]
    %v10441 = vld [vmem:[%s10436 + $0x20] sm:$0xff]
    %v10442 = vld [vmem:[%s10436 + $0x28] sm:$0xff]
    %v10443 = vld [vmem:[%s10436 + $0x30] sm:$0xff]
    %v10444 = vld [vmem:[%s10436 + $0x38] sm:$0xff]
    %v10446 = vsel %vm9915, %v10432, 0
    %v10449 = vsel %vm9915, %v10433, 0
    %v10452 = vsel %vm9915, %v10434, 0
    %v10455 = vsel %vm9915, %v10435, 0
    %10457 = vmatpush.msra.mxu0 0.0
    %10458 = vmatpush.msra.mxu0 0.0
    %10459 = vmatpush.msra.mxu0 0.0
    %10460 = vmatpush.msra.mxu0 0.0
    %10461 = vmatpush.msra.mxu0 0.0
    %10462 = vmatpush.msra.mxu0 0.0
    %10463 = vmatpush.msra.mxu0 0.0
    %10464 = vmatpush.msra.mxu0 0.0
    %10465 = vmatpush.msra.mxu0 %v10444
    %10466 = vmatpush.msra.mxu0 %v10443
    %10467 = vmatpush.msra.mxu0 %v10442
    %10468 = vmatpush.msra.mxu0 %v10441
    %10469 = vmatpush.msra.mxu0 %v10440
    %10470 = vmatpush.msra.mxu0 %v10439
    %10471 = vmatpush.msra.mxu0 %v10438
    %10472 = vmatpush.msra.mxu0 %v10437
    %10473 = vmatmul.f32.gmra.mxu0 %v10446
    %v10474 = vpop.f32.mrf.mxu0
    %v10475 = vadd.f32 0.0, %v10474
    %10476 = vmatmul.f32.gmra.mxu0 %v10449
    %v10477 = vpop.f32.mrf.mxu0
    %v10478 = vadd.f32 0.0, %v10477
    %10479 = vmatmul.f32.gmra.mxu0 %v10452
    %v10480 = vpop.f32.mrf.mxu0
    %v10481 = vadd.f32 0.0, %v10480
    %10482 = vmatmul.f32.gmra.mxu0 %v10455
    %v10483 = vpop.f32.mrf.mxu0
    %v10484 = vadd.f32 0.0, %v10483
    %10485 = vdwg.mxu0
    %v10486 = vadd.f32 %v10428, %v10475
    %v10487 = vadd.f32 %v10429, %v10478
    %v10488 = vadd.f32 %v10430, %v10481
    %v10489 = vadd.f32 %v10431, %v10484
    %v10490 = vperm.slane %v9974, 0
    %v10491 = vadd.f32 %v10486, %v10490
    %v10492 = vadd.f32 %v10487, %v10490
    %v10493 = vadd.f32 %v10488, %v10490
    %v10494 = vadd.f32 %v10489, %v10490
    %v10495 = vxor.u32 %v10491, 2147483648
    %v10496 = vxor.u32 %v10492, 2147483648
    %v10497 = vxor.u32 %v10493, 2147483648
    %v10498 = vxor.u32 %v10494, 2147483648
    %v10499 = vmul.f32 %v10495, 1.442695
    %v10500 = vpow.pop %v10499
    %v10501 = vmul.f32 %v10496, 1.442695
    %v10502 = vpow.pop %v10501
    %v10503 = vmul.f32 %v10497, 1.442695
    %v10504 = vpow.pop %v10503
    %v10505 = vmul.f32 %v10498, 1.442695
    %v10506 = vpow.pop %v10505
    %v10507 = vadd.f32 %v10500, 1.0
    %v10508 = vadd.f32 %v10502, 1.0
    %v10509 = vadd.f32 %v10504, 1.0
    %v10510 = vadd.f32 %v10506, 1.0
    %v10511 = vrcp.pop %v10507
    %v10512 = vmul.f32 %v10507, %v10511
    %v10513 = vsub.f32 1.0, %v10512
    %v10514 = vmul.f32 %v10511, %v10513
    %v10515 = vadd.f32 %v10511, %v10514
    %vm10516 = vweird.f32 %v10507
    %vm10517 = vweird.f32 %v10511
    %vm10518 = vmor %vm10516, %vm10517
    %v10519 = vsel %vm10518, %v10511, %v10515
    %v10520 = vand.u32 2147483647, %v10507
    %vm10521 = vcmp.eq.f32.partialorder %v10520, 8.507059e+37
    %v10522 = vand.u32 %v10507, 2147483648
    %v10523 = vor.u32 1.1754944e-38, %v10522
    %v10524 = vsel %vm10521, %v10523, %v10519
    %v10525 = vmul.f32 1.0, %v10524
    %v10526 = vrcp.pop %v10508
    %v10527 = vmul.f32 %v10508, %v10526
    %v10528 = vsub.f32 1.0, %v10527
    %v10529 = vmul.f32 %v10526, %v10528
    %v10530 = vadd.f32 %v10526, %v10529
    %vm10531 = vweird.f32 %v10508
    %vm10532 = vweird.f32 %v10526
    %vm10533 = vmor %vm10531, %vm10532
    %v10534 = vsel %vm10533, %v10526, %v10530
    %v10535 = vand.u32 2147483647, %v10508
    %vm10536 = vcmp.eq.f32.partialorder %v10535, 8.507059e+37
    %v10537 = vand.u32 %v10508, 2147483648
    %v10538 = vor.u32 1.1754944e-38, %v10537
    %v10539 = vsel %vm10536, %v10538, %v10534
    %v10540 = vmul.f32 1.0, %v10539
    %v10541 = vrcp.pop %v10509
    %v10542 = vmul.f32 %v10509, %v10541
    %v10543 = vsub.f32 1.0, %v10542
    %v10544 = vmul.f32 %v10541, %v10543
    %v10545 = vadd.f32 %v10541, %v10544
    %vm10546 = vweird.f32 %v10509
    %vm10547 = vweird.f32 %v10541
    %vm10548 = vmor %vm10546, %vm10547
    %v10549 = vsel %vm10548, %v10541, %v10545
    %v10550 = vand.u32 2147483647, %v10509
    %vm10551 = vcmp.eq.f32.partialorder %v10550, 8.507059e+37
    %v10552 = vand.u32 %v10509, 2147483648
    %v10553 = vor.u32 1.1754944e-38, %v10552
    %v10554 = vsel %vm10551, %v10553, %v10549
    %v10555 = vmul.f32 1.0, %v10554
    %v10556 = vrcp.pop %v10510
    %v10557 = vmul.f32 %v10510, %v10556
    %v10558 = vsub.f32 1.0, %v10557
    %v10559 = vmul.f32 %v10556, %v10558
    %v10560 = vadd.f32 %v10556, %v10559
    %vm10561 = vweird.f32 %v10510
    %vm10562 = vweird.f32 %v10556
    %vm10563 = vmor %vm10561, %vm10562
    %v10564 = vsel %vm10563, %v10556, %v10560
    %v10565 = vand.u32 2147483647, %v10510
    %vm10566 = vcmp.eq.f32.partialorder %v10565, 8.507059e+37
    %v10567 = vand.u32 %v10510, 2147483648
    %v10568 = vor.u32 1.1754944e-38, %v10567
    %v10569 = vsel %vm10566, %v10568, %v10564
    %v10570 = vmul.f32 1.0, %v10569
    %v10571 = vmul.f32 %v10491, %v10525
    %v10572 = vmul.f32 %v10492, %v10540
    %v10573 = vmul.f32 %v10493, %v10555
    %v10574 = vmul.f32 %v10494, %v10570
    %v10575 = vperm.slane %v9975, 0
    %v10576 = vmul.f32 %v10571, %v10575
    %v10577 = vmul.f32 %v10572, %v10575
    %v10578 = vmul.f32 %v10573, %v10575
    %v10579 = vmul.f32 %v10574, %v10575
    %v10580 = vperm.slane %v9976, 0
    %v10581 = vadd.f32 %v10576, %v10580
    %v10582 = vadd.f32 %v10577, %v10580
    %v10583 = vadd.f32 %v10578, %v10580
    %v10584 = vadd.f32 %v10579, %v10580
    %v10585 = vmax.f32 %v10581, 0.0
    %v10586 = vmax.f32 %v10582, 0.0
    %v10587 = vmax.f32 %v10583, 0.0
    %v10588 = vmax.f32 %v10584, 0.0
    %10589 = vst [vmem:[#allocation8] sm:$0xff] %v10585
    %10590 = vst [vmem:[#allocation8 + $0x8] sm:$0xff] %v10586
    %10591 = vst [vmem:[#allocation8 + $0x10] sm:$0xff] %v10587
    %10592 = vst [vmem:[#allocation8 + $0x18] sm:$0xff] %v10588
    %s10593 = scalar_lea.vmem [#allocation8], 5
    %v10594 = vld [vmem:[%s10593] ss:$16 sm:$0x3]
    %s10595 = scalar_lea.vmem [#allocation8], 6
    %v10596 = vld [vmem:[%s10595] ss:$16 sm:$0x3]
    %v10597 = vmax.f32 %v10594, %v10596
    %s10598 = scalar_lea.vmem [#allocation8], 9
    %v10599 = vld [vmem:[%s10598] ss:$16 sm:$0x3]
    %s10600 = scalar_lea.vmem [#allocation8], 10
    %v10601 = vld [vmem:[%s10600] ss:$16 sm:$0x3]
    %v10602 = vmax.f32 %v10599, %v10601
    %v10603 = vmax.f32 %v10597, %v10602
    %v10604 = vld [vmem:[%s9] sm:$0xff]
    %v10605 = vld [vmem:[%s9 + $0x8] sm:$0xff]
    %v10606 = vld [vmem:[%s9 + $0x10] sm:$0xff]
    %v10607 = vld [vmem:[%s9 + $0x18] sm:$0xff]
    %v10608 = vld [vmem:[%s9 + $0x20] sm:$0xff]
    %v10609 = vld [vmem:[%s9 + $0x28] sm:$0xff]
    %v10610 = vld [vmem:[%s9 + $0x30] sm:$0xff]
    %v10611 = vld [vmem:[%s9 + $0x38] sm:$0xff]
    %vm10612 = vcmask 15360
    %v10614 = vsel %vm10612, %v10604, 0
    %v10617 = vsel %vm10612, %v10605, 0
    %v10620 = vsel %vm10612, %v10606, 0
    %v10623 = vsel %vm10612, %v10607, 0
    %v10626 = vsel %vm10612, %v10608, 0
    %v10629 = vsel %vm10612, %v10609, 0
    %v10632 = vsel %vm10612, %v10610, 0
    %v10635 = vsel %vm10612, %v10611, 0
    %vm10637 = vcmask 1041408
    %v10639 = vsel %vm10637, %v10603, 0
    %10641 = vmatpush.msra.mxu0 0.0
    %10642 = vmatpush.msra.mxu0 0.0
    %10643 = vmatpush.msra.mxu0 0.0
    %10644 = vmatpush.msra.mxu0 0.0
    %10645 = vmatpush.msra.mxu0 0.0
    %10646 = vmatpush.msra.mxu0 0.0
    %10647 = vmatpush.msra.mxu0 0.0
    %10648 = vmatpush.msra.mxu0 0.0
    %10649 = vmatpush.msra.mxu0 0.0
    %10650 = vmatpush.msra.mxu0 0.0
    %10651 = vmatpush.msra.mxu0 0.0
    %10652 = vmatpush.msra.mxu0 0.0
    %10653 = vmatpush.msra.mxu0 0.0
    %10654 = vmatpush.msra.mxu0 0.0
    %10655 = vmatpush.msra.mxu0 0.0
    %10656 = vmatpush.msra.mxu0 %v10639
    %10657 = vmatmul.f32.gmra.mxu0 %v10614
    %v10658 = vpop.f32.mrf.mxu0
    %v10659 = vadd.f32 0.0, %v10658
    %10660 = vmatmul.f32.gmra.mxu0 %v10617
    %v10661 = vpop.f32.mrf.mxu0
    %v10662 = vadd.f32 0.0, %v10661
    %10663 = vmatmul.f32.gmra.mxu0 %v10620
    %v10664 = vpop.f32.mrf.mxu0
    %v10665 = vadd.f32 0.0, %v10664
    %10666 = vmatmul.f32.gmra.mxu0 %v10623
    %v10667 = vpop.f32.mrf.mxu0
    %v10668 = vadd.f32 0.0, %v10667
    %10669 = vmatmul.f32.gmra.mxu0 %v10626
    %v10670 = vpop.f32.mrf.mxu0
    %v10671 = vadd.f32 0.0, %v10670
    %10672 = vmatmul.f32.gmra.mxu0 %v10629
    %v10673 = vpop.f32.mrf.mxu0
    %v10674 = vadd.f32 0.0, %v10673
    %10675 = vmatmul.f32.gmra.mxu0 %v10632
    %v10676 = vpop.f32.mrf.mxu0
    %v10677 = vadd.f32 0.0, %v10676
    %10678 = vmatmul.f32.gmra.mxu0 %v10635
    %v10679 = vpop.f32.mrf.mxu0
    %v10680 = vadd.f32 0.0, %v10679
    %10681 = vdwg.mxu0
    %v10682 = vld [vmem:[%s11] sm:$0xff]
    %v10683 = vld [vmem:[%s11 + $0x8] sm:$0xff]
    %v10684 = vld [vmem:[%s11 + $0x10] sm:$0xff]
    %v10685 = vld [vmem:[%s11 + $0x18] sm:$0xff]
    %v10686 = vld [vmem:[%s11 + $0x20] sm:$0xff]
    %v10687 = vld [vmem:[%s11 + $0x28] sm:$0xff]
    %v10688 = vld [vmem:[%s11 + $0x30] sm:$0xff]
    %v10689 = vld [vmem:[%s11 + $0x38] sm:$0xff]
    %v10690 = vmul.f32 %v10659, %v10682
    %v10691 = vmul.f32 %v10662, %v10683
    %v10692 = vmul.f32 %v10665, %v10684
    %v10693 = vmul.f32 %v10668, %v10685
    %v10694 = vmul.f32 %v10671, %v10686
    %v10695 = vmul.f32 %v10674, %v10687
    %v10696 = vmul.f32 %v10677, %v10688
    %v10697 = vmul.f32 %v10680, %v10689
    %v10698 = vld [vmem:[%s5] sm:$0xff]
    %v10699 = vld [vmem:[%s5 + $0x8] sm:$0xff]
    %v10700 = vld [vmem:[%s5 + $0x10] sm:$0xff]
    %v10701 = vld [vmem:[%s5 + $0x18] sm:$0xff]
    %v10702 = vld [vmem:[%s5 + $0x20] sm:$0xff]
    %v10703 = vld [vmem:[%s5 + $0x28] sm:$0xff]
    %v10704 = vld [vmem:[%s5 + $0x30] sm:$0xff]
    %v10705 = vld [vmem:[%s5 + $0x38] sm:$0xff]
    %v10706 = vld [vmem:[%s5 + $0x40] sm:$0xff]
    %v10707 = vld [vmem:[%s5 + $0x48] sm:$0xff]
    %v10708 = vld [vmem:[%s5 + $0x50] sm:$0xff]
    %v10709 = vld [vmem:[%s5 + $0x58] sm:$0xff]
    %v10710 = vld [vmem:[%s5 + $0x60] sm:$0xff]
    %v10711 = vld [vmem:[%s5 + $0x68] sm:$0xff]
    %v10712 = vld [vmem:[%s5 + $0x70] sm:$0xff]
    %v10713 = vld [vmem:[%s5 + $0x78] sm:$0xff]
    %v10714 = vld [vmem:[%s8 + $0x8] sm:$0x1]
    %v10715 = vperm.slane %v10714, 0
    %10716 = vmatpush.msra.mxu0 %v10713
    %10717 = vmatpush.msra.mxu0 %v10712
    %10718 = vmatpush.msra.mxu0 %v10711
    %10719 = vmatpush.msra.mxu0 %v10710
    %10720 = vmatpush.msra.mxu0 %v10709
    %10721 = vmatpush.msra.mxu0 %v10708
    %10722 = vmatpush.msra.mxu0 %v10707
    %10723 = vmatpush.msra.mxu0 %v10706
    %10724 = vmatpush.msra.mxu0 %v10705
    %10725 = vmatpush.msra.mxu0 %v10704
    %10726 = vmatpush.msra.mxu0 %v10703
    %10727 = vmatpush.msra.mxu0 %v10702
    %10728 = vmatpush.msra.mxu0 %v10701
    %10729 = vmatpush.msra.mxu0 %v10700
    %10730 = vmatpush.msra.mxu0 %v10699
    %10731 = vmatpush.msra.mxu0 %v10698
    %10732 = vmatmul.f32.gmra.mxu0 %v10690
    %v10733 = vpop.f32.mrf.mxu0
    %v10734 = vadd.f32 %v10715, %v10733
    %10735 = vmatmul.f32.gmra.mxu0 %v10691
    %v10736 = vpop.f32.mrf.mxu0
    %v10737 = vadd.f32 %v10715, %v10736
    %10738 = vmatmul.f32.gmra.mxu0 %v10692
    %v10739 = vpop.f32.mrf.mxu0
    %v10740 = vadd.f32 %v10715, %v10739
    %10741 = vmatmul.f32.gmra.mxu0 %v10693
    %v10742 = vpop.f32.mrf.mxu0
    %v10743 = vadd.f32 %v10715, %v10742
    %10744 = vmatmul.f32.gmra.mxu0 %v10694
    %v10745 = vpop.f32.mrf.mxu0
    %v10746 = vadd.f32 %v10715, %v10745
    %10747 = vmatmul.f32.gmra.mxu0 %v10695
    %v10748 = vpop.f32.mrf.mxu0
    %v10749 = vadd.f32 %v10715, %v10748
    %10750 = vmatmul.f32.gmra.mxu0 %v10696
    %v10751 = vpop.f32.mrf.mxu0
    %v10752 = vadd.f32 %v10715, %v10751
    %10753 = vmatmul.f32.gmra.mxu0 %v10697
    %v10754 = vpop.f32.mrf.mxu0
    %v10755 = vadd.f32 %v10715, %v10754
    %10756 = vdwg.mxu0
    %10765 = vrot.lane.b32.xlu0 %v10734, 112
    %v10766 = vpop.permute.xlu0 %10765
    %10767 = vrot.lane.b32.xlu0 %v10737, 112
    %v10768 = vpop.permute.xlu0 %10767
    %10769 = vrot.lane.b32.xlu0 %v10740, 112
    %v10770 = vpop.permute.xlu0 %10769
    %10771 = vrot.lane.b32.xlu0 %v10743, 112
    %v10772 = vpop.permute.xlu0 %10771
    %10773 = vrot.lane.b32.xlu0 %v10746, 112
    %v10774 = vpop.permute.xlu0 %10773
    %10775 = vrot.lane.b32.xlu0 %v10749, 112
    %v10776 = vpop.permute.xlu0 %10775
    %10777 = vrot.lane.b32.xlu0 %v10752, 112
    %v10778 = vpop.permute.xlu0 %10777
    %10779 = vrot.lane.b32.xlu0 %v10755, 112
    %v10780 = vpop.permute.xlu0 %10779
    %v10781 = vsel %vm6136, %v10734, 0
    %v10783 = vsel %vm6136, %v10737, 0
    %v10785 = vsel %vm6136, %v10740, 0
    %v10787 = vsel %vm6136, %v10743, 0
    %v10789 = vsel %vm6136, %v10746, 0
    %v10791 = vsel %vm6136, %v10749, 0
    %v10793 = vsel %vm6136, %v10752, 0
    %v10795 = vsel %vm6136, %v10755, 0
    %v10797 = vsel %vm6136, %v10766, 0
    %v10799 = vsel %vm6136, %v10768, 0
    %v10801 = vsel %vm6136, %v10770, 0
    %v10803 = vsel %vm6136, %v10772, 0
    %v10805 = vsel %vm6136, %v10774, 0
    %v10807 = vsel %vm6136, %v10776, 0
    %v10809 = vsel %vm6136, %v10778, 0
    %v10811 = vsel %vm6136, %v10780, 0
    %10813 = vmatpush.xpose.msra.mxu0 0.0
    %10814 = vmatpush.xpose.msra.mxu0 0.0
    %10815 = vmatpush.xpose.msra.mxu0 0.0
    %10816 = vmatpush.xpose.msra.mxu0 0.0
    %10817 = vmatpush.xpose.msra.mxu0 0.0
    %10818 = vmatpush.xpose.msra.mxu0 0.0
    %10819 = vmatpush.xpose.msra.mxu0 0.0
    %10820 = vmatpush.xpose.msra.mxu0 0.0
    %10821 = vmatpush.xpose.msra.mxu0 %v10811
    %10822 = vmatpush.xpose.msra.mxu0 %v10809
    %10823 = vmatpush.xpose.msra.mxu0 %v10807
    %10824 = vmatpush.xpose.msra.mxu0 %v10805
    %10825 = vmatpush.xpose.msra.mxu0 %v10803
    %10826 = vmatpush.xpose.msra.mxu0 %v10801
    %10827 = vmatpush.xpose.msra.mxu0 %v10799
    %10828 = vmatpush.xpose.msra.mxu0 %v10797
    %10829 = vmatmul.f32.gmra.mxu0 %v10781
    %v10830 = vpop.f32.mrf.mxu0
    %v10831 = vadd.f32 0.0, %v10830
    %10832 = vmatmul.f32.gmra.mxu0 %v10783
    %v10833 = vpop.f32.mrf.mxu0
    %v10834 = vadd.f32 0.0, %v10833
    %10835 = vmatmul.f32.gmra.mxu0 %v10785
    %v10836 = vpop.f32.mrf.mxu0
    %v10837 = vadd.f32 0.0, %v10836
    %10838 = vmatmul.f32.gmra.mxu0 %v10787
    %v10839 = vpop.f32.mrf.mxu0
    %v10840 = vadd.f32 0.0, %v10839
    %10841 = vmatmul.f32.gmra.mxu0 %v10789
    %v10842 = vpop.f32.mrf.mxu0
    %v10843 = vadd.f32 0.0, %v10842
    %10844 = vmatmul.f32.gmra.mxu0 %v10791
    %v10845 = vpop.f32.mrf.mxu0
    %v10846 = vadd.f32 0.0, %v10845
    %10847 = vmatmul.f32.gmra.mxu0 %v10793
    %v10848 = vpop.f32.mrf.mxu0
    %v10849 = vadd.f32 0.0, %v10848
    %10850 = vmatmul.f32.gmra.mxu0 %v10795
    %v10851 = vpop.f32.mrf.mxu0
    %v10852 = vadd.f32 0.0, %v10851
    %10853 = vdwg.mxu0
    %v10854 = vmul.f32 %v10831, 0.25
    %v10855 = vmul.f32 %v10834, 0.25
    %v10856 = vmul.f32 %v10837, 0.25
    %v10857 = vmul.f32 %v10840, 0.25
    %v10858 = vmul.f32 %v10843, 0.25
    %v10859 = vmul.f32 %v10846, 0.25
    %v10860 = vmul.f32 %v10849, 0.25
    %v10861 = vmul.f32 %v10852, 0.25
    %v10862 = vld [vmem:[%s12] sm:$0xff]
    %v10863 = vld [vmem:[%s12 + $0x8] sm:$0xff]
    %v10864 = vld [vmem:[%s12 + $0x10] sm:$0xff]
    %v10865 = vld [vmem:[%s12 + $0x18] sm:$0xff]
    %v10866 = vld [vmem:[%s12 + $0x20] sm:$0xff]
    %v10867 = vld [vmem:[%s12 + $0x28] sm:$0xff]
    %v10868 = vld [vmem:[%s12 + $0x30] sm:$0xff]
    %v10869 = vld [vmem:[%s12 + $0x38] sm:$0xff]
    %v10870 = vadd.f32 %v10854, %v10862
    %v10871 = vadd.f32 %v10855, %v10863
    %v10872 = vadd.f32 %v10856, %v10864
    %v10873 = vadd.f32 %v10857, %v10865
    %v10874 = vadd.f32 %v10858, %v10866
    %v10875 = vadd.f32 %v10859, %v10867
    %v10876 = vadd.f32 %v10860, %v10868
    %v10877 = vadd.f32 %v10861, %v10869
    %v10878 = vsel %vm9915, %v10870, -inf
    %10879 = vmax.xlane.f32.xlu0 %v10878
    %v10880 = vpop.xlane.xlu0 %10879
    %v10881 = vsel %vm9915, %v10871, -inf
    %10882 = vmax.xlane.f32.xlu0 %v10881
    %v10883 = vpop.xlane.xlu0 %10882
    %v10884 = vsel %vm9915, %v10872, -inf
    %10885 = vmax.xlane.f32.xlu0 %v10884
    %v10886 = vpop.xlane.xlu0 %10885
    %v10887 = vsel %vm9915, %v10873, -inf
    %10888 = vmax.xlane.f32.xlu0 %v10887
    %v10889 = vpop.xlane.xlu0 %10888
    %v10890 = vsel %vm9915, %v10874, -inf
    %10891 = vmax.xlane.f32.xlu0 %v10890
    %v10892 = vpop.xlane.xlu0 %10891
    %v10893 = vsel %vm9915, %v10875, -inf
    %10894 = vmax.xlane.f32.xlu0 %v10893
    %v10895 = vpop.xlane.xlu0 %10894
    %v10896 = vsel %vm9915, %v10876, -inf
    %10897 = vmax.xlane.f32.xlu0 %v10896
    %v10898 = vpop.xlane.xlu0 %10897
    %v10899 = vsel %vm9915, %v10877, -inf
    %10900 = vmax.xlane.f32.xlu0 %v10899
    %v10901 = vpop.xlane.xlu0 %10900
    %v10902 = vsub.f32 %v10870, %v10880
    %v10903 = vsub.f32 %v10871, %v10883
    %v10904 = vsub.f32 %v10872, %v10886
    %v10905 = vsub.f32 %v10873, %v10889
    %v10906 = vsub.f32 %v10874, %v10892
    %v10907 = vsub.f32 %v10875, %v10895
    %v10908 = vsub.f32 %v10876, %v10898
    %v10909 = vsub.f32 %v10877, %v10901
    %v10910 = vmul.f32 %v10902, 1.442695
    %v10911 = vpow.pop %v10910
    %v10912 = vmul.f32 %v10903, 1.442695
    %v10913 = vpow.pop %v10912
    %v10914 = vmul.f32 %v10904, 1.442695
    %v10915 = vpow.pop %v10914
    %v10916 = vmul.f32 %v10905, 1.442695
    %v10917 = vpow.pop %v10916
    %v10918 = vmul.f32 %v10906, 1.442695
    %v10919 = vpow.pop %v10918
    %v10920 = vmul.f32 %v10907, 1.442695
    %v10921 = vpow.pop %v10920
    %v10922 = vmul.f32 %v10908, 1.442695
    %v10923 = vpow.pop %v10922
    %v10924 = vmul.f32 %v10909, 1.442695
    %v10925 = vpow.pop %v10924
    %v10926 = vsel %vm9915, %v10911, 0.0
    %10927 = vadd.xlane.f32.xlu0 %v10926
    %v10928 = vpop.xlane.xlu0 %10927
    %v10929 = vsel %vm9915, %v10913, 0.0
    %10930 = vadd.xlane.f32.xlu0 %v10929
    %v10931 = vpop.xlane.xlu0 %10930
    %v10932 = vsel %vm9915, %v10915, 0.0
    %10933 = vadd.xlane.f32.xlu0 %v10932
    %v10934 = vpop.xlane.xlu0 %10933
    %v10935 = vsel %vm9915, %v10917, 0.0
    %10936 = vadd.xlane.f32.xlu0 %v10935
    %v10937 = vpop.xlane.xlu0 %10936
    %v10938 = vsel %vm9915, %v10919, 0.0
    %10939 = vadd.xlane.f32.xlu0 %v10938
    %v10940 = vpop.xlane.xlu0 %10939
    %v10941 = vsel %vm9915, %v10921, 0.0
    %10942 = vadd.xlane.f32.xlu0 %v10941
    %v10943 = vpop.xlane.xlu0 %10942
    %v10944 = vsel %vm9915, %v10923, 0.0
    %10945 = vadd.xlane.f32.xlu0 %v10944
    %v10946 = vpop.xlane.xlu0 %10945
    %v10947 = vsel %vm9915, %v10925, 0.0
    %10948 = vadd.xlane.f32.xlu0 %v10947
    %v10949 = vpop.xlane.xlu0 %10948
    %v10950 = vrcp.pop %v10928
    %v10951 = vrcp.pop %v10931
    %v10952 = vrcp.pop %v10934
    %v10953 = vrcp.pop %v10937
    %v10954 = vrcp.pop %v10940
    %v10955 = vrcp.pop %v10943
    %v10956 = vrcp.pop %v10946
    %v10957 = vrcp.pop %v10949
    %v10958 = vmul.f32 %v10911, %v10950
    %v10959 = vmul.f32 %v10913, %v10951
    %v10960 = vmul.f32 %v10915, %v10952
    %v10961 = vmul.f32 %v10917, %v10953
    %v10962 = vmul.f32 %v10919, %v10954
    %v10963 = vmul.f32 %v10921, %v10955
    %v10964 = vmul.f32 %v10923, %v10956
    %v10965 = vmul.f32 %v10925, %v10957
    %10966 = vrot.lane.b32.xlu0 %v10734, 96
    %v10967 = vpop.permute.xlu0 %10966
    %10968 = vrot.lane.b32.xlu0 %v10737, 96
    %v10969 = vpop.permute.xlu0 %10968
    %10970 = vrot.lane.b32.xlu0 %v10740, 96
    %v10971 = vpop.permute.xlu0 %10970
    %10972 = vrot.lane.b32.xlu0 %v10743, 96
    %v10973 = vpop.permute.xlu0 %10972
    %10974 = vrot.lane.b32.xlu0 %v10746, 96
    %v10975 = vpop.permute.xlu0 %10974
    %10976 = vrot.lane.b32.xlu0 %v10749, 96
    %v10977 = vpop.permute.xlu0 %10976
    %10978 = vrot.lane.b32.xlu0 %v10752, 96
    %v10979 = vpop.permute.xlu0 %10978
    %10980 = vrot.lane.b32.xlu0 %v10755, 96
    %v10981 = vpop.permute.xlu0 %10980
    %v10991 = vsel %vm9915, %v10958, 0
    %v10994 = vsel %vm9915, %v10959, 0
    %v10997 = vsel %vm9915, %v10960, 0
    %v11000 = vsel %vm9915, %v10961, 0
    %v11003 = vsel %vm9915, %v10962, 0
    %v11006 = vsel %vm9915, %v10963, 0
    %v11009 = vsel %vm9915, %v10964, 0
    %v11012 = vsel %vm9915, %v10965, 0
    %11014 = vmatpush.msra.mxu0 0.0
    %11015 = vmatpush.msra.mxu0 0.0
    %11016 = vmatpush.msra.mxu0 0.0
    %11017 = vmatpush.msra.mxu0 0.0
    %11018 = vmatpush.msra.mxu0 0.0
    %11019 = vmatpush.msra.mxu0 0.0
    %11020 = vmatpush.msra.mxu0 0.0
    %11021 = vmatpush.msra.mxu0 0.0
    %11022 = vmatpush.msra.mxu0 %v10981
    %11023 = vmatpush.msra.mxu0 %v10979
    %11024 = vmatpush.msra.mxu0 %v10977
    %11025 = vmatpush.msra.mxu0 %v10975
    %11026 = vmatpush.msra.mxu0 %v10973
    %11027 = vmatpush.msra.mxu0 %v10971
    %11028 = vmatpush.msra.mxu0 %v10969
    %11029 = vmatpush.msra.mxu0 %v10967
    %11030 = vmatmul.f32.gmra.mxu0 %v10991
    %v11031 = vpop.f32.mrf.mxu0
    %v11032 = vadd.f32 0.0, %v11031
    %11033 = vmatmul.f32.gmra.mxu0 %v10994
    %v11034 = vpop.f32.mrf.mxu0
    %v11035 = vadd.f32 0.0, %v11034
    %11036 = vmatmul.f32.gmra.mxu0 %v10997
    %v11037 = vpop.f32.mrf.mxu0
    %v11038 = vadd.f32 0.0, %v11037
    %11039 = vmatmul.f32.gmra.mxu0 %v11000
    %v11040 = vpop.f32.mrf.mxu0
    %v11041 = vadd.f32 0.0, %v11040
    %11042 = vmatmul.f32.gmra.mxu0 %v11003
    %v11043 = vpop.f32.mrf.mxu0
    %v11044 = vadd.f32 0.0, %v11043
    %11045 = vmatmul.f32.gmra.mxu0 %v11006
    %v11046 = vpop.f32.mrf.mxu0
    %v11047 = vadd.f32 0.0, %v11046
    %11048 = vmatmul.f32.gmra.mxu0 %v11009
    %v11049 = vpop.f32.mrf.mxu0
    %v11050 = vadd.f32 0.0, %v11049
    %11051 = vmatmul.f32.gmra.mxu0 %v11012
    %v11052 = vpop.f32.mrf.mxu0
    %v11053 = vadd.f32 0.0, %v11052
    %11054 = vdwg.mxu0
    %v11055 = vld [vmem:[%s13] sm:$0xff]
    %v11056 = vld [vmem:[%s13 + $0x8] sm:$0xff]
    %v11057 = vld [vmem:[%s13 + $0x10] sm:$0xff]
    %v11058 = vld [vmem:[%s13 + $0x18] sm:$0xff]
    %v11059 = vld [vmem:[%s13 + $0x20] sm:$0xff]
    %v11060 = vld [vmem:[%s13 + $0x28] sm:$0xff]
    %v11061 = vld [vmem:[%s13 + $0x30] sm:$0xff]
    %v11062 = vld [vmem:[%s13 + $0x38] sm:$0xff]
    %v11064 = vsel %vm6136, %v11032, 0
    %v11067 = vsel %vm6136, %v11035, 0
    %v11070 = vsel %vm6136, %v11038, 0
    %v11073 = vsel %vm6136, %v11041, 0
    %v11076 = vsel %vm6136, %v11044, 0
    %v11079 = vsel %vm6136, %v11047, 0
    %v11082 = vsel %vm6136, %v11050, 0
    %v11085 = vsel %vm6136, %v11053, 0
    %11087 = vmatpush.msra.mxu0 0.0
    %11088 = vmatpush.msra.mxu0 0.0
    %11089 = vmatpush.msra.mxu0 0.0
    %11090 = vmatpush.msra.mxu0 0.0
    %11091 = vmatpush.msra.mxu0 0.0
    %11092 = vmatpush.msra.mxu0 0.0
    %11093 = vmatpush.msra.mxu0 0.0
    %11094 = vmatpush.msra.mxu0 0.0
    %11095 = vmatpush.msra.mxu0 0.0
    %11096 = vmatpush.msra.mxu0 0.0
    %11097 = vmatpush.msra.mxu0 0.0
    %11098 = vmatpush.msra.mxu0 0.0
    %11099 = vmatpush.msra.mxu0 0.0
    %11100 = vmatpush.msra.mxu0 0.0
    %11101 = vmatpush.msra.mxu0 %v11059
    %11102 = vmatpush.msra.mxu0 %v11055
    %11103 = vmatmul.f32.gmra.mxu0 %v11064
    %v11104 = vpop.f32.mrf.mxu0
    %v11105 = vadd.f32 0.0, %v11104
    %11106 = vmatmul.f32.gmra.mxu0 %v11067
    %v11107 = vpop.f32.mrf.mxu0
    %v11108 = vadd.f32 0.0, %v11107
    %11109 = vmatmul.f32.gmra.mxu0 %v11070
    %v11110 = vpop.f32.mrf.mxu0
    %v11111 = vadd.f32 0.0, %v11110
    %11112 = vmatmul.f32.gmra.mxu0 %v11073
    %v11113 = vpop.f32.mrf.mxu0
    %v11114 = vadd.f32 0.0, %v11113
    %11115 = vmatmul.f32.gmra.mxu0 %v11076
    %v11116 = vpop.f32.mrf.mxu0
    %v11117 = vadd.f32 0.0, %v11116
    %11118 = vmatmul.f32.gmra.mxu0 %v11079
    %v11119 = vpop.f32.mrf.mxu0
    %v11120 = vadd.f32 0.0, %v11119
    %11121 = vmatmul.f32.gmra.mxu0 %v11082
    %v11122 = vpop.f32.mrf.mxu0
    %v11123 = vadd.f32 0.0, %v11122
    %11124 = vmatmul.f32.gmra.mxu0 %v11085
    %v11125 = vpop.f32.mrf.mxu0
    %v11126 = vadd.f32 0.0, %v11125
    %11127 = vdwg.mxu0
    %11128 = vmatpush.msra.mxu0 0.0
    %11129 = vmatpush.msra.mxu0 0.0
    %11130 = vmatpush.msra.mxu0 0.0
    %11131 = vmatpush.msra.mxu0 0.0
    %11132 = vmatpush.msra.mxu0 0.0
    %11133 = vmatpush.msra.mxu0 0.0
    %11134 = vmatpush.msra.mxu0 0.0
    %11135 = vmatpush.msra.mxu0 0.0
    %11136 = vmatpush.msra.mxu0 0.0
    %11137 = vmatpush.msra.mxu0 0.0
    %11138 = vmatpush.msra.mxu0 0.0
    %11139 = vmatpush.msra.mxu0 0.0
    %11140 = vmatpush.msra.mxu0 0.0
    %11141 = vmatpush.msra.mxu0 0.0
    %11142 = vmatpush.msra.mxu0 %v11060
    %11143 = vmatpush.msra.mxu0 %v11056
    %11144 = vmatmul.f32.gmra.mxu0 %v11064
    %v11145 = vpop.f32.mrf.mxu0
    %v11146 = vadd.f32 0.0, %v11145
    %11147 = vmatmul.f32.gmra.mxu0 %v11067
    %v11148 = vpop.f32.mrf.mxu0
    %v11149 = vadd.f32 0.0, %v11148
    %11150 = vmatmul.f32.gmra.mxu0 %v11070
    %v11151 = vpop.f32.mrf.mxu0
    %v11152 = vadd.f32 0.0, %v11151
    %11153 = vmatmul.f32.gmra.mxu0 %v11073
    %v11154 = vpop.f32.mrf.mxu0
    %v11155 = vadd.f32 0.0, %v11154
    %11156 = vmatmul.f32.gmra.mxu0 %v11076
    %v11157 = vpop.f32.mrf.mxu0
    %v11158 = vadd.f32 0.0, %v11157
    %11159 = vmatmul.f32.gmra.mxu0 %v11079
    %v11160 = vpop.f32.mrf.mxu0
    %v11161 = vadd.f32 0.0, %v11160
    %11162 = vmatmul.f32.gmra.mxu0 %v11082
    %v11163 = vpop.f32.mrf.mxu0
    %v11164 = vadd.f32 0.0, %v11163
    %11165 = vmatmul.f32.gmra.mxu0 %v11085
    %v11166 = vpop.f32.mrf.mxu0
    %v11167 = vadd.f32 0.0, %v11166
    %11168 = vdwg.mxu0
    %11169 = vmatpush.msra.mxu0 0.0
    %11170 = vmatpush.msra.mxu0 0.0
    %11171 = vmatpush.msra.mxu0 0.0
    %11172 = vmatpush.msra.mxu0 0.0
    %11173 = vmatpush.msra.mxu0 0.0
    %11174 = vmatpush.msra.mxu0 0.0
    %11175 = vmatpush.msra.mxu0 0.0
    %11176 = vmatpush.msra.mxu0 0.0
    %11177 = vmatpush.msra.mxu0 0.0
    %11178 = vmatpush.msra.mxu0 0.0
    %11179 = vmatpush.msra.mxu0 0.0
    %11180 = vmatpush.msra.mxu0 0.0
    %11181 = vmatpush.msra.mxu0 0.0
    %11182 = vmatpush.msra.mxu0 0.0
    %11183 = vmatpush.msra.mxu0 %v11061
    %11184 = vmatpush.msra.mxu0 %v11057
    %11185 = vmatmul.f32.gmra.mxu0 %v11064
    %v11186 = vpop.f32.mrf.mxu0
    %v11187 = vadd.f32 0.0, %v11186
    %11188 = vmatmul.f32.gmra.mxu0 %v11067
    %v11189 = vpop.f32.mrf.mxu0
    %v11190 = vadd.f32 0.0, %v11189
    %11191 = vmatmul.f32.gmra.mxu0 %v11070
    %v11192 = vpop.f32.mrf.mxu0
    %v11193 = vadd.f32 0.0, %v11192
    %11194 = vmatmul.f32.gmra.mxu0 %v11073
    %v11195 = vpop.f32.mrf.mxu0
    %v11196 = vadd.f32 0.0, %v11195
    %11197 = vmatmul.f32.gmra.mxu0 %v11076
    %v11198 = vpop.f32.mrf.mxu0
    %v11199 = vadd.f32 0.0, %v11198
    %11200 = vmatmul.f32.gmra.mxu0 %v11079
    %v11201 = vpop.f32.mrf.mxu0
    %v11202 = vadd.f32 0.0, %v11201
    %11203 = vmatmul.f32.gmra.mxu0 %v11082
    %v11204 = vpop.f32.mrf.mxu0
    %v11205 = vadd.f32 0.0, %v11204
    %11206 = vmatmul.f32.gmra.mxu0 %v11085
    %v11207 = vpop.f32.mrf.mxu0
    %v11208 = vadd.f32 0.0, %v11207
    %11209 = vdwg.mxu0
    %11210 = vmatpush.msra.mxu0 0.0
    %11211 = vmatpush.msra.mxu0 0.0
    %11212 = vmatpush.msra.mxu0 0.0
    %11213 = vmatpush.msra.mxu0 0.0
    %11214 = vmatpush.msra.mxu0 0.0
    %11215 = vmatpush.msra.mxu0 0.0
    %11216 = vmatpush.msra.mxu0 0.0
    %11217 = vmatpush.msra.mxu0 0.0
    %11218 = vmatpush.msra.mxu0 0.0
    %11219 = vmatpush.msra.mxu0 0.0
    %11220 = vmatpush.msra.mxu0 0.0
    %11221 = vmatpush.msra.mxu0 0.0
    %11222 = vmatpush.msra.mxu0 0.0
    %11223 = vmatpush.msra.mxu0 0.0
    %11224 = vmatpush.msra.mxu0 %v11062
    %11225 = vmatpush.msra.mxu0 %v11058
    %11226 = vmatmul.f32.gmra.mxu0 %v11064
    %v11227 = vpop.f32.mrf.mxu0
    %v11228 = vadd.f32 0.0, %v11227
    %11229 = vmatmul.f32.gmra.mxu0 %v11067
    %v11230 = vpop.f32.mrf.mxu0
    %v11231 = vadd.f32 0.0, %v11230
    %11232 = vmatmul.f32.gmra.mxu0 %v11070
    %v11233 = vpop.f32.mrf.mxu0
    %v11234 = vadd.f32 0.0, %v11233
    %11235 = vmatmul.f32.gmra.mxu0 %v11073
    %v11236 = vpop.f32.mrf.mxu0
    %v11237 = vadd.f32 0.0, %v11236
    %11238 = vmatmul.f32.gmra.mxu0 %v11076
    %v11239 = vpop.f32.mrf.mxu0
    %v11240 = vadd.f32 0.0, %v11239
    %11241 = vmatmul.f32.gmra.mxu0 %v11079
    %v11242 = vpop.f32.mrf.mxu0
    %v11243 = vadd.f32 0.0, %v11242
    %11244 = vmatmul.f32.gmra.mxu0 %v11082
    %v11245 = vpop.f32.mrf.mxu0
    %v11246 = vadd.f32 0.0, %v11245
    %11247 = vmatmul.f32.gmra.mxu0 %v11085
    %v11248 = vpop.f32.mrf.mxu0
    %v11249 = vadd.f32 0.0, %v11248
    %11250 = vdwg.mxu0
    %v11251 = vld [vmem:[%s14] sm:$0xff]
    %v11252 = vld [vmem:[%s14 + $0x8] sm:$0xff]
    %v11253 = vld [vmem:[%s14 + $0x10] sm:$0xff]
    %v11254 = vld [vmem:[%s14 + $0x18] sm:$0xff]
    %v11255 = vld [vmem:[%s14 + $0x20] sm:$0xff]
    %v11256 = vld [vmem:[%s14 + $0x28] sm:$0xff]
    %v11257 = vld [vmem:[%s14 + $0x30] sm:$0xff]
    %v11258 = vld [vmem:[%s14 + $0x38] sm:$0xff]
    %v11259 = vld [vmem:[%s14 + $0x40] sm:$0xff]
    %v11260 = vld [vmem:[%s14 + $0x48] sm:$0xff]
    %v11261 = vld [vmem:[%s14 + $0x50] sm:$0xff]
    %v11262 = vld [vmem:[%s14 + $0x58] sm:$0xff]
    %v11263 = vld [vmem:[%s14 + $0x60] sm:$0xff]
    %v11264 = vld [vmem:[%s14 + $0x68] sm:$0xff]
    %v11265 = vld [vmem:[%s14 + $0x70] sm:$0xff]
    %v11266 = vld [vmem:[%s14 + $0x78] sm:$0xff]
    %v11267 = vld [vmem:[%s14 + $0x80] sm:$0xff]
    %v11268 = vld [vmem:[%s14 + $0x88] sm:$0xff]
    %v11269 = vld [vmem:[%s14 + $0x90] sm:$0xff]
    %v11270 = vld [vmem:[%s14 + $0x98] sm:$0xff]
    %v11271 = vld [vmem:[%s14 + $0xa0] sm:$0xff]
    %v11272 = vld [vmem:[%s14 + $0xa8] sm:$0xff]
    %v11273 = vld [vmem:[%s14 + $0xb0] sm:$0xff]
    %v11274 = vld [vmem:[%s14 + $0xb8] sm:$0xff]
    %v11275 = vld [vmem:[%s14 + $0xc0] sm:$0xff]
    %v11276 = vld [vmem:[%s14 + $0xc8] sm:$0xff]
    %v11277 = vld [vmem:[%s14 + $0xd0] sm:$0xff]
    %v11278 = vld [vmem:[%s14 + $0xd8] sm:$0xff]
    %v11279 = vld [vmem:[%s14 + $0xe0] sm:$0xff]
    %v11280 = vld [vmem:[%s14 + $0xe8] sm:$0xff]
    %v11281 = vld [vmem:[%s14 + $0xf0] sm:$0xff]
    %v11282 = vld [vmem:[%s14 + $0xf8] sm:$0xff]
    %v11283 = vmul.f32 %v11105, %v11251
    %v11284 = vmul.f32 %v11146, %v11252
    %v11285 = vmul.f32 %v11187, %v11253
    %v11286 = vmul.f32 %v11228, %v11254
    %v11287 = vmul.f32 %v11108, %v11255
    %v11288 = vmul.f32 %v11149, %v11256
    %v11289 = vmul.f32 %v11190, %v11257
    %v11290 = vmul.f32 %v11231, %v11258
    %v11291 = vmul.f32 %v11111, %v11259
    %v11292 = vmul.f32 %v11152, %v11260
    %v11293 = vmul.f32 %v11193, %v11261
    %v11294 = vmul.f32 %v11234, %v11262
    %v11295 = vmul.f32 %v11114, %v11263
    %v11296 = vmul.f32 %v11155, %v11264
    %v11297 = vmul.f32 %v11196, %v11265
    %v11298 = vmul.f32 %v11237, %v11266
    %v11299 = vmul.f32 %v11117, %v11267
    %v11300 = vmul.f32 %v11158, %v11268
    %v11301 = vmul.f32 %v11199, %v11269
    %v11302 = vmul.f32 %v11240, %v11270
    %v11303 = vmul.f32 %v11120, %v11271
    %v11304 = vmul.f32 %v11161, %v11272
    %v11305 = vmul.f32 %v11202, %v11273
    %v11306 = vmul.f32 %v11243, %v11274
    %v11307 = vmul.f32 %v11123, %v11275
    %v11308 = vmul.f32 %v11164, %v11276
    %v11309 = vmul.f32 %v11205, %v11277
    %v11310 = vmul.f32 %v11246, %v11278
    %v11311 = vmul.f32 %v11126, %v11279
    %v11312 = vmul.f32 %v11167, %v11280
    %v11313 = vmul.f32 %v11208, %v11281
    %v11314 = vmul.f32 %v11249, %v11282
    %v11315 = vld [vmem:[%s10] sm:$0x3]
    %v11317 = vsel %vm9915, %v11315, 0
    %11319 = vmatpush.msra.mxu0 0.0
    %11320 = vmatpush.msra.mxu0 0.0
    %11321 = vmatpush.msra.mxu0 0.0
    %11322 = vmatpush.msra.mxu0 0.0
    %11323 = vmatpush.msra.mxu0 0.0
    %11324 = vmatpush.msra.mxu0 0.0
    %11325 = vmatpush.msra.mxu0 0.0
    %11326 = vmatpush.msra.mxu0 0.0
    %11327 = vmatpush.msra.mxu0 %v11311
    %11328 = vmatpush.msra.mxu0 %v11307
    %11329 = vmatpush.msra.mxu0 %v11303
    %11330 = vmatpush.msra.mxu0 %v11299
    %11331 = vmatpush.msra.mxu0 %v11295
    %11332 = vmatpush.msra.mxu0 %v11291
    %11333 = vmatpush.msra.mxu0 %v11287
    %11334 = vmatpush.msra.mxu0 %v11283
    %11335 = vmatmul.f32.gmra.mxu0 %v11317
    %v11336 = vpop.f32.mrf.mxu0
    %v11337 = vadd.f32 0.0, %v11336
    %11338 = vdwg.mxu0
    %11339 = vmatpush.msra.mxu0 0.0
    %11340 = vmatpush.msra.mxu0 0.0
    %11341 = vmatpush.msra.mxu0 0.0
    %11342 = vmatpush.msra.mxu0 0.0
    %11343 = vmatpush.msra.mxu0 0.0
    %11344 = vmatpush.msra.mxu0 0.0
    %11345 = vmatpush.msra.mxu0 0.0
    %11346 = vmatpush.msra.mxu0 0.0
    %11347 = vmatpush.msra.mxu0 %v11312
    %11348 = vmatpush.msra.mxu0 %v11308
    %11349 = vmatpush.msra.mxu0 %v11304
    %11350 = vmatpush.msra.mxu0 %v11300
    %11351 = vmatpush.msra.mxu0 %v11296
    %11352 = vmatpush.msra.mxu0 %v11292
    %11353 = vmatpush.msra.mxu0 %v11288
    %11354 = vmatpush.msra.mxu0 %v11284
    %11355 = vmatmul.f32.gmra.mxu0 %v11317
    %v11356 = vpop.f32.mrf.mxu0
    %v11357 = vadd.f32 0.0, %v11356
    %11358 = vdwg.mxu0
    %11359 = vmatpush.msra.mxu0 0.0
    %11360 = vmatpush.msra.mxu0 0.0
    %11361 = vmatpush.msra.mxu0 0.0
    %11362 = vmatpush.msra.mxu0 0.0
    %11363 = vmatpush.msra.mxu0 0.0
    %11364 = vmatpush.msra.mxu0 0.0
    %11365 = vmatpush.msra.mxu0 0.0
    %11366 = vmatpush.msra.mxu0 0.0
    %11367 = vmatpush.msra.mxu0 %v11313
    %11368 = vmatpush.msra.mxu0 %v11309
    %11369 = vmatpush.msra.mxu0 %v11305
    %11370 = vmatpush.msra.mxu0 %v11301
    %11371 = vmatpush.msra.mxu0 %v11297
    %11372 = vmatpush.msra.mxu0 %v11293
    %11373 = vmatpush.msra.mxu0 %v11289
    %11374 = vmatpush.msra.mxu0 %v11285
    %11375 = vmatmul.f32.gmra.mxu0 %v11317
    %v11376 = vpop.f32.mrf.mxu0
    %v11377 = vadd.f32 0.0, %v11376
    %11378 = vdwg.mxu0
    %11379 = vmatpush.msra.mxu0 0.0
    %11380 = vmatpush.msra.mxu0 0.0
    %11381 = vmatpush.msra.mxu0 0.0
    %11382 = vmatpush.msra.mxu0 0.0
    %11383 = vmatpush.msra.mxu0 0.0
    %11384 = vmatpush.msra.mxu0 0.0
    %11385 = vmatpush.msra.mxu0 0.0
    %11386 = vmatpush.msra.mxu0 0.0
    %11387 = vmatpush.msra.mxu0 %v11314
    %11388 = vmatpush.msra.mxu0 %v11310
    %11389 = vmatpush.msra.mxu0 %v11306
    %11390 = vmatpush.msra.mxu0 %v11302
    %11391 = vmatpush.msra.mxu0 %v11298
    %11392 = vmatpush.msra.mxu0 %v11294
    %11393 = vmatpush.msra.mxu0 %v11290
    %11394 = vmatpush.msra.mxu0 %v11286
    %11395 = vmatmul.f32.gmra.mxu0 %v11317
    %v11396 = vpop.f32.mrf.mxu0
    %v11397 = vadd.f32 0.0, %v11396
    %11398 = vdwg.mxu0
    %v11399 = vld [vmem:[%s6] sm:$0xff]
    %v11400 = vld [vmem:[%s6 + $0x8] sm:$0xff]
    %v11401 = vld [vmem:[%s6 + $0x10] sm:$0xff]
    %v11402 = vld [vmem:[%s6 + $0x18] sm:$0xff]
    %v11403 = vld [vmem:[%s6 + $0x20] sm:$0xff]
    %v11404 = vld [vmem:[%s6 + $0x28] sm:$0xff]
    %v11405 = vld [vmem:[%s6 + $0x30] sm:$0xff]
    %v11406 = vld [vmem:[%s6 + $0x38] sm:$0xff]
    %v11407 = vld [vmem:[%s6 + $0x40] sm:$0xff]
    %v11408 = vld [vmem:[%s6 + $0x48] sm:$0xff]
    %v11409 = vld [vmem:[%s6 + $0x50] sm:$0xff]
    %v11410 = vld [vmem:[%s6 + $0x58] sm:$0xff]
    %v11411 = vld [vmem:[%s6 + $0x60] sm:$0xff]
    %v11412 = vld [vmem:[%s6 + $0x68] sm:$0xff]
    %v11413 = vld [vmem:[%s6 + $0x70] sm:$0xff]
    %v11414 = vld [vmem:[%s6 + $0x78] sm:$0xff]
    %v11415 = vld [vmem:[%s6 + $0x80] sm:$0xff]
    %v11416 = vld [vmem:[%s6 + $0x88] sm:$0xff]
    %v11417 = vld [vmem:[%s6 + $0x90] sm:$0xff]
    %v11418 = vld [vmem:[%s6 + $0x98] sm:$0xff]
    %v11419 = vld [vmem:[%s6 + $0xa0] sm:$0xff]
    %v11420 = vld [vmem:[%s6 + $0xa8] sm:$0xff]
    %v11421 = vld [vmem:[%s6 + $0xb0] sm:$0xff]
    %v11422 = vld [vmem:[%s6 + $0xb8] sm:$0xff]
    %v11423 = vld [vmem:[%s6 + $0xc0] sm:$0xff]
    %v11424 = vld [vmem:[%s6 + $0xc8] sm:$0xff]
    %v11425 = vld [vmem:[%s6 + $0xd0] sm:$0xff]
    %v11426 = vld [vmem:[%s6 + $0xd8] sm:$0xff]
    %v11427 = vld [vmem:[%s6 + $0xe0] sm:$0xff]
    %v11428 = vld [vmem:[%s6 + $0xe8] sm:$0xff]
    %v11429 = vld [vmem:[%s6 + $0xf0] sm:$0xff]
    %v11430 = vld [vmem:[%s6 + $0xf8] sm:$0xff]
    %v11431 = vld [vmem:[%s6 + $0x100] sm:$0xff]
    %v11432 = vld [vmem:[%s6 + $0x108] sm:$0xff]
    %v11433 = vld [vmem:[%s6 + $0x110] sm:$0xff]
    %v11434 = vld [vmem:[%s6 + $0x118] sm:$0xff]
    %v11435 = vld [vmem:[%s6 + $0x120] sm:$0xff]
    %v11436 = vld [vmem:[%s6 + $0x128] sm:$0xff]
    %v11437 = vld [vmem:[%s6 + $0x130] sm:$0xff]
    %v11438 = vld [vmem:[%s6 + $0x138] sm:$0xff]
    %v11439 = vld [vmem:[%s6 + $0x140] sm:$0xff]
    %v11440 = vld [vmem:[%s6 + $0x148] sm:$0xff]
    %v11441 = vld [vmem:[%s6 + $0x150] sm:$0xff]
    %v11442 = vld [vmem:[%s6 + $0x158] sm:$0xff]
    %v11443 = vld [vmem:[%s6 + $0x160] sm:$0xff]
    %v11444 = vld [vmem:[%s6 + $0x168] sm:$0xff]
    %v11445 = vld [vmem:[%s6 + $0x170] sm:$0xff]
    %v11446 = vld [vmem:[%s6 + $0x178] sm:$0xff]
    %v11447 = vld [vmem:[%s6 + $0x180] sm:$0xff]
    %v11448 = vld [vmem:[%s6 + $0x188] sm:$0xff]
    %v11449 = vld [vmem:[%s6 + $0x190] sm:$0xff]
    %v11450 = vld [vmem:[%s6 + $0x198] sm:$0xff]
    %v11451 = vld [vmem:[%s6 + $0x1a0] sm:$0xff]
    %v11452 = vld [vmem:[%s6 + $0x1a8] sm:$0xff]
    %v11453 = vld [vmem:[%s6 + $0x1b0] sm:$0xff]
    %v11454 = vld [vmem:[%s6 + $0x1b8] sm:$0xff]
    %v11455 = vld [vmem:[%s6 + $0x1c0] sm:$0xff]
    %v11456 = vld [vmem:[%s6 + $0x1c8] sm:$0xff]
    %v11457 = vld [vmem:[%s6 + $0x1d0] sm:$0xff]
    %v11458 = vld [vmem:[%s6 + $0x1d8] sm:$0xff]
    %v11459 = vld [vmem:[%s6 + $0x1e0] sm:$0xff]
    %v11460 = vld [vmem:[%s6 + $0x1e8] sm:$0xff]
    %v11461 = vld [vmem:[%s6 + $0x1f0] sm:$0xff]
    %v11462 = vld [vmem:[%s6 + $0x1f8] sm:$0xff]
    %v11463 = vld [vmem:[%s8 + $0x9] sm:$0x1]
    %v11464 = vperm.slane %v11463, 0
    %11465 = vmatpush.msra.mxu0 %v11414
    %11466 = vmatpush.msra.mxu0 %v11413
    %11467 = vmatpush.msra.mxu0 %v11412
    %11468 = vmatpush.msra.mxu0 %v11411
    %11469 = vmatpush.msra.mxu0 %v11410
    %11470 = vmatpush.msra.mxu0 %v11409
    %11471 = vmatpush.msra.mxu0 %v11408
    %11472 = vmatpush.msra.mxu0 %v11407
    %11473 = vmatpush.msra.mxu0 %v11406
    %11474 = vmatpush.msra.mxu0 %v11405
    %11475 = vmatpush.msra.mxu0 %v11404
    %11476 = vmatpush.msra.mxu0 %v11403
    %11477 = vmatpush.msra.mxu0 %v11402
    %11478 = vmatpush.msra.mxu0 %v11401
    %11479 = vmatpush.msra.mxu0 %v11400
    %11480 = vmatpush.msra.mxu0 %v11399
    %11481 = vmatmul.f32.gmra.mxu0 %v11337
    %v11482 = vpop.f32.mrf.mxu0
    %v11483 = vadd.f32 %v11464, %v11482
    %11484 = vdwg.mxu0
    %11485 = vmatpush.msra.mxu0 %v11430
    %11486 = vmatpush.msra.mxu0 %v11429
    %11487 = vmatpush.msra.mxu0 %v11428
    %11488 = vmatpush.msra.mxu0 %v11427
    %11489 = vmatpush.msra.mxu0 %v11426
    %11490 = vmatpush.msra.mxu0 %v11425
    %11491 = vmatpush.msra.mxu0 %v11424
    %11492 = vmatpush.msra.mxu0 %v11423
    %11493 = vmatpush.msra.mxu0 %v11422
    %11494 = vmatpush.msra.mxu0 %v11421
    %11495 = vmatpush.msra.mxu0 %v11420
    %11496 = vmatpush.msra.mxu0 %v11419
    %11497 = vmatpush.msra.mxu0 %v11418
    %11498 = vmatpush.msra.mxu0 %v11417
    %11499 = vmatpush.msra.mxu0 %v11416
    %11500 = vmatpush.msra.mxu0 %v11415
    %11501 = vmatmul.f32.gmra.mxu0 %v11357
    %v11502 = vpop.f32.mrf.mxu0
    %v11503 = vadd.f32 %v11483, %v11502
    %11504 = vdwg.mxu0
    %11505 = vmatpush.msra.mxu0 %v11446
    %11506 = vmatpush.msra.mxu0 %v11445
    %11507 = vmatpush.msra.mxu0 %v11444
    %11508 = vmatpush.msra.mxu0 %v11443
    %11509 = vmatpush.msra.mxu0 %v11442
    %11510 = vmatpush.msra.mxu0 %v11441
    %11511 = vmatpush.msra.mxu0 %v11440
    %11512 = vmatpush.msra.mxu0 %v11439
    %11513 = vmatpush.msra.mxu0 %v11438
    %11514 = vmatpush.msra.mxu0 %v11437
    %11515 = vmatpush.msra.mxu0 %v11436
    %11516 = vmatpush.msra.mxu0 %v11435
    %11517 = vmatpush.msra.mxu0 %v11434
    %11518 = vmatpush.msra.mxu0 %v11433
    %11519 = vmatpush.msra.mxu0 %v11432
    %11520 = vmatpush.msra.mxu0 %v11431
    %11521 = vmatmul.f32.gmra.mxu0 %v11377
    %v11522 = vpop.f32.mrf.mxu0
    %v11523 = vadd.f32 %v11503, %v11522
    %11524 = vdwg.mxu0
    %11525 = vmatpush.msra.mxu0 %v11462
    %11526 = vmatpush.msra.mxu0 %v11461
    %11527 = vmatpush.msra.mxu0 %v11460
    %11528 = vmatpush.msra.mxu0 %v11459
    %11529 = vmatpush.msra.mxu0 %v11458
    %11530 = vmatpush.msra.mxu0 %v11457
    %11531 = vmatpush.msra.mxu0 %v11456
    %11532 = vmatpush.msra.mxu0 %v11455
    %11533 = vmatpush.msra.mxu0 %v11454
    %11534 = vmatpush.msra.mxu0 %v11453
    %11535 = vmatpush.msra.mxu0 %v11452
    %11536 = vmatpush.msra.mxu0 %v11451
    %11537 = vmatpush.msra.mxu0 %v11450
    %11538 = vmatpush.msra.mxu0 %v11449
    %11539 = vmatpush.msra.mxu0 %v11448
    %11540 = vmatpush.msra.mxu0 %v11447
    %11541 = vmatmul.f32.gmra.mxu0 %v11397
    %v11542 = vpop.f32.mrf.mxu0
    %v11543 = vadd.f32 %v11523, %v11542
    %11544 = vdwg.mxu0
    %v11545 = vmax.f32 %v11543, 0.0
    %v11546 = vld [vmem:[%s7] sm:$0xff]
    %v11547 = vld [vmem:[%s7 + $0x8] sm:$0xff]
    %v11548 = vld [vmem:[%s7 + $0x10] sm:$0xff]
    %v11549 = vld [vmem:[%s7 + $0x18] sm:$0xff]
    %v11550 = vld [vmem:[%s8 + $0xa] sm:$0x1]
    %v11551 = vperm.slane %v11550, 0
    %v11553 = vsel %vm8945, %v11545, 0
    %11555 = vmatpush.msra.mxu0 0.0
    %11556 = vmatpush.msra.mxu0 0.0
    %11557 = vmatpush.msra.mxu0 0.0
    %11558 = vmatpush.msra.mxu0 0.0
    %11559 = vmatpush.msra.mxu0 0.0
    %11560 = vmatpush.msra.mxu0 0.0
    %11561 = vmatpush.msra.mxu0 0.0
    %11562 = vmatpush.msra.mxu0 0.0
    %11563 = vmatpush.msra.mxu0 0.0
    %11564 = vmatpush.msra.mxu0 0.0
    %11565 = vmatpush.msra.mxu0 0.0
    %11566 = vmatpush.msra.mxu0 0.0
    %11567 = vmatpush.msra.mxu0 %v11549
    %11568 = vmatpush.msra.mxu0 %v11548
    %11569 = vmatpush.msra.mxu0 %v11547
    %11570 = vmatpush.msra.mxu0 %v11546
    %11571 = vmatmul.f32.gmra.mxu0 %v11553
    %v11572 = vpop.f32.mrf.mxu0
    %v11573 = vadd.f32 %v11551, %v11572
    %11574 = vdwg.mxu0
    %vm11575 = vcmask 17408
    %11576 = vst.msk [vmem:[#allocation9] sm:$0x3] %vm11575, %v11573
    // Predicated region
    $region66: #{forward.1} parent=1 // pred_check
      _
    $region67: #{forward.1} parent=1 // pred_check_branch
      %11578 = sbr.rel (0) target = $region69
    $region68: #{forward.1} parent=1 // pred_region
      %11580 = vsyncadd [#allocation10], 0
      %s11582 = sshll.u32 [#allocation9], 4
      %s11583 = int_to_ptr.vmem [resolvable:$true] %s11582
      %s11584 = sshll.u32 %s15, 4
      %s11585 = int_to_ptr.hbm [resolvable:$true] %s11584
      %11587 = dma.vmem_to_hbm [thread:$0]  %s11583, 32, %s11585, [#allocation10]
    $region69: #{forward.1} parent=1 // pred_fallthru
      _
    // Predicated region
    $region70: #{forward.1} parent=1 // pred_check
      _
    $region71: #{forward.1} parent=1 // pred_check_branch
      %11589 = sbr.rel (0) target = $region73
    $region72: #{forward.1} parent=1 // pred_region
      %11591 = dma.done [#allocation10], 32
    $region73: #{forward.1} parent=1 // pred_fallthru
      _
    %11592 = vsyncpa [#allocation10], 1

</llo_original>
